<compile_context>
chip_gen: v5e
topology: v5e:2x2
jax: 0.10.0
libtpu: 0.0.40
codegen_flags: <defaults>
</compile_context>

<pallas_src>
from functools import partial

import numpy as np
import jax
import jax.numpy as jnp
from jax.experimental import pallas as pl
from jax.experimental.pallas import tpu as pltpu

# region name, joint start, joint end (matches the PyTorch module)
REGIONS = (
    ("right_hand", 0, 21),
    ("left_hand", 21, 42),
    ("lips", 42, 61),
    ("body", 61, 86),
)


# ----------------------------- math helpers --------------------------------
def _gelu(x):
    # tanh-form GELU (EUP tanh, cheap); |err| vs exact erf GELU < ~1e-3
    c0 = 0.7978845608028654  # sqrt(2/pi)
    return 0.5 * x * (1.0 + jnp.tanh(c0 * (x + 0.044715 * (x * x * x))))


def _gelu_exact(x):
    # exact erf GELU, used only in the pure-JAX (non-Pallas) reference
    return 0.5 * x * (1.0 + jax.lax.erf(x * 0.7071067811865476))


def _const_spec(shape):
    """Full-array BlockSpec with a constant block index (any grid rank)."""
    nd = len(shape)
    return pl.BlockSpec(shape, lambda *_, _nd=nd: (0,) * _nd)


# ------------------------------ Pallas kernels ------------------------------
def _region_kernel(x_ref, w1_ref, b1_ref, w2_ref, b2_ref,
                   gavg_ref, gamma_ref, beta_ref, out_ref):
    """Fused 4-region GCN encoder + projection + grouped LayerNorm + GELU.

    x_ref:    [bn, 172]      bf16 packed per-frame coords (all joints)
    w1_ref:   [172, 86*H]    bf16 block-diagonal GCN layer-1 weights
    w2_ref:   [86*H, 4*R]    bf16 block-diagonal fused (GCN layer-2 o proj)
    gavg_ref: [4*R, 4*R]     f32 block-diag averaging matrix (per-region mean)
    out_ref:  [bn, 4*R]      bf16 — single lane-dense store per tile.
    """
    f32 = jnp.float32
    h = jnp.dot(x_ref[...], w1_ref[...], preferred_element_type=f32) + b1_ref[...]
    h = jnp.maximum(h, 0.0).astype(jnp.bfloat16)
    y = jnp.dot(h, w2_ref[...], preferred_element_type=f32) + b2_ref[...]
    # grouped (per-region) LayerNorm via block-diag averaging matmuls (lane-dense,
    # f32 stats): mu and E[y^2] are broadcast back to every lane of their group.
    gavg = gavg_ref[...]
    mu = jnp.dot(y, gavg, preferred_element_type=f32)
    msq = jnp.dot(y * y, gavg, preferred_element_type=f32)
    var = msq - mu * mu
    yn = (y - mu) * jax.lax.rsqrt(var + 1e-5) * gamma_ref[...] + beta_ref[...]
    out_ref[...] = _gelu(yn).astype(out_ref.dtype)


def _temporal_kernel(x_ref, w1_ref, b1_ref, w2_ref, b2_ref, w3_ref, b3_ref,
                     wm_ref, bm_ref, wo_ref, bo_ref,
                     first_ref, second_ref, buf_ref):
    """temporal_pooling -> (mlp | second_temporal_pooling) -> out_proj,
    one sequence per grid step.

    x_ref:  [1, T, C] bf16 frame features of this sequence.
    w*_ref: [K, C, C] bf16 conv weights (W_k[cin, cout]).
    buf_ref: VMEM scratch [T + 4, C] bf16 used as a zero-padded window buffer;
    only halo rows are zeroed per conv (trailing halo re-zeroed since a longer
    earlier conv leaves stale rows there).  Boundary handling == Conv1d zero pad.
    Outputs are padded to a multiple of 128 classes for lane-dense stores.
    """
    f32, bf16 = jnp.float32, jnp.bfloat16
    x = x_ref[0]                           # [T, C] bf16
    t, c = x.shape

    def conv(inp_bf16, w_ref, b_ref, ksize):
        n = inp_bf16.shape[0]
        pad = (ksize - 1) // 2
        buf_ref[pl.ds(0, pad), :] = jnp.zeros((pad, c), bf16)          # leading halo
        buf_ref[pl.ds(pad + n, pad), :] = jnp.zeros((pad, c), bf16)    # trailing halo
        buf_ref[pl.ds(pad, n), :] = inp_bf16
        acc = jnp.zeros((n, c), f32)
        for k in range(ksize):                                          # shifted taps
            acc = acc + jnp.dot(buf_ref[pl.ds(k, n), :], w_ref[k],
                                preferred_element_type=f32)
        return _gelu(acc + b_ref[...])                                  # f32

    # temporal_pooling: Conv1d(k=5,p=2)+GELU+AvgPool(2,2), twice
    y = conv(x, w1_ref, b1_ref, 5)                                      # [T,   C]
    p1 = y.reshape(t // 2, 2, c).mean(axis=1).astype(bf16)              # [T/2, C]
    z = conv(p1, w2_ref, b2_ref, 5)                                     # [T/2, C]
    init_mem = z.reshape(t // 4, 2, c).mean(axis=1)                     # [T/4, C] f32
    im_bf = init_mem.astype(bf16)

    # first head: mlp (Linear + GELU) -> out_proj
    fm = _gelu(jnp.dot(im_bf, wm_ref[...], preferred_element_type=f32) + bm_ref[...])
    first_ref[0] = jnp.dot(fm.astype(bf16), wo_ref[...],
                           preferred_element_type=f32) + bo_ref[...]

    # second head: Conv1d(k=3,p=1)+GELU -> out_proj
    s = conv(im_bf, w3_ref, b3_ref, 3)                                  # [T/4, C]
    second_ref[0] = jnp.dot(s.astype(bf16), wo_ref[...],
                            preferred_element_type=f32) + bo_ref[...]


# --------------------------- weight preparation ------------------------------
def prepare_params(params, gnn_hidden, gnn_feat, region_feat, num_classes):
    """Fold the GCN structure into block-diagonal weights and cast to bf16.

    Called ONCE, outside the jitted per-call path.

    Per region r (exact linear-map composition):
      W1_blk[(j',c),(j,f)] = (j'==j)*Ws1[c,f] + Wn1[c,f]/Jr
      W2p[(j,h), r]        = (Ws2 @ Wp_j)[h,r] + (Wn2 @ sum_j Wp_j)[h,r]/Jr
      b2p                  = b2 @ sum_j Wp_j + bp
    The per-region blocks are assembled into block-diagonal W1/W2 so the whole
    region stage is two big-K MXU matmuls.
    """
    bf16, f32 = jnp.bfloat16, jnp.float32
    H, F, R = gnn_hidden, gnn_feat, region_feat
    jrs = [j1 - j0 for _, j0, j1 in REGIONS]
    in_tot = 2 * sum(jrs)                  # 172
    jh_tot = sum(jrs) * H
    d_model = R * len(REGIONS)

    w1 = jnp.zeros((in_tot, jh_tot), f32)
    b1 = jnp.zeros((1, jh_tot), f32)
    w2 = jnp.zeros((jh_tot, d_model), f32)
    b2 = jnp.zeros((1, d_model), f32)
    gamma = jnp.zeros((1, d_model), f32)
    beta = jnp.zeros((1, d_model), f32)
    gavg = jnp.zeros((d_model, d_model), f32)

    in_off = jh_off = 0
    for ridx, (name, j0, j1) in enumerate(REGIONS):
        rp = params["regions"][name]
        jr = j1 - j0
        eye = jnp.eye(jr, dtype=f32)
        avg = jnp.full((jr, jr), 1.0 / jr, f32)
        w1_blk = (jnp.einsum("ab,cf->acbf", eye, rp["ws1"])
                  + jnp.einsum("ab,cf->acbf", avg, rp["wn1"])
                  ).reshape(2 * jr, jr * H)
        b1_blk = jnp.tile(rp["b1"], (1, jr))                            # [1, Jr*H]
        wp3 = rp["wp2d"].reshape(jr, F, R)
        psum = wp3.sum(axis=0)                                          # [F, R]
        w2_blk = (jnp.einsum("hf,jfr->jhr", rp["ws2"], wp3)
                  + (rp["wn2"] @ psum)[None, :, :] / jr
                  ).reshape(jr * H, R)
        b2_blk = rp["b2"] @ psum + rp["bp"]                             # [1, R]

        r0 = ridx * R
        w1 = w1.at[in_off:in_off + 2 * jr, jh_off:jh_off + jr * H].set(w1_blk)
        b1 = b1.at[:, jh_off:jh_off + jr * H].set(b1_blk)
        w2 = w2.at[jh_off:jh_off + jr * H, r0:r0 + R].set(w2_blk)
        b2 = b2.at[:, r0:r0 + R].set(b2_blk)
        gamma = gamma.at[:, r0:r0 + R].set(rp["gamma"])
        beta = beta.at[:, r0:r0 + R].set(rp["beta"])
        gavg = gavg.at[r0:r0 + R, r0:r0 + R].set(jnp.full((R, R), 1.0 / R, f32))
        in_off += 2 * jr
        jh_off += jr * H

    # pad out_proj to a multiple of 128 classes for lane-dense logit stores
    ncp = ((num_classes + 127) // 128) * 128
    wo = jnp.zeros((d_model, ncp), f32).at[:, :num_classes].set(params["wo"])
    bo = jnp.zeros((1, ncp), f32).at[:, :num_classes].set(params["bo"])

    return dict(
        w1=w1.astype(bf16), b1=b1, w2=w2.astype(bf16), b2=b2,
        gavg=gavg, gamma=gamma, beta=beta,
        cw1=params["w1"].astype(bf16), cb1=params["b1c"],
        cw2=params["w2"].astype(bf16), cb2=params["b2c"],
        cw3=params["w3"].astype(bf16), cb3=params["b3c"],
        wm=params["wm"].astype(bf16), bm=params["bm"],
        wo=wo.astype(bf16), bo=bo)


# ------------------------------ pallas wrappers ------------------------------
def _region_stage(poses, prep):
    """All four region encoders in one pallas_call.  Returns [B*T, d_model] bf16."""
    b, t = poses.shape[0], poses.shape[1]
    n = b * t
    j2 = poses.shape[2] * poses.shape[3]                 # 172
    d_out = prep["gamma"].shape[-1]
    x = poses.reshape(n, j2).astype(jnp.bfloat16)        # packed per-frame coords

    bn = n
    for cand in (256, 128, 64, 32, 16, 8):               # frame tile (cap 256 for v7x VMEM)
        if n % cand == 0:
            bn = cand
            break

    args = (x, prep["w1"], prep["b1"], prep["w2"], prep["b2"],
            prep["gavg"], prep["gamma"], prep["beta"])
    in_specs = [pl.BlockSpec((bn, j2), lambda i: (i, 0))]
    in_specs += [_const_spec(a.shape) for a in args[1:]]

    return pl.pallas_call(
        _region_kernel,
        grid=(n // bn,),
        in_specs=in_specs,
        out_specs=pl.BlockSpec((bn, d_out), lambda i: (i, 0)),
        out_shape=jax.ShapeDtypeStruct((n, d_out), jnp.bfloat16),
        compiler_params=pltpu.CompilerParams(dimension_semantics=("parallel",)),
    )(*args)


def _temporal_stage(ff, prep, b, t, num_classes):
    """Temporal stage, one sequence per grid step (parallel over batch).

    Returns (first_logits, second_logits) each [B, T//4, num_classes]."""
    c = ff.shape[-1]
    ncp = prep["wo"].shape[-1]
    x = ff.reshape(b, t, c)                               # metadata reshape only

    args = (x, prep["cw1"], prep["cb1"], prep["cw2"], prep["cb2"],
            prep["cw3"], prep["cb3"], prep["wm"], prep["bm"],
            prep["wo"], prep["bo"])
    in_specs = [pl.BlockSpec((1, t, c), lambda i: (i, 0, 0))]
    in_specs += [_const_spec(a.shape) for a in args[1:]]
    out_sds = jax.ShapeDtypeStruct((b, t // 4, ncp), jnp.float32)
    out_spec = pl.BlockSpec((1, t // 4, ncp), lambda i: (i, 0, 0))

    first, second = pl.pallas_call(
        _temporal_kernel,
        grid=(b,),
        in_specs=in_specs,
        out_specs=(out_spec, out_spec),
        out_shape=(out_sds, out_sds),
        scratch_shapes=[pltpu.VMEM((t + 4, c), jnp.bfloat16)],
        compiler_params=pltpu.CompilerParams(dimension_semantics=("parallel",)),
    )(*args)

    return first[..., :num_classes], second[..., :num_classes]


@partial(jax.jit, static_argnames=("num_classes",))
def _forward_impl(poses, prep, *, num_classes):
    b, t = poses.shape[0], poses.shape[1]
    assert t % 4 == 0, "sequence length must be divisible by 4"
    ff = _region_stage(poses, prep)                       # [B*T, d_model] bf16
    first, second = _temporal_stage(ff, prep, b, t, num_classes)
    return second, first


def model_forward(poses, prep, num_classes, return_first_logits=False):
    second, first = _forward_impl(poses, prep, num_classes=num_classes)
    if return_first_logits:
        return second, first
    return second


# --------------------------- deterministic params ---------------------------
def init_params(key, gnn_hidden, gnn_feat, region_feat, d_model, num_classes):
    keys = iter(jax.random.split(key, 128))

    def nrm(shape, fan_in):
        return jax.random.normal(next(keys), shape, jnp.float32) / np.float32(np.sqrt(fan_in))

    params = {"regions": {}}
    for name, j0, j1 in REGIONS:
        jr = j1 - j0
        params["regions"][name] = dict(
            ws1=nrm((2, gnn_hidden), 2), wn1=nrm((2, gnn_hidden), 2),
            b1=nrm((1, gnn_hidden), gnn_hidden),
            ws2=nrm((gnn_hidden, gnn_feat), gnn_hidden),
            wn2=nrm((gnn_hidden, gnn_feat), gnn_hidden),
            b2=nrm((1, gnn_feat), gnn_feat),
            wp2d=nrm((jr * gnn_feat, region_feat), jr * gnn_feat),
            bp=nrm((1, region_feat), region_feat),
            gamma=jnp.ones((1, region_feat), jnp.float32),
            beta=jnp.zeros((1, region_feat), jnp.float32),
        )
    params.update(
        w1=nrm((5, d_model, d_model), 5 * d_model), b1c=nrm((1, d_model), d_model),
        w2=nrm((5, d_model, d_model), 5 * d_model), b2c=nrm((1, d_model), d_model),
        w3=nrm((3, d_model, d_model), 3 * d_model), b3c=nrm((1, d_model), d_model),
        wm=nrm((d_model, d_model), d_model), bm=nrm((1, d_model), d_model),
        wo=nrm((d_model, num_classes), d_model), bo=nrm((1, num_classes), d_model),
    )
    return params


# ----------------------- pure-JAX reference (for check) ---------------------
def reference_forward(poses, params, gnn_feat):
    b, t = poses.shape[0], poses.shape[1]
    feats = []
    for name, j0, j1 in REGIONS:
        rp = params["regions"][name]
        jr = j1 - j0
        x = poses[:, :, j0:j1, :]
        xm = jnp.mean(x, axis=2, keepdims=True)
        h = (jnp.einsum('btjc,cf->btjf', x, rp["ws1"])
             + jnp.einsum('btjc,cf->btjf', xm, rp["wn1"]) + rp["b1"])
        h = jnp.maximum(h, 0.0)
        hm = jnp.mean(h, axis=2, keepdims=True)
        g = (jnp.einsum('btjf,fo->btjo', h, rp["ws2"])
             + jnp.einsum('btjf,fo->btjo', hm, rp["wn2"]) + rp["b2"])
        flat = g.reshape(b, t, jr * gnn_feat)
        y = flat @ rp["wp2d"] + rp["bp"]
        mu = y.mean(-1, keepdims=True)
        var = ((y - mu) ** 2).mean(-1, keepdims=True)
        y = (y - mu) / jnp.sqrt(var + 1e-5) * rp["gamma"] + rp["beta"]
        feats.append(_gelu_exact(y))
    ff = jnp.concatenate(feats, axis=-1)

    def conv1d(x, w, bias, pad):
        k_size, t_len = w.shape[0], x.shape[1]
        xp = jnp.pad(x, ((0, 0), (pad, pad), (0, 0)))
        return sum(jnp.einsum('btc,cd->btd', xp[:, k:k + t_len, :], w[k])
                   for k in range(k_size)) + bias

    def avgpool2(x):
        bb, tt, cc = x.shape
        return x.reshape(bb, tt // 2, 2, cc).mean(axis=2)

    y = avgpool2(_gelu_exact(conv1d(ff, params["w1"], params["b1c"], 2)))
    init_memory = avgpool2(_gelu_exact(conv1d(y, params["w2"], params["b2c"], 2)))
    first_mem = _gelu_exact(init_memory @ params["wm"] + params["bm"])
    first_logits = first_mem @ params["wo"] + params["bo"]
    second_mem = _gelu_exact(conv1d(init_memory, params["w3"], params["b3c"], 1))
    second_logits = second_mem @ params["wo"] + params["bo"]
    return second_logits, first_logits


# ----------------------------------- main ------------------------------------
if __name__ == "__main__":
    B, T, J = 2, 8, 86                       # J fixed by the region definition
    GNN_HIDDEN, GNN_FEAT, REGION_FEAT, NUM_CLASSES = 32, 16, 64, 32
    D_MODEL = REGION_FEAT * len(REGIONS)     # 256

    root = jax.random.PRNGKey(0)
    pkey, dkey = jax.random.split(root)
    params = init_params(pkey, GNN_HIDDEN, GNN_FEAT, REGION_FEAT, D_MODEL, NUM_CLASSES)
    poses = jax.random.normal(dkey, (B, T, J, 2), jnp.float32)

    # Fold + cast weights ONCE, outside the jitted per-call path.
    prep = jax.block_until_ready(
        prepare_params(params, GNN_HIDDEN, GNN_FEAT, REGION_FEAT, NUM_CLASSES))

    second_logits, first_logits = model_forward(
        poses, prep, NUM_CLASSES, return_first_logits=True)
    second_logits, first_logits = jax.block_until_ready((second_logits, first_logits))

    assert second_logits.shape == (B, T // 4, NUM_CLASSES)
    assert first_logits.shape == (B, T // 4, NUM_CLASSES)

    ref_second, ref_first = reference_forward(poses, params, GNN_FEAT)

    # Tolerances are sized for bf16 MXU inputs (weights + activations, f32
    # accumulation), bf16 inter-stage features, and the tanh GELU used
    # in-kernel vs. the exact-f32/erf reference.  Genuine implementation bugs
    # produce O(1) errors and still trip both the element-wise guard and the
    # relative-L2 check.
    def check(name, got, want):
        got, want = np.asarray(got), np.asarray(want)
        np.testing.assert_allclose(got, want, rtol=1e-1, atol=1e-1)
        rel = np.linalg.norm(got - want) / max(np.linalg.norm(want), 1e-6)
        assert rel < 3e-2, f"{name}: relative L2 error {rel:.4f} too large"

    check("second_logits", second_logits, ref_second)
    check("first_logits", first_logits, ref_first)
    print("KERNEL_OK")
</pallas_src>

<mosaic_0001>
module attributes {stable_mosaic.version = 11 : i64} {
  func.func @_region_kernel(%arg0: i32, %arg1: memref<16x172xbf16, #tpu.memory_space<vmem>>, %arg2: memref<172x2752xbf16, #tpu.memory_space<vmem>>, %arg3: memref<1x2752xf32, #tpu.memory_space<vmem>>, %arg4: memref<2752x256xbf16, #tpu.memory_space<vmem>>, %arg5: memref<1x256xf32, #tpu.memory_space<vmem>>, %arg6: memref<256x256xf32, #tpu.memory_space<vmem>>, %arg7: memref<1x256xf32, #tpu.memory_space<vmem>>, %arg8: memref<1x256xf32, #tpu.memory_space<vmem>>, %arg9: memref<16x256xbf16, #tpu.memory_space<vmem>>) attributes {dimension_semantics = [#tpu.dimension_semantics<parallel>], iteration_bounds = array<i64: 1>, scalar_prefetch = 0 : i64, scratch_operands = 0 : i64, tpu.core_type = #tpu.core_type<tc>, window_params = [{transform_indices = @transform_0, window_bounds = array<i64: 16, 172>}, {pipeline_mode = #tpu.pipeline_mode<synchronous>, transform_indices = @transform_1, window_bounds = array<i64: 172, 2752>}, {pipeline_mode = #tpu.pipeline_mode<synchronous>, transform_indices = @transform_2, window_bounds = array<i64: 1, 2752>}, {pipeline_mode = #tpu.pipeline_mode<synchronous>, transform_indices = @transform_3, window_bounds = array<i64: 2752, 256>}, {pipeline_mode = #tpu.pipeline_mode<synchronous>, transform_indices = @transform_4, window_bounds = array<i64: 1, 256>}, {pipeline_mode = #tpu.pipeline_mode<synchronous>, transform_indices = @transform_5, window_bounds = array<i64: 256, 256>}, {pipeline_mode = #tpu.pipeline_mode<synchronous>, transform_indices = @transform_6, window_bounds = array<i64: 1, 256>}, {pipeline_mode = #tpu.pipeline_mode<synchronous>, transform_indices = @transform_7, window_bounds = array<i64: 1, 256>}, {transform_indices = @transform_8, window_bounds = array<i64: 16, 256>}]} {
    %c0 = arith.constant 0 : index
    %c0_0 = arith.constant 0 : index
    %0 = vector.load %arg1[%c0, %c0_0] : memref<16x172xbf16, #tpu.memory_space<vmem>>, vector<16x172xbf16>
    %c0_1 = arith.constant 0 : index
    %c0_2 = arith.constant 0 : index
    %1 = vector.load %arg2[%c0_1, %c0_2] : memref<172x2752xbf16, #tpu.memory_space<vmem>>, vector<172x2752xbf16>
    %cst = arith.constant dense<0.000000e+00> : vector<16x2752xf32>
    %2 = tpu.matmul %0, %1, %cst {dimension_numbers = #tpu.dot_dimension_numbers<[1], [0], [0], [1], [0, 0, 1, 1], [], []>} : vector<16x172xbf16>, vector<172x2752xbf16>, vector<16x2752xf32> -> vector<16x2752xf32>
    %c0_3 = arith.constant 0 : index
    %c0_4 = arith.constant 0 : index
    %3 = vector.load %arg3[%c0_3, %c0_4] : memref<1x2752xf32, #tpu.memory_space<vmem>>, vector<1x2752xf32>
    %4 = vector.broadcast %3 : vector<1x2752xf32> to vector<16x2752xf32>
    %5 = arith.addf %2, %4 : vector<16x2752xf32>
    %cst_5 = arith.constant 0.000000e+00 : f32
    %6 = vector.broadcast %cst_5 : f32 to vector<16x2752xf32>
    %7 = arith.maximumf %5, %6 : vector<16x2752xf32>
    %8 = arith.truncf %7 : vector<16x2752xf32> to vector<16x2752xbf16>
    %c0_6 = arith.constant 0 : index
    %c0_7 = arith.constant 0 : index
    %9 = vector.load %arg4[%c0_6, %c0_7] : memref<2752x256xbf16, #tpu.memory_space<vmem>>, vector<2752x256xbf16>
    %cst_8 = arith.constant dense<0.000000e+00> : vector<16x256xf32>
    %10 = tpu.matmul %8, %9, %cst_8 {dimension_numbers = #tpu.dot_dimension_numbers<[1], [0], [0], [1], [0, 0, 1, 1], [], []>} : vector<16x2752xbf16>, vector<2752x256xbf16>, vector<16x256xf32> -> vector<16x256xf32>
    %c0_9 = arith.constant 0 : index
    %c0_10 = arith.constant 0 : index
    %11 = vector.load %arg5[%c0_9, %c0_10] : memref<1x256xf32, #tpu.memory_space<vmem>>, vector<1x256xf32>
    %12 = vector.broadcast %11 : vector<1x256xf32> to vector<16x256xf32>
    %13 = arith.addf %10, %12 : vector<16x256xf32>
    %c0_11 = arith.constant 0 : index
    %c0_12 = arith.constant 0 : index
    %14 = vector.load %arg6[%c0_11, %c0_12] : memref<256x256xf32, #tpu.memory_space<vmem>>, vector<256x256xf32>
    %cst_13 = arith.constant dense<0.000000e+00> : vector<16x256xf32>
    %15 = tpu.matmul %13, %14, %cst_13 {dimension_numbers = #tpu.dot_dimension_numbers<[1], [0], [0], [1], [0, 0, 1, 1], [], []>} : vector<16x256xf32>, vector<256x256xf32>, vector<16x256xf32> -> vector<16x256xf32>
    %16 = arith.mulf %13, %13 : vector<16x256xf32>
    %cst_14 = arith.constant dense<0.000000e+00> : vector<16x256xf32>
    %17 = tpu.matmul %16, %14, %cst_14 {dimension_numbers = #tpu.dot_dimension_numbers<[1], [0], [0], [1], [0, 0, 1, 1], [], []>} : vector<16x256xf32>, vector<256x256xf32>, vector<16x256xf32> -> vector<16x256xf32>
    %18 = arith.mulf %15, %15 : vector<16x256xf32>
    %19 = arith.subf %17, %18 : vector<16x256xf32>
    %20 = arith.subf %13, %15 : vector<16x256xf32>
    %cst_15 = arith.constant 9.99999974E-6 : f32
    %21 = vector.broadcast %cst_15 : f32 to vector<16x256xf32>
    %22 = arith.addf %19, %21 : vector<16x256xf32>
    %23 = math.rsqrt %22 : vector<16x256xf32>
    %24 = arith.mulf %20, %23 : vector<16x256xf32>
    %c0_16 = arith.constant 0 : index
    %c0_17 = arith.constant 0 : index
    %25 = vector.load %arg7[%c0_16, %c0_17] : memref<1x256xf32, #tpu.memory_space<vmem>>, vector<1x256xf32>
    %26 = vector.broadcast %25 : vector<1x256xf32> to vector<16x256xf32>
    %27 = arith.mulf %24, %26 : vector<16x256xf32>
    %c0_18 = arith.constant 0 : index
    %c0_19 = arith.constant 0 : index
    %28 = vector.load %arg8[%c0_18, %c0_19] : memref<1x256xf32, #tpu.memory_space<vmem>>, vector<1x256xf32>
    %29 = vector.broadcast %28 : vector<1x256xf32> to vector<16x256xf32>
    %30 = arith.addf %27, %29 : vector<16x256xf32>
    %cst_20 = arith.constant 5.000000e-01 : f32
    %31 = vector.broadcast %cst_20 : f32 to vector<16x256xf32>
    %32 = arith.mulf %31, %30 : vector<16x256xf32>
    %33 = arith.mulf %30, %30 : vector<16x256xf32>
    %34 = arith.mulf %33, %30 : vector<16x256xf32>
    %cst_21 = arith.constant 4.471500e-02 : f32
    %35 = vector.broadcast %cst_21 : f32 to vector<16x256xf32>
    %36 = arith.mulf %35, %34 : vector<16x256xf32>
    %37 = arith.addf %30, %36 : vector<16x256xf32>
    %cst_22 = arith.constant 0.797884583 : f32
    %38 = vector.broadcast %cst_22 : f32 to vector<16x256xf32>
    %39 = arith.mulf %38, %37 : vector<16x256xf32>
    %40 = math.tanh %39 : vector<16x256xf32>
    %cst_23 = arith.constant 1.000000e+00 : f32
    %41 = vector.broadcast %cst_23 : f32 to vector<16x256xf32>
    %42 = arith.addf %41, %40 : vector<16x256xf32>
    %43 = arith.mulf %32, %42 : vector<16x256xf32>
    %44 = arith.truncf %43 : vector<16x256xf32> to vector<16x256xbf16>
    %c0_24 = arith.constant 0 : index
    %c0_25 = arith.constant 0 : index
    %45 = vector.load %arg9[%c0_24, %c0_25] : memref<16x256xbf16, #tpu.memory_space<vmem>>, vector<16x256xbf16>
    tpu.vector_store %arg9[%c0_24, %c0_25], %44 {strides = array<i32>} : memref<16x256xbf16, #tpu.memory_space<vmem>>, vector<16x256xbf16>,
    return
  }
  func.func @transform_0(%arg0: i32) -> (i32, i32) {
    %c0_i32 = arith.constant 0 : i32
    %c0_i32_0 = arith.constant 0 : i32
    return %arg0, %c0_i32 : i32, i32
  }
  func.func @transform_1(%arg0: i32) -> (i32, i32) {
    %c0_i32 = arith.constant 0 : i32
    %c0_i32_0 = arith.constant 0 : i32
    %c0_i32_1 = arith.constant 0 : i32
    return %c0_i32, %c0_i32_0 : i32, i32
  }
  func.func @transform_2(%arg0: i32) -> (i32, i32) {
    %c0_i32 = arith.constant 0 : i32
    %c0_i32_0 = arith.constant 0 : i32
    %c0_i32_1 = arith.constant 0 : i32
    return %c0_i32, %c0_i32_0 : i32, i32
  }
  func.func @transform_3(%arg0: i32) -> (i32, i32) {
    %c0_i32 = arith.constant 0 : i32
    %c0_i32_0 = arith.constant 0 : i32
    %c0_i32_1 = arith.constant 0 : i32
    return %c0_i32, %c0_i32_0 : i32, i32
  }
  func.func @transform_4(%arg0: i32) -> (i32, i32) {
    %c0_i32 = arith.constant 0 : i32
    %c0_i32_0 = arith.constant 0 : i32
    %c0_i32_1 = arith.constant 0 : i32
    return %c0_i32, %c0_i32_0 : i32, i32
  }
  func.func @transform_5(%arg0: i32) -> (i32, i32) {
    %c0_i32 = arith.constant 0 : i32
    %c0_i32_0 = arith.constant 0 : i32
    %c0_i32_1 = arith.constant 0 : i32
    return %c0_i32, %c0_i32_0 : i32, i32
  }
  func.func @transform_6(%arg0: i32) -> (i32, i32) {
    %c0_i32 = arith.constant 0 : i32
    %c0_i32_0 = arith.constant 0 : i32
    %c0_i32_1 = arith.constant 0 : i32
    return %c0_i32, %c0_i32_0 : i32, i32
  }
  func.func @transform_7(%arg0: i32) -> (i32, i32) {
    %c0_i32 = arith.constant 0 : i32
    %c0_i32_0 = arith.constant 0 : i32
    %c0_i32_1 = arith.constant 0 : i32
    return %c0_i32, %c0_i32_0 : i32, i32
  }
  func.func @transform_8(%arg0: i32) -> (i32, i32) {
    %c0_i32 = arith.constant 0 : i32
    %c0_i32_0 = arith.constant 0 : i32
    return %arg0, %c0_i32 : i32, i32
  }
}

module attributes {stable_mosaic.version = 11 : i64} {
  func.func @_temporal_kernel(%arg0: i32, %arg1: memref<1x8x256xbf16, #tpu.memory_space<vmem>>, %arg2: memref<5x256x256xbf16, #tpu.memory_space<vmem>>, %arg3: memref<1x256xf32, #tpu.memory_space<vmem>>, %arg4: memref<5x256x256xbf16, #tpu.memory_space<vmem>>, %arg5: memref<1x256xf32, #tpu.memory_space<vmem>>, %arg6: memref<3x256x256xbf16, #tpu.memory_space<vmem>>, %arg7: memref<1x256xf32, #tpu.memory_space<vmem>>, %arg8: memref<256x256xbf16, #tpu.memory_space<vmem>>, %arg9: memref<1x256xf32, #tpu.memory_space<vmem>>, %arg10: memref<256x128xbf16, #tpu.memory_space<vmem>>, %arg11: memref<1x128xf32, #tpu.memory_space<vmem>>, %arg12: memref<1x2x128xf32, #tpu.memory_space<vmem>>, %arg13: memref<1x2x128xf32, #tpu.memory_space<vmem>>, %arg14: memref<12x256xbf16, #tpu.memory_space<vmem>>) attributes {dimension_semantics = [#tpu.dimension_semantics<parallel>], iteration_bounds = array<i64: 2>, scalar_prefetch = 0 : i64, scratch_operands = 1 : i64, tpu.core_type = #tpu.core_type<tc>, window_params = [{transform_indices = @transform_0, window_bounds = array<i64: 1, 8, 256>}, {pipeline_mode = #tpu.pipeline_mode<synchronous>, transform_indices = @transform_1, window_bounds = array<i64: 5, 256, 256>}, {pipeline_mode = #tpu.pipeline_mode<synchronous>, transform_indices = @transform_2, window_bounds = array<i64: 1, 256>}, {pipeline_mode = #tpu.pipeline_mode<synchronous>, transform_indices = @transform_3, window_bounds = array<i64: 5, 256, 256>}, {pipeline_mode = #tpu.pipeline_mode<synchronous>, transform_indices = @transform_4, window_bounds = array<i64: 1, 256>}, {pipeline_mode = #tpu.pipeline_mode<synchronous>, transform_indices = @transform_5, window_bounds = array<i64: 3, 256, 256>}, {pipeline_mode = #tpu.pipeline_mode<synchronous>, transform_indices = @transform_6, window_bounds = array<i64: 1, 256>}, {pipeline_mode = #tpu.pipeline_mode<synchronous>, transform_indices = @transform_7, window_bounds = array<i64: 256, 256>}, {pipeline_mode = #tpu.pipeline_mode<synchronous>, transform_indices = @transform_8, window_bounds = array<i64: 1, 256>}, {pipeline_mode = #tpu.pipeline_mode<synchronous>, transform_indices = @transform_9, window_bounds = array<i64: 256, 128>}, {pipeline_mode = #tpu.pipeline_mode<synchronous>, transform_indices = @transform_10, window_bounds = array<i64: 1, 128>}, {transform_indices = @transform_11, window_bounds = array<i64: 1, 2, 128>}, {transform_indices = @transform_12, window_bounds = array<i64: 1, 2, 128>}]} {
    %c0 = arith.constant 0 : index
    %c0_0 = arith.constant 0 : index
    %c0_1 = arith.constant 0 : index
    %0 = vector.load %arg1[%c0, %c0_0, %c0_1] : memref<1x8x256xbf16, #tpu.memory_space<vmem>>, vector<1x8x256xbf16>
    %1 = vector.shape_cast %0 : vector<1x8x256xbf16> to vector<8x256xbf16>
    %cst = arith.constant 0.000000e+00 : bf16
    %2 = vector.broadcast %cst : bf16 to vector<2x256xbf16>
    %c0_2 = arith.constant 0 : index
    %c0_3 = arith.constant 0 : index
    %3 = vector.load %arg14[%c0_2, %c0_3] : memref<12x256xbf16, #tpu.memory_space<vmem>>, vector<2x256xbf16>
    tpu.vector_store %arg14[%c0_2, %c0_3], %2 {strides = array<i32>} : memref<12x256xbf16, #tpu.memory_space<vmem>>, vector<2x256xbf16>,
    %cst_4 = arith.constant 0.000000e+00 : bf16
    %4 = vector.broadcast %cst_4 : bf16 to vector<2x256xbf16>
    %c10 = arith.constant 10 : index
    %c0_5 = arith.constant 0 : index
    %5 = vector.load %arg14[%c10, %c0_5] : memref<12x256xbf16, #tpu.memory_space<vmem>>, vector<2x256xbf16>
    tpu.vector_store %arg14[%c10, %c0_5], %4 {strides = array<i32>} : memref<12x256xbf16, #tpu.memory_space<vmem>>, vector<2x256xbf16>,
    %c2 = arith.constant 2 : index
    %c0_6 = arith.constant 0 : index
    %6 = vector.load %arg14[%c2, %c0_6] : memref<12x256xbf16, #tpu.memory_space<vmem>>, vector<8x256xbf16>
    tpu.vector_store %arg14[%c2, %c0_6], %1 {strides = array<i32>} : memref<12x256xbf16, #tpu.memory_space<vmem>>, vector<8x256xbf16>,
    %cst_7 = arith.constant 0.000000e+00 : f32
    %7 = vector.broadcast %cst_7 : f32 to vector<8x256xf32>
    %c0_8 = arith.constant 0 : index
    %c0_9 = arith.constant 0 : index
    %8 = vector.load %arg14[%c0_8, %c0_9] : memref<12x256xbf16, #tpu.memory_space<vmem>>, vector<8x256xbf16>
    %c0_10 = arith.constant 0 : index
    %c0_11 = arith.constant 0 : index
    %c0_12 = arith.constant 0 : index
    %9 = vector.load %arg2[%c0_10, %c0_11, %c0_12] : memref<5x256x256xbf16, #tpu.memory_space<vmem>>, vector<1x256x256xbf16>
    %10 = vector.shape_cast %9 : vector<1x256x256xbf16> to vector<256x256xbf16>
    %cst_13 = arith.constant dense<0.000000e+00> : vector<8x256xf32>
    %11 = tpu.matmul %8, %10, %cst_13 {dimension_numbers = #tpu.dot_dimension_numbers<[1], [0], [0], [1], [0, 0, 1, 1], [], []>} : vector<8x256xbf16>, vector<256x256xbf16>, vector<8x256xf32> -> vector<8x256xf32>
    %12 = arith.addf %7, %11 : vector<8x256xf32>
    %c1 = arith.constant 1 : index
    %c0_14 = arith.constant 0 : index
    %13 = vector.load %arg14[%c1, %c0_14] : memref<12x256xbf16, #tpu.memory_space<vmem>>, vector<8x256xbf16>
    %c1_15 = arith.constant 1 : index
    %c0_16 = arith.constant 0 : index
    %c0_17 = arith.constant 0 : index
    %14 = vector.load %arg2[%c1_15, %c0_16, %c0_17] : memref<5x256x256xbf16, #tpu.memory_space<vmem>>, vector<1x256x256xbf16>
    %15 = vector.shape_cast %14 : vector<1x256x256xbf16> to vector<256x256xbf16>
    %cst_18 = arith.constant dense<0.000000e+00> : vector<8x256xf32>
    %16 = tpu.matmul %13, %15, %cst_18 {dimension_numbers = #tpu.dot_dimension_numbers<[1], [0], [0], [1], [0, 0, 1, 1], [], []>} : vector<8x256xbf16>, vector<256x256xbf16>, vector<8x256xf32> -> vector<8x256xf32>
    %17 = arith.addf %12, %16 : vector<8x256xf32>
    %c2_19 = arith.constant 2 : index
    %c0_20 = arith.constant 0 : index
    %18 = vector.load %arg14[%c2_19, %c0_20] : memref<12x256xbf16, #tpu.memory_space<vmem>>, vector<8x256xbf16>
    %c2_21 = arith.constant 2 : index
    %c0_22 = arith.constant 0 : index
    %c0_23 = arith.constant 0 : index
    %19 = vector.load %arg2[%c2_21, %c0_22, %c0_23] : memref<5x256x256xbf16, #tpu.memory_space<vmem>>, vector<1x256x256xbf16>
    %20 = vector.shape_cast %19 : vector<1x256x256xbf16> to vector<256x256xbf16>
    %cst_24 = arith.constant dense<0.000000e+00> : vector<8x256xf32>
    %21 = tpu.matmul %18, %20, %cst_24 {dimension_numbers = #tpu.dot_dimension_numbers<[1], [0], [0], [1], [0, 0, 1, 1], [], []>} : vector<8x256xbf16>, vector<256x256xbf16>, vector<8x256xf32> -> vector<8x256xf32>
    %22 = arith.addf %17, %21 : vector<8x256xf32>
    %c3 = arith.constant 3 : index
    %c0_25 = arith.constant 0 : index
    %23 = vector.load %arg14[%c3, %c0_25] : memref<12x256xbf16, #tpu.memory_space<vmem>>, vector<8x256xbf16>
    %c3_26 = arith.constant 3 : index
    %c0_27 = arith.constant 0 : index
    %c0_28 = arith.constant 0 : index
    %24 = vector.load %arg2[%c3_26, %c0_27, %c0_28] : memref<5x256x256xbf16, #tpu.memory_space<vmem>>, vector<1x256x256xbf16>
    %25 = vector.shape_cast %24 : vector<1x256x256xbf16> to vector<256x256xbf16>
    %cst_29 = arith.constant dense<0.000000e+00> : vector<8x256xf32>
    %26 = tpu.matmul %23, %25, %cst_29 {dimension_numbers = #tpu.dot_dimension_numbers<[1], [0], [0], [1], [0, 0, 1, 1], [], []>} : vector<8x256xbf16>, vector<256x256xbf16>, vector<8x256xf32> -> vector<8x256xf32>
    %27 = arith.addf %22, %26 : vector<8x256xf32>
    %c4 = arith.constant 4 : index
    %c0_30 = arith.constant 0 : index
    %28 = vector.load %arg14[%c4, %c0_30] : memref<12x256xbf16, #tpu.memory_space<vmem>>, vector<8x256xbf16>
    %c4_31 = arith.constant 4 : index
    %c0_32 = arith.constant 0 : index
    %c0_33 = arith.constant 0 : index
    %29 = vector.load %arg2[%c4_31, %c0_32, %c0_33] : memref<5x256x256xbf16, #tpu.memory_space<vmem>>, vector<1x256x256xbf16>
    %30 = vector.shape_cast %29 : vector<1x256x256xbf16> to vector<256x256xbf16>
    %cst_34 = arith.constant dense<0.000000e+00> : vector<8x256xf32>
    %31 = tpu.matmul %28, %30, %cst_34 {dimension_numbers = #tpu.dot_dimension_numbers<[1], [0], [0], [1], [0, 0, 1, 1], [], []>} : vector<8x256xbf16>, vector<256x256xbf16>, vector<8x256xf32> -> vector<8x256xf32>
    %32 = arith.addf %27, %31 : vector<8x256xf32>
    %c0_35 = arith.constant 0 : index
    %c0_36 = arith.constant 0 : index
    %33 = vector.load %arg3[%c0_35, %c0_36] : memref<1x256xf32, #tpu.memory_space<vmem>>, vector<1x256xf32>
    %34 = vector.broadcast %33 : vector<1x256xf32> to vector<8x256xf32>
    %35 = arith.addf %32, %34 : vector<8x256xf32>
    %cst_37 = arith.constant 5.000000e-01 : f32
    %36 = vector.broadcast %cst_37 : f32 to vector<8x256xf32>
    %37 = arith.mulf %36, %35 : vector<8x256xf32>
    %38 = arith.mulf %35, %35 : vector<8x256xf32>
    %39 = arith.mulf %38, %35 : vector<8x256xf32>
    %cst_38 = arith.constant 4.471500e-02 : f32
    %40 = vector.broadcast %cst_38 : f32 to vector<8x256xf32>
    %41 = arith.mulf %40, %39 : vector<8x256xf32>
    %42 = arith.addf %35, %41 : vector<8x256xf32>
    %cst_39 = arith.constant 0.797884583 : f32
    %43 = vector.broadcast %cst_39 : f32 to vector<8x256xf32>
    %44 = arith.mulf %43, %42 : vector<8x256xf32>
    %45 = math.tanh %44 : vector<8x256xf32>
    %cst_40 = arith.constant 1.000000e+00 : f32
    %46 = vector.broadcast %cst_40 : f32 to vector<8x256xf32>
    %47 = arith.addf %46, %45 : vector<8x256xf32>
    %48 = arith.mulf %37, %47 : vector<8x256xf32>
    %49 = vector.shape_cast %48 : vector<8x256xf32> to vector<4x2x256xf32>
    %cst_41 = arith.constant dense<0.000000e+00> : vector<4x256xf32>
    %50 = vector.multi_reduction <add>, %49, %cst_41 [1] : vector<4x2x256xf32> to vector<4x256xf32>
    %cst_42 = arith.constant 2.000000e+00 : f32
    %51 = vector.broadcast %cst_42 : f32 to vector<4x256xf32>
    %52 = arith.divf %50, %51 : vector<4x256xf32>
    %53 = arith.truncf %52 : vector<4x256xf32> to vector<4x256xbf16>
    %cst_43 = arith.constant 0.000000e+00 : bf16
    %54 = vector.broadcast %cst_43 : bf16 to vector<2x256xbf16>
    %c0_44 = arith.constant 0 : index
    %c0_45 = arith.constant 0 : index
    %55 = vector.load %arg14[%c0_44, %c0_45] : memref<12x256xbf16, #tpu.memory_space<vmem>>, vector<2x256xbf16>
    tpu.vector_store %arg14[%c0_44, %c0_45], %54 {strides = array<i32>} : memref<12x256xbf16, #tpu.memory_space<vmem>>, vector<2x256xbf16>,
    %cst_46 = arith.constant 0.000000e+00 : bf16
    %56 = vector.broadcast %cst_46 : bf16 to vector<2x256xbf16>
    %c6 = arith.constant 6 : index
    %c0_47 = arith.constant 0 : index
    %57 = vector.load %arg14[%c6, %c0_47] : memref<12x256xbf16, #tpu.memory_space<vmem>>, vector<2x256xbf16>
    tpu.vector_store %arg14[%c6, %c0_47], %56 {strides = array<i32>} : memref<12x256xbf16, #tpu.memory_space<vmem>>, vector<2x256xbf16>,
    %c2_48 = arith.constant 2 : index
    %c0_49 = arith.constant 0 : index
    %58 = vector.load %arg14[%c2_48, %c0_49] : memref<12x256xbf16, #tpu.memory_space<vmem>>, vector<4x256xbf16>
    tpu.vector_store %arg14[%c2_48, %c0_49], %53 {strides = array<i32>} : memref<12x256xbf16, #tpu.memory_space<vmem>>, vector<4x256xbf16>,
    %cst_50 = arith.constant 0.000000e+00 : f32
    %59 = vector.broadcast %cst_50 : f32 to vector<4x256xf32>
    %c0_51 = arith.constant 0 : index
    %c0_52 = arith.constant 0 : index
    %60 = vector.load %arg14[%c0_51, %c0_52] : memref<12x256xbf16, #tpu.memory_space<vmem>>, vector<4x256xbf16>
    %c0_53 = arith.constant 0 : index
    %c0_54 = arith.constant 0 : index
    %c0_55 = arith.constant 0 : index
    %61 = vector.load %arg4[%c0_53, %c0_54, %c0_55] : memref<5x256x256xbf16, #tpu.memory_space<vmem>>, vector<1x256x256xbf16>
    %62 = vector.shape_cast %61 : vector<1x256x256xbf16> to vector<256x256xbf16>
    %cst_56 = arith.constant dense<0.000000e+00> : vector<4x256xf32>
    %63 = tpu.matmul %60, %62, %cst_56 {dimension_numbers = #tpu.dot_dimension_numbers<[1], [0], [0], [1], [0, 0, 1, 1], [], []>} : vector<4x256xbf16>, vector<256x256xbf16>, vector<4x256xf32> -> vector<4x256xf32>
    %64 = arith.addf %59, %63 : vector<4x256xf32>
    %c1_57 = arith.constant 1 : index
    %c0_58 = arith.constant 0 : index
    %65 = vector.load %arg14[%c1_57, %c0_58] : memref<12x256xbf16, #tpu.memory_space<vmem>>, vector<4x256xbf16>
    %c1_59 = arith.constant 1 : index
    %c0_60 = arith.constant 0 : index
    %c0_61 = arith.constant 0 : index
    %66 = vector.load %arg4[%c1_59, %c0_60, %c0_61] : memref<5x256x256xbf16, #tpu.memory_space<vmem>>, vector<1x256x256xbf16>
    %67 = vector.shape_cast %66 : vector<1x256x256xbf16> to vector<256x256xbf16>
    %cst_62 = arith.constant dense<0.000000e+00> : vector<4x256xf32>
    %68 = tpu.matmul %65, %67, %cst_62 {dimension_numbers = #tpu.dot_dimension_numbers<[1], [0], [0], [1], [0, 0, 1, 1], [], []>} : vector<4x256xbf16>, vector<256x256xbf16>, vector<4x256xf32> -> vector<4x256xf32>
    %69 = arith.addf %64, %68 : vector<4x256xf32>
    %c2_63 = arith.constant 2 : index
    %c0_64 = arith.constant 0 : index
    %70 = vector.load %arg14[%c2_63, %c0_64] : memref<12x256xbf16, #tpu.memory_space<vmem>>, vector<4x256xbf16>
    %c2_65 = arith.constant 2 : index
    %c0_66 = arith.constant 0 : index
    %c0_67 = arith.constant 0 : index
    %71 = vector.load %arg4[%c2_65, %c0_66, %c0_67] : memref<5x256x256xbf16, #tpu.memory_space<vmem>>, vector<1x256x256xbf16>
    %72 = vector.shape_cast %71 : vector<1x256x256xbf16> to vector<256x256xbf16>
    %cst_68 = arith.constant dense<0.000000e+00> : vector<4x256xf32>
    %73 = tpu.matmul %70, %72, %cst_68 {dimension_numbers = #tpu.dot_dimension_numbers<[1], [0], [0], [1], [0, 0, 1, 1], [], []>} : vector<4x256xbf16>, vector<256x256xbf16>, vector<4x256xf32> -> vector<4x256xf32>
    %74 = arith.addf %69, %73 : vector<4x256xf32>
    %c3_69 = arith.constant 3 : index
    %c0_70 = arith.constant 0 : index
    %75 = vector.load %arg14[%c3_69, %c0_70] : memref<12x256xbf16, #tpu.memory_space<vmem>>, vector<4x256xbf16>
    %c3_71 = arith.constant 3 : index
    %c0_72 = arith.constant 0 : index
    %c0_73 = arith.constant 0 : index
    %76 = vector.load %arg4[%c3_71, %c0_72, %c0_73] : memref<5x256x256xbf16, #tpu.memory_space<vmem>>, vector<1x256x256xbf16>
    %77 = vector.shape_cast %76 : vector<1x256x256xbf16> to vector<256x256xbf16>
    %cst_74 = arith.constant dense<0.000000e+00> : vector<4x256xf32>
    %78 = tpu.matmul %75, %77, %cst_74 {dimension_numbers = #tpu.dot_dimension_numbers<[1], [0], [0], [1], [0, 0, 1, 1], [], []>} : vector<4x256xbf16>, vector<256x256xbf16>, vector<4x256xf32> -> vector<4x256xf32>
    %79 = arith.addf %74, %78 : vector<4x256xf32>
    %c4_75 = arith.constant 4 : index
    %c0_76 = arith.constant 0 : index
    %80 = vector.load %arg14[%c4_75, %c0_76] : memref<12x256xbf16, #tpu.memory_space<vmem>>, vector<4x256xbf16>
    %c4_77 = arith.constant 4 : index
    %c0_78 = arith.constant 0 : index
    %c0_79 = arith.constant 0 : index
    %81 = vector.load %arg4[%c4_77, %c0_78, %c0_79] : memref<5x256x256xbf16, #tpu.memory_space<vmem>>, vector<1x256x256xbf16>
    %82 = vector.shape_cast %81 : vector<1x256x256xbf16> to vector<256x256xbf16>
    %cst_80 = arith.constant dense<0.000000e+00> : vector<4x256xf32>
    %83 = tpu.matmul %80, %82, %cst_80 {dimension_numbers = #tpu.dot_dimension_numbers<[1], [0], [0], [1], [0, 0, 1, 1], [], []>} : vector<4x256xbf16>, vector<256x256xbf16>, vector<4x256xf32> -> vector<4x256xf32>
    %84 = arith.addf %79, %83 : vector<4x256xf32>
    %c0_81 = arith.constant 0 : index
    %c0_82 = arith.constant 0 : index
    %85 = vector.load %arg5[%c0_81, %c0_82] : memref<1x256xf32, #tpu.memory_space<vmem>>, vector<1x256xf32>
    %86 = vector.broadcast %85 : vector<1x256xf32> to vector<4x256xf32>
    %87 = arith.addf %84, %86 : vector<4x256xf32>
    %cst_83 = arith.constant 5.000000e-01 : f32
    %88 = vector.broadcast %cst_83 : f32 to vector<4x256xf32>
    %89 = arith.mulf %88, %87 : vector<4x256xf32>
    %90 = arith.mulf %87, %87 : vector<4x256xf32>
    %91 = arith.mulf %90, %87 : vector<4x256xf32>
    %cst_84 = arith.constant 4.471500e-02 : f32
    %92 = vector.broadcast %cst_84 : f32 to vector<4x256xf32>
    %93 = arith.mulf %92, %91 : vector<4x256xf32>
    %94 = arith.addf %87, %93 : vector<4x256xf32>
    %cst_85 = arith.constant 0.797884583 : f32
    %95 = vector.broadcast %cst_85 : f32 to vector<4x256xf32>
    %96 = arith.mulf %95, %94 : vector<4x256xf32>
    %97 = math.tanh %96 : vector<4x256xf32>
    %cst_86 = arith.constant 1.000000e+00 : f32
    %98 = vector.broadcast %cst_86 : f32 to vector<4x256xf32>
    %99 = arith.addf %98, %97 : vector<4x256xf32>
    %100 = arith.mulf %89, %99 : vector<4x256xf32>
    %101 = vector.shape_cast %100 : vector<4x256xf32> to vector<2x2x256xf32>
    %cst_87 = arith.constant dense<0.000000e+00> : vector<2x256xf32>
    %102 = vector.multi_reduction <add>, %101, %cst_87 [1] : vector<2x2x256xf32> to vector<2x256xf32>
    %cst_88 = arith.constant 2.000000e+00 : f32
    %103 = vector.broadcast %cst_88 : f32 to vector<2x256xf32>
    %104 = arith.divf %102, %103 : vector<2x256xf32>
    %105 = arith.truncf %104 : vector<2x256xf32> to vector<2x256xbf16>
    %c0_89 = arith.constant 0 : index
    %c0_90 = arith.constant 0 : index
    %106 = vector.load %arg8[%c0_89, %c0_90] : memref<256x256xbf16, #tpu.memory_space<vmem>>, vector<256x256xbf16>
    %cst_91 = arith.constant dense<0.000000e+00> : vector<2x256xf32>
    %107 = tpu.matmul %105, %106, %cst_91 {dimension_numbers = #tpu.dot_dimension_numbers<[1], [0], [0], [1], [0, 0, 1, 1], [], []>} : vector<2x256xbf16>, vector<256x256xbf16>, vector<2x256xf32> -> vector<2x256xf32>
    %c0_92 = arith.constant 0 : index
    %c0_93 = arith.constant 0 : index
    %108 = vector.load %arg9[%c0_92, %c0_93] : memref<1x256xf32, #tpu.memory_space<vmem>>, vector<1x256xf32>
    %109 = vector.broadcast %108 : vector<1x256xf32> to vector<2x256xf32>
    %110 = arith.addf %107, %109 : vector<2x256xf32>
    %cst_94 = arith.constant 5.000000e-01 : f32
    %111 = vector.broadcast %cst_94 : f32 to vector<2x256xf32>
    %112 = arith.mulf %111, %110 : vector<2x256xf32>
    %113 = arith.mulf %110, %110 : vector<2x256xf32>
    %114 = arith.mulf %113, %110 : vector<2x256xf32>
    %cst_95 = arith.constant 4.471500e-02 : f32
    %115 = vector.broadcast %cst_95 : f32 to vector<2x256xf32>
    %116 = arith.mulf %115, %114 : vector<2x256xf32>
    %117 = arith.addf %110, %116 : vector<2x256xf32>
    %cst_96 = arith.constant 0.797884583 : f32
    %118 = vector.broadcast %cst_96 : f32 to vector<2x256xf32>
    %119 = arith.mulf %118, %117 : vector<2x256xf32>
    %120 = math.tanh %119 : vector<2x256xf32>
    %cst_97 = arith.constant 1.000000e+00 : f32
    %121 = vector.broadcast %cst_97 : f32 to vector<2x256xf32>
    %122 = arith.addf %121, %120 : vector<2x256xf32>
    %123 = arith.mulf %112, %122 : vector<2x256xf32>
    %124 = arith.truncf %123 : vector<2x256xf32> to vector<2x256xbf16>
    %c0_98 = arith.constant 0 : index
    %c0_99 = arith.constant 0 : index
    %125 = vector.load %arg10[%c0_98, %c0_99] : memref<256x128xbf16, #tpu.memory_space<vmem>>, vector<256x128xbf16>
    %cst_100 = arith.constant dense<0.000000e+00> : vector<2x128xf32>
    %126 = tpu.matmul %124, %125, %cst_100 {dimension_numbers = #tpu.dot_dimension_numbers<[1], [0], [0], [1], [0, 0, 1, 1], [], []>} : vector<2x256xbf16>, vector<256x128xbf16>, vector<2x128xf32> -> vector<2x128xf32>
    %c0_101 = arith.constant 0 : index
    %c0_102 = arith.constant 0 : index
    %127 = vector.load %arg11[%c0_101, %c0_102] : memref<1x128xf32, #tpu.memory_space<vmem>>, vector<1x128xf32>
    %128 = vector.broadcast %127 : vector<1x128xf32> to vector<2x128xf32>
    %129 = arith.addf %126, %128 : vector<2x128xf32>
    %c0_103 = arith.constant 0 : index
    %c0_104 = arith.constant 0 : index
    %c0_105 = arith.constant 0 : index
    %130 = vector.load %arg12[%c0_103, %c0_104, %c0_105] : memref<1x2x128xf32, #tpu.memory_space<vmem>>, vector<1x2x128xf32>
    %131 = vector.shape_cast %130 : vector<1x2x128xf32> to vector<2x128xf32>
    %132 = vector.shape_cast %129 : vector<2x128xf32> to vector<1x2x128xf32>
    tpu.vector_store %arg12[%c0_103, %c0_104, %c0_105], %132 {strides = array<i32>} : memref<1x2x128xf32, #tpu.memory_space<vmem>>, vector<1x2x128xf32>,
    %cst_106 = arith.constant 0.000000e+00 : bf16
    %133 = vector.broadcast %cst_106 : bf16 to vector<1x256xbf16>
    %c0_107 = arith.constant 0 : index
    %c0_108 = arith.constant 0 : index
    %134 = vector.load %arg14[%c0_107, %c0_108] : memref<12x256xbf16, #tpu.memory_space<vmem>>, vector<1x256xbf16>
    tpu.vector_store %arg14[%c0_107, %c0_108], %133 {strides = array<i32>} : memref<12x256xbf16, #tpu.memory_space<vmem>>, vector<1x256xbf16>,
    %cst_109 = arith.constant 0.000000e+00 : bf16
    %135 = vector.broadcast %cst_109 : bf16 to vector<1x256xbf16>
    %c3_110 = arith.constant 3 : index
    %c0_111 = arith.constant 0 : index
    %136 = vector.load %arg14[%c3_110, %c0_111] : memref<12x256xbf16, #tpu.memory_space<vmem>>, vector<1x256xbf16>
    tpu.vector_store %arg14[%c3_110, %c0_111], %135 {strides = array<i32>} : memref<12x256xbf16, #tpu.memory_space<vmem>>, vector<1x256xbf16>,
    %c1_112 = arith.constant 1 : index
    %c0_113 = arith.constant 0 : index
    %137 = vector.load %arg14[%c1_112, %c0_113] : memref<12x256xbf16, #tpu.memory_space<vmem>>, vector<2x256xbf16>
    tpu.vector_store %arg14[%c1_112, %c0_113], %105 {strides = array<i32>} : memref<12x256xbf16, #tpu.memory_space<vmem>>, vector<2x256xbf16>,
    %cst_114 = arith.constant 0.000000e+00 : f32
    %138 = vector.broadcast %cst_114 : f32 to vector<2x256xf32>
    %c0_115 = arith.constant 0 : index
    %c0_116 = arith.constant 0 : index
    %139 = vector.load %arg14[%c0_115, %c0_116] : memref<12x256xbf16, #tpu.memory_space<vmem>>, vector<2x256xbf16>
    %c0_117 = arith.constant 0 : index
    %c0_118 = arith.constant 0 : index
    %c0_119 = arith.constant 0 : index
    %140 = vector.load %arg6[%c0_117, %c0_118, %c0_119] : memref<3x256x256xbf16, #tpu.memory_space<vmem>>, vector<1x256x256xbf16>
    %141 = vector.shape_cast %140 : vector<1x256x256xbf16> to vector<256x256xbf16>
    %cst_120 = arith.constant dense<0.000000e+00> : vector<2x256xf32>
    %142 = tpu.matmul %139, %141, %cst_120 {dimension_numbers = #tpu.dot_dimension_numbers<[1], [0], [0], [1], [0, 0, 1, 1], [], []>} : vector<2x256xbf16>, vector<256x256xbf16>, vector<2x256xf32> -> vector<2x256xf32>
    %143 = arith.addf %138, %142 : vector<2x256xf32>
    %c1_121 = arith.constant 1 : index
    %c0_122 = arith.constant 0 : index
    %144 = vector.load %arg14[%c1_121, %c0_122] : memref<12x256xbf16, #tpu.memory_space<vmem>>, vector<2x256xbf16>
    %c1_123 = arith.constant 1 : index
    %c0_124 = arith.constant 0 : index
    %c0_125 = arith.constant 0 : index
    %145 = vector.load %arg6[%c1_123, %c0_124, %c0_125] : memref<3x256x256xbf16, #tpu.memory_space<vmem>>, vector<1x256x256xbf16>
    %146 = vector.shape_cast %145 : vector<1x256x256xbf16> to vector<256x256xbf16>
    %cst_126 = arith.constant dense<0.000000e+00> : vector<2x256xf32>
    %147 = tpu.matmul %144, %146, %cst_126 {dimension_numbers = #tpu.dot_dimension_numbers<[1], [0], [0], [1], [0, 0, 1, 1], [], []>} : vector<2x256xbf16>, vector<256x256xbf16>, vector<2x256xf32> -> vector<2x256xf32>
    %148 = arith.addf %143, %147 : vector<2x256xf32>
    %c2_127 = arith.constant 2 : index
    %c0_128 = arith.constant 0 : index
    %149 = vector.load %arg14[%c2_127, %c0_128] : memref<12x256xbf16, #tpu.memory_space<vmem>>, vector<2x256xbf16>
    %c2_129 = arith.constant 2 : index
    %c0_130 = arith.constant 0 : index
    %c0_131 = arith.constant 0 : index
    %150 = vector.load %arg6[%c2_129, %c0_130, %c0_131] : memref<3x256x256xbf16, #tpu.memory_space<vmem>>, vector<1x256x256xbf16>
    %151 = vector.shape_cast %150 : vector<1x256x256xbf16> to vector<256x256xbf16>
    %cst_132 = arith.constant dense<0.000000e+00> : vector<2x256xf32>
    %152 = tpu.matmul %149, %151, %cst_132 {dimension_numbers = #tpu.dot_dimension_numbers<[1], [0], [0], [1], [0, 0, 1, 1], [], []>} : vector<2x256xbf16>, vector<256x256xbf16>, vector<2x256xf32> -> vector<2x256xf32>
    %153 = arith.addf %148, %152 : vector<2x256xf32>
    %c0_133 = arith.constant 0 : index
    %c0_134 = arith.constant 0 : index
    %154 = vector.load %arg7[%c0_133, %c0_134] : memref<1x256xf32, #tpu.memory_space<vmem>>, vector<1x256xf32>
    %155 = vector.broadcast %154 : vector<1x256xf32> to vector<2x256xf32>
    %156 = arith.addf %153, %155 : vector<2x256xf32>
    %cst_135 = arith.constant 5.000000e-01 : f32
    %157 = vector.broadcast %cst_135 : f32 to vector<2x256xf32>
    %158 = arith.mulf %157, %156 : vector<2x256xf32>
    %159 = arith.mulf %156, %156 : vector<2x256xf32>
    %160 = arith.mulf %159, %156 : vector<2x256xf32>
    %cst_136 = arith.constant 4.471500e-02 : f32
    %161 = vector.broadcast %cst_136 : f32 to vector<2x256xf32>
    %162 = arith.mulf %161, %160 : vector<2x256xf32>
    %163 = arith.addf %156, %162 : vector<2x256xf32>
    %cst_137 = arith.constant 0.797884583 : f32
    %164 = vector.broadcast %cst_137 : f32 to vector<2x256xf32>
    %165 = arith.mulf %164, %163 : vector<2x256xf32>
    %166 = math.tanh %165 : vector<2x256xf32>
    %cst_138 = arith.constant 1.000000e+00 : f32
    %167 = vector.broadcast %cst_138 : f32 to vector<2x256xf32>
    %168 = arith.addf %167, %166 : vector<2x256xf32>
    %169 = arith.mulf %158, %168 : vector<2x256xf32>
    %170 = arith.truncf %169 : vector<2x256xf32> to vector<2x256xbf16>
    %c0_139 = arith.constant 0 : index
    %c0_140 = arith.constant 0 : index
    %171 = vector.load %arg10[%c0_139, %c0_140] : memref<256x128xbf16, #tpu.memory_space<vmem>>, vector<256x128xbf16>
    %cst_141 = arith.constant dense<0.000000e+00> : vector<2x128xf32>
    %172 = tpu.matmul %170, %171, %cst_141 {dimension_numbers = #tpu.dot_dimension_numbers<[1], [0], [0], [1], [0, 0, 1, 1], [], []>} : vector<2x256xbf16>, vector<256x128xbf16>, vector<2x128xf32> -> vector<2x128xf32>
    %c0_142 = arith.constant 0 : index
    %c0_143 = arith.constant 0 : index
    %173 = vector.load %arg11[%c0_142, %c0_143] : memref<1x128xf32, #tpu.memory_space<vmem>>, vector<1x128xf32>
    %174 = vector.broadcast %173 : vector<1x128xf32> to vector<2x128xf32>
    %175 = arith.addf %172, %174 : vector<2x128xf32>
    %c0_144 = arith.constant 0 : index
    %c0_145 = arith.constant 0 : index
    %c0_146 = arith.constant 0 : index
    %176 = vector.load %arg13[%c0_144, %c0_145, %c0_146] : memref<1x2x128xf32, #tpu.memory_space<vmem>>, vector<1x2x128xf32>
    %177 = vector.shape_cast %176 : vector<1x2x128xf32> to vector<2x128xf32>
    %178 = vector.shape_cast %175 : vector<2x128xf32> to vector<1x2x128xf32>
    tpu.vector_store %arg13[%c0_144, %c0_145, %c0_146], %178 {strides = array<i32>} : memref<1x2x128xf32, #tpu.memory_space<vmem>>, vector<1x2x128xf32>,
    return
  }
  func.func @transform_0(%arg0: i32) -> (i32, i32, i32) {
    %c0_i32 = arith.constant 0 : i32
    %c0_i32_0 = arith.constant 0 : i32
    %c0_i32_1 = arith.constant 0 : i32
    return %arg0, %c0_i32, %c0_i32_0 : i32, i32, i32
  }
  func.func @transform_1(%arg0: i32) -> (i32, i32, i32) {
    %c0_i32 = arith.constant 0 : i32
    %c0_i32_0 = arith.constant 0 : i32
    %c0_i32_1 = arith.constant 0 : i32
    %c0_i32_2 = arith.constant 0 : i32
    return %c0_i32, %c0_i32_0, %c0_i32_1 : i32, i32, i32
  }
  func.func @transform_2(%arg0: i32) -> (i32, i32) {
    %c0_i32 = arith.constant 0 : i32
    %c0_i32_0 = arith.constant 0 : i32
    %c0_i32_1 = arith.constant 0 : i32
    return %c0_i32, %c0_i32_0 : i32, i32
  }
  func.func @transform_3(%arg0: i32) -> (i32, i32, i32) {
    %c0_i32 = arith.constant 0 : i32
    %c0_i32_0 = arith.constant 0 : i32
    %c0_i32_1 = arith.constant 0 : i32
    %c0_i32_2 = arith.constant 0 : i32
    return %c0_i32, %c0_i32_0, %c0_i32_1 : i32, i32, i32
  }
  func.func @transform_4(%arg0: i32) -> (i32, i32) {
    %c0_i32 = arith.constant 0 : i32
    %c0_i32_0 = arith.constant 0 : i32
    %c0_i32_1 = arith.constant 0 : i32
    return %c0_i32, %c0_i32_0 : i32, i32
  }
  func.func @transform_5(%arg0: i32) -> (i32, i32, i32) {
    %c0_i32 = arith.constant 0 : i32
    %c0_i32_0 = arith.constant 0 : i32
    %c0_i32_1 = arith.constant 0 : i32
    %c0_i32_2 = arith.constant 0 : i32
    return %c0_i32, %c0_i32_0, %c0_i32_1 : i32, i32, i32
  }
  func.func @transform_6(%arg0: i32) -> (i32, i32) {
    %c0_i32 = arith.constant 0 : i32
    %c0_i32_0 = arith.constant 0 : i32
    %c0_i32_1 = arith.constant 0 : i32
    return %c0_i32, %c0_i32_0 : i32, i32
  }
  func.func @transform_7(%arg0: i32) -> (i32, i32) {
    %c0_i32 = arith.constant 0 : i32
    %c0_i32_0 = arith.constant 0 : i32
    %c0_i32_1 = arith.constant 0 : i32
    return %c0_i32, %c0_i32_0 : i32, i32
  }
  func.func @transform_8(%arg0: i32) -> (i32, i32) {
    %c0_i32 = arith.constant 0 : i32
    %c0_i32_0 = arith.constant 0 : i32
    %c0_i32_1 = arith.constant 0 : i32
    return %c0_i32, %c0_i32_0 : i32, i32
  }
  func.func @transform_9(%arg0: i32) -> (i32, i32) {
    %c0_i32 = arith.constant 0 : i32
    %c0_i32_0 = arith.constant 0 : i32
    %c0_i32_1 = arith.constant 0 : i32
    return %c0_i32, %c0_i32_0 : i32, i32
  }
  func.func @transform_10(%arg0: i32) -> (i32, i32) {
    %c0_i32 = arith.constant 0 : i32
    %c0_i32_0 = arith.constant 0 : i32
    %c0_i32_1 = arith.constant 0 : i32
    return %c0_i32, %c0_i32_0 : i32, i32
  }
  func.func @transform_11(%arg0: i32) -> (i32, i32, i32) {
    %c0_i32 = arith.constant 0 : i32
    %c0_i32_0 = arith.constant 0 : i32
    %c0_i32_1 = arith.constant 0 : i32
    return %arg0, %c0_i32, %c0_i32_0 : i32, i32, i32
  }
  func.func @transform_12(%arg0: i32) -> (i32, i32, i32) {
    %c0_i32 = arith.constant 0 : i32
    %c0_i32_0 = arith.constant 0 : i32
    %c0_i32_1 = arith.constant 0 : i32
    return %arg0, %c0_i32, %c0_i32_0 : i32, i32, i32
  }
}

</mosaic_0001>

<llo_original>
// kernel: _forward_impl.3
$region0: #{_forward_impl.3}
  #allocation0 [shape = 'u32[]', space=smem, size = 0x4, offset = 0x4, fixed_abs, tag = 'smem constant byte address 0x4 - core index']
  #allocation1 [shape = 'u32[72,128]{1,0:T(1,128)}', space=vmem, size = 0x9000, scoped, tag = 'internal scratch']
  #allocation2 [shape = 'bf16[12,256]{1,0:T(8,128)(2,1)}', space=vmem, size = 0x2000, scoped, tag = 'scratch operand']
  %s0 = inlined_call_operand.vmem [shape: bf16[2,8,256], index: 0, kind: input, shape index: {}]
  %s1 = inlined_call_operand.hbm [shape: bf16[5,256,256], index: 1, kind: input, shape index: {}]
  %s2 = inlined_call_operand.hbm [shape: f32[1,256], index: 2, kind: input, shape index: {}]
  %s3 = inlined_call_operand.hbm [shape: bf16[5,256,256], index: 3, kind: input, shape index: {}]
  %s4 = inlined_call_operand.hbm [shape: f32[1,256], index: 4, kind: input, shape index: {}]
  %s5 = inlined_call_operand.hbm [shape: bf16[3,256,256], index: 5, kind: input, shape index: {}]
  %s6 = inlined_call_operand.hbm [shape: f32[1,256], index: 6, kind: input, shape index: {}]
  %s7 = inlined_call_operand.hbm [shape: bf16[256,256], index: 7, kind: input, shape index: {}]
  %s8 = inlined_call_operand.hbm [shape: f32[1,256], index: 8, kind: input, shape index: {}]
  %s9 = inlined_call_operand.hbm [shape: bf16[256,128], index: 9, kind: input, shape index: {}]
  %s10 = inlined_call_operand.hbm [shape: f32[1,128], index: 10, kind: input, shape index: {}]
  %s11 = inlined_call_operand.hbm [shape: f32[2,2,128], index: 11, kind: output, shape index: {0}]
  %s12 = inlined_call_operand.hbm [shape: f32[2,2,128], index: 12, kind: output, shape index: {1}]
  %13 = xla_tuple %s11, %s12
  %s14 = sld [smem:[#allocation0]]
  $region125: #{_forward_impl.3} parent=0
    _
  %s16 = ssub.s32 1, %s14
  %s17 = scalar_select 0, %s16, %s14
  $region1: #{_forward_impl.3} parent=0
    #allocation3 [shape = 'u8[655360]{0}', space=vmem, size = 0xa0000, scoped, tag = 'input window, operand 1, single buffered']
    #allocation4 [shape = 's32[2]{0}', space=sflag, size = 0x8, scoped, tag = 'scoped memory for _forward_impl.3']
    #allocation5 [shape = 's32[2]{0}', space=sflag, size = 0x8, scoped, tag = 'scoped memory for _forward_impl.3']
    #allocation6 [shape = 'u8[1024]{0}', space=vmem, size = 0x400, scoped, tag = 'input window, operand 2, single buffered']
    #allocation7 [shape = 's32[1]{0}', space=sflag, size = 0x4, scoped, tag = 'scoped memory for _forward_impl.3']
    #allocation8 [shape = 'u8[655360]{0}', space=vmem, size = 0xa0000, scoped, tag = 'input window, operand 3, single buffered']
    #allocation9 [shape = 'u8[1024]{0}', space=vmem, size = 0x400, scoped, tag = 'input window, operand 4, single buffered']
    #allocation10 [shape = 's32[1]{0}', space=sflag, size = 0x4, scoped, tag = 'scoped memory for _forward_impl.3']
    #allocation11 [shape = 'u8[393216]{0}', space=vmem, size = 0x60000, scoped, tag = 'input window, operand 5, single buffered']
    #allocation12 [shape = 'u8[1024]{0}', space=vmem, size = 0x400, scoped, tag = 'input window, operand 6, single buffered']
    #allocation13 [shape = 's32[1]{0}', space=sflag, size = 0x4, scoped, tag = 'scoped memory for _forward_impl.3']
    #allocation14 [shape = 'u8[131072]{0}', space=vmem, size = 0x20000, scoped, tag = 'input window, operand 7, single buffered']
    #allocation15 [shape = 'u8[1024]{0}', space=vmem, size = 0x400, scoped, tag = 'input window, operand 8, single buffered']
    #allocation16 [shape = 's32[1]{0}', space=sflag, size = 0x4, scoped, tag = 'scoped memory for _forward_impl.3']
    #allocation17 [shape = 'u8[65536]{0}', space=vmem, size = 0x10000, scoped, tag = 'input window, operand 9, single buffered']
    #allocation18 [shape = 'u8[512]{0}', space=vmem, size = 0x400, scoped, tag = 'input window, operand 10, single buffered']
    #allocation19 [shape = 's32[1]{0}', space=sflag, size = 0x4, scoped, tag = 'scoped memory for _forward_impl.3']
    #allocation20 [shape = 'u8[2048]{0}', space=vmem, size = 0x800, scoped, tag = 'output window, operand 0']
    #allocation21 [shape = 'u8[2048]{0}', space=vmem, size = 0x800, scoped, tag = 'output window, operand 1']
    #allocation22 [shape = 's32[2]{0}', space=sflag, size = 0x8, scoped, tag = 'scoped memory for _forward_impl.3']
    %18 = vsyncpa [#allocation4], 0
    %19 = vsyncpa [#allocation7], 0
    %20 = vsyncpa [#allocation10], 0
    %21 = vsyncpa [#allocation13], 0
    %22 = vsyncpa [#allocation16], 0
    %23 = vsyncpa [#allocation19], 0
    %24 = vsyncpa [#allocation5], 0
    %s25 = scalar_lea.sflag [#allocation5], 1
    %26 = vsyncpa %s25, 0
    %27 = vsyncpa [#allocation22], 0
    %s28 = scalar_lea.sflag [#allocation22], 1
    %29 = vsyncpa %s28, 0
    loop: start=0, step=1, limit=4
    $region2: #{_forward_impl.3} parent=1 // loop_pre_header
      _
    $region3: #{_forward_impl.3} parent=1 // loop_header
      %s31 = sphi 0, %s35
      %p32 = scmp.ge.s32.totalorder %s31, 4
      %s41 = sphi 0, %s43
      %s44 = sphi 0, %s41
      %s45 = sphi 0, %s44
      %s61 = sphi 0, %s45
      %s65 = sphi 0, %s65
      %s67 = sphi 0, %s65
      %s68 = sphi 0, %s67
      %s82 = sphi 0, %s68
      %s86 = sphi 0, %s86
      %s88 = sphi 0, %s86
      %s89 = sphi 0, %s88
      %s103 = sphi 0, %s89
      %s107 = sphi 0, %s107
      %s109 = sphi 0, %s107
      %s110 = sphi 0, %s109
      %s124 = sphi 0, %s110
      %s128 = sphi 0, %s128
      %s130 = sphi 0, %s128
      %s131 = sphi 0, %s130
      %s145 = sphi 0, %s131
      %s149 = sphi 0, %s149
      %s151 = sphi 0, %s149
      %s152 = sphi 0, %s151
      %s166 = sphi 0, %s152
      %s170 = sphi 0, %s170
      %s172 = sphi 0, %s170
      %s173 = sphi 0, %s172
      %s187 = sphi 0, %s173
      %s191 = sphi 0, %s191
      %s193 = sphi 0, %s191
      %s194 = sphi 0, %s193
      %s208 = sphi 0, %s194
      %s212 = sphi 0, %s212
      %s214 = sphi 0, %s212
      %s215 = sphi 0, %s214
      %s229 = sphi 0, %s215
      %s233 = sphi 0, %s233
      %s235 = sphi 0, %s233
      %s236 = sphi 0, %s235
      %s250 = sphi 0, %s236
      %s254 = sphi 0, %s254
      %s256 = sphi 0, %s254
      %s257 = sphi 0, %s256
      %s271 = sphi 0, %s257
      %s277 = sphi 0, %s279
      %s280 = sphi 0, %s277
      %s281 = sphi 0, %s280
      %s297 = sphi 0, %s281
      %s303 = sphi 0, %s305
      %s306 = sphi 0, %s303
      %s307 = sphi 0, %s306
      %s323 = sphi 0, %s307
    $region4: #{_forward_impl.3} parent=1 // loop_header_branch
      %34 = sbr.rel (%p32) target = $region8
    $region5: #{_forward_impl.3} parent=1 // loop_body
      %s36 = ssub.s32 %s31, 1
      %s37 = ssub.s32 %s31, 2
      %s38 = sadd.s32 %s31, 1
      %s39 = ssub.s32 %s31, %s38
      %p40 = scmp.eq.s32.totalorder %s39, 0
      %s42 = sadd.s32 %s41, 1
      %s43 = scalar_select %p40, %s41, %s42
      %p46 = pneg %p40
      %p47 = scmp.eq.s32.totalorder %s31, 1
      %p48 = por %p46, %p47
      %p49 = scmp.ne.s32.totalorder %s41, %s44
      %p50 = scmp.eq.s32.totalorder %s31, 0
      %p51 = por %p49, %p50
      %p52 = scmp.ne.s32.totalorder %s41, %s44
      %p53 = scmp.eq.s32.totalorder %s36, 1
      %p54 = por %p52, %p53
      %p55 = scmp.ne.s32.totalorder %s44, %s45
      %p56 = scmp.eq.s32.totalorder %s36, 0
      %p57 = por %p55, %p56
      %p58 = scmp.ne.s32.totalorder %s44, %s45
      %p59 = scmp.eq.s32.totalorder %s37, 1
      %p60 = por %p58, %p59
      %p62 = scmp.ne.s32.totalorder %s45, %s61
      %p63 = scmp.eq.s32.totalorder %s37, 0
      %p64 = por %p62, %p63
      %s66 = sadd.s32 %s65, 1
      %p69 = scmp.eq.s32.totalorder %s31, 1
      %p70 = scmp.ne.s32.totalorder %s65, %s67
      %p71 = scmp.eq.s32.totalorder %s31, 0
      %p72 = por %p70, %p71
      %p73 = scmp.ne.s32.totalorder %s65, %s67
      %p74 = scmp.eq.s32.totalorder %s36, 1
      %p75 = por %p73, %p74
      %p76 = scmp.ne.s32.totalorder %s67, %s68
      %p77 = scmp.eq.s32.totalorder %s36, 0
      %p78 = por %p76, %p77
      %p79 = scmp.ne.s32.totalorder %s67, %s68
      %p80 = scmp.eq.s32.totalorder %s37, 1
      %p81 = por %p79, %p80
      %p83 = scmp.ne.s32.totalorder %s68, %s82
      %p84 = scmp.eq.s32.totalorder %s37, 0
      %p85 = por %p83, %p84
      %s87 = sadd.s32 %s86, 1
      %p90 = scmp.eq.s32.totalorder %s31, 1
      %p91 = scmp.ne.s32.totalorder %s86, %s88
      %p92 = scmp.eq.s32.totalorder %s31, 0
      %p93 = por %p91, %p92
      %p94 = scmp.ne.s32.totalorder %s86, %s88
      %p95 = scmp.eq.s32.totalorder %s36, 1
      %p96 = por %p94, %p95
      %p97 = scmp.ne.s32.totalorder %s88, %s89
      %p98 = scmp.eq.s32.totalorder %s36, 0
      %p99 = por %p97, %p98
      %p100 = scmp.ne.s32.totalorder %s88, %s89
      %p101 = scmp.eq.s32.totalorder %s37, 1
      %p102 = por %p100, %p101
      %p104 = scmp.ne.s32.totalorder %s89, %s103
      %p105 = scmp.eq.s32.totalorder %s37, 0
      %p106 = por %p104, %p105
      %s108 = sadd.s32 %s107, 1
      %p111 = scmp.eq.s32.totalorder %s31, 1
      %p112 = scmp.ne.s32.totalorder %s107, %s109
      %p113 = scmp.eq.s32.totalorder %s31, 0
      %p114 = por %p112, %p113
      %p115 = scmp.ne.s32.totalorder %s107, %s109
      %p116 = scmp.eq.s32.totalorder %s36, 1
      %p117 = por %p115, %p116
      %p118 = scmp.ne.s32.totalorder %s109, %s110
      %p119 = scmp.eq.s32.totalorder %s36, 0
      %p120 = por %p118, %p119
      %p121 = scmp.ne.s32.totalorder %s109, %s110
      %p122 = scmp.eq.s32.totalorder %s37, 1
      %p123 = por %p121, %p122
      %p125 = scmp.ne.s32.totalorder %s110, %s124
      %p126 = scmp.eq.s32.totalorder %s37, 0
      %p127 = por %p125, %p126
      %s129 = sadd.s32 %s128, 1
      %p132 = scmp.eq.s32.totalorder %s31, 1
      %p133 = scmp.ne.s32.totalorder %s128, %s130
      %p134 = scmp.eq.s32.totalorder %s31, 0
      %p135 = por %p133, %p134
      %p136 = scmp.ne.s32.totalorder %s128, %s130
      %p137 = scmp.eq.s32.totalorder %s36, 1
      %p138 = por %p136, %p137
      %p139 = scmp.ne.s32.totalorder %s130, %s131
      %p140 = scmp.eq.s32.totalorder %s36, 0
      %p141 = por %p139, %p140
      %p142 = scmp.ne.s32.totalorder %s130, %s131
      %p143 = scmp.eq.s32.totalorder %s37, 1
      %p144 = por %p142, %p143
      %p146 = scmp.ne.s32.totalorder %s131, %s145
      %p147 = scmp.eq.s32.totalorder %s37, 0
      %p148 = por %p146, %p147
      %s150 = sadd.s32 %s149, 1
      %p153 = scmp.eq.s32.totalorder %s31, 1
      %p154 = scmp.ne.s32.totalorder %s149, %s151
      %p155 = scmp.eq.s32.totalorder %s31, 0
      %p156 = por %p154, %p155
      %p157 = scmp.ne.s32.totalorder %s149, %s151
      %p158 = scmp.eq.s32.totalorder %s36, 1
      %p159 = por %p157, %p158
      %p160 = scmp.ne.s32.totalorder %s151, %s152
      %p161 = scmp.eq.s32.totalorder %s36, 0
      %p162 = por %p160, %p161
      %p163 = scmp.ne.s32.totalorder %s151, %s152
      %p164 = scmp.eq.s32.totalorder %s37, 1
      %p165 = por %p163, %p164
      %p167 = scmp.ne.s32.totalorder %s152, %s166
      %p168 = scmp.eq.s32.totalorder %s37, 0
      %p169 = por %p167, %p168
      %s171 = sadd.s32 %s170, 1
      %p174 = scmp.eq.s32.totalorder %s31, 1
      %p175 = scmp.ne.s32.totalorder %s170, %s172
      %p176 = scmp.eq.s32.totalorder %s31, 0
      %p177 = por %p175, %p176
      %p178 = scmp.ne.s32.totalorder %s170, %s172
      %p179 = scmp.eq.s32.totalorder %s36, 1
      %p180 = por %p178, %p179
      %p181 = scmp.ne.s32.totalorder %s172, %s173
      %p182 = scmp.eq.s32.totalorder %s36, 0
      %p183 = por %p181, %p182
      %p184 = scmp.ne.s32.totalorder %s172, %s173
      %p185 = scmp.eq.s32.totalorder %s37, 1
      %p186 = por %p184, %p185
      %p188 = scmp.ne.s32.totalorder %s173, %s187
      %p189 = scmp.eq.s32.totalorder %s37, 0
      %p190 = por %p188, %p189
      %s192 = sadd.s32 %s191, 1
      %p195 = scmp.eq.s32.totalorder %s31, 1
      %p196 = scmp.ne.s32.totalorder %s191, %s193
      %p197 = scmp.eq.s32.totalorder %s31, 0
      %p198 = por %p196, %p197
      %p199 = scmp.ne.s32.totalorder %s191, %s193
      %p200 = scmp.eq.s32.totalorder %s36, 1
      %p201 = por %p199, %p200
      %p202 = scmp.ne.s32.totalorder %s193, %s194
      %p203 = scmp.eq.s32.totalorder %s36, 0
      %p204 = por %p202, %p203
      %p205 = scmp.ne.s32.totalorder %s193, %s194
      %p206 = scmp.eq.s32.totalorder %s37, 1
      %p207 = por %p205, %p206
      %p209 = scmp.ne.s32.totalorder %s194, %s208
      %p210 = scmp.eq.s32.totalorder %s37, 0
      %p211 = por %p209, %p210
      %s213 = sadd.s32 %s212, 1
      %p216 = scmp.eq.s32.totalorder %s31, 1
      %p217 = scmp.ne.s32.totalorder %s212, %s214
      %p218 = scmp.eq.s32.totalorder %s31, 0
      %p219 = por %p217, %p218
      %p220 = scmp.ne.s32.totalorder %s212, %s214
      %p221 = scmp.eq.s32.totalorder %s36, 1
      %p222 = por %p220, %p221
      %p223 = scmp.ne.s32.totalorder %s214, %s215
      %p224 = scmp.eq.s32.totalorder %s36, 0
      %p225 = por %p223, %p224
      %p226 = scmp.ne.s32.totalorder %s214, %s215
      %p227 = scmp.eq.s32.totalorder %s37, 1
      %p228 = por %p226, %p227
      %p230 = scmp.ne.s32.totalorder %s215, %s229
      %p231 = scmp.eq.s32.totalorder %s37, 0
      %p232 = por %p230, %p231
      %s234 = sadd.s32 %s233, 1
      %p237 = scmp.eq.s32.totalorder %s31, 1
      %p238 = scmp.ne.s32.totalorder %s233, %s235
      %p239 = scmp.eq.s32.totalorder %s31, 0
      %p240 = por %p238, %p239
      %p241 = scmp.ne.s32.totalorder %s233, %s235
      %p242 = scmp.eq.s32.totalorder %s36, 1
      %p243 = por %p241, %p242
      %p244 = scmp.ne.s32.totalorder %s235, %s236
      %p245 = scmp.eq.s32.totalorder %s36, 0
      %p246 = por %p244, %p245
      %p247 = scmp.ne.s32.totalorder %s235, %s236
      %p248 = scmp.eq.s32.totalorder %s37, 1
      %p249 = por %p247, %p248
      %p251 = scmp.ne.s32.totalorder %s236, %s250
      %p252 = scmp.eq.s32.totalorder %s37, 0
      %p253 = por %p251, %p252
      %s255 = sadd.s32 %s254, 1
      %p258 = scmp.eq.s32.totalorder %s31, 1
      %p259 = scmp.ne.s32.totalorder %s254, %s256
      %p260 = scmp.eq.s32.totalorder %s31, 0
      %p261 = por %p259, %p260
      %p262 = scmp.ne.s32.totalorder %s254, %s256
      %p263 = scmp.eq.s32.totalorder %s36, 1
      %p264 = por %p262, %p263
      %p265 = scmp.ne.s32.totalorder %s256, %s257
      %p266 = scmp.eq.s32.totalorder %s36, 0
      %p267 = por %p265, %p266
      %p268 = scmp.ne.s32.totalorder %s256, %s257
      %p269 = scmp.eq.s32.totalorder %s37, 1
      %p270 = por %p268, %p269
      %p272 = scmp.ne.s32.totalorder %s257, %s271
      %p273 = scmp.eq.s32.totalorder %s37, 0
      %p274 = por %p272, %p273
      %s275 = ssub.s32 %s31, %s38
      %p276 = scmp.eq.s32.totalorder %s275, 0
      %s278 = sadd.s32 %s277, 1
      %s279 = scalar_select %p276, %s277, %s278
      %p282 = pneg %p276
      %p283 = scmp.eq.s32.totalorder %s31, 1
      %p284 = por %p282, %p283
      %p285 = scmp.ne.s32.totalorder %s277, %s280
      %p286 = scmp.eq.s32.totalorder %s31, 0
      %p287 = por %p285, %p286
      %p288 = scmp.ne.s32.totalorder %s277, %s280
      %p289 = scmp.eq.s32.totalorder %s36, 1
      %p290 = por %p288, %p289
      %p291 = scmp.ne.s32.totalorder %s280, %s281
      %p292 = scmp.eq.s32.totalorder %s36, 0
      %p293 = por %p291, %p292
      %p294 = scmp.ne.s32.totalorder %s280, %s281
      %p295 = scmp.eq.s32.totalorder %s37, 1
      %p296 = por %p294, %p295
      %p298 = scmp.ne.s32.totalorder %s281, %s297
      %p299 = scmp.eq.s32.totalorder %s37, 0
      %p300 = por %p298, %p299
      %s301 = ssub.s32 %s31, %s38
      %p302 = scmp.eq.s32.totalorder %s301, 0
      %s304 = sadd.s32 %s303, 1
      %s305 = scalar_select %p302, %s303, %s304
      %p308 = pneg %p302
      %p309 = scmp.eq.s32.totalorder %s31, 1
      %p310 = por %p308, %p309
      %p311 = scmp.ne.s32.totalorder %s303, %s306
      %p312 = scmp.eq.s32.totalorder %s31, 0
      %p313 = por %p311, %p312
      %p314 = scmp.ne.s32.totalorder %s303, %s306
      %p315 = scmp.eq.s32.totalorder %s36, 1
      %p316 = por %p314, %p315
      %p317 = scmp.ne.s32.totalorder %s306, %s307
      %p318 = scmp.eq.s32.totalorder %s36, 0
      %p319 = por %p317, %p318
      %p320 = scmp.ne.s32.totalorder %s306, %s307
      %p321 = scmp.eq.s32.totalorder %s37, 1
      %p322 = por %p320, %p321
      %p324 = scmp.ne.s32.totalorder %s307, %s323
      %p325 = scmp.eq.s32.totalorder %s37, 0
      %p326 = por %p324, %p325
      %p327 = scmp.le.s32.totalorder 1, %s31
      %p328 = scmp.lt.s32.totalorder %s31, 3
      %p329 = pnand %p327, %p328
      %p330 = pneg %p329
      // Predicated region
      $region9: #{_forward_impl.3} parent=5 // pred_check
        _
      $region10: #{_forward_impl.3} parent=5 // pred_check_branch
        %332 = sbr.rel (%p329) target = $region12
      $region11: #{_forward_impl.3} parent=5 // pred_region
        %s333 = ssub.s32 %s31, 1
        // Predicated region
        $region13: #{_forward_impl.3} parent=11 // pred_check
          %p334 = pneg %p78
        $region14: #{_forward_impl.3} parent=11 // pred_check_branch
          %336 = sbr.rel (%p334) target = $region16
        $region15: #{_forward_impl.3} parent=11 // pred_region
          %338 = vsyncadd [#allocation4], 0
          %s339 = sshll.u32 %s1, 4
          %s340 = int_to_ptr.hbm [resolvable:$true] %s339
          %s341 = sshll.u32 [#allocation3], 4
          %s342 = int_to_ptr.vmem [resolvable:$true] %s341
          %347 = dma.hbm_to_vmem [thread:$0]  %s340, 20480, %s342, [#allocation4], 128, 128, 8
        $region16: #{_forward_impl.3} parent=11 // pred_fallthru
          _
        // Predicated region
        $region17: #{_forward_impl.3} parent=11 // pred_check
          %p348 = pneg %p99
        $region18: #{_forward_impl.3} parent=11 // pred_check_branch
          %350 = sbr.rel (%p348) target = $region20
        $region19: #{_forward_impl.3} parent=11 // pred_region
          %352 = vsyncadd [#allocation7], 0
          %s354 = sshll.u32 %s2, 4
          %s355 = int_to_ptr.hbm [resolvable:$true] %s354
          %s356 = sshll.u32 [#allocation6], 4
          %s357 = int_to_ptr.vmem [resolvable:$true] %s356
          %359 = dma.hbm_to_vmem [thread:$0]  %s355, 32, %s357, [#allocation7]
        $region20: #{_forward_impl.3} parent=11 // pred_fallthru
          _
        // Predicated region
        $region21: #{_forward_impl.3} parent=11 // pred_check
          %p360 = pneg %p120
        $region22: #{_forward_impl.3} parent=11 // pred_check_branch
          %362 = sbr.rel (%p360) target = $region24
        $region23: #{_forward_impl.3} parent=11 // pred_region
          %364 = vsyncadd [#allocation7], 0
          %s365 = sshll.u32 %s3, 4
          %s366 = int_to_ptr.hbm [resolvable:$true] %s365
          %s367 = sshll.u32 [#allocation8], 4
          %s368 = int_to_ptr.vmem [resolvable:$true] %s367
          %373 = dma.hbm_to_vmem [thread:$0]  %s366, 20480, %s368, [#allocation7], 128, 128, 8
        $region24: #{_forward_impl.3} parent=11 // pred_fallthru
          _
        // Predicated region
        $region25: #{_forward_impl.3} parent=11 // pred_check
          %p374 = pneg %p141
        $region26: #{_forward_impl.3} parent=11 // pred_check_branch
          %376 = sbr.rel (%p374) target = $region28
        $region27: #{_forward_impl.3} parent=11 // pred_region
          %378 = vsyncadd [#allocation10], 0
          %s380 = sshll.u32 %s4, 4
          %s381 = int_to_ptr.hbm [resolvable:$true] %s380
          %s382 = sshll.u32 [#allocation9], 4
          %s383 = int_to_ptr.vmem [resolvable:$true] %s382
          %385 = dma.hbm_to_vmem [thread:$0]  %s381, 32, %s383, [#allocation10]
        $region28: #{_forward_impl.3} parent=11 // pred_fallthru
          _
        // Predicated region
        $region29: #{_forward_impl.3} parent=11 // pred_check
          %p386 = pneg %p162
        $region30: #{_forward_impl.3} parent=11 // pred_check_branch
          %388 = sbr.rel (%p386) target = $region32
        $region31: #{_forward_impl.3} parent=11 // pred_region
          %390 = vsyncadd [#allocation10], 0
          %s391 = sshll.u32 %s5, 4
          %s392 = int_to_ptr.hbm [resolvable:$true] %s391
          %s393 = sshll.u32 [#allocation11], 4
          %s394 = int_to_ptr.vmem [resolvable:$true] %s393
          %399 = dma.hbm_to_vmem [thread:$0]  %s392, 12288, %s394, [#allocation10], 128, 128, 8
        $region32: #{_forward_impl.3} parent=11 // pred_fallthru
          _
        // Predicated region
        $region33: #{_forward_impl.3} parent=11 // pred_check
          %p400 = pneg %p183
        $region34: #{_forward_impl.3} parent=11 // pred_check_branch
          %402 = sbr.rel (%p400) target = $region36
        $region35: #{_forward_impl.3} parent=11 // pred_region
          %404 = vsyncadd [#allocation13], 0
          %s406 = sshll.u32 %s6, 4
          %s407 = int_to_ptr.hbm [resolvable:$true] %s406
          %s408 = sshll.u32 [#allocation12], 4
          %s409 = int_to_ptr.vmem [resolvable:$true] %s408
          %411 = dma.hbm_to_vmem [thread:$0]  %s407, 32, %s409, [#allocation13]
        $region36: #{_forward_impl.3} parent=11 // pred_fallthru
          _
        // Predicated region
        $region37: #{_forward_impl.3} parent=11 // pred_check
          %p412 = pneg %p204
        $region38: #{_forward_impl.3} parent=11 // pred_check_branch
          %414 = sbr.rel (%p412) target = $region40
        $region39: #{_forward_impl.3} parent=11 // pred_region
          %416 = vsyncadd [#allocation13], 0
          %s417 = sshll.u32 %s7, 4
          %s418 = int_to_ptr.hbm [resolvable:$true] %s417
          %s419 = sshll.u32 [#allocation14], 4
          %s420 = int_to_ptr.vmem [resolvable:$true] %s419
          %425 = dma.hbm_to_vmem [thread:$0]  %s418, 4096, %s420, [#allocation13], 128, 128, 8
        $region40: #{_forward_impl.3} parent=11 // pred_fallthru
          _
        // Predicated region
        $region41: #{_forward_impl.3} parent=11 // pred_check
          %p426 = pneg %p225
        $region42: #{_forward_impl.3} parent=11 // pred_check_branch
          %428 = sbr.rel (%p426) target = $region44
        $region43: #{_forward_impl.3} parent=11 // pred_region
          %430 = vsyncadd [#allocation16], 0
          %s432 = sshll.u32 %s8, 4
          %s433 = int_to_ptr.hbm [resolvable:$true] %s432
          %s434 = sshll.u32 [#allocation15], 4
          %s435 = int_to_ptr.vmem [resolvable:$true] %s434
          %437 = dma.hbm_to_vmem [thread:$0]  %s433, 32, %s435, [#allocation16]
        $region44: #{_forward_impl.3} parent=11 // pred_fallthru
          _
        // Predicated region
        $region45: #{_forward_impl.3} parent=11 // pred_check
          %p438 = pneg %p246
        $region46: #{_forward_impl.3} parent=11 // pred_check_branch
          %440 = sbr.rel (%p438) target = $region48
        $region47: #{_forward_impl.3} parent=11 // pred_region
          %442 = vsyncadd [#allocation16], 0
          %s443 = sshll.u32 %s9, 4
          %s444 = int_to_ptr.hbm [resolvable:$true] %s443
          %s445 = sshll.u32 [#allocation17], 4
          %s446 = int_to_ptr.vmem [resolvable:$true] %s445
          %451 = dma.hbm_to_vmem [thread:$0]  %s444, 2048, %s446, [#allocation16], 64, 64, 4
        $region48: #{_forward_impl.3} parent=11 // pred_fallthru
          _
        // Predicated region
        $region49: #{_forward_impl.3} parent=11 // pred_check
          %p452 = pneg %p267
        $region50: #{_forward_impl.3} parent=11 // pred_check_branch
          %454 = sbr.rel (%p452) target = $region52
        $region51: #{_forward_impl.3} parent=11 // pred_region
          %456 = vsyncadd [#allocation19], 0
          %s458 = sshll.u32 %s10, 4
          %s459 = int_to_ptr.hbm [resolvable:$true] %s458
          %s460 = sshll.u32 [#allocation18], 4
          %s461 = int_to_ptr.vmem [resolvable:$true] %s460
          %463 = dma.hbm_to_vmem [thread:$0]  %s459, 16, %s461, [#allocation19]
        $region52: #{_forward_impl.3} parent=11 // pred_fallthru
          _
      $region12: #{_forward_impl.3} parent=5 // pred_fallthru
        _
      %p464 = scmp.lt.s32.totalorder %s31, 2
      // Predicated region
      $region53: #{_forward_impl.3} parent=5 // pred_check
        %p465 = pneg %p464
      $region54: #{_forward_impl.3} parent=5 // pred_check_branch
        %467 = sbr.rel (%p465) target = $region56
      $region55: #{_forward_impl.3} parent=5 // pred_region
        // Predicated region
        $region57: #{_forward_impl.3} parent=55 // pred_check
          %p468 = pneg %p51
        $region58: #{_forward_impl.3} parent=55 // pred_check_branch
          %470 = sbr.rel (%p468) target = $region60
        $region59: #{_forward_impl.3} parent=55 // pred_region
          %p471 = scmp.lt.s32.totalorder %s31, 1
          %s472 = scalar_select %p471, %s31, 1
          %s473 = smul.addr %s472, 2
          %s474 = smul.addr %s473, 4
          %s475 = scalar_lea.vmem %s0, %s474
        $region60: #{_forward_impl.3} parent=55 // pred_fallthru
          _
      $region56: #{_forward_impl.3} parent=5 // pred_fallthru
        _
      %p476 = scmp.le.s32.totalorder 1, %s31
      %p477 = scmp.lt.s32.totalorder %s31, 3
      %p478 = pnand %p476, %p477
      %p479 = pneg %p478
      // Predicated region
      $region61: #{_forward_impl.3} parent=5 // pred_check
        _
      $region62: #{_forward_impl.3} parent=5 // pred_check_branch
        %481 = sbr.rel (%p478) target = $region64
      $region63: #{_forward_impl.3} parent=5 // pred_region
        %s482 = ssub.s32 %s31, 1
        // Predicated region
        $region65: #{_forward_impl.3} parent=63 // pred_check
          %p483 = pneg %p78
        $region66: #{_forward_impl.3} parent=63 // pred_check_branch
          %485 = sbr.rel (%p483) target = $region68
        $region67: #{_forward_impl.3} parent=63 // pred_region
          %487 = dma.done [#allocation4], 20480
        $region68: #{_forward_impl.3} parent=63 // pred_fallthru
          _
        // Predicated region
        $region69: #{_forward_impl.3} parent=63 // pred_check
          %p488 = pneg %p99
        $region70: #{_forward_impl.3} parent=63 // pred_check_branch
          %490 = sbr.rel (%p488) target = $region72
        $region71: #{_forward_impl.3} parent=63 // pred_region
          %492 = dma.done [#allocation7], 32
        $region72: #{_forward_impl.3} parent=63 // pred_fallthru
          _
        // Predicated region
        $region73: #{_forward_impl.3} parent=63 // pred_check
          %p493 = pneg %p120
        $region74: #{_forward_impl.3} parent=63 // pred_check_branch
          %495 = sbr.rel (%p493) target = $region76
        $region75: #{_forward_impl.3} parent=63 // pred_region
          %497 = dma.done [#allocation7], 20480
        $region76: #{_forward_impl.3} parent=63 // pred_fallthru
          _
        // Predicated region
        $region77: #{_forward_impl.3} parent=63 // pred_check
          %p498 = pneg %p141
        $region78: #{_forward_impl.3} parent=63 // pred_check_branch
          %500 = sbr.rel (%p498) target = $region80
        $region79: #{_forward_impl.3} parent=63 // pred_region
          %502 = dma.done [#allocation10], 32
        $region80: #{_forward_impl.3} parent=63 // pred_fallthru
          _
        // Predicated region
        $region81: #{_forward_impl.3} parent=63 // pred_check
          %p503 = pneg %p162
        $region82: #{_forward_impl.3} parent=63 // pred_check_branch
          %505 = sbr.rel (%p503) target = $region84
        $region83: #{_forward_impl.3} parent=63 // pred_region
          %507 = dma.done [#allocation10], 12288
        $region84: #{_forward_impl.3} parent=63 // pred_fallthru
          _
        // Predicated region
        $region85: #{_forward_impl.3} parent=63 // pred_check
          %p508 = pneg %p183
        $region86: #{_forward_impl.3} parent=63 // pred_check_branch
          %510 = sbr.rel (%p508) target = $region88
        $region87: #{_forward_impl.3} parent=63 // pred_region
          %512 = dma.done [#allocation13], 32
        $region88: #{_forward_impl.3} parent=63 // pred_fallthru
          _
        // Predicated region
        $region89: #{_forward_impl.3} parent=63 // pred_check
          %p513 = pneg %p204
        $region90: #{_forward_impl.3} parent=63 // pred_check_branch
          %515 = sbr.rel (%p513) target = $region92
        $region91: #{_forward_impl.3} parent=63 // pred_region
          %517 = dma.done [#allocation13], 4096
        $region92: #{_forward_impl.3} parent=63 // pred_fallthru
          _
        // Predicated region
        $region93: #{_forward_impl.3} parent=63 // pred_check
          %p518 = pneg %p225
        $region94: #{_forward_impl.3} parent=63 // pred_check_branch
          %520 = sbr.rel (%p518) target = $region96
        $region95: #{_forward_impl.3} parent=63 // pred_region
          %522 = dma.done [#allocation16], 32
        $region96: #{_forward_impl.3} parent=63 // pred_fallthru
          _
        // Predicated region
        $region97: #{_forward_impl.3} parent=63 // pred_check
          %p523 = pneg %p246
        $region98: #{_forward_impl.3} parent=63 // pred_check_branch
          %525 = sbr.rel (%p523) target = $region100
        $region99: #{_forward_impl.3} parent=63 // pred_region
          %527 = dma.done [#allocation16], 2048
        $region100: #{_forward_impl.3} parent=63 // pred_fallthru
          _
        // Predicated region
        $region101: #{_forward_impl.3} parent=63 // pred_check
          %p528 = pneg %p267
        $region102: #{_forward_impl.3} parent=63 // pred_check_branch
          %530 = sbr.rel (%p528) target = $region104
        $region103: #{_forward_impl.3} parent=63 // pred_region
          %532 = dma.done [#allocation19], 16
        $region104: #{_forward_impl.3} parent=63 // pred_fallthru
          _
        %p533 = scmp.lt.s32.totalorder %s36, 1
        %s534 = scalar_select %p533, %s36, 1
        %s535 = smul.addr %s534, 2
        %s536 = smul.addr %s535, 4
        %s537 = scalar_lea.vmem %s0, %s536
        %p538 = pneg %p57
        %p539 = pneg %p54
        %p540 = pneg %p78
        %p541 = pneg %p75
        %p542 = pneg %p99
        %p543 = pneg %p96
        %p544 = pneg %p120
        %p545 = pneg %p117
        %p546 = pneg %p141
        %p547 = pneg %p138
        %p548 = pneg %p162
        %p549 = pneg %p159
        %p550 = pneg %p183
        %p551 = pneg %p180
        %p552 = pneg %p204
        %p553 = pneg %p201
        %p554 = pneg %p225
        %p555 = pneg %p222
        %p556 = pneg %p246
        %p557 = pneg %p243
        %p558 = pneg %p267
        %p559 = pneg %p264
        %p560 = pneg %p293
        %p561 = pneg %p290
        %s562 = sand.u32 %s280, 1
        %s563 = scalar_lea.sflag [#allocation5], %s562
        %s564 = sand.u32 %s280, 1
        %s565 = smul.addr %s564, 2
        %s566 = scalar_lea.vmem [#allocation20], %s565
        %p567 = pneg %p319
        %p568 = pneg %p316
        %s569 = sand.u32 %s306, 1
        %s570 = scalar_lea.sflag [#allocation22], %s569
        %s571 = sand.u32 %s306, 1
        %s572 = smul.addr %s571, 2
        %s573 = scalar_lea.vmem [#allocation21], %s572
        %p574 = scmp.lt.s32.totalorder %s36, 1
        %s575 = scalar_select %p574, %s36, 1
        %s576 = smul.addr %s575, 2
        %s577 = smul.addr %s576, 4
        %s578 = scalar_lea.vmem %s0, %s577
        %v580 = vld [vmem:[%s578] sm:$0xff]
        %581 = vst [vmem:[#allocation2] sm:$0x11] 0
        %582 = vst [vmem:[#allocation2 + $0x8] sm:$0x22] 0
        %v584 = vrot.slane %v580, 7
        %v585 = vrot.slane %v584, 4
        %588 = vst [vmem:[#allocation2] sm:$0xee] %v584
        %589 = vst [vmem:[#allocation2 + $0x8] sm:$0x11] %v585
        %v590 = vld [vmem:[#allocation2] sm:$0xff]
        %v591 = vld [vmem:[#allocation3] sm:$0xff]
        %v592 = vld [vmem:[#allocation3 + $0x8] sm:$0xff]
        %v593 = vld [vmem:[#allocation3 + $0x10] sm:$0xff]
        %v594 = vld [vmem:[#allocation3 + $0x18] sm:$0xff]
        %v595 = vld [vmem:[#allocation3 + $0x20] sm:$0xff]
        %v596 = vld [vmem:[#allocation3 + $0x28] sm:$0xff]
        %v597 = vld [vmem:[#allocation3 + $0x30] sm:$0xff]
        %v598 = vld [vmem:[#allocation3 + $0x38] sm:$0xff]
        %v599 = vld [vmem:[#allocation3 + $0x40] sm:$0xff]
        %v600 = vld [vmem:[#allocation3 + $0x48] sm:$0xff]
        %v601 = vld [vmem:[#allocation3 + $0x50] sm:$0xff]
        %v602 = vld [vmem:[#allocation3 + $0x58] sm:$0xff]
        %v603 = vld [vmem:[#allocation3 + $0x60] sm:$0xff]
        %v604 = vld [vmem:[#allocation3 + $0x68] sm:$0xff]
        %v605 = vld [vmem:[#allocation3 + $0x70] sm:$0xff]
        %v606 = vld [vmem:[#allocation3 + $0x78] sm:$0xff]
        %v607 = vld [vmem:[#allocation3 + $0x80] sm:$0xff]
        %v608 = vld [vmem:[#allocation3 + $0x88] sm:$0xff]
        %v609 = vld [vmem:[#allocation3 + $0x90] sm:$0xff]
        %v610 = vld [vmem:[#allocation3 + $0x98] sm:$0xff]
        %v611 = vld [vmem:[#allocation3 + $0xa0] sm:$0xff]
        %v612 = vld [vmem:[#allocation3 + $0xa8] sm:$0xff]
        %v613 = vld [vmem:[#allocation3 + $0xb0] sm:$0xff]
        %v614 = vld [vmem:[#allocation3 + $0xb8] sm:$0xff]
        %v615 = vld [vmem:[#allocation3 + $0xc0] sm:$0xff]
        %v616 = vld [vmem:[#allocation3 + $0xc8] sm:$0xff]
        %v617 = vld [vmem:[#allocation3 + $0xd0] sm:$0xff]
        %v618 = vld [vmem:[#allocation3 + $0xd8] sm:$0xff]
        %v619 = vld [vmem:[#allocation3 + $0xe0] sm:$0xff]
        %v620 = vld [vmem:[#allocation3 + $0xe8] sm:$0xff]
        %v621 = vld [vmem:[#allocation3 + $0xf0] sm:$0xff]
        %v622 = vld [vmem:[#allocation3 + $0xf8] sm:$0xff]
        %v623 = vld [vmem:[#allocation2 + $0x8] sm:$0x11]
        %s624 = scalar_lea.vmem [#allocation3], 256
        %v625 = vld [vmem:[%s624] sm:$0xff]
        %v626 = vld [vmem:[%s624 + $0x8] sm:$0xff]
        %v627 = vld [vmem:[%s624 + $0x10] sm:$0xff]
        %v628 = vld [vmem:[%s624 + $0x18] sm:$0xff]
        %v629 = vld [vmem:[%s624 + $0x20] sm:$0xff]
        %v630 = vld [vmem:[%s624 + $0x28] sm:$0xff]
        %v631 = vld [vmem:[%s624 + $0x30] sm:$0xff]
        %v632 = vld [vmem:[%s624 + $0x38] sm:$0xff]
        %v633 = vld [vmem:[%s624 + $0x40] sm:$0xff]
        %v634 = vld [vmem:[%s624 + $0x48] sm:$0xff]
        %v635 = vld [vmem:[%s624 + $0x50] sm:$0xff]
        %v636 = vld [vmem:[%s624 + $0x58] sm:$0xff]
        %v637 = vld [vmem:[%s624 + $0x60] sm:$0xff]
        %v638 = vld [vmem:[%s624 + $0x68] sm:$0xff]
        %v639 = vld [vmem:[%s624 + $0x70] sm:$0xff]
        %v640 = vld [vmem:[%s624 + $0x78] sm:$0xff]
        %v641 = vld [vmem:[%s624 + $0x80] sm:$0xff]
        %v642 = vld [vmem:[%s624 + $0x88] sm:$0xff]
        %v643 = vld [vmem:[%s624 + $0x90] sm:$0xff]
        %v644 = vld [vmem:[%s624 + $0x98] sm:$0xff]
        %v645 = vld [vmem:[%s624 + $0xa0] sm:$0xff]
        %v646 = vld [vmem:[%s624 + $0xa8] sm:$0xff]
        %v647 = vld [vmem:[%s624 + $0xb0] sm:$0xff]
        %v648 = vld [vmem:[%s624 + $0xb8] sm:$0xff]
        %v649 = vld [vmem:[%s624 + $0xc0] sm:$0xff]
        %v650 = vld [vmem:[%s624 + $0xc8] sm:$0xff]
        %v651 = vld [vmem:[%s624 + $0xd0] sm:$0xff]
        %v652 = vld [vmem:[%s624 + $0xd8] sm:$0xff]
        %v653 = vld [vmem:[%s624 + $0xe0] sm:$0xff]
        %v654 = vld [vmem:[%s624 + $0xe8] sm:$0xff]
        %v655 = vld [vmem:[%s624 + $0xf0] sm:$0xff]
        %v656 = vld [vmem:[%s624 + $0xf8] sm:$0xff]
        %v659 = vunpack.c.l.b16 %v590
        %v660 = vunpack.c.h.b16 %v590
        %v661 = vunpack.c.l.b16 %v623
        %v662 = vunpack.c.h.b16 %v623
        %v663 = vpack.c.b16 %v661, %v659
        %v664 = vpack.c.b16 %v662, %v660
        %v666 = vshrl.u32 %v663, 16
        %v668 = vshll.u32 %v663, 16
        %v670 = vrot.slane %v668, 1
        %v671 = vor.u32 %v666, %v670
        %v673 = vshrl.u32 %v664, 16
        %v675 = vshll.u32 %v664, 16
        %v677 = vrot.slane %v675, 1
        %v678 = vor.u32 %v673, %v677
        %v713 = vunpack.c.l.b16 %v625
        %v714 = vunpack.c.h.b16 %v625
        %v715 = vunpack.c.l.b16 %v626
        %v716 = vunpack.c.h.b16 %v626
        %v717 = vunpack.c.l.b16 %v627
        %v718 = vunpack.c.h.b16 %v627
        %v719 = vunpack.c.l.b16 %v628
        %v720 = vunpack.c.h.b16 %v628
        %v721 = vunpack.c.l.b16 %v629
        %v722 = vunpack.c.h.b16 %v629
        %v723 = vunpack.c.l.b16 %v630
        %v724 = vunpack.c.h.b16 %v630
        %v725 = vunpack.c.l.b16 %v631
        %v726 = vunpack.c.h.b16 %v631
        %v727 = vunpack.c.l.b16 %v632
        %v728 = vunpack.c.h.b16 %v632
        %v729 = vunpack.c.l.b16 %v633
        %v730 = vunpack.c.h.b16 %v633
        %v731 = vunpack.c.l.b16 %v634
        %v732 = vunpack.c.h.b16 %v634
        %v733 = vunpack.c.l.b16 %v635
        %v734 = vunpack.c.h.b16 %v635
        %v735 = vunpack.c.l.b16 %v636
        %v736 = vunpack.c.h.b16 %v636
        %v737 = vunpack.c.l.b16 %v637
        %v738 = vunpack.c.h.b16 %v637
        %v739 = vunpack.c.l.b16 %v638
        %v740 = vunpack.c.h.b16 %v638
        %v741 = vunpack.c.l.b16 %v639
        %v742 = vunpack.c.h.b16 %v639
        %v743 = vunpack.c.l.b16 %v640
        %v744 = vunpack.c.h.b16 %v640
        %v745 = vunpack.c.l.b16 %v641
        %v746 = vunpack.c.h.b16 %v641
        %v747 = vunpack.c.l.b16 %v642
        %v748 = vunpack.c.h.b16 %v642
        %v749 = vunpack.c.l.b16 %v643
        %v750 = vunpack.c.h.b16 %v643
        %v751 = vunpack.c.l.b16 %v644
        %v752 = vunpack.c.h.b16 %v644
        %v753 = vunpack.c.l.b16 %v645
        %v754 = vunpack.c.h.b16 %v645
        %v755 = vunpack.c.l.b16 %v646
        %v756 = vunpack.c.h.b16 %v646
        %v757 = vunpack.c.l.b16 %v647
        %v758 = vunpack.c.h.b16 %v647
        %v759 = vunpack.c.l.b16 %v648
        %v760 = vunpack.c.h.b16 %v648
        %v761 = vunpack.c.l.b16 %v649
        %v762 = vunpack.c.h.b16 %v649
        %v763 = vunpack.c.l.b16 %v650
        %v764 = vunpack.c.h.b16 %v650
        %v765 = vunpack.c.l.b16 %v651
        %v766 = vunpack.c.h.b16 %v651
        %v767 = vunpack.c.l.b16 %v652
        %v768 = vunpack.c.h.b16 %v652
        %v769 = vunpack.c.l.b16 %v653
        %v770 = vunpack.c.h.b16 %v653
        %v771 = vunpack.c.l.b16 %v654
        %v772 = vunpack.c.h.b16 %v654
        %v773 = vunpack.c.l.b16 %v655
        %v774 = vunpack.c.h.b16 %v655
        %v775 = vunpack.c.l.b16 %v656
        %v776 = vunpack.c.h.b16 %v656
        %v777 = vpack.c.b16 %v715, %v713
        %v778 = vpack.c.b16 %v716, %v714
        %v779 = vpack.c.b16 %v719, %v717
        %v780 = vpack.c.b16 %v720, %v718
        %v781 = vpack.c.b16 %v723, %v721
        %v782 = vpack.c.b16 %v724, %v722
        %v783 = vpack.c.b16 %v727, %v725
        %v784 = vpack.c.b16 %v728, %v726
        %v785 = vpack.c.b16 %v731, %v729
        %v786 = vpack.c.b16 %v732, %v730
        %v787 = vpack.c.b16 %v735, %v733
        %v788 = vpack.c.b16 %v736, %v734
        %v789 = vpack.c.b16 %v739, %v737
        %v790 = vpack.c.b16 %v740, %v738
        %v791 = vpack.c.b16 %v743, %v741
        %v792 = vpack.c.b16 %v744, %v742
        %v793 = vpack.c.b16 %v747, %v745
        %v794 = vpack.c.b16 %v748, %v746
        %v795 = vpack.c.b16 %v751, %v749
        %v796 = vpack.c.b16 %v752, %v750
        %v797 = vpack.c.b16 %v755, %v753
        %v798 = vpack.c.b16 %v756, %v754
        %v799 = vpack.c.b16 %v759, %v757
        %v800 = vpack.c.b16 %v760, %v758
        %v801 = vpack.c.b16 %v763, %v761
        %v802 = vpack.c.b16 %v764, %v762
        %v803 = vpack.c.b16 %v767, %v765
        %v804 = vpack.c.b16 %v768, %v766
        %v805 = vpack.c.b16 %v771, %v769
        %v806 = vpack.c.b16 %v772, %v770
        %v807 = vpack.c.b16 %v775, %v773
        %v808 = vpack.c.b16 %v776, %v774
        %841 = vmatpush.bf16.msra.mxu0 %v791
        %842 = vmatpush.bf16.msra.mxu0 %v789
        %843 = vmatpush.bf16.msra.mxu0 %v787
        %844 = vmatpush.bf16.msra.mxu0 %v785
        %845 = vmatpush.bf16.msra.mxu0 %v783
        %846 = vmatpush.bf16.msra.mxu0 %v781
        %847 = vmatpush.bf16.msra.mxu0 %v779
        %848 = vmatpush.bf16.msra.mxu0 %v777
        %849 = vmatmul.bf16.gmra.mxu0 %v671
        %v850 = vpop.f32.mrf.mxu0
        %v851 = vadd.f32 0.0, %v850
        %v852 = vpop.f32.mrf.mxu0
        %853 = vdwg.mxu0
        %854 = vmatpush.bf16.msra.mxu0 %v807
        %855 = vmatpush.bf16.msra.mxu0 %v805
        %856 = vmatpush.bf16.msra.mxu0 %v803
        %857 = vmatpush.bf16.msra.mxu0 %v801
        %858 = vmatpush.bf16.msra.mxu0 %v799
        %859 = vmatpush.bf16.msra.mxu0 %v797
        %860 = vmatpush.bf16.msra.mxu0 %v795
        %861 = vmatpush.bf16.msra.mxu0 %v793
        %862 = vmatmul.bf16.gmra.mxu0 %v678
        %v863 = vpop.f32.mrf.mxu0
        %v864 = vadd.f32 %v851, %v863
        %v865 = vpop.f32.mrf.mxu0
        %866 = vdwg.mxu0
        %867 = vmatpush.bf16.msra.mxu0 %v792
        %868 = vmatpush.bf16.msra.mxu0 %v790
        %869 = vmatpush.bf16.msra.mxu0 %v788
        %870 = vmatpush.bf16.msra.mxu0 %v786
        %871 = vmatpush.bf16.msra.mxu0 %v784
        %872 = vmatpush.bf16.msra.mxu0 %v782
        %873 = vmatpush.bf16.msra.mxu0 %v780
        %874 = vmatpush.bf16.msra.mxu0 %v778
        %875 = vmatmul.bf16.gmra.mxu0 %v671
        %v876 = vpop.f32.mrf.mxu0
        %v877 = vadd.f32 0.0, %v876
        %v878 = vpop.f32.mrf.mxu0
        %879 = vdwg.mxu0
        %880 = vmatpush.bf16.msra.mxu0 %v808
        %881 = vmatpush.bf16.msra.mxu0 %v806
        %882 = vmatpush.bf16.msra.mxu0 %v804
        %883 = vmatpush.bf16.msra.mxu0 %v802
        %884 = vmatpush.bf16.msra.mxu0 %v800
        %885 = vmatpush.bf16.msra.mxu0 %v798
        %886 = vmatpush.bf16.msra.mxu0 %v796
        %887 = vmatpush.bf16.msra.mxu0 %v794
        %888 = vmatmul.bf16.gmra.mxu0 %v678
        %v889 = vpop.f32.mrf.mxu0
        %v890 = vadd.f32 %v877, %v889
        %v891 = vpop.f32.mrf.mxu0
        %892 = vdwg.mxu0
        %v893 = vpack.c.b16 %v659, %v659
        %v894 = vpack.c.b16 %v660, %v660
        %v929 = vunpack.c.l.b16 %v591
        %v930 = vunpack.c.h.b16 %v591
        %v931 = vunpack.c.l.b16 %v592
        %v932 = vunpack.c.h.b16 %v592
        %v933 = vunpack.c.l.b16 %v593
        %v934 = vunpack.c.h.b16 %v593
        %v935 = vunpack.c.l.b16 %v594
        %v936 = vunpack.c.h.b16 %v594
        %v937 = vunpack.c.l.b16 %v595
        %v938 = vunpack.c.h.b16 %v595
        %v939 = vunpack.c.l.b16 %v596
        %v940 = vunpack.c.h.b16 %v596
        %v941 = vunpack.c.l.b16 %v597
        %v942 = vunpack.c.h.b16 %v597
        %v943 = vunpack.c.l.b16 %v598
        %v944 = vunpack.c.h.b16 %v598
        %v945 = vunpack.c.l.b16 %v599
        %v946 = vunpack.c.h.b16 %v599
        %v947 = vunpack.c.l.b16 %v600
        %v948 = vunpack.c.h.b16 %v600
        %v949 = vunpack.c.l.b16 %v601
        %v950 = vunpack.c.h.b16 %v601
        %v951 = vunpack.c.l.b16 %v602
        %v952 = vunpack.c.h.b16 %v602
        %v953 = vunpack.c.l.b16 %v603
        %v954 = vunpack.c.h.b16 %v603
        %v955 = vunpack.c.l.b16 %v604
        %v956 = vunpack.c.h.b16 %v604
        %v957 = vunpack.c.l.b16 %v605
        %v958 = vunpack.c.h.b16 %v605
        %v959 = vunpack.c.l.b16 %v606
        %v960 = vunpack.c.h.b16 %v606
        %v961 = vunpack.c.l.b16 %v607
        %v962 = vunpack.c.h.b16 %v607
        %v963 = vunpack.c.l.b16 %v608
        %v964 = vunpack.c.h.b16 %v608
        %v965 = vunpack.c.l.b16 %v609
        %v966 = vunpack.c.h.b16 %v609
        %v967 = vunpack.c.l.b16 %v610
        %v968 = vunpack.c.h.b16 %v610
        %v969 = vunpack.c.l.b16 %v611
        %v970 = vunpack.c.h.b16 %v611
        %v971 = vunpack.c.l.b16 %v612
        %v972 = vunpack.c.h.b16 %v612
        %v973 = vunpack.c.l.b16 %v613
        %v974 = vunpack.c.h.b16 %v613
        %v975 = vunpack.c.l.b16 %v614
        %v976 = vunpack.c.h.b16 %v614
        %v977 = vunpack.c.l.b16 %v615
        %v978 = vunpack.c.h.b16 %v615
        %v979 = vunpack.c.l.b16 %v616
        %v980 = vunpack.c.h.b16 %v616
        %v981 = vunpack.c.l.b16 %v617
        %v982 = vunpack.c.h.b16 %v617
        %v983 = vunpack.c.l.b16 %v618
        %v984 = vunpack.c.h.b16 %v618
        %v985 = vunpack.c.l.b16 %v619
        %v986 = vunpack.c.h.b16 %v619
        %v987 = vunpack.c.l.b16 %v620
        %v988 = vunpack.c.h.b16 %v620
        %v989 = vunpack.c.l.b16 %v621
        %v990 = vunpack.c.h.b16 %v621
        %v991 = vunpack.c.l.b16 %v622
        %v992 = vunpack.c.h.b16 %v622
        %v993 = vpack.c.b16 %v931, %v929
        %v994 = vpack.c.b16 %v932, %v930
        %v995 = vpack.c.b16 %v935, %v933
        %v996 = vpack.c.b16 %v936, %v934
        %v997 = vpack.c.b16 %v939, %v937
        %v998 = vpack.c.b16 %v940, %v938
        %v999 = vpack.c.b16 %v943, %v941
        %v1000 = vpack.c.b16 %v944, %v942
        %v1001 = vpack.c.b16 %v947, %v945
        %v1002 = vpack.c.b16 %v948, %v946
        %v1003 = vpack.c.b16 %v951, %v949
        %v1004 = vpack.c.b16 %v952, %v950
        %v1005 = vpack.c.b16 %v955, %v953
        %v1006 = vpack.c.b16 %v956, %v954
        %v1007 = vpack.c.b16 %v959, %v957
        %v1008 = vpack.c.b16 %v960, %v958
        %v1009 = vpack.c.b16 %v963, %v961
        %v1010 = vpack.c.b16 %v964, %v962
        %v1011 = vpack.c.b16 %v967, %v965
        %v1012 = vpack.c.b16 %v968, %v966
        %v1013 = vpack.c.b16 %v971, %v969
        %v1014 = vpack.c.b16 %v972, %v970
        %v1015 = vpack.c.b16 %v975, %v973
        %v1016 = vpack.c.b16 %v976, %v974
        %v1017 = vpack.c.b16 %v979, %v977
        %v1018 = vpack.c.b16 %v980, %v978
        %v1019 = vpack.c.b16 %v983, %v981
        %v1020 = vpack.c.b16 %v984, %v982
        %v1021 = vpack.c.b16 %v987, %v985
        %v1022 = vpack.c.b16 %v988, %v986
        %v1023 = vpack.c.b16 %v991, %v989
        %v1024 = vpack.c.b16 %v992, %v990
        %1057 = vmatpush.bf16.msra.mxu0 %v1007
        %1058 = vmatpush.bf16.msra.mxu0 %v1005
        %1059 = vmatpush.bf16.msra.mxu0 %v1003
        %1060 = vmatpush.bf16.msra.mxu0 %v1001
        %1061 = vmatpush.bf16.msra.mxu0 %v999
        %1062 = vmatpush.bf16.msra.mxu0 %v997
        %1063 = vmatpush.bf16.msra.mxu0 %v995
        %1064 = vmatpush.bf16.msra.mxu0 %v993
        %1065 = vmatmul.bf16.gmra.mxu0 %v893
        %v1066 = vpop.f32.mrf.mxu0
        %v1067 = vadd.f32 %v864, %v1066
        %v1068 = vpop.f32.mrf.mxu0
        %1069 = vdwg.mxu0
        %1070 = vmatpush.bf16.msra.mxu0 %v1023
        %1071 = vmatpush.bf16.msra.mxu0 %v1021
        %1072 = vmatpush.bf16.msra.mxu0 %v1019
        %1073 = vmatpush.bf16.msra.mxu0 %v1017
        %1074 = vmatpush.bf16.msra.mxu0 %v1015
        %1075 = vmatpush.bf16.msra.mxu0 %v1013
        %1076 = vmatpush.bf16.msra.mxu0 %v1011
        %1077 = vmatpush.bf16.msra.mxu0 %v1009
        %1078 = vmatmul.bf16.gmra.mxu0 %v894
        %v1079 = vpop.f32.mrf.mxu0
        %v1080 = vadd.f32 %v1067, %v1079
        %v1081 = vpop.f32.mrf.mxu0
        %1082 = vdwg.mxu0
        %1083 = vmatpush.bf16.msra.mxu0 %v1008
        %1084 = vmatpush.bf16.msra.mxu0 %v1006
        %1085 = vmatpush.bf16.msra.mxu0 %v1004
        %1086 = vmatpush.bf16.msra.mxu0 %v1002
        %1087 = vmatpush.bf16.msra.mxu0 %v1000
        %1088 = vmatpush.bf16.msra.mxu0 %v998
        %1089 = vmatpush.bf16.msra.mxu0 %v996
        %1090 = vmatpush.bf16.msra.mxu0 %v994
        %1091 = vmatmul.bf16.gmra.mxu0 %v893
        %v1092 = vpop.f32.mrf.mxu0
        %v1093 = vadd.f32 %v890, %v1092
        %v1094 = vpop.f32.mrf.mxu0
        %1095 = vdwg.mxu0
        %1096 = vmatpush.bf16.msra.mxu0 %v1024
        %1097 = vmatpush.bf16.msra.mxu0 %v1022
        %1098 = vmatpush.bf16.msra.mxu0 %v1020
        %1099 = vmatpush.bf16.msra.mxu0 %v1018
        %1100 = vmatpush.bf16.msra.mxu0 %v1016
        %1101 = vmatpush.bf16.msra.mxu0 %v1014
        %1102 = vmatpush.bf16.msra.mxu0 %v1012
        %1103 = vmatpush.bf16.msra.mxu0 %v1010
        %1104 = vmatmul.bf16.gmra.mxu0 %v894
        %v1105 = vpop.f32.mrf.mxu0
        %v1106 = vadd.f32 %v1093, %v1105
        %v1107 = vpop.f32.mrf.mxu0
        %1108 = vdwg.mxu0
        %v1109 = vld [vmem:[#allocation2] sm:$0xee]
        %s1110 = scalar_lea.vmem [#allocation3], 512
        %v1111 = vld [vmem:[%s1110] sm:$0xff]
        %v1112 = vld [vmem:[%s1110 + $0x8] sm:$0xff]
        %v1113 = vld [vmem:[%s1110 + $0x10] sm:$0xff]
        %v1114 = vld [vmem:[%s1110 + $0x18] sm:$0xff]
        %v1115 = vld [vmem:[%s1110 + $0x20] sm:$0xff]
        %v1116 = vld [vmem:[%s1110 + $0x28] sm:$0xff]
        %v1117 = vld [vmem:[%s1110 + $0x30] sm:$0xff]
        %v1118 = vld [vmem:[%s1110 + $0x38] sm:$0xff]
        %v1119 = vld [vmem:[%s1110 + $0x40] sm:$0xff]
        %v1120 = vld [vmem:[%s1110 + $0x48] sm:$0xff]
        %v1121 = vld [vmem:[%s1110 + $0x50] sm:$0xff]
        %v1122 = vld [vmem:[%s1110 + $0x58] sm:$0xff]
        %v1123 = vld [vmem:[%s1110 + $0x60] sm:$0xff]
        %v1124 = vld [vmem:[%s1110 + $0x68] sm:$0xff]
        %v1125 = vld [vmem:[%s1110 + $0x70] sm:$0xff]
        %v1126 = vld [vmem:[%s1110 + $0x78] sm:$0xff]
        %v1127 = vld [vmem:[%s1110 + $0x80] sm:$0xff]
        %v1128 = vld [vmem:[%s1110 + $0x88] sm:$0xff]
        %v1129 = vld [vmem:[%s1110 + $0x90] sm:$0xff]
        %v1130 = vld [vmem:[%s1110 + $0x98] sm:$0xff]
        %v1131 = vld [vmem:[%s1110 + $0xa0] sm:$0xff]
        %v1132 = vld [vmem:[%s1110 + $0xa8] sm:$0xff]
        %v1133 = vld [vmem:[%s1110 + $0xb0] sm:$0xff]
        %v1134 = vld [vmem:[%s1110 + $0xb8] sm:$0xff]
        %v1135 = vld [vmem:[%s1110 + $0xc0] sm:$0xff]
        %v1136 = vld [vmem:[%s1110 + $0xc8] sm:$0xff]
        %v1137 = vld [vmem:[%s1110 + $0xd0] sm:$0xff]
        %v1138 = vld [vmem:[%s1110 + $0xd8] sm:$0xff]
        %v1139 = vld [vmem:[%s1110 + $0xe0] sm:$0xff]
        %v1140 = vld [vmem:[%s1110 + $0xe8] sm:$0xff]
        %v1141 = vld [vmem:[%s1110 + $0xf0] sm:$0xff]
        %v1142 = vld [vmem:[%s1110 + $0xf8] sm:$0xff]
        %v1144 = vunpack.c.l.b16 %v1109
        %v1145 = vunpack.c.h.b16 %v1109
        %v1146 = vpack.c.b16 %v661, %v1144
        %v1147 = vpack.c.b16 %v662, %v1145
        %v1148 = vrot.slane %v1146, 1
        %v1149 = vrot.slane %v1147, 1
        %v1184 = vunpack.c.l.b16 %v1111
        %v1185 = vunpack.c.h.b16 %v1111
        %v1186 = vunpack.c.l.b16 %v1112
        %v1187 = vunpack.c.h.b16 %v1112
        %v1188 = vunpack.c.l.b16 %v1113
        %v1189 = vunpack.c.h.b16 %v1113
        %v1190 = vunpack.c.l.b16 %v1114
        %v1191 = vunpack.c.h.b16 %v1114
        %v1192 = vunpack.c.l.b16 %v1115
        %v1193 = vunpack.c.h.b16 %v1115
        %v1194 = vunpack.c.l.b16 %v1116
        %v1195 = vunpack.c.h.b16 %v1116
        %v1196 = vunpack.c.l.b16 %v1117
        %v1197 = vunpack.c.h.b16 %v1117
        %v1198 = vunpack.c.l.b16 %v1118
        %v1199 = vunpack.c.h.b16 %v1118
        %v1200 = vunpack.c.l.b16 %v1119
        %v1201 = vunpack.c.h.b16 %v1119
        %v1202 = vunpack.c.l.b16 %v1120
        %v1203 = vunpack.c.h.b16 %v1120
        %v1204 = vunpack.c.l.b16 %v1121
        %v1205 = vunpack.c.h.b16 %v1121
        %v1206 = vunpack.c.l.b16 %v1122
        %v1207 = vunpack.c.h.b16 %v1122
        %v1208 = vunpack.c.l.b16 %v1123
        %v1209 = vunpack.c.h.b16 %v1123
        %v1210 = vunpack.c.l.b16 %v1124
        %v1211 = vunpack.c.h.b16 %v1124
        %v1212 = vunpack.c.l.b16 %v1125
        %v1213 = vunpack.c.h.b16 %v1125
        %v1214 = vunpack.c.l.b16 %v1126
        %v1215 = vunpack.c.h.b16 %v1126
        %v1216 = vunpack.c.l.b16 %v1127
        %v1217 = vunpack.c.h.b16 %v1127
        %v1218 = vunpack.c.l.b16 %v1128
        %v1219 = vunpack.c.h.b16 %v1128
        %v1220 = vunpack.c.l.b16 %v1129
        %v1221 = vunpack.c.h.b16 %v1129
        %v1222 = vunpack.c.l.b16 %v1130
        %v1223 = vunpack.c.h.b16 %v1130
        %v1224 = vunpack.c.l.b16 %v1131
        %v1225 = vunpack.c.h.b16 %v1131
        %v1226 = vunpack.c.l.b16 %v1132
        %v1227 = vunpack.c.h.b16 %v1132
        %v1228 = vunpack.c.l.b16 %v1133
        %v1229 = vunpack.c.h.b16 %v1133
        %v1230 = vunpack.c.l.b16 %v1134
        %v1231 = vunpack.c.h.b16 %v1134
        %v1232 = vunpack.c.l.b16 %v1135
        %v1233 = vunpack.c.h.b16 %v1135
        %v1234 = vunpack.c.l.b16 %v1136
        %v1235 = vunpack.c.h.b16 %v1136
        %v1236 = vunpack.c.l.b16 %v1137
        %v1237 = vunpack.c.h.b16 %v1137
        %v1238 = vunpack.c.l.b16 %v1138
        %v1239 = vunpack.c.h.b16 %v1138
        %v1240 = vunpack.c.l.b16 %v1139
        %v1241 = vunpack.c.h.b16 %v1139
        %v1242 = vunpack.c.l.b16 %v1140
        %v1243 = vunpack.c.h.b16 %v1140
        %v1244 = vunpack.c.l.b16 %v1141
        %v1245 = vunpack.c.h.b16 %v1141
        %v1246 = vunpack.c.l.b16 %v1142
        %v1247 = vunpack.c.h.b16 %v1142
        %v1248 = vpack.c.b16 %v1186, %v1184
        %v1249 = vpack.c.b16 %v1187, %v1185
        %v1250 = vpack.c.b16 %v1190, %v1188
        %v1251 = vpack.c.b16 %v1191, %v1189
        %v1252 = vpack.c.b16 %v1194, %v1192
        %v1253 = vpack.c.b16 %v1195, %v1193
        %v1254 = vpack.c.b16 %v1198, %v1196
        %v1255 = vpack.c.b16 %v1199, %v1197
        %v1256 = vpack.c.b16 %v1202, %v1200
        %v1257 = vpack.c.b16 %v1203, %v1201
        %v1258 = vpack.c.b16 %v1206, %v1204
        %v1259 = vpack.c.b16 %v1207, %v1205
        %v1260 = vpack.c.b16 %v1210, %v1208
        %v1261 = vpack.c.b16 %v1211, %v1209
        %v1262 = vpack.c.b16 %v1214, %v1212
        %v1263 = vpack.c.b16 %v1215, %v1213
        %v1264 = vpack.c.b16 %v1218, %v1216
        %v1265 = vpack.c.b16 %v1219, %v1217
        %v1266 = vpack.c.b16 %v1222, %v1220
        %v1267 = vpack.c.b16 %v1223, %v1221
        %v1268 = vpack.c.b16 %v1226, %v1224
        %v1269 = vpack.c.b16 %v1227, %v1225
        %v1270 = vpack.c.b16 %v1230, %v1228
        %v1271 = vpack.c.b16 %v1231, %v1229
        %v1272 = vpack.c.b16 %v1234, %v1232
        %v1273 = vpack.c.b16 %v1235, %v1233
        %v1274 = vpack.c.b16 %v1238, %v1236
        %v1275 = vpack.c.b16 %v1239, %v1237
        %v1276 = vpack.c.b16 %v1242, %v1240
        %v1277 = vpack.c.b16 %v1243, %v1241
        %v1278 = vpack.c.b16 %v1246, %v1244
        %v1279 = vpack.c.b16 %v1247, %v1245
        %1312 = vmatpush.bf16.msra.mxu0 %v1262
        %1313 = vmatpush.bf16.msra.mxu0 %v1260
        %1314 = vmatpush.bf16.msra.mxu0 %v1258
        %1315 = vmatpush.bf16.msra.mxu0 %v1256
        %1316 = vmatpush.bf16.msra.mxu0 %v1254
        %1317 = vmatpush.bf16.msra.mxu0 %v1252
        %1318 = vmatpush.bf16.msra.mxu0 %v1250
        %1319 = vmatpush.bf16.msra.mxu0 %v1248
        %1320 = vmatmul.bf16.gmra.mxu0 %v1148
        %v1321 = vpop.f32.mrf.mxu0
        %v1322 = vadd.f32 0.0, %v1321
        %v1323 = vpop.f32.mrf.mxu0
        %1324 = vdwg.mxu0
        %1325 = vmatpush.bf16.msra.mxu0 %v1278
        %1326 = vmatpush.bf16.msra.mxu0 %v1276
        %1327 = vmatpush.bf16.msra.mxu0 %v1274
        %1328 = vmatpush.bf16.msra.mxu0 %v1272
        %1329 = vmatpush.bf16.msra.mxu0 %v1270
        %1330 = vmatpush.bf16.msra.mxu0 %v1268
        %1331 = vmatpush.bf16.msra.mxu0 %v1266
        %1332 = vmatpush.bf16.msra.mxu0 %v1264
        %1333 = vmatmul.bf16.gmra.mxu0 %v1149
        %v1334 = vpop.f32.mrf.mxu0
        %v1335 = vadd.f32 %v1322, %v1334
        %v1336 = vpop.f32.mrf.mxu0
        %1337 = vdwg.mxu0
        %1338 = vmatpush.bf16.msra.mxu0 %v1263
        %1339 = vmatpush.bf16.msra.mxu0 %v1261
        %1340 = vmatpush.bf16.msra.mxu0 %v1259
        %1341 = vmatpush.bf16.msra.mxu0 %v1257
        %1342 = vmatpush.bf16.msra.mxu0 %v1255
        %1343 = vmatpush.bf16.msra.mxu0 %v1253
        %1344 = vmatpush.bf16.msra.mxu0 %v1251
        %1345 = vmatpush.bf16.msra.mxu0 %v1249
        %1346 = vmatmul.bf16.gmra.mxu0 %v1148
        %v1347 = vpop.f32.mrf.mxu0
        %v1348 = vadd.f32 0.0, %v1347
        %v1349 = vpop.f32.mrf.mxu0
        %1350 = vdwg.mxu0
        %1351 = vmatpush.bf16.msra.mxu0 %v1279
        %1352 = vmatpush.bf16.msra.mxu0 %v1277
        %1353 = vmatpush.bf16.msra.mxu0 %v1275
        %1354 = vmatpush.bf16.msra.mxu0 %v1273
        %1355 = vmatpush.bf16.msra.mxu0 %v1271
        %1356 = vmatpush.bf16.msra.mxu0 %v1269
        %1357 = vmatpush.bf16.msra.mxu0 %v1267
        %1358 = vmatpush.bf16.msra.mxu0 %v1265
        %1359 = vmatmul.bf16.gmra.mxu0 %v1149
        %v1360 = vpop.f32.mrf.mxu0
        %v1361 = vadd.f32 %v1348, %v1360
        %v1362 = vpop.f32.mrf.mxu0
        %1363 = vdwg.mxu0
        %v1364 = vadd.f32 %v1080, %v1335
        %v1365 = vadd.f32 %v1106, %v1361
        %v1366 = vld [vmem:[#allocation2 + $0x8] sm:$0x33]
        %s1367 = scalar_lea.vmem [#allocation3], 768
        %v1368 = vld [vmem:[%s1367] sm:$0xff]
        %v1369 = vld [vmem:[%s1367 + $0x8] sm:$0xff]
        %v1370 = vld [vmem:[%s1367 + $0x10] sm:$0xff]
        %v1371 = vld [vmem:[%s1367 + $0x18] sm:$0xff]
        %v1372 = vld [vmem:[%s1367 + $0x20] sm:$0xff]
        %v1373 = vld [vmem:[%s1367 + $0x28] sm:$0xff]
        %v1374 = vld [vmem:[%s1367 + $0x30] sm:$0xff]
        %v1375 = vld [vmem:[%s1367 + $0x38] sm:$0xff]
        %v1376 = vld [vmem:[%s1367 + $0x40] sm:$0xff]
        %v1377 = vld [vmem:[%s1367 + $0x48] sm:$0xff]
        %v1378 = vld [vmem:[%s1367 + $0x50] sm:$0xff]
        %v1379 = vld [vmem:[%s1367 + $0x58] sm:$0xff]
        %v1380 = vld [vmem:[%s1367 + $0x60] sm:$0xff]
        %v1381 = vld [vmem:[%s1367 + $0x68] sm:$0xff]
        %v1382 = vld [vmem:[%s1367 + $0x70] sm:$0xff]
        %v1383 = vld [vmem:[%s1367 + $0x78] sm:$0xff]
        %v1384 = vld [vmem:[%s1367 + $0x80] sm:$0xff]
        %v1385 = vld [vmem:[%s1367 + $0x88] sm:$0xff]
        %v1386 = vld [vmem:[%s1367 + $0x90] sm:$0xff]
        %v1387 = vld [vmem:[%s1367 + $0x98] sm:$0xff]
        %v1388 = vld [vmem:[%s1367 + $0xa0] sm:$0xff]
        %v1389 = vld [vmem:[%s1367 + $0xa8] sm:$0xff]
        %v1390 = vld [vmem:[%s1367 + $0xb0] sm:$0xff]
        %v1391 = vld [vmem:[%s1367 + $0xb8] sm:$0xff]
        %v1392 = vld [vmem:[%s1367 + $0xc0] sm:$0xff]
        %v1393 = vld [vmem:[%s1367 + $0xc8] sm:$0xff]
        %v1394 = vld [vmem:[%s1367 + $0xd0] sm:$0xff]
        %v1395 = vld [vmem:[%s1367 + $0xd8] sm:$0xff]
        %v1396 = vld [vmem:[%s1367 + $0xe0] sm:$0xff]
        %v1397 = vld [vmem:[%s1367 + $0xe8] sm:$0xff]
        %v1398 = vld [vmem:[%s1367 + $0xf0] sm:$0xff]
        %v1399 = vld [vmem:[%s1367 + $0xf8] sm:$0xff]
        %v1401 = vunpack.c.l.b16 %v1366
        %v1402 = vunpack.c.h.b16 %v1366
        %v1403 = vpack.c.b16 %v1401, %v1144
        %v1404 = vpack.c.b16 %v1402, %v1145
        %v1406 = vshrl.u32 %v1403, 16
        %v1408 = vrot.slane %v1406, 1
        %v1409 = vshll.u32 %v1403, 16
        %v1411 = vrot.slane %v1409, 2
        %v1412 = vor.u32 %v1408, %v1411
        %v1414 = vshrl.u32 %v1404, 16
        %v1416 = vrot.slane %v1414, 1
        %v1417 = vshll.u32 %v1404, 16
        %v1419 = vrot.slane %v1417, 2
        %v1420 = vor.u32 %v1416, %v1419
        %v1455 = vunpack.c.l.b16 %v1368
        %v1456 = vunpack.c.h.b16 %v1368
        %v1457 = vunpack.c.l.b16 %v1369
        %v1458 = vunpack.c.h.b16 %v1369
        %v1459 = vunpack.c.l.b16 %v1370
        %v1460 = vunpack.c.h.b16 %v1370
        %v1461 = vunpack.c.l.b16 %v1371
        %v1462 = vunpack.c.h.b16 %v1371
        %v1463 = vunpack.c.l.b16 %v1372
        %v1464 = vunpack.c.h.b16 %v1372
        %v1465 = vunpack.c.l.b16 %v1373
        %v1466 = vunpack.c.h.b16 %v1373
        %v1467 = vunpack.c.l.b16 %v1374
        %v1468 = vunpack.c.h.b16 %v1374
        %v1469 = vunpack.c.l.b16 %v1375
        %v1470 = vunpack.c.h.b16 %v1375
        %v1471 = vunpack.c.l.b16 %v1376
        %v1472 = vunpack.c.h.b16 %v1376
        %v1473 = vunpack.c.l.b16 %v1377
        %v1474 = vunpack.c.h.b16 %v1377
        %v1475 = vunpack.c.l.b16 %v1378
        %v1476 = vunpack.c.h.b16 %v1378
        %v1477 = vunpack.c.l.b16 %v1379
        %v1478 = vunpack.c.h.b16 %v1379
        %v1479 = vunpack.c.l.b16 %v1380
        %v1480 = vunpack.c.h.b16 %v1380
        %v1481 = vunpack.c.l.b16 %v1381
        %v1482 = vunpack.c.h.b16 %v1381
        %v1483 = vunpack.c.l.b16 %v1382
        %v1484 = vunpack.c.h.b16 %v1382
        %v1485 = vunpack.c.l.b16 %v1383
        %v1486 = vunpack.c.h.b16 %v1383
        %v1487 = vunpack.c.l.b16 %v1384
        %v1488 = vunpack.c.h.b16 %v1384
        %v1489 = vunpack.c.l.b16 %v1385
        %v1490 = vunpack.c.h.b16 %v1385
        %v1491 = vunpack.c.l.b16 %v1386
        %v1492 = vunpack.c.h.b16 %v1386
        %v1493 = vunpack.c.l.b16 %v1387
        %v1494 = vunpack.c.h.b16 %v1387
        %v1495 = vunpack.c.l.b16 %v1388
        %v1496 = vunpack.c.h.b16 %v1388
        %v1497 = vunpack.c.l.b16 %v1389
        %v1498 = vunpack.c.h.b16 %v1389
        %v1499 = vunpack.c.l.b16 %v1390
        %v1500 = vunpack.c.h.b16 %v1390
        %v1501 = vunpack.c.l.b16 %v1391
        %v1502 = vunpack.c.h.b16 %v1391
        %v1503 = vunpack.c.l.b16 %v1392
        %v1504 = vunpack.c.h.b16 %v1392
        %v1505 = vunpack.c.l.b16 %v1393
        %v1506 = vunpack.c.h.b16 %v1393
        %v1507 = vunpack.c.l.b16 %v1394
        %v1508 = vunpack.c.h.b16 %v1394
        %v1509 = vunpack.c.l.b16 %v1395
        %v1510 = vunpack.c.h.b16 %v1395
        %v1511 = vunpack.c.l.b16 %v1396
        %v1512 = vunpack.c.h.b16 %v1396
        %v1513 = vunpack.c.l.b16 %v1397
        %v1514 = vunpack.c.h.b16 %v1397
        %v1515 = vunpack.c.l.b16 %v1398
        %v1516 = vunpack.c.h.b16 %v1398
        %v1517 = vunpack.c.l.b16 %v1399
        %v1518 = vunpack.c.h.b16 %v1399
        %v1519 = vpack.c.b16 %v1457, %v1455
        %v1520 = vpack.c.b16 %v1458, %v1456
        %v1521 = vpack.c.b16 %v1461, %v1459
        %v1522 = vpack.c.b16 %v1462, %v1460
        %v1523 = vpack.c.b16 %v1465, %v1463
        %v1524 = vpack.c.b16 %v1466, %v1464
        %v1525 = vpack.c.b16 %v1469, %v1467
        %v1526 = vpack.c.b16 %v1470, %v1468
        %v1527 = vpack.c.b16 %v1473, %v1471
        %v1528 = vpack.c.b16 %v1474, %v1472
        %v1529 = vpack.c.b16 %v1477, %v1475
        %v1530 = vpack.c.b16 %v1478, %v1476
        %v1531 = vpack.c.b16 %v1481, %v1479
        %v1532 = vpack.c.b16 %v1482, %v1480
        %v1533 = vpack.c.b16 %v1485, %v1483
        %v1534 = vpack.c.b16 %v1486, %v1484
        %v1535 = vpack.c.b16 %v1489, %v1487
        %v1536 = vpack.c.b16 %v1490, %v1488
        %v1537 = vpack.c.b16 %v1493, %v1491
        %v1538 = vpack.c.b16 %v1494, %v1492
        %v1539 = vpack.c.b16 %v1497, %v1495
        %v1540 = vpack.c.b16 %v1498, %v1496
        %v1541 = vpack.c.b16 %v1501, %v1499
        %v1542 = vpack.c.b16 %v1502, %v1500
        %v1543 = vpack.c.b16 %v1505, %v1503
        %v1544 = vpack.c.b16 %v1506, %v1504
        %v1545 = vpack.c.b16 %v1509, %v1507
        %v1546 = vpack.c.b16 %v1510, %v1508
        %v1547 = vpack.c.b16 %v1513, %v1511
        %v1548 = vpack.c.b16 %v1514, %v1512
        %v1549 = vpack.c.b16 %v1517, %v1515
        %v1550 = vpack.c.b16 %v1518, %v1516
        %1583 = vmatpush.bf16.msra.mxu0 %v1533
        %1584 = vmatpush.bf16.msra.mxu0 %v1531
        %1585 = vmatpush.bf16.msra.mxu0 %v1529
        %1586 = vmatpush.bf16.msra.mxu0 %v1527
        %1587 = vmatpush.bf16.msra.mxu0 %v1525
        %1588 = vmatpush.bf16.msra.mxu0 %v1523
        %1589 = vmatpush.bf16.msra.mxu0 %v1521
        %1590 = vmatpush.bf16.msra.mxu0 %v1519
        %1591 = vmatmul.bf16.gmra.mxu0 %v1412
        %v1592 = vpop.f32.mrf.mxu0
        %v1593 = vadd.f32 0.0, %v1592
        %v1594 = vpop.f32.mrf.mxu0
        %1595 = vdwg.mxu0
        %1596 = vmatpush.bf16.msra.mxu0 %v1549
        %1597 = vmatpush.bf16.msra.mxu0 %v1547
        %1598 = vmatpush.bf16.msra.mxu0 %v1545
        %1599 = vmatpush.bf16.msra.mxu0 %v1543
        %1600 = vmatpush.bf16.msra.mxu0 %v1541
        %1601 = vmatpush.bf16.msra.mxu0 %v1539
        %1602 = vmatpush.bf16.msra.mxu0 %v1537
        %1603 = vmatpush.bf16.msra.mxu0 %v1535
        %1604 = vmatmul.bf16.gmra.mxu0 %v1420
        %v1605 = vpop.f32.mrf.mxu0
        %v1606 = vadd.f32 %v1593, %v1605
        %v1607 = vpop.f32.mrf.mxu0
        %1608 = vdwg.mxu0
        %1609 = vmatpush.bf16.msra.mxu0 %v1534
        %1610 = vmatpush.bf16.msra.mxu0 %v1532
        %1611 = vmatpush.bf16.msra.mxu0 %v1530
        %1612 = vmatpush.bf16.msra.mxu0 %v1528
        %1613 = vmatpush.bf16.msra.mxu0 %v1526
        %1614 = vmatpush.bf16.msra.mxu0 %v1524
        %1615 = vmatpush.bf16.msra.mxu0 %v1522
        %1616 = vmatpush.bf16.msra.mxu0 %v1520
        %1617 = vmatmul.bf16.gmra.mxu0 %v1412
        %v1618 = vpop.f32.mrf.mxu0
        %v1619 = vadd.f32 0.0, %v1618
        %v1620 = vpop.f32.mrf.mxu0
        %1621 = vdwg.mxu0
        %1622 = vmatpush.bf16.msra.mxu0 %v1550
        %1623 = vmatpush.bf16.msra.mxu0 %v1548
        %1624 = vmatpush.bf16.msra.mxu0 %v1546
        %1625 = vmatpush.bf16.msra.mxu0 %v1544
        %1626 = vmatpush.bf16.msra.mxu0 %v1542
        %1627 = vmatpush.bf16.msra.mxu0 %v1540
        %1628 = vmatpush.bf16.msra.mxu0 %v1538
        %1629 = vmatpush.bf16.msra.mxu0 %v1536
        %1630 = vmatmul.bf16.gmra.mxu0 %v1420
        %v1631 = vpop.f32.mrf.mxu0
        %v1632 = vadd.f32 %v1619, %v1631
        %v1633 = vpop.f32.mrf.mxu0
        %1634 = vdwg.mxu0
        %v1635 = vadd.f32 %v1364, %v1606
        %v1636 = vadd.f32 %v1365, %v1632
        %v1637 = vld [vmem:[#allocation2] sm:$0xcc]
        %s1638 = scalar_lea.vmem [#allocation3], 1024
        %v1639 = vld [vmem:[%s1638] sm:$0xff]
        %v1640 = vld [vmem:[%s1638 + $0x8] sm:$0xff]
        %v1641 = vld [vmem:[%s1638 + $0x10] sm:$0xff]
        %v1642 = vld [vmem:[%s1638 + $0x18] sm:$0xff]
        %v1643 = vld [vmem:[%s1638 + $0x20] sm:$0xff]
        %v1644 = vld [vmem:[%s1638 + $0x28] sm:$0xff]
        %v1645 = vld [vmem:[%s1638 + $0x30] sm:$0xff]
        %v1646 = vld [vmem:[%s1638 + $0x38] sm:$0xff]
        %v1647 = vld [vmem:[%s1638 + $0x40] sm:$0xff]
        %v1648 = vld [vmem:[%s1638 + $0x48] sm:$0xff]
        %v1649 = vld [vmem:[%s1638 + $0x50] sm:$0xff]
        %v1650 = vld [vmem:[%s1638 + $0x58] sm:$0xff]
        %v1651 = vld [vmem:[%s1638 + $0x60] sm:$0xff]
        %v1652 = vld [vmem:[%s1638 + $0x68] sm:$0xff]
        %v1653 = vld [vmem:[%s1638 + $0x70] sm:$0xff]
        %v1654 = vld [vmem:[%s1638 + $0x78] sm:$0xff]
        %v1655 = vld [vmem:[%s1638 + $0x80] sm:$0xff]
        %v1656 = vld [vmem:[%s1638 + $0x88] sm:$0xff]
        %v1657 = vld [vmem:[%s1638 + $0x90] sm:$0xff]
        %v1658 = vld [vmem:[%s1638 + $0x98] sm:$0xff]
        %v1659 = vld [vmem:[%s1638 + $0xa0] sm:$0xff]
        %v1660 = vld [vmem:[%s1638 + $0xa8] sm:$0xff]
        %v1661 = vld [vmem:[%s1638 + $0xb0] sm:$0xff]
        %v1662 = vld [vmem:[%s1638 + $0xb8] sm:$0xff]
        %v1663 = vld [vmem:[%s1638 + $0xc0] sm:$0xff]
        %v1664 = vld [vmem:[%s1638 + $0xc8] sm:$0xff]
        %v1665 = vld [vmem:[%s1638 + $0xd0] sm:$0xff]
        %v1666 = vld [vmem:[%s1638 + $0xd8] sm:$0xff]
        %v1667 = vld [vmem:[%s1638 + $0xe0] sm:$0xff]
        %v1668 = vld [vmem:[%s1638 + $0xe8] sm:$0xff]
        %v1669 = vld [vmem:[%s1638 + $0xf0] sm:$0xff]
        %v1670 = vld [vmem:[%s1638 + $0xf8] sm:$0xff]
        %v1672 = vunpack.c.l.b16 %v1637
        %v1673 = vunpack.c.h.b16 %v1637
        %v1674 = vpack.c.b16 %v1401, %v1672
        %v1675 = vpack.c.b16 %v1402, %v1673
        %v1676 = vrot.slane %v1674, 2
        %v1677 = vrot.slane %v1675, 2
        %v1712 = vunpack.c.l.b16 %v1639
        %v1713 = vunpack.c.h.b16 %v1639
        %v1714 = vunpack.c.l.b16 %v1640
        %v1715 = vunpack.c.h.b16 %v1640
        %v1716 = vunpack.c.l.b16 %v1641
        %v1717 = vunpack.c.h.b16 %v1641
        %v1718 = vunpack.c.l.b16 %v1642
        %v1719 = vunpack.c.h.b16 %v1642
        %v1720 = vunpack.c.l.b16 %v1643
        %v1721 = vunpack.c.h.b16 %v1643
        %v1722 = vunpack.c.l.b16 %v1644
        %v1723 = vunpack.c.h.b16 %v1644
        %v1724 = vunpack.c.l.b16 %v1645
        %v1725 = vunpack.c.h.b16 %v1645
        %v1726 = vunpack.c.l.b16 %v1646
        %v1727 = vunpack.c.h.b16 %v1646
        %v1728 = vunpack.c.l.b16 %v1647
        %v1729 = vunpack.c.h.b16 %v1647
        %v1730 = vunpack.c.l.b16 %v1648
        %v1731 = vunpack.c.h.b16 %v1648
        %v1732 = vunpack.c.l.b16 %v1649
        %v1733 = vunpack.c.h.b16 %v1649
        %v1734 = vunpack.c.l.b16 %v1650
        %v1735 = vunpack.c.h.b16 %v1650
        %v1736 = vunpack.c.l.b16 %v1651
        %v1737 = vunpack.c.h.b16 %v1651
        %v1738 = vunpack.c.l.b16 %v1652
        %v1739 = vunpack.c.h.b16 %v1652
        %v1740 = vunpack.c.l.b16 %v1653
        %v1741 = vunpack.c.h.b16 %v1653
        %v1742 = vunpack.c.l.b16 %v1654
        %v1743 = vunpack.c.h.b16 %v1654
        %v1744 = vunpack.c.l.b16 %v1655
        %v1745 = vunpack.c.h.b16 %v1655
        %v1746 = vunpack.c.l.b16 %v1656
        %v1747 = vunpack.c.h.b16 %v1656
        %v1748 = vunpack.c.l.b16 %v1657
        %v1749 = vunpack.c.h.b16 %v1657
        %v1750 = vunpack.c.l.b16 %v1658
        %v1751 = vunpack.c.h.b16 %v1658
        %v1752 = vunpack.c.l.b16 %v1659
        %v1753 = vunpack.c.h.b16 %v1659
        %v1754 = vunpack.c.l.b16 %v1660
        %v1755 = vunpack.c.h.b16 %v1660
        %v1756 = vunpack.c.l.b16 %v1661
        %v1757 = vunpack.c.h.b16 %v1661
        %v1758 = vunpack.c.l.b16 %v1662
        %v1759 = vunpack.c.h.b16 %v1662
        %v1760 = vunpack.c.l.b16 %v1663
        %v1761 = vunpack.c.h.b16 %v1663
        %v1762 = vunpack.c.l.b16 %v1664
        %v1763 = vunpack.c.h.b16 %v1664
        %v1764 = vunpack.c.l.b16 %v1665
        %v1765 = vunpack.c.h.b16 %v1665
        %v1766 = vunpack.c.l.b16 %v1666
        %v1767 = vunpack.c.h.b16 %v1666
        %v1768 = vunpack.c.l.b16 %v1667
        %v1769 = vunpack.c.h.b16 %v1667
        %v1770 = vunpack.c.l.b16 %v1668
        %v1771 = vunpack.c.h.b16 %v1668
        %v1772 = vunpack.c.l.b16 %v1669
        %v1773 = vunpack.c.h.b16 %v1669
        %v1774 = vunpack.c.l.b16 %v1670
        %v1775 = vunpack.c.h.b16 %v1670
        %v1776 = vpack.c.b16 %v1714, %v1712
        %v1777 = vpack.c.b16 %v1715, %v1713
        %v1778 = vpack.c.b16 %v1718, %v1716
        %v1779 = vpack.c.b16 %v1719, %v1717
        %v1780 = vpack.c.b16 %v1722, %v1720
        %v1781 = vpack.c.b16 %v1723, %v1721
        %v1782 = vpack.c.b16 %v1726, %v1724
        %v1783 = vpack.c.b16 %v1727, %v1725
        %v1784 = vpack.c.b16 %v1730, %v1728
        %v1785 = vpack.c.b16 %v1731, %v1729
        %v1786 = vpack.c.b16 %v1734, %v1732
        %v1787 = vpack.c.b16 %v1735, %v1733
        %v1788 = vpack.c.b16 %v1738, %v1736
        %v1789 = vpack.c.b16 %v1739, %v1737
        %v1790 = vpack.c.b16 %v1742, %v1740
        %v1791 = vpack.c.b16 %v1743, %v1741
        %v1792 = vpack.c.b16 %v1746, %v1744
        %v1793 = vpack.c.b16 %v1747, %v1745
        %v1794 = vpack.c.b16 %v1750, %v1748
        %v1795 = vpack.c.b16 %v1751, %v1749
        %v1796 = vpack.c.b16 %v1754, %v1752
        %v1797 = vpack.c.b16 %v1755, %v1753
        %v1798 = vpack.c.b16 %v1758, %v1756
        %v1799 = vpack.c.b16 %v1759, %v1757
        %v1800 = vpack.c.b16 %v1762, %v1760
        %v1801 = vpack.c.b16 %v1763, %v1761
        %v1802 = vpack.c.b16 %v1766, %v1764
        %v1803 = vpack.c.b16 %v1767, %v1765
        %v1804 = vpack.c.b16 %v1770, %v1768
        %v1805 = vpack.c.b16 %v1771, %v1769
        %v1806 = vpack.c.b16 %v1774, %v1772
        %v1807 = vpack.c.b16 %v1775, %v1773
        %1840 = vmatpush.bf16.msra.mxu0 %v1790
        %1841 = vmatpush.bf16.msra.mxu0 %v1788
        %1842 = vmatpush.bf16.msra.mxu0 %v1786
        %1843 = vmatpush.bf16.msra.mxu0 %v1784
        %1844 = vmatpush.bf16.msra.mxu0 %v1782
        %1845 = vmatpush.bf16.msra.mxu0 %v1780
        %1846 = vmatpush.bf16.msra.mxu0 %v1778
        %1847 = vmatpush.bf16.msra.mxu0 %v1776
        %1848 = vmatmul.bf16.gmra.mxu0 %v1676
        %v1849 = vpop.f32.mrf.mxu0
        %v1850 = vadd.f32 0.0, %v1849
        %v1851 = vpop.f32.mrf.mxu0
        %1852 = vdwg.mxu0
        %1853 = vmatpush.bf16.msra.mxu0 %v1806
        %1854 = vmatpush.bf16.msra.mxu0 %v1804
        %1855 = vmatpush.bf16.msra.mxu0 %v1802
        %1856 = vmatpush.bf16.msra.mxu0 %v1800
        %1857 = vmatpush.bf16.msra.mxu0 %v1798
        %1858 = vmatpush.bf16.msra.mxu0 %v1796
        %1859 = vmatpush.bf16.msra.mxu0 %v1794
        %1860 = vmatpush.bf16.msra.mxu0 %v1792
        %1861 = vmatmul.bf16.gmra.mxu0 %v1677
        %v1862 = vpop.f32.mrf.mxu0
        %v1863 = vadd.f32 %v1850, %v1862
        %v1864 = vpop.f32.mrf.mxu0
        %1865 = vdwg.mxu0
        %1866 = vmatpush.bf16.msra.mxu0 %v1791
        %1867 = vmatpush.bf16.msra.mxu0 %v1789
        %1868 = vmatpush.bf16.msra.mxu0 %v1787
        %1869 = vmatpush.bf16.msra.mxu0 %v1785
        %1870 = vmatpush.bf16.msra.mxu0 %v1783
        %1871 = vmatpush.bf16.msra.mxu0 %v1781
        %1872 = vmatpush.bf16.msra.mxu0 %v1779
        %1873 = vmatpush.bf16.msra.mxu0 %v1777
        %1874 = vmatmul.bf16.gmra.mxu0 %v1676
        %v1875 = vpop.f32.mrf.mxu0
        %v1876 = vadd.f32 0.0, %v1875
        %v1877 = vpop.f32.mrf.mxu0
        %1878 = vdwg.mxu0
        %1879 = vmatpush.bf16.msra.mxu0 %v1807
        %1880 = vmatpush.bf16.msra.mxu0 %v1805
        %1881 = vmatpush.bf16.msra.mxu0 %v1803
        %1882 = vmatpush.bf16.msra.mxu0 %v1801
        %1883 = vmatpush.bf16.msra.mxu0 %v1799
        %1884 = vmatpush.bf16.msra.mxu0 %v1797
        %1885 = vmatpush.bf16.msra.mxu0 %v1795
        %1886 = vmatpush.bf16.msra.mxu0 %v1793
        %1887 = vmatmul.bf16.gmra.mxu0 %v1677
        %v1888 = vpop.f32.mrf.mxu0
        %v1889 = vadd.f32 %v1876, %v1888
        %v1890 = vpop.f32.mrf.mxu0
        %1891 = vdwg.mxu0
        %v1892 = vadd.f32 %v1635, %v1863
        %v1893 = vadd.f32 %v1636, %v1889
        %v1894 = vld [vmem:[#allocation6] sm:$0x3]
        %v1896 = vperm.slane %v1894, 0
        %v1897 = vperm.slane %v1894, 1
        %v1900 = vadd.f32 %v1892, %v1896
        %v1901 = vadd.f32 %v1893, %v1897
        %v1902 = vmul.f32 %v1900, 0.5
        %v1903 = vmul.f32 %v1901, 0.5
        %v1904 = vmul.f32 %v1900, %v1900
        %v1905 = vmul.f32 %v1901, %v1901
        %v1906 = vmul.f32 %v1904, %v1900
        %v1907 = vmul.f32 %v1905, %v1901
        %v1908 = vmul.f32 %v1906, 0.044715
        %v1909 = vmul.f32 %v1907, 0.044715
        %v1910 = vadd.f32 %v1900, %v1908
        %v1911 = vadd.f32 %v1901, %v1909
        %v1912 = vmul.f32 %v1910, 0.7978846
        %v1913 = vmul.f32 %v1911, 0.7978846
        %v1914 = vtanh.pop %v1912
        %v1915 = vtanh.pop %v1913
        %v1916 = vadd.f32 %v1914, 1.0
        %v1917 = vadd.f32 %v1915, 1.0
        %v1918 = vmul.f32 %v1902, %v1916
        %v1919 = vmul.f32 %v1903, %v1917
        %v1922 = vrot.slane %v1919, 6
        %vm1923 = vcmask 1041408
        %v1924 = vsel %vm1923, %v1918, %v1922
        %vm1925 = vcmask 1043458
        %v1926 = vsel %vm1925, %v1918, %v1922
        %v1927 = vrot.slane %v1926, 2
        %vm1928 = vcmask 1045508
        %v1929 = vsel %vm1928, %v1918, %v1922
        %v1930 = vrot.slane %v1929, 4
        %vm1931 = vcmask 1045504
        %v1932 = vsel %vm1931, %v1922, %v1918
        %v1933 = vrot.slane %v1932, 6
        %1934 = vst [vmem:[#allocation1] ss:$4 sm:$0xff] %v1924
        %v1935 = vld.sshfl [vmem:[#allocation1] sm:$0xff pattern:$0x73625140]
        %v1936 = vld.sshfl [vmem:[#allocation1 + $0x8] sm:$0xff pattern:$0x73625140]
        %s1937 = scalar_lea.vmem [#allocation1], 32
        %1938 = vst [vmem:[%s1937] ss:$4 sm:$0xff] %v1927
        %v1939 = vld.sshfl [vmem:[#allocation1 + $0x20] sm:$0xff pattern:$0x73625140]
        %v1940 = vld.sshfl [vmem:[#allocation1 + $0x28] sm:$0xff pattern:$0x73625140]
        %1941 = vst [vmem:[#allocation1] ss:$4 sm:$0xff] %v1930
        %v1942 = vld.sshfl [vmem:[#allocation1] sm:$0xff pattern:$0x73625140]
        %v1943 = vld.sshfl [vmem:[#allocation1 + $0x8] sm:$0xff pattern:$0x73625140]
        %1944 = vst [vmem:[%s1937] ss:$4 sm:$0xff] %v1933
        %v1945 = vld.sshfl [vmem:[#allocation1 + $0x20] sm:$0xff pattern:$0x73625140]
        %v1946 = vld.sshfl [vmem:[#allocation1 + $0x28] sm:$0xff pattern:$0x73625140]
        %v1955 = vsel %vm1923, %v1935, 0.0
        %v1956 = vrot.slane %v1955, 4
        %v1957 = vadd.f32 %v1955, %v1956
        %v1958 = vrot.slane %v1957, 2
        %v1959 = vadd.f32 %v1957, %v1958
        %v1960 = vrot.slane %v1959, 1
        %v1961 = vadd.f32 %v1959, %v1960
        %v1962 = vsel %vm1923, %v1936, 0.0
        %v1963 = vrot.slane %v1962, 4
        %v1964 = vadd.f32 %v1962, %v1963
        %v1965 = vrot.slane %v1964, 2
        %v1966 = vadd.f32 %v1964, %v1965
        %v1967 = vrot.slane %v1966, 1
        %v1968 = vadd.f32 %v1966, %v1967
        %v1969 = vsel %vm1923, %v1939, 0.0
        %v1970 = vrot.slane %v1969, 4
        %v1971 = vadd.f32 %v1969, %v1970
        %v1972 = vrot.slane %v1971, 2
        %v1973 = vadd.f32 %v1971, %v1972
        %v1974 = vrot.slane %v1973, 1
        %v1975 = vadd.f32 %v1973, %v1974
        %v1976 = vsel %vm1923, %v1940, 0.0
        %v1977 = vrot.slane %v1976, 4
        %v1978 = vadd.f32 %v1976, %v1977
        %v1979 = vrot.slane %v1978, 2
        %v1980 = vadd.f32 %v1978, %v1979
        %v1981 = vrot.slane %v1980, 1
        %v1982 = vadd.f32 %v1980, %v1981
        %v1983 = vsel %vm1923, %v1942, 0.0
        %v1984 = vrot.slane %v1983, 4
        %v1985 = vadd.f32 %v1983, %v1984
        %v1986 = vrot.slane %v1985, 2
        %v1987 = vadd.f32 %v1985, %v1986
        %v1988 = vrot.slane %v1987, 1
        %v1989 = vadd.f32 %v1987, %v1988
        %v1990 = vsel %vm1923, %v1943, 0.0
        %v1991 = vrot.slane %v1990, 4
        %v1992 = vadd.f32 %v1990, %v1991
        %v1993 = vrot.slane %v1992, 2
        %v1994 = vadd.f32 %v1992, %v1993
        %v1995 = vrot.slane %v1994, 1
        %v1996 = vadd.f32 %v1994, %v1995
        %v1997 = vsel %vm1923, %v1945, 0.0
        %v1998 = vrot.slane %v1997, 4
        %v1999 = vadd.f32 %v1997, %v1998
        %v2000 = vrot.slane %v1999, 2
        %v2001 = vadd.f32 %v1999, %v2000
        %v2002 = vrot.slane %v2001, 1
        %v2003 = vadd.f32 %v2001, %v2002
        %v2004 = vsel %vm1923, %v1946, 0.0
        %v2005 = vrot.slane %v2004, 4
        %v2006 = vadd.f32 %v2004, %v2005
        %v2007 = vrot.slane %v2006, 2
        %v2008 = vadd.f32 %v2006, %v2007
        %v2009 = vrot.slane %v2008, 1
        %v2010 = vadd.f32 %v2008, %v2009
        %v2011 = vrcp.pop 2.0
        %v2012 = vmul.f32 2.0, %v2011
        %v2013 = vsub.f32 1.0, %v2012
        %v2014 = vmul.f32 %v2011, %v2013
        %v2015 = vadd.f32 %v2011, %v2014
        %vm2016 = vweird.f32 %v2011
        %v2017 = vsel %vm2016, %v2011, %v2015
        %v2018 = vmul.f32 %v1961, %v2017
        %v2019 = vmul.f32 %v1968, %v2017
        %v2020 = vmul.f32 %v1975, %v2017
        %v2021 = vmul.f32 %v1982, %v2017
        %v2022 = vmul.f32 %v1989, %v2017
        %v2023 = vmul.f32 %v1996, %v2017
        %v2024 = vmul.f32 %v2003, %v2017
        %v2025 = vmul.f32 %v2010, %v2017
        %v2026 = vpack.c.bf16 %v2019, %v2018
        %v2027 = vpack.c.bf16 %v2021, %v2020
        %v2028 = vpack.c.bf16 %v2023, %v2022
        %v2029 = vpack.c.bf16 %v2025, %v2024
        %2030 = vst [vmem:[#allocation2] sm:$0x11] 0
        %2031 = vst [vmem:[#allocation2] sm:$0x88] 0
        %v2036 = vunpack.c.l.b16 %v2026
        %v2037 = vunpack.c.h.b16 %v2026
        %v2038 = vunpack.c.l.b16 %v2027
        %v2039 = vunpack.c.h.b16 %v2027
        %v2040 = vunpack.c.l.b16 %v2028
        %v2041 = vunpack.c.h.b16 %v2028
        %v2042 = vunpack.c.l.b16 %v2029
        %v2043 = vunpack.c.h.b16 %v2029
        %vm2044 = vcmask 1043459
        %v2045 = vsel %vm2044, %v2038, %v2036
        %vm2046 = vcmask 1044484
        %v2047 = vsel %vm2046, %v2040, %v2045
        %vm2048 = vcmask 1045509
        %v2049 = vsel %vm2048, %v2042, %v2047
        %v2050 = vsel %vm2044, %v2039, %v2037
        %v2051 = vsel %vm2046, %v2041, %v2050
        %v2052 = vsel %vm2048, %v2043, %v2051
        %v2053 = vpack.c.b16 %v2052, %v2049
        %2055 = vst [vmem:[#allocation2] sm:$0x66] %v2053
        %v2056 = vld [vmem:[#allocation2] sm:$0x33]
        %v2057 = vld [vmem:[#allocation8] sm:$0xff]
        %v2058 = vld [vmem:[#allocation8 + $0x8] sm:$0xff]
        %v2059 = vld [vmem:[#allocation8 + $0x10] sm:$0xff]
        %v2060 = vld [vmem:[#allocation8 + $0x18] sm:$0xff]
        %v2061 = vld [vmem:[#allocation8 + $0x20] sm:$0xff]
        %v2062 = vld [vmem:[#allocation8 + $0x28] sm:$0xff]
        %v2063 = vld [vmem:[#allocation8 + $0x30] sm:$0xff]
        %v2064 = vld [vmem:[#allocation8 + $0x38] sm:$0xff]
        %v2065 = vld [vmem:[#allocation8 + $0x40] sm:$0xff]
        %v2066 = vld [vmem:[#allocation8 + $0x48] sm:$0xff]
        %v2067 = vld [vmem:[#allocation8 + $0x50] sm:$0xff]
        %v2068 = vld [vmem:[#allocation8 + $0x58] sm:$0xff]
        %v2069 = vld [vmem:[#allocation8 + $0x60] sm:$0xff]
        %v2070 = vld [vmem:[#allocation8 + $0x68] sm:$0xff]
        %v2071 = vld [vmem:[#allocation8 + $0x70] sm:$0xff]
        %v2072 = vld [vmem:[#allocation8 + $0x78] sm:$0xff]
        %v2073 = vld [vmem:[#allocation8 + $0x80] sm:$0xff]
        %v2074 = vld [vmem:[#allocation8 + $0x88] sm:$0xff]
        %v2075 = vld [vmem:[#allocation8 + $0x90] sm:$0xff]
        %v2076 = vld [vmem:[#allocation8 + $0x98] sm:$0xff]
        %v2077 = vld [vmem:[#allocation8 + $0xa0] sm:$0xff]
        %v2078 = vld [vmem:[#allocation8 + $0xa8] sm:$0xff]
        %v2079 = vld [vmem:[#allocation8 + $0xb0] sm:$0xff]
        %v2080 = vld [vmem:[#allocation8 + $0xb8] sm:$0xff]
        %v2081 = vld [vmem:[#allocation8 + $0xc0] sm:$0xff]
        %v2082 = vld [vmem:[#allocation8 + $0xc8] sm:$0xff]
        %v2083 = vld [vmem:[#allocation8 + $0xd0] sm:$0xff]
        %v2084 = vld [vmem:[#allocation8 + $0xd8] sm:$0xff]
        %v2085 = vld [vmem:[#allocation8 + $0xe0] sm:$0xff]
        %v2086 = vld [vmem:[#allocation8 + $0xe8] sm:$0xff]
        %v2087 = vld [vmem:[#allocation8 + $0xf0] sm:$0xff]
        %v2088 = vld [vmem:[#allocation8 + $0xf8] sm:$0xff]
        %v2089 = vld [vmem:[#allocation2] sm:$0x77]
        %s2090 = scalar_lea.vmem [#allocation8], 256
        %v2091 = vld [vmem:[%s2090] sm:$0xff]
        %v2092 = vld [vmem:[%s2090 + $0x8] sm:$0xff]
        %v2093 = vld [vmem:[%s2090 + $0x10] sm:$0xff]
        %v2094 = vld [vmem:[%s2090 + $0x18] sm:$0xff]
        %v2095 = vld [vmem:[%s2090 + $0x20] sm:$0xff]
        %v2096 = vld [vmem:[%s2090 + $0x28] sm:$0xff]
        %v2097 = vld [vmem:[%s2090 + $0x30] sm:$0xff]
        %v2098 = vld [vmem:[%s2090 + $0x38] sm:$0xff]
        %v2099 = vld [vmem:[%s2090 + $0x40] sm:$0xff]
        %v2100 = vld [vmem:[%s2090 + $0x48] sm:$0xff]
        %v2101 = vld [vmem:[%s2090 + $0x50] sm:$0xff]
        %v2102 = vld [vmem:[%s2090 + $0x58] sm:$0xff]
        %v2103 = vld [vmem:[%s2090 + $0x60] sm:$0xff]
        %v2104 = vld [vmem:[%s2090 + $0x68] sm:$0xff]
        %v2105 = vld [vmem:[%s2090 + $0x70] sm:$0xff]
        %v2106 = vld [vmem:[%s2090 + $0x78] sm:$0xff]
        %v2107 = vld [vmem:[%s2090 + $0x80] sm:$0xff]
        %v2108 = vld [vmem:[%s2090 + $0x88] sm:$0xff]
        %v2109 = vld [vmem:[%s2090 + $0x90] sm:$0xff]
        %v2110 = vld [vmem:[%s2090 + $0x98] sm:$0xff]
        %v2111 = vld [vmem:[%s2090 + $0xa0] sm:$0xff]
        %v2112 = vld [vmem:[%s2090 + $0xa8] sm:$0xff]
        %v2113 = vld [vmem:[%s2090 + $0xb0] sm:$0xff]
        %v2114 = vld [vmem:[%s2090 + $0xb8] sm:$0xff]
        %v2115 = vld [vmem:[%s2090 + $0xc0] sm:$0xff]
        %v2116 = vld [vmem:[%s2090 + $0xc8] sm:$0xff]
        %v2117 = vld [vmem:[%s2090 + $0xd0] sm:$0xff]
        %v2118 = vld [vmem:[%s2090 + $0xd8] sm:$0xff]
        %v2119 = vld [vmem:[%s2090 + $0xe0] sm:$0xff]
        %v2120 = vld [vmem:[%s2090 + $0xe8] sm:$0xff]
        %v2121 = vld [vmem:[%s2090 + $0xf0] sm:$0xff]
        %v2122 = vld [vmem:[%s2090 + $0xf8] sm:$0xff]
        %v2124 = vunpack.c.l.b16 %v2089
        %v2125 = vunpack.c.h.b16 %v2089
        %v2126 = vpack.c.b16 %v2124, %v2124
        %v2127 = vpack.c.b16 %v2125, %v2125
        %v2129 = vshrl.u32 %v2126, 16
        %v2131 = vshll.u32 %v2126, 16
        %v2133 = vrot.slane %v2131, 1
        %v2134 = vor.u32 %v2129, %v2133
        %v2136 = vshrl.u32 %v2127, 16
        %v2138 = vshll.u32 %v2127, 16
        %v2140 = vrot.slane %v2138, 1
        %v2141 = vor.u32 %v2136, %v2140
        %v2176 = vunpack.c.l.b16 %v2091
        %v2177 = vunpack.c.h.b16 %v2091
        %v2178 = vunpack.c.l.b16 %v2092
        %v2179 = vunpack.c.h.b16 %v2092
        %v2180 = vunpack.c.l.b16 %v2093
        %v2181 = vunpack.c.h.b16 %v2093
        %v2182 = vunpack.c.l.b16 %v2094
        %v2183 = vunpack.c.h.b16 %v2094
        %v2184 = vunpack.c.l.b16 %v2095
        %v2185 = vunpack.c.h.b16 %v2095
        %v2186 = vunpack.c.l.b16 %v2096
        %v2187 = vunpack.c.h.b16 %v2096
        %v2188 = vunpack.c.l.b16 %v2097
        %v2189 = vunpack.c.h.b16 %v2097
        %v2190 = vunpack.c.l.b16 %v2098
        %v2191 = vunpack.c.h.b16 %v2098
        %v2192 = vunpack.c.l.b16 %v2099
        %v2193 = vunpack.c.h.b16 %v2099
        %v2194 = vunpack.c.l.b16 %v2100
        %v2195 = vunpack.c.h.b16 %v2100
        %v2196 = vunpack.c.l.b16 %v2101
        %v2197 = vunpack.c.h.b16 %v2101
        %v2198 = vunpack.c.l.b16 %v2102
        %v2199 = vunpack.c.h.b16 %v2102
        %v2200 = vunpack.c.l.b16 %v2103
        %v2201 = vunpack.c.h.b16 %v2103
        %v2202 = vunpack.c.l.b16 %v2104
        %v2203 = vunpack.c.h.b16 %v2104
        %v2204 = vunpack.c.l.b16 %v2105
        %v2205 = vunpack.c.h.b16 %v2105
        %v2206 = vunpack.c.l.b16 %v2106
        %v2207 = vunpack.c.h.b16 %v2106
        %v2208 = vunpack.c.l.b16 %v2107
        %v2209 = vunpack.c.h.b16 %v2107
        %v2210 = vunpack.c.l.b16 %v2108
        %v2211 = vunpack.c.h.b16 %v2108
        %v2212 = vunpack.c.l.b16 %v2109
        %v2213 = vunpack.c.h.b16 %v2109
        %v2214 = vunpack.c.l.b16 %v2110
        %v2215 = vunpack.c.h.b16 %v2110
        %v2216 = vunpack.c.l.b16 %v2111
        %v2217 = vunpack.c.h.b16 %v2111
        %v2218 = vunpack.c.l.b16 %v2112
        %v2219 = vunpack.c.h.b16 %v2112
        %v2220 = vunpack.c.l.b16 %v2113
        %v2221 = vunpack.c.h.b16 %v2113
        %v2222 = vunpack.c.l.b16 %v2114
        %v2223 = vunpack.c.h.b16 %v2114
        %v2224 = vunpack.c.l.b16 %v2115
        %v2225 = vunpack.c.h.b16 %v2115
        %v2226 = vunpack.c.l.b16 %v2116
        %v2227 = vunpack.c.h.b16 %v2116
        %v2228 = vunpack.c.l.b16 %v2117
        %v2229 = vunpack.c.h.b16 %v2117
        %v2230 = vunpack.c.l.b16 %v2118
        %v2231 = vunpack.c.h.b16 %v2118
        %v2232 = vunpack.c.l.b16 %v2119
        %v2233 = vunpack.c.h.b16 %v2119
        %v2234 = vunpack.c.l.b16 %v2120
        %v2235 = vunpack.c.h.b16 %v2120
        %v2236 = vunpack.c.l.b16 %v2121
        %v2237 = vunpack.c.h.b16 %v2121
        %v2238 = vunpack.c.l.b16 %v2122
        %v2239 = vunpack.c.h.b16 %v2122
        %v2240 = vpack.c.b16 %v2178, %v2176
        %v2241 = vpack.c.b16 %v2179, %v2177
        %v2242 = vpack.c.b16 %v2182, %v2180
        %v2243 = vpack.c.b16 %v2183, %v2181
        %v2244 = vpack.c.b16 %v2186, %v2184
        %v2245 = vpack.c.b16 %v2187, %v2185
        %v2246 = vpack.c.b16 %v2190, %v2188
        %v2247 = vpack.c.b16 %v2191, %v2189
        %v2248 = vpack.c.b16 %v2194, %v2192
        %v2249 = vpack.c.b16 %v2195, %v2193
        %v2250 = vpack.c.b16 %v2198, %v2196
        %v2251 = vpack.c.b16 %v2199, %v2197
        %v2252 = vpack.c.b16 %v2202, %v2200
        %v2253 = vpack.c.b16 %v2203, %v2201
        %v2254 = vpack.c.b16 %v2206, %v2204
        %v2255 = vpack.c.b16 %v2207, %v2205
        %v2256 = vpack.c.b16 %v2210, %v2208
        %v2257 = vpack.c.b16 %v2211, %v2209
        %v2258 = vpack.c.b16 %v2214, %v2212
        %v2259 = vpack.c.b16 %v2215, %v2213
        %v2260 = vpack.c.b16 %v2218, %v2216
        %v2261 = vpack.c.b16 %v2219, %v2217
        %v2262 = vpack.c.b16 %v2222, %v2220
        %v2263 = vpack.c.b16 %v2223, %v2221
        %v2264 = vpack.c.b16 %v2226, %v2224
        %v2265 = vpack.c.b16 %v2227, %v2225
        %v2266 = vpack.c.b16 %v2230, %v2228
        %v2267 = vpack.c.b16 %v2231, %v2229
        %v2268 = vpack.c.b16 %v2234, %v2232
        %v2269 = vpack.c.b16 %v2235, %v2233
        %v2270 = vpack.c.b16 %v2238, %v2236
        %v2271 = vpack.c.b16 %v2239, %v2237
        %2304 = vmatpush.bf16.msra.mxu0 %v2254
        %2305 = vmatpush.bf16.msra.mxu0 %v2252
        %2306 = vmatpush.bf16.msra.mxu0 %v2250
        %2307 = vmatpush.bf16.msra.mxu0 %v2248
        %2308 = vmatpush.bf16.msra.mxu0 %v2246
        %2309 = vmatpush.bf16.msra.mxu0 %v2244
        %2310 = vmatpush.bf16.msra.mxu0 %v2242
        %2311 = vmatpush.bf16.msra.mxu0 %v2240
        %2312 = vmatmul.bf16.gmra.mxu0 %v2134
        %v2313 = vpop.f32.mrf.mxu0
        %v2314 = vadd.f32 0.0, %v2313
        %v2315 = vpop.f32.mrf.mxu0
        %2316 = vdwg.mxu0
        %2317 = vmatpush.bf16.msra.mxu0 %v2270
        %2318 = vmatpush.bf16.msra.mxu0 %v2268
        %2319 = vmatpush.bf16.msra.mxu0 %v2266
        %2320 = vmatpush.bf16.msra.mxu0 %v2264
        %2321 = vmatpush.bf16.msra.mxu0 %v2262
        %2322 = vmatpush.bf16.msra.mxu0 %v2260
        %2323 = vmatpush.bf16.msra.mxu0 %v2258
        %2324 = vmatpush.bf16.msra.mxu0 %v2256
        %2325 = vmatmul.bf16.gmra.mxu0 %v2141
        %v2326 = vpop.f32.mrf.mxu0
        %v2327 = vadd.f32 %v2314, %v2326
        %v2328 = vpop.f32.mrf.mxu0
        %2329 = vdwg.mxu0
        %2330 = vmatpush.bf16.msra.mxu0 %v2255
        %2331 = vmatpush.bf16.msra.mxu0 %v2253
        %2332 = vmatpush.bf16.msra.mxu0 %v2251
        %2333 = vmatpush.bf16.msra.mxu0 %v2249
        %2334 = vmatpush.bf16.msra.mxu0 %v2247
        %2335 = vmatpush.bf16.msra.mxu0 %v2245
        %2336 = vmatpush.bf16.msra.mxu0 %v2243
        %2337 = vmatpush.bf16.msra.mxu0 %v2241
        %2338 = vmatmul.bf16.gmra.mxu0 %v2134
        %v2339 = vpop.f32.mrf.mxu0
        %v2340 = vadd.f32 0.0, %v2339
        %v2341 = vpop.f32.mrf.mxu0
        %2342 = vdwg.mxu0
        %2343 = vmatpush.bf16.msra.mxu0 %v2271
        %2344 = vmatpush.bf16.msra.mxu0 %v2269
        %2345 = vmatpush.bf16.msra.mxu0 %v2267
        %2346 = vmatpush.bf16.msra.mxu0 %v2265
        %2347 = vmatpush.bf16.msra.mxu0 %v2263
        %2348 = vmatpush.bf16.msra.mxu0 %v2261
        %2349 = vmatpush.bf16.msra.mxu0 %v2259
        %2350 = vmatpush.bf16.msra.mxu0 %v2257
        %2351 = vmatmul.bf16.gmra.mxu0 %v2141
        %v2352 = vpop.f32.mrf.mxu0
        %v2353 = vadd.f32 %v2340, %v2352
        %v2354 = vpop.f32.mrf.mxu0
        %2355 = vdwg.mxu0
        %v2357 = vunpack.c.l.b16 %v2056
        %v2358 = vunpack.c.h.b16 %v2056
        %v2359 = vpack.c.b16 %v2357, %v2357
        %v2360 = vpack.c.b16 %v2358, %v2358
        %v2395 = vunpack.c.l.b16 %v2057
        %v2396 = vunpack.c.h.b16 %v2057
        %v2397 = vunpack.c.l.b16 %v2058
        %v2398 = vunpack.c.h.b16 %v2058
        %v2399 = vunpack.c.l.b16 %v2059
        %v2400 = vunpack.c.h.b16 %v2059
        %v2401 = vunpack.c.l.b16 %v2060
        %v2402 = vunpack.c.h.b16 %v2060
        %v2403 = vunpack.c.l.b16 %v2061
        %v2404 = vunpack.c.h.b16 %v2061
        %v2405 = vunpack.c.l.b16 %v2062
        %v2406 = vunpack.c.h.b16 %v2062
        %v2407 = vunpack.c.l.b16 %v2063
        %v2408 = vunpack.c.h.b16 %v2063
        %v2409 = vunpack.c.l.b16 %v2064
        %v2410 = vunpack.c.h.b16 %v2064
        %v2411 = vunpack.c.l.b16 %v2065
        %v2412 = vunpack.c.h.b16 %v2065
        %v2413 = vunpack.c.l.b16 %v2066
        %v2414 = vunpack.c.h.b16 %v2066
        %v2415 = vunpack.c.l.b16 %v2067
        %v2416 = vunpack.c.h.b16 %v2067
        %v2417 = vunpack.c.l.b16 %v2068
        %v2418 = vunpack.c.h.b16 %v2068
        %v2419 = vunpack.c.l.b16 %v2069
        %v2420 = vunpack.c.h.b16 %v2069
        %v2421 = vunpack.c.l.b16 %v2070
        %v2422 = vunpack.c.h.b16 %v2070
        %v2423 = vunpack.c.l.b16 %v2071
        %v2424 = vunpack.c.h.b16 %v2071
        %v2425 = vunpack.c.l.b16 %v2072
        %v2426 = vunpack.c.h.b16 %v2072
        %v2427 = vunpack.c.l.b16 %v2073
        %v2428 = vunpack.c.h.b16 %v2073
        %v2429 = vunpack.c.l.b16 %v2074
        %v2430 = vunpack.c.h.b16 %v2074
        %v2431 = vunpack.c.l.b16 %v2075
        %v2432 = vunpack.c.h.b16 %v2075
        %v2433 = vunpack.c.l.b16 %v2076
        %v2434 = vunpack.c.h.b16 %v2076
        %v2435 = vunpack.c.l.b16 %v2077
        %v2436 = vunpack.c.h.b16 %v2077
        %v2437 = vunpack.c.l.b16 %v2078
        %v2438 = vunpack.c.h.b16 %v2078
        %v2439 = vunpack.c.l.b16 %v2079
        %v2440 = vunpack.c.h.b16 %v2079
        %v2441 = vunpack.c.l.b16 %v2080
        %v2442 = vunpack.c.h.b16 %v2080
        %v2443 = vunpack.c.l.b16 %v2081
        %v2444 = vunpack.c.h.b16 %v2081
        %v2445 = vunpack.c.l.b16 %v2082
        %v2446 = vunpack.c.h.b16 %v2082
        %v2447 = vunpack.c.l.b16 %v2083
        %v2448 = vunpack.c.h.b16 %v2083
        %v2449 = vunpack.c.l.b16 %v2084
        %v2450 = vunpack.c.h.b16 %v2084
        %v2451 = vunpack.c.l.b16 %v2085
        %v2452 = vunpack.c.h.b16 %v2085
        %v2453 = vunpack.c.l.b16 %v2086
        %v2454 = vunpack.c.h.b16 %v2086
        %v2455 = vunpack.c.l.b16 %v2087
        %v2456 = vunpack.c.h.b16 %v2087
        %v2457 = vunpack.c.l.b16 %v2088
        %v2458 = vunpack.c.h.b16 %v2088
        %v2459 = vpack.c.b16 %v2397, %v2395
        %v2460 = vpack.c.b16 %v2398, %v2396
        %v2461 = vpack.c.b16 %v2401, %v2399
        %v2462 = vpack.c.b16 %v2402, %v2400
        %v2463 = vpack.c.b16 %v2405, %v2403
        %v2464 = vpack.c.b16 %v2406, %v2404
        %v2465 = vpack.c.b16 %v2409, %v2407
        %v2466 = vpack.c.b16 %v2410, %v2408
        %v2467 = vpack.c.b16 %v2413, %v2411
        %v2468 = vpack.c.b16 %v2414, %v2412
        %v2469 = vpack.c.b16 %v2417, %v2415
        %v2470 = vpack.c.b16 %v2418, %v2416
        %v2471 = vpack.c.b16 %v2421, %v2419
        %v2472 = vpack.c.b16 %v2422, %v2420
        %v2473 = vpack.c.b16 %v2425, %v2423
        %v2474 = vpack.c.b16 %v2426, %v2424
        %v2475 = vpack.c.b16 %v2429, %v2427
        %v2476 = vpack.c.b16 %v2430, %v2428
        %v2477 = vpack.c.b16 %v2433, %v2431
        %v2478 = vpack.c.b16 %v2434, %v2432
        %v2479 = vpack.c.b16 %v2437, %v2435
        %v2480 = vpack.c.b16 %v2438, %v2436
        %v2481 = vpack.c.b16 %v2441, %v2439
        %v2482 = vpack.c.b16 %v2442, %v2440
        %v2483 = vpack.c.b16 %v2445, %v2443
        %v2484 = vpack.c.b16 %v2446, %v2444
        %v2485 = vpack.c.b16 %v2449, %v2447
        %v2486 = vpack.c.b16 %v2450, %v2448
        %v2487 = vpack.c.b16 %v2453, %v2451
        %v2488 = vpack.c.b16 %v2454, %v2452
        %v2489 = vpack.c.b16 %v2457, %v2455
        %v2490 = vpack.c.b16 %v2458, %v2456
        %2523 = vmatpush.bf16.msra.mxu0 %v2473
        %2524 = vmatpush.bf16.msra.mxu0 %v2471
        %2525 = vmatpush.bf16.msra.mxu0 %v2469
        %2526 = vmatpush.bf16.msra.mxu0 %v2467
        %2527 = vmatpush.bf16.msra.mxu0 %v2465
        %2528 = vmatpush.bf16.msra.mxu0 %v2463
        %2529 = vmatpush.bf16.msra.mxu0 %v2461
        %2530 = vmatpush.bf16.msra.mxu0 %v2459
        %2531 = vmatmul.bf16.gmra.mxu0 %v2359
        %v2532 = vpop.f32.mrf.mxu0
        %v2533 = vadd.f32 %v2327, %v2532
        %v2534 = vpop.f32.mrf.mxu0
        %2535 = vdwg.mxu0
        %2536 = vmatpush.bf16.msra.mxu0 %v2489
        %2537 = vmatpush.bf16.msra.mxu0 %v2487
        %2538 = vmatpush.bf16.msra.mxu0 %v2485
        %2539 = vmatpush.bf16.msra.mxu0 %v2483
        %2540 = vmatpush.bf16.msra.mxu0 %v2481
        %2541 = vmatpush.bf16.msra.mxu0 %v2479
        %2542 = vmatpush.bf16.msra.mxu0 %v2477
        %2543 = vmatpush.bf16.msra.mxu0 %v2475
        %2544 = vmatmul.bf16.gmra.mxu0 %v2360
        %v2545 = vpop.f32.mrf.mxu0
        %v2546 = vadd.f32 %v2533, %v2545
        %v2547 = vpop.f32.mrf.mxu0
        %2548 = vdwg.mxu0
        %2549 = vmatpush.bf16.msra.mxu0 %v2474
        %2550 = vmatpush.bf16.msra.mxu0 %v2472
        %2551 = vmatpush.bf16.msra.mxu0 %v2470
        %2552 = vmatpush.bf16.msra.mxu0 %v2468
        %2553 = vmatpush.bf16.msra.mxu0 %v2466
        %2554 = vmatpush.bf16.msra.mxu0 %v2464
        %2555 = vmatpush.bf16.msra.mxu0 %v2462
        %2556 = vmatpush.bf16.msra.mxu0 %v2460
        %2557 = vmatmul.bf16.gmra.mxu0 %v2359
        %v2558 = vpop.f32.mrf.mxu0
        %v2559 = vadd.f32 %v2353, %v2558
        %v2560 = vpop.f32.mrf.mxu0
        %2561 = vdwg.mxu0
        %2562 = vmatpush.bf16.msra.mxu0 %v2490
        %2563 = vmatpush.bf16.msra.mxu0 %v2488
        %2564 = vmatpush.bf16.msra.mxu0 %v2486
        %2565 = vmatpush.bf16.msra.mxu0 %v2484
        %2566 = vmatpush.bf16.msra.mxu0 %v2482
        %2567 = vmatpush.bf16.msra.mxu0 %v2480
        %2568 = vmatpush.bf16.msra.mxu0 %v2478
        %2569 = vmatpush.bf16.msra.mxu0 %v2476
        %2570 = vmatmul.bf16.gmra.mxu0 %v2360
        %v2571 = vpop.f32.mrf.mxu0
        %v2572 = vadd.f32 %v2559, %v2571
        %v2573 = vpop.f32.mrf.mxu0
        %2574 = vdwg.mxu0
        %v2575 = vld [vmem:[#allocation2] sm:$0x66]
        %s2576 = scalar_lea.vmem [#allocation8], 512
        %v2577 = vld [vmem:[%s2576] sm:$0xff]
        %v2578 = vld [vmem:[%s2576 + $0x8] sm:$0xff]
        %v2579 = vld [vmem:[%s2576 + $0x10] sm:$0xff]
        %v2580 = vld [vmem:[%s2576 + $0x18] sm:$0xff]
        %v2581 = vld [vmem:[%s2576 + $0x20] sm:$0xff]
        %v2582 = vld [vmem:[%s2576 + $0x28] sm:$0xff]
        %v2583 = vld [vmem:[%s2576 + $0x30] sm:$0xff]
        %v2584 = vld [vmem:[%s2576 + $0x38] sm:$0xff]
        %v2585 = vld [vmem:[%s2576 + $0x40] sm:$0xff]
        %v2586 = vld [vmem:[%s2576 + $0x48] sm:$0xff]
        %v2587 = vld [vmem:[%s2576 + $0x50] sm:$0xff]
        %v2588 = vld [vmem:[%s2576 + $0x58] sm:$0xff]
        %v2589 = vld [vmem:[%s2576 + $0x60] sm:$0xff]
        %v2590 = vld [vmem:[%s2576 + $0x68] sm:$0xff]
        %v2591 = vld [vmem:[%s2576 + $0x70] sm:$0xff]
        %v2592 = vld [vmem:[%s2576 + $0x78] sm:$0xff]
        %v2593 = vld [vmem:[%s2576 + $0x80] sm:$0xff]
        %v2594 = vld [vmem:[%s2576 + $0x88] sm:$0xff]
        %v2595 = vld [vmem:[%s2576 + $0x90] sm:$0xff]
        %v2596 = vld [vmem:[%s2576 + $0x98] sm:$0xff]
        %v2597 = vld [vmem:[%s2576 + $0xa0] sm:$0xff]
        %v2598 = vld [vmem:[%s2576 + $0xa8] sm:$0xff]
        %v2599 = vld [vmem:[%s2576 + $0xb0] sm:$0xff]
        %v2600 = vld [vmem:[%s2576 + $0xb8] sm:$0xff]
        %v2601 = vld [vmem:[%s2576 + $0xc0] sm:$0xff]
        %v2602 = vld [vmem:[%s2576 + $0xc8] sm:$0xff]
        %v2603 = vld [vmem:[%s2576 + $0xd0] sm:$0xff]
        %v2604 = vld [vmem:[%s2576 + $0xd8] sm:$0xff]
        %v2605 = vld [vmem:[%s2576 + $0xe0] sm:$0xff]
        %v2606 = vld [vmem:[%s2576 + $0xe8] sm:$0xff]
        %v2607 = vld [vmem:[%s2576 + $0xf0] sm:$0xff]
        %v2608 = vld [vmem:[%s2576 + $0xf8] sm:$0xff]
        %v2610 = vunpack.c.l.b16 %v2575
        %v2611 = vunpack.c.h.b16 %v2575
        %v2612 = vpack.c.b16 %v2610, %v2610
        %v2613 = vpack.c.b16 %v2611, %v2611
        %v2614 = vrot.slane %v2612, 1
        %v2615 = vrot.slane %v2613, 1
        %v2650 = vunpack.c.l.b16 %v2577
        %v2651 = vunpack.c.h.b16 %v2577
        %v2652 = vunpack.c.l.b16 %v2578
        %v2653 = vunpack.c.h.b16 %v2578
        %v2654 = vunpack.c.l.b16 %v2579
        %v2655 = vunpack.c.h.b16 %v2579
        %v2656 = vunpack.c.l.b16 %v2580
        %v2657 = vunpack.c.h.b16 %v2580
        %v2658 = vunpack.c.l.b16 %v2581
        %v2659 = vunpack.c.h.b16 %v2581
        %v2660 = vunpack.c.l.b16 %v2582
        %v2661 = vunpack.c.h.b16 %v2582
        %v2662 = vunpack.c.l.b16 %v2583
        %v2663 = vunpack.c.h.b16 %v2583
        %v2664 = vunpack.c.l.b16 %v2584
        %v2665 = vunpack.c.h.b16 %v2584
        %v2666 = vunpack.c.l.b16 %v2585
        %v2667 = vunpack.c.h.b16 %v2585
        %v2668 = vunpack.c.l.b16 %v2586
        %v2669 = vunpack.c.h.b16 %v2586
        %v2670 = vunpack.c.l.b16 %v2587
        %v2671 = vunpack.c.h.b16 %v2587
        %v2672 = vunpack.c.l.b16 %v2588
        %v2673 = vunpack.c.h.b16 %v2588
        %v2674 = vunpack.c.l.b16 %v2589
        %v2675 = vunpack.c.h.b16 %v2589
        %v2676 = vunpack.c.l.b16 %v2590
        %v2677 = vunpack.c.h.b16 %v2590
        %v2678 = vunpack.c.l.b16 %v2591
        %v2679 = vunpack.c.h.b16 %v2591
        %v2680 = vunpack.c.l.b16 %v2592
        %v2681 = vunpack.c.h.b16 %v2592
        %v2682 = vunpack.c.l.b16 %v2593
        %v2683 = vunpack.c.h.b16 %v2593
        %v2684 = vunpack.c.l.b16 %v2594
        %v2685 = vunpack.c.h.b16 %v2594
        %v2686 = vunpack.c.l.b16 %v2595
        %v2687 = vunpack.c.h.b16 %v2595
        %v2688 = vunpack.c.l.b16 %v2596
        %v2689 = vunpack.c.h.b16 %v2596
        %v2690 = vunpack.c.l.b16 %v2597
        %v2691 = vunpack.c.h.b16 %v2597
        %v2692 = vunpack.c.l.b16 %v2598
        %v2693 = vunpack.c.h.b16 %v2598
        %v2694 = vunpack.c.l.b16 %v2599
        %v2695 = vunpack.c.h.b16 %v2599
        %v2696 = vunpack.c.l.b16 %v2600
        %v2697 = vunpack.c.h.b16 %v2600
        %v2698 = vunpack.c.l.b16 %v2601
        %v2699 = vunpack.c.h.b16 %v2601
        %v2700 = vunpack.c.l.b16 %v2602
        %v2701 = vunpack.c.h.b16 %v2602
        %v2702 = vunpack.c.l.b16 %v2603
        %v2703 = vunpack.c.h.b16 %v2603
        %v2704 = vunpack.c.l.b16 %v2604
        %v2705 = vunpack.c.h.b16 %v2604
        %v2706 = vunpack.c.l.b16 %v2605
        %v2707 = vunpack.c.h.b16 %v2605
        %v2708 = vunpack.c.l.b16 %v2606
        %v2709 = vunpack.c.h.b16 %v2606
        %v2710 = vunpack.c.l.b16 %v2607
        %v2711 = vunpack.c.h.b16 %v2607
        %v2712 = vunpack.c.l.b16 %v2608
        %v2713 = vunpack.c.h.b16 %v2608
        %v2714 = vpack.c.b16 %v2652, %v2650
        %v2715 = vpack.c.b16 %v2653, %v2651
        %v2716 = vpack.c.b16 %v2656, %v2654
        %v2717 = vpack.c.b16 %v2657, %v2655
        %v2718 = vpack.c.b16 %v2660, %v2658
        %v2719 = vpack.c.b16 %v2661, %v2659
        %v2720 = vpack.c.b16 %v2664, %v2662
        %v2721 = vpack.c.b16 %v2665, %v2663
        %v2722 = vpack.c.b16 %v2668, %v2666
        %v2723 = vpack.c.b16 %v2669, %v2667
        %v2724 = vpack.c.b16 %v2672, %v2670
        %v2725 = vpack.c.b16 %v2673, %v2671
        %v2726 = vpack.c.b16 %v2676, %v2674
        %v2727 = vpack.c.b16 %v2677, %v2675
        %v2728 = vpack.c.b16 %v2680, %v2678
        %v2729 = vpack.c.b16 %v2681, %v2679
        %v2730 = vpack.c.b16 %v2684, %v2682
        %v2731 = vpack.c.b16 %v2685, %v2683
        %v2732 = vpack.c.b16 %v2688, %v2686
        %v2733 = vpack.c.b16 %v2689, %v2687
        %v2734 = vpack.c.b16 %v2692, %v2690
        %v2735 = vpack.c.b16 %v2693, %v2691
        %v2736 = vpack.c.b16 %v2696, %v2694
        %v2737 = vpack.c.b16 %v2697, %v2695
        %v2738 = vpack.c.b16 %v2700, %v2698
        %v2739 = vpack.c.b16 %v2701, %v2699
        %v2740 = vpack.c.b16 %v2704, %v2702
        %v2741 = vpack.c.b16 %v2705, %v2703
        %v2742 = vpack.c.b16 %v2708, %v2706
        %v2743 = vpack.c.b16 %v2709, %v2707
        %v2744 = vpack.c.b16 %v2712, %v2710
        %v2745 = vpack.c.b16 %v2713, %v2711
        %2778 = vmatpush.bf16.msra.mxu0 %v2728
        %2779 = vmatpush.bf16.msra.mxu0 %v2726
        %2780 = vmatpush.bf16.msra.mxu0 %v2724
        %2781 = vmatpush.bf16.msra.mxu0 %v2722
        %2782 = vmatpush.bf16.msra.mxu0 %v2720
        %2783 = vmatpush.bf16.msra.mxu0 %v2718
        %2784 = vmatpush.bf16.msra.mxu0 %v2716
        %2785 = vmatpush.bf16.msra.mxu0 %v2714
        %2786 = vmatmul.bf16.gmra.mxu0 %v2614
        %v2787 = vpop.f32.mrf.mxu0
        %v2788 = vadd.f32 0.0, %v2787
        %v2789 = vpop.f32.mrf.mxu0
        %2790 = vdwg.mxu0
        %2791 = vmatpush.bf16.msra.mxu0 %v2744
        %2792 = vmatpush.bf16.msra.mxu0 %v2742
        %2793 = vmatpush.bf16.msra.mxu0 %v2740
        %2794 = vmatpush.bf16.msra.mxu0 %v2738
        %2795 = vmatpush.bf16.msra.mxu0 %v2736
        %2796 = vmatpush.bf16.msra.mxu0 %v2734
        %2797 = vmatpush.bf16.msra.mxu0 %v2732
        %2798 = vmatpush.bf16.msra.mxu0 %v2730
        %2799 = vmatmul.bf16.gmra.mxu0 %v2615
        %v2800 = vpop.f32.mrf.mxu0
        %v2801 = vadd.f32 %v2788, %v2800
        %v2802 = vpop.f32.mrf.mxu0
        %2803 = vdwg.mxu0
        %2804 = vmatpush.bf16.msra.mxu0 %v2729
        %2805 = vmatpush.bf16.msra.mxu0 %v2727
        %2806 = vmatpush.bf16.msra.mxu0 %v2725
        %2807 = vmatpush.bf16.msra.mxu0 %v2723
        %2808 = vmatpush.bf16.msra.mxu0 %v2721
        %2809 = vmatpush.bf16.msra.mxu0 %v2719
        %2810 = vmatpush.bf16.msra.mxu0 %v2717
        %2811 = vmatpush.bf16.msra.mxu0 %v2715
        %2812 = vmatmul.bf16.gmra.mxu0 %v2614
        %v2813 = vpop.f32.mrf.mxu0
        %v2814 = vadd.f32 0.0, %v2813
        %v2815 = vpop.f32.mrf.mxu0
        %2816 = vdwg.mxu0
        %2817 = vmatpush.bf16.msra.mxu0 %v2745
        %2818 = vmatpush.bf16.msra.mxu0 %v2743
        %2819 = vmatpush.bf16.msra.mxu0 %v2741
        %2820 = vmatpush.bf16.msra.mxu0 %v2739
        %2821 = vmatpush.bf16.msra.mxu0 %v2737
        %2822 = vmatpush.bf16.msra.mxu0 %v2735
        %2823 = vmatpush.bf16.msra.mxu0 %v2733
        %2824 = vmatpush.bf16.msra.mxu0 %v2731
        %2825 = vmatmul.bf16.gmra.mxu0 %v2615
        %v2826 = vpop.f32.mrf.mxu0
        %v2827 = vadd.f32 %v2814, %v2826
        %v2828 = vpop.f32.mrf.mxu0
        %2829 = vdwg.mxu0
        %v2830 = vadd.f32 %v2546, %v2801
        %v2831 = vadd.f32 %v2572, %v2827
        %v2832 = vld [vmem:[#allocation2] sm:$0xee]
        %s2833 = scalar_lea.vmem [#allocation8], 768
        %v2834 = vld [vmem:[%s2833] sm:$0xff]
        %v2835 = vld [vmem:[%s2833 + $0x8] sm:$0xff]
        %v2836 = vld [vmem:[%s2833 + $0x10] sm:$0xff]
        %v2837 = vld [vmem:[%s2833 + $0x18] sm:$0xff]
        %v2838 = vld [vmem:[%s2833 + $0x20] sm:$0xff]
        %v2839 = vld [vmem:[%s2833 + $0x28] sm:$0xff]
        %v2840 = vld [vmem:[%s2833 + $0x30] sm:$0xff]
        %v2841 = vld [vmem:[%s2833 + $0x38] sm:$0xff]
        %v2842 = vld [vmem:[%s2833 + $0x40] sm:$0xff]
        %v2843 = vld [vmem:[%s2833 + $0x48] sm:$0xff]
        %v2844 = vld [vmem:[%s2833 + $0x50] sm:$0xff]
        %v2845 = vld [vmem:[%s2833 + $0x58] sm:$0xff]
        %v2846 = vld [vmem:[%s2833 + $0x60] sm:$0xff]
        %v2847 = vld [vmem:[%s2833 + $0x68] sm:$0xff]
        %v2848 = vld [vmem:[%s2833 + $0x70] sm:$0xff]
        %v2849 = vld [vmem:[%s2833 + $0x78] sm:$0xff]
        %v2850 = vld [vmem:[%s2833 + $0x80] sm:$0xff]
        %v2851 = vld [vmem:[%s2833 + $0x88] sm:$0xff]
        %v2852 = vld [vmem:[%s2833 + $0x90] sm:$0xff]
        %v2853 = vld [vmem:[%s2833 + $0x98] sm:$0xff]
        %v2854 = vld [vmem:[%s2833 + $0xa0] sm:$0xff]
        %v2855 = vld [vmem:[%s2833 + $0xa8] sm:$0xff]
        %v2856 = vld [vmem:[%s2833 + $0xb0] sm:$0xff]
        %v2857 = vld [vmem:[%s2833 + $0xb8] sm:$0xff]
        %v2858 = vld [vmem:[%s2833 + $0xc0] sm:$0xff]
        %v2859 = vld [vmem:[%s2833 + $0xc8] sm:$0xff]
        %v2860 = vld [vmem:[%s2833 + $0xd0] sm:$0xff]
        %v2861 = vld [vmem:[%s2833 + $0xd8] sm:$0xff]
        %v2862 = vld [vmem:[%s2833 + $0xe0] sm:$0xff]
        %v2863 = vld [vmem:[%s2833 + $0xe8] sm:$0xff]
        %v2864 = vld [vmem:[%s2833 + $0xf0] sm:$0xff]
        %v2865 = vld [vmem:[%s2833 + $0xf8] sm:$0xff]
        %v2867 = vunpack.c.l.b16 %v2832
        %v2868 = vunpack.c.h.b16 %v2832
        %v2869 = vpack.c.b16 %v2867, %v2867
        %v2870 = vpack.c.b16 %v2868, %v2868
        %v2872 = vshrl.u32 %v2869, 16
        %v2874 = vrot.slane %v2872, 1
        %v2875 = vshll.u32 %v2869, 16
        %v2877 = vrot.slane %v2875, 2
        %v2878 = vor.u32 %v2874, %v2877
        %v2880 = vshrl.u32 %v2870, 16
        %v2882 = vrot.slane %v2880, 1
        %v2883 = vshll.u32 %v2870, 16
        %v2885 = vrot.slane %v2883, 2
        %v2886 = vor.u32 %v2882, %v2885
        %v2921 = vunpack.c.l.b16 %v2834
        %v2922 = vunpack.c.h.b16 %v2834
        %v2923 = vunpack.c.l.b16 %v2835
        %v2924 = vunpack.c.h.b16 %v2835
        %v2925 = vunpack.c.l.b16 %v2836
        %v2926 = vunpack.c.h.b16 %v2836
        %v2927 = vunpack.c.l.b16 %v2837
        %v2928 = vunpack.c.h.b16 %v2837
        %v2929 = vunpack.c.l.b16 %v2838
        %v2930 = vunpack.c.h.b16 %v2838
        %v2931 = vunpack.c.l.b16 %v2839
        %v2932 = vunpack.c.h.b16 %v2839
        %v2933 = vunpack.c.l.b16 %v2840
        %v2934 = vunpack.c.h.b16 %v2840
        %v2935 = vunpack.c.l.b16 %v2841
        %v2936 = vunpack.c.h.b16 %v2841
        %v2937 = vunpack.c.l.b16 %v2842
        %v2938 = vunpack.c.h.b16 %v2842
        %v2939 = vunpack.c.l.b16 %v2843
        %v2940 = vunpack.c.h.b16 %v2843
        %v2941 = vunpack.c.l.b16 %v2844
        %v2942 = vunpack.c.h.b16 %v2844
        %v2943 = vunpack.c.l.b16 %v2845
        %v2944 = vunpack.c.h.b16 %v2845
        %v2945 = vunpack.c.l.b16 %v2846
        %v2946 = vunpack.c.h.b16 %v2846
        %v2947 = vunpack.c.l.b16 %v2847
        %v2948 = vunpack.c.h.b16 %v2847
        %v2949 = vunpack.c.l.b16 %v2848
        %v2950 = vunpack.c.h.b16 %v2848
        %v2951 = vunpack.c.l.b16 %v2849
        %v2952 = vunpack.c.h.b16 %v2849
        %v2953 = vunpack.c.l.b16 %v2850
        %v2954 = vunpack.c.h.b16 %v2850
        %v2955 = vunpack.c.l.b16 %v2851
        %v2956 = vunpack.c.h.b16 %v2851
        %v2957 = vunpack.c.l.b16 %v2852
        %v2958 = vunpack.c.h.b16 %v2852
        %v2959 = vunpack.c.l.b16 %v2853
        %v2960 = vunpack.c.h.b16 %v2853
        %v2961 = vunpack.c.l.b16 %v2854
        %v2962 = vunpack.c.h.b16 %v2854
        %v2963 = vunpack.c.l.b16 %v2855
        %v2964 = vunpack.c.h.b16 %v2855
        %v2965 = vunpack.c.l.b16 %v2856
        %v2966 = vunpack.c.h.b16 %v2856
        %v2967 = vunpack.c.l.b16 %v2857
        %v2968 = vunpack.c.h.b16 %v2857
        %v2969 = vunpack.c.l.b16 %v2858
        %v2970 = vunpack.c.h.b16 %v2858
        %v2971 = vunpack.c.l.b16 %v2859
        %v2972 = vunpack.c.h.b16 %v2859
        %v2973 = vunpack.c.l.b16 %v2860
        %v2974 = vunpack.c.h.b16 %v2860
        %v2975 = vunpack.c.l.b16 %v2861
        %v2976 = vunpack.c.h.b16 %v2861
        %v2977 = vunpack.c.l.b16 %v2862
        %v2978 = vunpack.c.h.b16 %v2862
        %v2979 = vunpack.c.l.b16 %v2863
        %v2980 = vunpack.c.h.b16 %v2863
        %v2981 = vunpack.c.l.b16 %v2864
        %v2982 = vunpack.c.h.b16 %v2864
        %v2983 = vunpack.c.l.b16 %v2865
        %v2984 = vunpack.c.h.b16 %v2865
        %v2985 = vpack.c.b16 %v2923, %v2921
        %v2986 = vpack.c.b16 %v2924, %v2922
        %v2987 = vpack.c.b16 %v2927, %v2925
        %v2988 = vpack.c.b16 %v2928, %v2926
        %v2989 = vpack.c.b16 %v2931, %v2929
        %v2990 = vpack.c.b16 %v2932, %v2930
        %v2991 = vpack.c.b16 %v2935, %v2933
        %v2992 = vpack.c.b16 %v2936, %v2934
        %v2993 = vpack.c.b16 %v2939, %v2937
        %v2994 = vpack.c.b16 %v2940, %v2938
        %v2995 = vpack.c.b16 %v2943, %v2941
        %v2996 = vpack.c.b16 %v2944, %v2942
        %v2997 = vpack.c.b16 %v2947, %v2945
        %v2998 = vpack.c.b16 %v2948, %v2946
        %v2999 = vpack.c.b16 %v2951, %v2949
        %v3000 = vpack.c.b16 %v2952, %v2950
        %v3001 = vpack.c.b16 %v2955, %v2953
        %v3002 = vpack.c.b16 %v2956, %v2954
        %v3003 = vpack.c.b16 %v2959, %v2957
        %v3004 = vpack.c.b16 %v2960, %v2958
        %v3005 = vpack.c.b16 %v2963, %v2961
        %v3006 = vpack.c.b16 %v2964, %v2962
        %v3007 = vpack.c.b16 %v2967, %v2965
        %v3008 = vpack.c.b16 %v2968, %v2966
        %v3009 = vpack.c.b16 %v2971, %v2969
        %v3010 = vpack.c.b16 %v2972, %v2970
        %v3011 = vpack.c.b16 %v2975, %v2973
        %v3012 = vpack.c.b16 %v2976, %v2974
        %v3013 = vpack.c.b16 %v2979, %v2977
        %v3014 = vpack.c.b16 %v2980, %v2978
        %v3015 = vpack.c.b16 %v2983, %v2981
        %v3016 = vpack.c.b16 %v2984, %v2982
        %3049 = vmatpush.bf16.msra.mxu0 %v2999
        %3050 = vmatpush.bf16.msra.mxu0 %v2997
        %3051 = vmatpush.bf16.msra.mxu0 %v2995
        %3052 = vmatpush.bf16.msra.mxu0 %v2993
        %3053 = vmatpush.bf16.msra.mxu0 %v2991
        %3054 = vmatpush.bf16.msra.mxu0 %v2989
        %3055 = vmatpush.bf16.msra.mxu0 %v2987
        %3056 = vmatpush.bf16.msra.mxu0 %v2985
        %3057 = vmatmul.bf16.gmra.mxu0 %v2878
        %v3058 = vpop.f32.mrf.mxu0
        %v3059 = vadd.f32 0.0, %v3058
        %v3060 = vpop.f32.mrf.mxu0
        %3061 = vdwg.mxu0
        %3062 = vmatpush.bf16.msra.mxu0 %v3015
        %3063 = vmatpush.bf16.msra.mxu0 %v3013
        %3064 = vmatpush.bf16.msra.mxu0 %v3011
        %3065 = vmatpush.bf16.msra.mxu0 %v3009
        %3066 = vmatpush.bf16.msra.mxu0 %v3007
        %3067 = vmatpush.bf16.msra.mxu0 %v3005
        %3068 = vmatpush.bf16.msra.mxu0 %v3003
        %3069 = vmatpush.bf16.msra.mxu0 %v3001
        %3070 = vmatmul.bf16.gmra.mxu0 %v2886
        %v3071 = vpop.f32.mrf.mxu0
        %v3072 = vadd.f32 %v3059, %v3071
        %v3073 = vpop.f32.mrf.mxu0
        %3074 = vdwg.mxu0
        %3075 = vmatpush.bf16.msra.mxu0 %v3000
        %3076 = vmatpush.bf16.msra.mxu0 %v2998
        %3077 = vmatpush.bf16.msra.mxu0 %v2996
        %3078 = vmatpush.bf16.msra.mxu0 %v2994
        %3079 = vmatpush.bf16.msra.mxu0 %v2992
        %3080 = vmatpush.bf16.msra.mxu0 %v2990
        %3081 = vmatpush.bf16.msra.mxu0 %v2988
        %3082 = vmatpush.bf16.msra.mxu0 %v2986
        %3083 = vmatmul.bf16.gmra.mxu0 %v2878
        %v3084 = vpop.f32.mrf.mxu0
        %v3085 = vadd.f32 0.0, %v3084
        %v3086 = vpop.f32.mrf.mxu0
        %3087 = vdwg.mxu0
        %3088 = vmatpush.bf16.msra.mxu0 %v3016
        %3089 = vmatpush.bf16.msra.mxu0 %v3014
        %3090 = vmatpush.bf16.msra.mxu0 %v3012
        %3091 = vmatpush.bf16.msra.mxu0 %v3010
        %3092 = vmatpush.bf16.msra.mxu0 %v3008
        %3093 = vmatpush.bf16.msra.mxu0 %v3006
        %3094 = vmatpush.bf16.msra.mxu0 %v3004
        %3095 = vmatpush.bf16.msra.mxu0 %v3002
        %3096 = vmatmul.bf16.gmra.mxu0 %v2886
        %v3097 = vpop.f32.mrf.mxu0
        %v3098 = vadd.f32 %v3085, %v3097
        %v3099 = vpop.f32.mrf.mxu0
        %3100 = vdwg.mxu0
        %v3101 = vadd.f32 %v2830, %v3072
        %v3102 = vadd.f32 %v2831, %v3098
        %v3103 = vld [vmem:[#allocation2] sm:$0xcc]
        %s3104 = scalar_lea.vmem [#allocation8], 1024
        %v3105 = vld [vmem:[%s3104] sm:$0xff]
        %v3106 = vld [vmem:[%s3104 + $0x8] sm:$0xff]
        %v3107 = vld [vmem:[%s3104 + $0x10] sm:$0xff]
        %v3108 = vld [vmem:[%s3104 + $0x18] sm:$0xff]
        %v3109 = vld [vmem:[%s3104 + $0x20] sm:$0xff]
        %v3110 = vld [vmem:[%s3104 + $0x28] sm:$0xff]
        %v3111 = vld [vmem:[%s3104 + $0x30] sm:$0xff]
        %v3112 = vld [vmem:[%s3104 + $0x38] sm:$0xff]
        %v3113 = vld [vmem:[%s3104 + $0x40] sm:$0xff]
        %v3114 = vld [vmem:[%s3104 + $0x48] sm:$0xff]
        %v3115 = vld [vmem:[%s3104 + $0x50] sm:$0xff]
        %v3116 = vld [vmem:[%s3104 + $0x58] sm:$0xff]
        %v3117 = vld [vmem:[%s3104 + $0x60] sm:$0xff]
        %v3118 = vld [vmem:[%s3104 + $0x68] sm:$0xff]
        %v3119 = vld [vmem:[%s3104 + $0x70] sm:$0xff]
        %v3120 = vld [vmem:[%s3104 + $0x78] sm:$0xff]
        %v3121 = vld [vmem:[%s3104 + $0x80] sm:$0xff]
        %v3122 = vld [vmem:[%s3104 + $0x88] sm:$0xff]
        %v3123 = vld [vmem:[%s3104 + $0x90] sm:$0xff]
        %v3124 = vld [vmem:[%s3104 + $0x98] sm:$0xff]
        %v3125 = vld [vmem:[%s3104 + $0xa0] sm:$0xff]
        %v3126 = vld [vmem:[%s3104 + $0xa8] sm:$0xff]
        %v3127 = vld [vmem:[%s3104 + $0xb0] sm:$0xff]
        %v3128 = vld [vmem:[%s3104 + $0xb8] sm:$0xff]
        %v3129 = vld [vmem:[%s3104 + $0xc0] sm:$0xff]
        %v3130 = vld [vmem:[%s3104 + $0xc8] sm:$0xff]
        %v3131 = vld [vmem:[%s3104 + $0xd0] sm:$0xff]
        %v3132 = vld [vmem:[%s3104 + $0xd8] sm:$0xff]
        %v3133 = vld [vmem:[%s3104 + $0xe0] sm:$0xff]
        %v3134 = vld [vmem:[%s3104 + $0xe8] sm:$0xff]
        %v3135 = vld [vmem:[%s3104 + $0xf0] sm:$0xff]
        %v3136 = vld [vmem:[%s3104 + $0xf8] sm:$0xff]
        %v3138 = vunpack.c.l.b16 %v3103
        %v3139 = vunpack.c.h.b16 %v3103
        %v3140 = vpack.c.b16 %v3138, %v3138
        %v3141 = vpack.c.b16 %v3139, %v3139
        %v3142 = vrot.slane %v3140, 2
        %v3143 = vrot.slane %v3141, 2
        %v3178 = vunpack.c.l.b16 %v3105
        %v3179 = vunpack.c.h.b16 %v3105
        %v3180 = vunpack.c.l.b16 %v3106
        %v3181 = vunpack.c.h.b16 %v3106
        %v3182 = vunpack.c.l.b16 %v3107
        %v3183 = vunpack.c.h.b16 %v3107
        %v3184 = vunpack.c.l.b16 %v3108
        %v3185 = vunpack.c.h.b16 %v3108
        %v3186 = vunpack.c.l.b16 %v3109
        %v3187 = vunpack.c.h.b16 %v3109
        %v3188 = vunpack.c.l.b16 %v3110
        %v3189 = vunpack.c.h.b16 %v3110
        %v3190 = vunpack.c.l.b16 %v3111
        %v3191 = vunpack.c.h.b16 %v3111
        %v3192 = vunpack.c.l.b16 %v3112
        %v3193 = vunpack.c.h.b16 %v3112
        %v3194 = vunpack.c.l.b16 %v3113
        %v3195 = vunpack.c.h.b16 %v3113
        %v3196 = vunpack.c.l.b16 %v3114
        %v3197 = vunpack.c.h.b16 %v3114
        %v3198 = vunpack.c.l.b16 %v3115
        %v3199 = vunpack.c.h.b16 %v3115
        %v3200 = vunpack.c.l.b16 %v3116
        %v3201 = vunpack.c.h.b16 %v3116
        %v3202 = vunpack.c.l.b16 %v3117
        %v3203 = vunpack.c.h.b16 %v3117
        %v3204 = vunpack.c.l.b16 %v3118
        %v3205 = vunpack.c.h.b16 %v3118
        %v3206 = vunpack.c.l.b16 %v3119
        %v3207 = vunpack.c.h.b16 %v3119
        %v3208 = vunpack.c.l.b16 %v3120
        %v3209 = vunpack.c.h.b16 %v3120
        %v3210 = vunpack.c.l.b16 %v3121
        %v3211 = vunpack.c.h.b16 %v3121
        %v3212 = vunpack.c.l.b16 %v3122
        %v3213 = vunpack.c.h.b16 %v3122
        %v3214 = vunpack.c.l.b16 %v3123
        %v3215 = vunpack.c.h.b16 %v3123
        %v3216 = vunpack.c.l.b16 %v3124
        %v3217 = vunpack.c.h.b16 %v3124
        %v3218 = vunpack.c.l.b16 %v3125
        %v3219 = vunpack.c.h.b16 %v3125
        %v3220 = vunpack.c.l.b16 %v3126
        %v3221 = vunpack.c.h.b16 %v3126
        %v3222 = vunpack.c.l.b16 %v3127
        %v3223 = vunpack.c.h.b16 %v3127
        %v3224 = vunpack.c.l.b16 %v3128
        %v3225 = vunpack.c.h.b16 %v3128
        %v3226 = vunpack.c.l.b16 %v3129
        %v3227 = vunpack.c.h.b16 %v3129
        %v3228 = vunpack.c.l.b16 %v3130
        %v3229 = vunpack.c.h.b16 %v3130
        %v3230 = vunpack.c.l.b16 %v3131
        %v3231 = vunpack.c.h.b16 %v3131
        %v3232 = vunpack.c.l.b16 %v3132
        %v3233 = vunpack.c.h.b16 %v3132
        %v3234 = vunpack.c.l.b16 %v3133
        %v3235 = vunpack.c.h.b16 %v3133
        %v3236 = vunpack.c.l.b16 %v3134
        %v3237 = vunpack.c.h.b16 %v3134
        %v3238 = vunpack.c.l.b16 %v3135
        %v3239 = vunpack.c.h.b16 %v3135
        %v3240 = vunpack.c.l.b16 %v3136
        %v3241 = vunpack.c.h.b16 %v3136
        %v3242 = vpack.c.b16 %v3180, %v3178
        %v3243 = vpack.c.b16 %v3181, %v3179
        %v3244 = vpack.c.b16 %v3184, %v3182
        %v3245 = vpack.c.b16 %v3185, %v3183
        %v3246 = vpack.c.b16 %v3188, %v3186
        %v3247 = vpack.c.b16 %v3189, %v3187
        %v3248 = vpack.c.b16 %v3192, %v3190
        %v3249 = vpack.c.b16 %v3193, %v3191
        %v3250 = vpack.c.b16 %v3196, %v3194
        %v3251 = vpack.c.b16 %v3197, %v3195
        %v3252 = vpack.c.b16 %v3200, %v3198
        %v3253 = vpack.c.b16 %v3201, %v3199
        %v3254 = vpack.c.b16 %v3204, %v3202
        %v3255 = vpack.c.b16 %v3205, %v3203
        %v3256 = vpack.c.b16 %v3208, %v3206
        %v3257 = vpack.c.b16 %v3209, %v3207
        %v3258 = vpack.c.b16 %v3212, %v3210
        %v3259 = vpack.c.b16 %v3213, %v3211
        %v3260 = vpack.c.b16 %v3216, %v3214
        %v3261 = vpack.c.b16 %v3217, %v3215
        %v3262 = vpack.c.b16 %v3220, %v3218
        %v3263 = vpack.c.b16 %v3221, %v3219
        %v3264 = vpack.c.b16 %v3224, %v3222
        %v3265 = vpack.c.b16 %v3225, %v3223
        %v3266 = vpack.c.b16 %v3228, %v3226
        %v3267 = vpack.c.b16 %v3229, %v3227
        %v3268 = vpack.c.b16 %v3232, %v3230
        %v3269 = vpack.c.b16 %v3233, %v3231
        %v3270 = vpack.c.b16 %v3236, %v3234
        %v3271 = vpack.c.b16 %v3237, %v3235
        %v3272 = vpack.c.b16 %v3240, %v3238
        %v3273 = vpack.c.b16 %v3241, %v3239
        %3306 = vmatpush.bf16.msra.mxu0 %v3256
        %3307 = vmatpush.bf16.msra.mxu0 %v3254
        %3308 = vmatpush.bf16.msra.mxu0 %v3252
        %3309 = vmatpush.bf16.msra.mxu0 %v3250
        %3310 = vmatpush.bf16.msra.mxu0 %v3248
        %3311 = vmatpush.bf16.msra.mxu0 %v3246
        %3312 = vmatpush.bf16.msra.mxu0 %v3244
        %3313 = vmatpush.bf16.msra.mxu0 %v3242
        %3314 = vmatmul.bf16.gmra.mxu0 %v3142
        %v3315 = vpop.f32.mrf.mxu0
        %v3316 = vadd.f32 0.0, %v3315
        %v3317 = vpop.f32.mrf.mxu0
        %3318 = vdwg.mxu0
        %3319 = vmatpush.bf16.msra.mxu0 %v3272
        %3320 = vmatpush.bf16.msra.mxu0 %v3270
        %3321 = vmatpush.bf16.msra.mxu0 %v3268
        %3322 = vmatpush.bf16.msra.mxu0 %v3266
        %3323 = vmatpush.bf16.msra.mxu0 %v3264
        %3324 = vmatpush.bf16.msra.mxu0 %v3262
        %3325 = vmatpush.bf16.msra.mxu0 %v3260
        %3326 = vmatpush.bf16.msra.mxu0 %v3258
        %3327 = vmatmul.bf16.gmra.mxu0 %v3143
        %v3328 = vpop.f32.mrf.mxu0
        %v3329 = vadd.f32 %v3316, %v3328
        %v3330 = vpop.f32.mrf.mxu0
        %3331 = vdwg.mxu0
        %3332 = vmatpush.bf16.msra.mxu0 %v3257
        %3333 = vmatpush.bf16.msra.mxu0 %v3255
        %3334 = vmatpush.bf16.msra.mxu0 %v3253
        %3335 = vmatpush.bf16.msra.mxu0 %v3251
        %3336 = vmatpush.bf16.msra.mxu0 %v3249
        %3337 = vmatpush.bf16.msra.mxu0 %v3247
        %3338 = vmatpush.bf16.msra.mxu0 %v3245
        %3339 = vmatpush.bf16.msra.mxu0 %v3243
        %3340 = vmatmul.bf16.gmra.mxu0 %v3142
        %v3341 = vpop.f32.mrf.mxu0
        %v3342 = vadd.f32 0.0, %v3341
        %v3343 = vpop.f32.mrf.mxu0
        %3344 = vdwg.mxu0
        %3345 = vmatpush.bf16.msra.mxu0 %v3273
        %3346 = vmatpush.bf16.msra.mxu0 %v3271
        %3347 = vmatpush.bf16.msra.mxu0 %v3269
        %3348 = vmatpush.bf16.msra.mxu0 %v3267
        %3349 = vmatpush.bf16.msra.mxu0 %v3265
        %3350 = vmatpush.bf16.msra.mxu0 %v3263
        %3351 = vmatpush.bf16.msra.mxu0 %v3261
        %3352 = vmatpush.bf16.msra.mxu0 %v3259
        %3353 = vmatmul.bf16.gmra.mxu0 %v3143
        %v3354 = vpop.f32.mrf.mxu0
        %v3355 = vadd.f32 %v3342, %v3354
        %v3356 = vpop.f32.mrf.mxu0
        %3357 = vdwg.mxu0
        %v3358 = vadd.f32 %v3101, %v3329
        %v3359 = vadd.f32 %v3102, %v3355
        %v3360 = vld [vmem:[#allocation9] sm:$0x3]
        %v3362 = vperm.slane %v3360, 0
        %v3363 = vperm.slane %v3360, 1
        %v3366 = vadd.f32 %v3358, %v3362
        %v3367 = vadd.f32 %v3359, %v3363
        %v3368 = vmul.f32 %v3366, 0.5
        %v3369 = vmul.f32 %v3367, 0.5
        %v3370 = vmul.f32 %v3366, %v3366
        %v3371 = vmul.f32 %v3367, %v3367
        %v3372 = vmul.f32 %v3370, %v3366
        %v3373 = vmul.f32 %v3371, %v3367
        %v3374 = vmul.f32 %v3372, 0.044715
        %v3375 = vmul.f32 %v3373, 0.044715
        %v3376 = vadd.f32 %v3366, %v3374
        %v3377 = vadd.f32 %v3367, %v3375
        %v3378 = vmul.f32 %v3376, 0.7978846
        %v3379 = vmul.f32 %v3377, 0.7978846
        %v3380 = vtanh.pop %v3378
        %v3381 = vtanh.pop %v3379
        %v3382 = vadd.f32 %v3380, 1.0
        %v3383 = vadd.f32 %v3381, 1.0
        %v3384 = vmul.f32 %v3368, %v3382
        %v3385 = vmul.f32 %v3369, %v3383
        %v3388 = vrot.slane %v3385, 6
        %v3389 = vsel %vm1923, %v3384, %v3388
        %v3390 = vsel %vm1925, %v3384, %v3388
        %v3391 = vrot.slane %v3390, 2
        %3392 = vst [vmem:[#allocation1] ss:$4 sm:$0xff] %v3389
        %v3393 = vld.sshfl [vmem:[#allocation1] sm:$0xff pattern:$0x73625140]
        %v3394 = vld.sshfl [vmem:[#allocation1 + $0x8] sm:$0xff pattern:$0x73625140]
        %s3395 = scalar_lea.vmem [#allocation1], 32
        %3396 = vst [vmem:[%s3395] ss:$4 sm:$0xff] %v3391
        %v3397 = vld.sshfl [vmem:[#allocation1 + $0x20] sm:$0xff pattern:$0x73625140]
        %v3398 = vld.sshfl [vmem:[#allocation1 + $0x28] sm:$0xff pattern:$0x73625140]
        %v3403 = vsel %vm1923, %v3393, 0.0
        %v3404 = vrot.slane %v3403, 4
        %v3405 = vadd.f32 %v3403, %v3404
        %v3406 = vrot.slane %v3405, 2
        %v3407 = vadd.f32 %v3405, %v3406
        %v3408 = vrot.slane %v3407, 1
        %v3409 = vadd.f32 %v3407, %v3408
        %v3410 = vsel %vm1923, %v3394, 0.0
        %v3411 = vrot.slane %v3410, 4
        %v3412 = vadd.f32 %v3410, %v3411
        %v3413 = vrot.slane %v3412, 2
        %v3414 = vadd.f32 %v3412, %v3413
        %v3415 = vrot.slane %v3414, 1
        %v3416 = vadd.f32 %v3414, %v3415
        %v3417 = vsel %vm1923, %v3397, 0.0
        %v3418 = vrot.slane %v3417, 4
        %v3419 = vadd.f32 %v3417, %v3418
        %v3420 = vrot.slane %v3419, 2
        %v3421 = vadd.f32 %v3419, %v3420
        %v3422 = vrot.slane %v3421, 1
        %v3423 = vadd.f32 %v3421, %v3422
        %v3424 = vsel %vm1923, %v3398, 0.0
        %v3425 = vrot.slane %v3424, 4
        %v3426 = vadd.f32 %v3424, %v3425
        %v3427 = vrot.slane %v3426, 2
        %v3428 = vadd.f32 %v3426, %v3427
        %v3429 = vrot.slane %v3428, 1
        %v3430 = vadd.f32 %v3428, %v3429
        %v3431 = vmul.f32 %v3409, %v2017
        %v3432 = vmul.f32 %v3416, %v2017
        %v3433 = vmul.f32 %v3423, %v2017
        %v3434 = vmul.f32 %v3430, %v2017
        %v3435 = vpack.c.bf16 %v3432, %v3431
        %v3436 = vpack.c.bf16 %v3434, %v3433
        %v3437 = vld [vmem:[#allocation14] sm:$0xff]
        %v3438 = vld [vmem:[#allocation14 + $0x8] sm:$0xff]
        %v3439 = vld [vmem:[#allocation14 + $0x10] sm:$0xff]
        %v3440 = vld [vmem:[#allocation14 + $0x18] sm:$0xff]
        %v3441 = vld [vmem:[#allocation14 + $0x20] sm:$0xff]
        %v3442 = vld [vmem:[#allocation14 + $0x28] sm:$0xff]
        %v3443 = vld [vmem:[#allocation14 + $0x30] sm:$0xff]
        %v3444 = vld [vmem:[#allocation14 + $0x38] sm:$0xff]
        %v3445 = vld [vmem:[#allocation14 + $0x40] sm:$0xff]
        %v3446 = vld [vmem:[#allocation14 + $0x48] sm:$0xff]
        %v3447 = vld [vmem:[#allocation14 + $0x50] sm:$0xff]
        %v3448 = vld [vmem:[#allocation14 + $0x58] sm:$0xff]
        %v3449 = vld [vmem:[#allocation14 + $0x60] sm:$0xff]
        %v3450 = vld [vmem:[#allocation14 + $0x68] sm:$0xff]
        %v3451 = vld [vmem:[#allocation14 + $0x70] sm:$0xff]
        %v3452 = vld [vmem:[#allocation14 + $0x78] sm:$0xff]
        %v3453 = vld [vmem:[#allocation14 + $0x80] sm:$0xff]
        %v3454 = vld [vmem:[#allocation14 + $0x88] sm:$0xff]
        %v3455 = vld [vmem:[#allocation14 + $0x90] sm:$0xff]
        %v3456 = vld [vmem:[#allocation14 + $0x98] sm:$0xff]
        %v3457 = vld [vmem:[#allocation14 + $0xa0] sm:$0xff]
        %v3458 = vld [vmem:[#allocation14 + $0xa8] sm:$0xff]
        %v3459 = vld [vmem:[#allocation14 + $0xb0] sm:$0xff]
        %v3460 = vld [vmem:[#allocation14 + $0xb8] sm:$0xff]
        %v3461 = vld [vmem:[#allocation14 + $0xc0] sm:$0xff]
        %v3462 = vld [vmem:[#allocation14 + $0xc8] sm:$0xff]
        %v3463 = vld [vmem:[#allocation14 + $0xd0] sm:$0xff]
        %v3464 = vld [vmem:[#allocation14 + $0xd8] sm:$0xff]
        %v3465 = vld [vmem:[#allocation14 + $0xe0] sm:$0xff]
        %v3466 = vld [vmem:[#allocation14 + $0xe8] sm:$0xff]
        %v3467 = vld [vmem:[#allocation14 + $0xf0] sm:$0xff]
        %v3468 = vld [vmem:[#allocation14 + $0xf8] sm:$0xff]
        %v3469 = vld [vmem:[#allocation15] sm:$0x3]
        %v3471 = vperm.slane %v3469, 0
        %v3472 = vperm.slane %v3469, 1
        %v3477 = vperm.slane %v3435, 0
        %v3478 = vperm.slane %v3435, 4
        %v3479 = vperm.slane %v3436, 0
        %v3480 = vperm.slane %v3436, 4
        %v3481 = vunpack.c.l.b16 %v3477
        %v3482 = vunpack.c.l.b16 %v3478
        %v3483 = vunpack.c.l.b16 %v3479
        %v3484 = vunpack.c.l.b16 %v3480
        %vm3485 = vcmask 1041409
        %v3486 = vsel %vm3485, %v3483, %v3481
        %v3487 = vsel %vm3485, %v3484, %v3482
        %v3488 = vpack.c.b16 %v3486, %v3486
        %v3489 = vpack.c.b16 %v3487, %v3487
        %v3524 = vunpack.c.l.b16 %v3437
        %v3525 = vunpack.c.h.b16 %v3437
        %v3526 = vunpack.c.l.b16 %v3438
        %v3527 = vunpack.c.h.b16 %v3438
        %v3528 = vunpack.c.l.b16 %v3439
        %v3529 = vunpack.c.h.b16 %v3439
        %v3530 = vunpack.c.l.b16 %v3440
        %v3531 = vunpack.c.h.b16 %v3440
        %v3532 = vunpack.c.l.b16 %v3441
        %v3533 = vunpack.c.h.b16 %v3441
        %v3534 = vunpack.c.l.b16 %v3442
        %v3535 = vunpack.c.h.b16 %v3442
        %v3536 = vunpack.c.l.b16 %v3443
        %v3537 = vunpack.c.h.b16 %v3443
        %v3538 = vunpack.c.l.b16 %v3444
        %v3539 = vunpack.c.h.b16 %v3444
        %v3540 = vunpack.c.l.b16 %v3445
        %v3541 = vunpack.c.h.b16 %v3445
        %v3542 = vunpack.c.l.b16 %v3446
        %v3543 = vunpack.c.h.b16 %v3446
        %v3544 = vunpack.c.l.b16 %v3447
        %v3545 = vunpack.c.h.b16 %v3447
        %v3546 = vunpack.c.l.b16 %v3448
        %v3547 = vunpack.c.h.b16 %v3448
        %v3548 = vunpack.c.l.b16 %v3449
        %v3549 = vunpack.c.h.b16 %v3449
        %v3550 = vunpack.c.l.b16 %v3450
        %v3551 = vunpack.c.h.b16 %v3450
        %v3552 = vunpack.c.l.b16 %v3451
        %v3553 = vunpack.c.h.b16 %v3451
        %v3554 = vunpack.c.l.b16 %v3452
        %v3555 = vunpack.c.h.b16 %v3452
        %v3556 = vunpack.c.l.b16 %v3453
        %v3557 = vunpack.c.h.b16 %v3453
        %v3558 = vunpack.c.l.b16 %v3454
        %v3559 = vunpack.c.h.b16 %v3454
        %v3560 = vunpack.c.l.b16 %v3455
        %v3561 = vunpack.c.h.b16 %v3455
        %v3562 = vunpack.c.l.b16 %v3456
        %v3563 = vunpack.c.h.b16 %v3456
        %v3564 = vunpack.c.l.b16 %v3457
        %v3565 = vunpack.c.h.b16 %v3457
        %v3566 = vunpack.c.l.b16 %v3458
        %v3567 = vunpack.c.h.b16 %v3458
        %v3568 = vunpack.c.l.b16 %v3459
        %v3569 = vunpack.c.h.b16 %v3459
        %v3570 = vunpack.c.l.b16 %v3460
        %v3571 = vunpack.c.h.b16 %v3460
        %v3572 = vunpack.c.l.b16 %v3461
        %v3573 = vunpack.c.h.b16 %v3461
        %v3574 = vunpack.c.l.b16 %v3462
        %v3575 = vunpack.c.h.b16 %v3462
        %v3576 = vunpack.c.l.b16 %v3463
        %v3577 = vunpack.c.h.b16 %v3463
        %v3578 = vunpack.c.l.b16 %v3464
        %v3579 = vunpack.c.h.b16 %v3464
        %v3580 = vunpack.c.l.b16 %v3465
        %v3581 = vunpack.c.h.b16 %v3465
        %v3582 = vunpack.c.l.b16 %v3466
        %v3583 = vunpack.c.h.b16 %v3466
        %v3584 = vunpack.c.l.b16 %v3467
        %v3585 = vunpack.c.h.b16 %v3467
        %v3586 = vunpack.c.l.b16 %v3468
        %v3587 = vunpack.c.h.b16 %v3468
        %v3588 = vpack.c.b16 %v3526, %v3524
        %v3589 = vpack.c.b16 %v3527, %v3525
        %v3590 = vpack.c.b16 %v3530, %v3528
        %v3591 = vpack.c.b16 %v3531, %v3529
        %v3592 = vpack.c.b16 %v3534, %v3532
        %v3593 = vpack.c.b16 %v3535, %v3533
        %v3594 = vpack.c.b16 %v3538, %v3536
        %v3595 = vpack.c.b16 %v3539, %v3537
        %v3596 = vpack.c.b16 %v3542, %v3540
        %v3597 = vpack.c.b16 %v3543, %v3541
        %v3598 = vpack.c.b16 %v3546, %v3544
        %v3599 = vpack.c.b16 %v3547, %v3545
        %v3600 = vpack.c.b16 %v3550, %v3548
        %v3601 = vpack.c.b16 %v3551, %v3549
        %v3602 = vpack.c.b16 %v3554, %v3552
        %v3603 = vpack.c.b16 %v3555, %v3553
        %v3604 = vpack.c.b16 %v3558, %v3556
        %v3605 = vpack.c.b16 %v3559, %v3557
        %v3606 = vpack.c.b16 %v3562, %v3560
        %v3607 = vpack.c.b16 %v3563, %v3561
        %v3608 = vpack.c.b16 %v3566, %v3564
        %v3609 = vpack.c.b16 %v3567, %v3565
        %v3610 = vpack.c.b16 %v3570, %v3568
        %v3611 = vpack.c.b16 %v3571, %v3569
        %v3612 = vpack.c.b16 %v3574, %v3572
        %v3613 = vpack.c.b16 %v3575, %v3573
        %v3614 = vpack.c.b16 %v3578, %v3576
        %v3615 = vpack.c.b16 %v3579, %v3577
        %v3616 = vpack.c.b16 %v3582, %v3580
        %v3617 = vpack.c.b16 %v3583, %v3581
        %v3618 = vpack.c.b16 %v3586, %v3584
        %v3619 = vpack.c.b16 %v3587, %v3585
        %3652 = vmatpush.bf16.msra.mxu0 %v3602
        %3653 = vmatpush.bf16.msra.mxu0 %v3600
        %3654 = vmatpush.bf16.msra.mxu0 %v3598
        %3655 = vmatpush.bf16.msra.mxu0 %v3596
        %3656 = vmatpush.bf16.msra.mxu0 %v3594
        %3657 = vmatpush.bf16.msra.mxu0 %v3592
        %3658 = vmatpush.bf16.msra.mxu0 %v3590
        %3659 = vmatpush.bf16.msra.mxu0 %v3588
        %3660 = vmatmul.bf16.gmra.mxu0 %v3488
        %v3661 = vpop.f32.mrf.mxu0
        %v3662 = vadd.f32 %v3471, %v3661
        %v3663 = vpop.f32.mrf.mxu0
        %3664 = vdwg.mxu0
        %3665 = vmatpush.bf16.msra.mxu0 %v3618
        %3666 = vmatpush.bf16.msra.mxu0 %v3616
        %3667 = vmatpush.bf16.msra.mxu0 %v3614
        %3668 = vmatpush.bf16.msra.mxu0 %v3612
        %3669 = vmatpush.bf16.msra.mxu0 %v3610
        %3670 = vmatpush.bf16.msra.mxu0 %v3608
        %3671 = vmatpush.bf16.msra.mxu0 %v3606
        %3672 = vmatpush.bf16.msra.mxu0 %v3604
        %3673 = vmatmul.bf16.gmra.mxu0 %v3489
        %v3674 = vpop.f32.mrf.mxu0
        %v3675 = vadd.f32 %v3662, %v3674
        %v3676 = vpop.f32.mrf.mxu0
        %3677 = vdwg.mxu0
        %3678 = vmatpush.bf16.msra.mxu0 %v3603
        %3679 = vmatpush.bf16.msra.mxu0 %v3601
        %3680 = vmatpush.bf16.msra.mxu0 %v3599
        %3681 = vmatpush.bf16.msra.mxu0 %v3597
        %3682 = vmatpush.bf16.msra.mxu0 %v3595
        %3683 = vmatpush.bf16.msra.mxu0 %v3593
        %3684 = vmatpush.bf16.msra.mxu0 %v3591
        %3685 = vmatpush.bf16.msra.mxu0 %v3589
        %3686 = vmatmul.bf16.gmra.mxu0 %v3488
        %v3687 = vpop.f32.mrf.mxu0
        %v3688 = vadd.f32 %v3472, %v3687
        %v3689 = vpop.f32.mrf.mxu0
        %3690 = vdwg.mxu0
        %3691 = vmatpush.bf16.msra.mxu0 %v3619
        %3692 = vmatpush.bf16.msra.mxu0 %v3617
        %3693 = vmatpush.bf16.msra.mxu0 %v3615
        %3694 = vmatpush.bf16.msra.mxu0 %v3613
        %3695 = vmatpush.bf16.msra.mxu0 %v3611
        %3696 = vmatpush.bf16.msra.mxu0 %v3609
        %3697 = vmatpush.bf16.msra.mxu0 %v3607
        %3698 = vmatpush.bf16.msra.mxu0 %v3605
        %3699 = vmatmul.bf16.gmra.mxu0 %v3489
        %v3700 = vpop.f32.mrf.mxu0
        %v3701 = vadd.f32 %v3688, %v3700
        %v3702 = vpop.f32.mrf.mxu0
        %3703 = vdwg.mxu0
        %v3704 = vmul.f32 %v3675, 0.5
        %v3705 = vmul.f32 %v3701, 0.5
        %v3706 = vmul.f32 %v3675, %v3675
        %v3707 = vmul.f32 %v3701, %v3701
        %v3708 = vmul.f32 %v3706, %v3675
        %v3709 = vmul.f32 %v3707, %v3701
        %v3710 = vmul.f32 %v3708, 0.044715
        %v3711 = vmul.f32 %v3709, 0.044715
        %v3712 = vadd.f32 %v3675, %v3710
        %v3713 = vadd.f32 %v3701, %v3711
        %v3714 = vmul.f32 %v3712, 0.7978846
        %v3715 = vmul.f32 %v3713, 0.7978846
        %v3716 = vtanh.pop %v3714
        %v3717 = vtanh.pop %v3715
        %v3718 = vadd.f32 %v3716, 1.0
        %v3719 = vadd.f32 %v3717, 1.0
        %v3720 = vmul.f32 %v3704, %v3718
        %v3721 = vmul.f32 %v3705, %v3719
        %v3722 = vpack.c.bf16 %v3720, %v3720
        %v3723 = vpack.c.bf16 %v3721, %v3721
        %v3724 = vld [vmem:[#allocation17] sm:$0xf]
        %v3725 = vld [vmem:[#allocation17 + $0x4] sm:$0xf]
        %v3726 = vld [vmem:[#allocation17 + $0x8] sm:$0xf]
        %v3727 = vld [vmem:[#allocation17 + $0xc] sm:$0xf]
        %v3728 = vld [vmem:[#allocation17 + $0x10] sm:$0xf]
        %v3729 = vld [vmem:[#allocation17 + $0x14] sm:$0xf]
        %v3730 = vld [vmem:[#allocation17 + $0x18] sm:$0xf]
        %v3731 = vld [vmem:[#allocation17 + $0x1c] sm:$0xf]
        %v3732 = vld [vmem:[#allocation17 + $0x20] sm:$0xf]
        %v3733 = vld [vmem:[#allocation17 + $0x24] sm:$0xf]
        %v3734 = vld [vmem:[#allocation17 + $0x28] sm:$0xf]
        %v3735 = vld [vmem:[#allocation17 + $0x2c] sm:$0xf]
        %v3736 = vld [vmem:[#allocation17 + $0x30] sm:$0xf]
        %v3737 = vld [vmem:[#allocation17 + $0x34] sm:$0xf]
        %v3738 = vld [vmem:[#allocation17 + $0x38] sm:$0xf]
        %v3739 = vld [vmem:[#allocation17 + $0x3c] sm:$0xf]
        %v3740 = vld [vmem:[#allocation17 + $0x40] sm:$0xf]
        %v3741 = vld [vmem:[#allocation17 + $0x44] sm:$0xf]
        %v3742 = vld [vmem:[#allocation17 + $0x48] sm:$0xf]
        %v3743 = vld [vmem:[#allocation17 + $0x4c] sm:$0xf]
        %v3744 = vld [vmem:[#allocation17 + $0x50] sm:$0xf]
        %v3745 = vld [vmem:[#allocation17 + $0x54] sm:$0xf]
        %v3746 = vld [vmem:[#allocation17 + $0x58] sm:$0xf]
        %v3747 = vld [vmem:[#allocation17 + $0x5c] sm:$0xf]
        %v3748 = vld [vmem:[#allocation17 + $0x60] sm:$0xf]
        %v3749 = vld [vmem:[#allocation17 + $0x64] sm:$0xf]
        %v3750 = vld [vmem:[#allocation17 + $0x68] sm:$0xf]
        %v3751 = vld [vmem:[#allocation17 + $0x6c] sm:$0xf]
        %v3752 = vld [vmem:[#allocation17 + $0x70] sm:$0xf]
        %v3753 = vld [vmem:[#allocation17 + $0x74] sm:$0xf]
        %v3754 = vld [vmem:[#allocation17 + $0x78] sm:$0xf]
        %v3755 = vld [vmem:[#allocation17 + $0x7c] sm:$0xf]
        %v3756 = vld [vmem:[#allocation18] sm:$0x1]
        %v3758 = vperm.slane %v3756, 0
        %v3792 = vunpack.c.l.b16 %v3724
        %v3793 = vunpack.c.l.b16 %v3725
        %v3794 = vunpack.c.l.b16 %v3726
        %v3795 = vunpack.c.l.b16 %v3727
        %v3796 = vunpack.c.l.b16 %v3728
        %v3797 = vunpack.c.l.b16 %v3729
        %v3798 = vunpack.c.l.b16 %v3730
        %v3799 = vunpack.c.l.b16 %v3731
        %v3800 = vunpack.c.l.b16 %v3732
        %v3801 = vunpack.c.l.b16 %v3733
        %v3802 = vunpack.c.l.b16 %v3734
        %v3803 = vunpack.c.l.b16 %v3735
        %v3804 = vunpack.c.l.b16 %v3736
        %v3805 = vunpack.c.l.b16 %v3737
        %v3806 = vunpack.c.l.b16 %v3738
        %v3807 = vunpack.c.l.b16 %v3739
        %v3808 = vunpack.c.l.b16 %v3740
        %v3809 = vunpack.c.l.b16 %v3741
        %v3810 = vunpack.c.l.b16 %v3742
        %v3811 = vunpack.c.l.b16 %v3743
        %v3812 = vunpack.c.l.b16 %v3744
        %v3813 = vunpack.c.l.b16 %v3745
        %v3814 = vunpack.c.l.b16 %v3746
        %v3815 = vunpack.c.l.b16 %v3747
        %v3816 = vunpack.c.l.b16 %v3748
        %v3817 = vunpack.c.l.b16 %v3749
        %v3818 = vunpack.c.l.b16 %v3750
        %v3819 = vunpack.c.l.b16 %v3751
        %v3820 = vunpack.c.l.b16 %v3752
        %v3821 = vunpack.c.l.b16 %v3753
        %v3822 = vunpack.c.l.b16 %v3754
        %v3823 = vunpack.c.l.b16 %v3755
        %v3824 = vpack.c.b16 %v3793, %v3792
        %v3825 = vpack.c.b16 %v3795, %v3794
        %v3826 = vpack.c.b16 %v3797, %v3796
        %v3827 = vpack.c.b16 %v3799, %v3798
        %v3828 = vpack.c.b16 %v3801, %v3800
        %v3829 = vpack.c.b16 %v3803, %v3802
        %v3830 = vpack.c.b16 %v3805, %v3804
        %v3831 = vpack.c.b16 %v3807, %v3806
        %v3832 = vpack.c.b16 %v3809, %v3808
        %v3833 = vpack.c.b16 %v3811, %v3810
        %v3834 = vpack.c.b16 %v3813, %v3812
        %v3835 = vpack.c.b16 %v3815, %v3814
        %v3836 = vpack.c.b16 %v3817, %v3816
        %v3837 = vpack.c.b16 %v3819, %v3818
        %v3838 = vpack.c.b16 %v3821, %v3820
        %v3839 = vpack.c.b16 %v3823, %v3822
        %3856 = vmatpush.bf16.msra.mxu0 %v3831
        %3857 = vmatpush.bf16.msra.mxu0 %v3830
        %3858 = vmatpush.bf16.msra.mxu0 %v3829
        %3859 = vmatpush.bf16.msra.mxu0 %v3828
        %3860 = vmatpush.bf16.msra.mxu0 %v3827
        %3861 = vmatpush.bf16.msra.mxu0 %v3826
        %3862 = vmatpush.bf16.msra.mxu0 %v3825
        %3863 = vmatpush.bf16.msra.mxu0 %v3824
        %3864 = vmatmul.bf16.gmra.mxu0 %v3722
        %v3865 = vpop.f32.mrf.mxu0
        %v3866 = vadd.f32 %v3758, %v3865
        %v3867 = vpop.f32.mrf.mxu0
        %3868 = vdwg.mxu0
        %3869 = vmatpush.bf16.msra.mxu0 %v3839
        %3870 = vmatpush.bf16.msra.mxu0 %v3838
        %3871 = vmatpush.bf16.msra.mxu0 %v3837
        %3872 = vmatpush.bf16.msra.mxu0 %v3836
        %3873 = vmatpush.bf16.msra.mxu0 %v3835
        %3874 = vmatpush.bf16.msra.mxu0 %v3834
        %3875 = vmatpush.bf16.msra.mxu0 %v3833
        %3876 = vmatpush.bf16.msra.mxu0 %v3832
        %3877 = vmatmul.bf16.gmra.mxu0 %v3723
        %v3878 = vpop.f32.mrf.mxu0
        %v3879 = vadd.f32 %v3866, %v3878
        %v3880 = vpop.f32.mrf.mxu0
        %3881 = vdwg.mxu0
        %3882 = vst [vmem:[%s566] sm:$0x3] %v3879
        %vm3883 = vcmask 1040384
        %vm3884 = vsmask.f32 256
        %vm3885 = vmand %vm3883, %vm3884
        %vm3886 = vcmask 1044484
        %vm3887 = vsmask.f32 4352
        %vm3888 = vmand %vm3886, %vm3887
        %vm3889 = vmor %vm3888, %vm3885
        %v3890 = vld [vmem:[#allocation2] sm:$0x11]
        %v3891 = vsel %vm3889, 0, %v3890
        %3892 = vst [vmem:[#allocation2] sm:$0x11] %v3891
        %vm3893 = vcmask 1041409
        %vm3894 = vsmask.f32 7942
        %vm3895 = vmand %vm3893, %vm3894
        %vm3896 = vcmask 1045509
        %vm3897 = vsmask.f32 7958
        %vm3898 = vmand %vm3896, %vm3897
        %vm3899 = vmor %vm3898, %vm3895
        %v3900 = vld [vmem:[#allocation2] sm:$0x22]
        %v3901 = vsel %vm3899, 0, %v3900
        %3902 = vst [vmem:[#allocation2] sm:$0x22] %v3901
        %v3903 = vunpack.c.l.b16 %v3435
        %v3904 = vunpack.c.h.b16 %v3435
        %v3905 = vunpack.c.l.b16 %v3436
        %v3906 = vunpack.c.h.b16 %v3436
        %vm3907 = vcmask 1042434
        %v3908 = vsel %vm3907, %v3905, %v3903
        %v3909 = vsel %vm3907, %v3906, %v3904
        %v3910 = vpack.c.b16 %v3909, %v3908
        %vm3912 = vcmask 1041408
        %vm3913 = vsmask.f32 1282
        %vm3914 = vmand %vm3912, %vm3913
        %vm3915 = vcmask 1045508
        %vm3916 = vsmask.f32 5394
        %vm3917 = vmand %vm3915, %vm3916
        %vm3918 = vmor %vm3917, %vm3914
        %v3919 = vld [vmem:[#allocation2] sm:$0x33]
        %v3920 = vsel %vm3918, %v3910, %v3919
        %3921 = vst [vmem:[#allocation2] sm:$0x33] %v3920
        %v3922 = vld [vmem:[#allocation2] sm:$0x11]
        %v3923 = vld [vmem:[#allocation11] sm:$0xff]
        %v3924 = vld [vmem:[#allocation11 + $0x8] sm:$0xff]
        %v3925 = vld [vmem:[#allocation11 + $0x10] sm:$0xff]
        %v3926 = vld [vmem:[#allocation11 + $0x18] sm:$0xff]
        %v3927 = vld [vmem:[#allocation11 + $0x20] sm:$0xff]
        %v3928 = vld [vmem:[#allocation11 + $0x28] sm:$0xff]
        %v3929 = vld [vmem:[#allocation11 + $0x30] sm:$0xff]
        %v3930 = vld [vmem:[#allocation11 + $0x38] sm:$0xff]
        %v3931 = vld [vmem:[#allocation11 + $0x40] sm:$0xff]
        %v3932 = vld [vmem:[#allocation11 + $0x48] sm:$0xff]
        %v3933 = vld [vmem:[#allocation11 + $0x50] sm:$0xff]
        %v3934 = vld [vmem:[#allocation11 + $0x58] sm:$0xff]
        %v3935 = vld [vmem:[#allocation11 + $0x60] sm:$0xff]
        %v3936 = vld [vmem:[#allocation11 + $0x68] sm:$0xff]
        %v3937 = vld [vmem:[#allocation11 + $0x70] sm:$0xff]
        %v3938 = vld [vmem:[#allocation11 + $0x78] sm:$0xff]
        %v3939 = vld [vmem:[#allocation11 + $0x80] sm:$0xff]
        %v3940 = vld [vmem:[#allocation11 + $0x88] sm:$0xff]
        %v3941 = vld [vmem:[#allocation11 + $0x90] sm:$0xff]
        %v3942 = vld [vmem:[#allocation11 + $0x98] sm:$0xff]
        %v3943 = vld [vmem:[#allocation11 + $0xa0] sm:$0xff]
        %v3944 = vld [vmem:[#allocation11 + $0xa8] sm:$0xff]
        %v3945 = vld [vmem:[#allocation11 + $0xb0] sm:$0xff]
        %v3946 = vld [vmem:[#allocation11 + $0xb8] sm:$0xff]
        %v3947 = vld [vmem:[#allocation11 + $0xc0] sm:$0xff]
        %v3948 = vld [vmem:[#allocation11 + $0xc8] sm:$0xff]
        %v3949 = vld [vmem:[#allocation11 + $0xd0] sm:$0xff]
        %v3950 = vld [vmem:[#allocation11 + $0xd8] sm:$0xff]
        %v3951 = vld [vmem:[#allocation11 + $0xe0] sm:$0xff]
        %v3952 = vld [vmem:[#allocation11 + $0xe8] sm:$0xff]
        %v3953 = vld [vmem:[#allocation11 + $0xf0] sm:$0xff]
        %v3954 = vld [vmem:[#allocation11 + $0xf8] sm:$0xff]
        %v3955 = vld [vmem:[#allocation2] sm:$0x33]
        %s3956 = scalar_lea.vmem [#allocation11], 256
        %v3957 = vld [vmem:[%s3956] sm:$0xff]
        %v3958 = vld [vmem:[%s3956 + $0x8] sm:$0xff]
        %v3959 = vld [vmem:[%s3956 + $0x10] sm:$0xff]
        %v3960 = vld [vmem:[%s3956 + $0x18] sm:$0xff]
        %v3961 = vld [vmem:[%s3956 + $0x20] sm:$0xff]
        %v3962 = vld [vmem:[%s3956 + $0x28] sm:$0xff]
        %v3963 = vld [vmem:[%s3956 + $0x30] sm:$0xff]
        %v3964 = vld [vmem:[%s3956 + $0x38] sm:$0xff]
        %v3965 = vld [vmem:[%s3956 + $0x40] sm:$0xff]
        %v3966 = vld [vmem:[%s3956 + $0x48] sm:$0xff]
        %v3967 = vld [vmem:[%s3956 + $0x50] sm:$0xff]
        %v3968 = vld [vmem:[%s3956 + $0x58] sm:$0xff]
        %v3969 = vld [vmem:[%s3956 + $0x60] sm:$0xff]
        %v3970 = vld [vmem:[%s3956 + $0x68] sm:$0xff]
        %v3971 = vld [vmem:[%s3956 + $0x70] sm:$0xff]
        %v3972 = vld [vmem:[%s3956 + $0x78] sm:$0xff]
        %v3973 = vld [vmem:[%s3956 + $0x80] sm:$0xff]
        %v3974 = vld [vmem:[%s3956 + $0x88] sm:$0xff]
        %v3975 = vld [vmem:[%s3956 + $0x90] sm:$0xff]
        %v3976 = vld [vmem:[%s3956 + $0x98] sm:$0xff]
        %v3977 = vld [vmem:[%s3956 + $0xa0] sm:$0xff]
        %v3978 = vld [vmem:[%s3956 + $0xa8] sm:$0xff]
        %v3979 = vld [vmem:[%s3956 + $0xb0] sm:$0xff]
        %v3980 = vld [vmem:[%s3956 + $0xb8] sm:$0xff]
        %v3981 = vld [vmem:[%s3956 + $0xc0] sm:$0xff]
        %v3982 = vld [vmem:[%s3956 + $0xc8] sm:$0xff]
        %v3983 = vld [vmem:[%s3956 + $0xd0] sm:$0xff]
        %v3984 = vld [vmem:[%s3956 + $0xd8] sm:$0xff]
        %v3985 = vld [vmem:[%s3956 + $0xe0] sm:$0xff]
        %v3986 = vld [vmem:[%s3956 + $0xe8] sm:$0xff]
        %v3987 = vld [vmem:[%s3956 + $0xf0] sm:$0xff]
        %v3988 = vld [vmem:[%s3956 + $0xf8] sm:$0xff]
        %v3990 = vunpack.c.l.b16 %v3955
        %v3991 = vunpack.c.h.b16 %v3955
        %v3992 = vpack.c.b16 %v3990, %v3990
        %v3993 = vpack.c.b16 %v3991, %v3991
        %v3995 = vshrl.u32 %v3992, 16
        %v3997 = vshll.u32 %v3992, 16
        %v3999 = vrot.slane %v3997, 1
        %v4000 = vor.u32 %v3995, %v3999
        %v4002 = vshrl.u32 %v3993, 16
        %v4004 = vshll.u32 %v3993, 16
        %v4006 = vrot.slane %v4004, 1
        %v4007 = vor.u32 %v4002, %v4006
        %v4042 = vunpack.c.l.b16 %v3957
        %v4043 = vunpack.c.h.b16 %v3957
        %v4044 = vunpack.c.l.b16 %v3958
        %v4045 = vunpack.c.h.b16 %v3958
        %v4046 = vunpack.c.l.b16 %v3959
        %v4047 = vunpack.c.h.b16 %v3959
        %v4048 = vunpack.c.l.b16 %v3960
        %v4049 = vunpack.c.h.b16 %v3960
        %v4050 = vunpack.c.l.b16 %v3961
        %v4051 = vunpack.c.h.b16 %v3961
        %v4052 = vunpack.c.l.b16 %v3962
        %v4053 = vunpack.c.h.b16 %v3962
        %v4054 = vunpack.c.l.b16 %v3963
        %v4055 = vunpack.c.h.b16 %v3963
        %v4056 = vunpack.c.l.b16 %v3964
        %v4057 = vunpack.c.h.b16 %v3964
        %v4058 = vunpack.c.l.b16 %v3965
        %v4059 = vunpack.c.h.b16 %v3965
        %v4060 = vunpack.c.l.b16 %v3966
        %v4061 = vunpack.c.h.b16 %v3966
        %v4062 = vunpack.c.l.b16 %v3967
        %v4063 = vunpack.c.h.b16 %v3967
        %v4064 = vunpack.c.l.b16 %v3968
        %v4065 = vunpack.c.h.b16 %v3968
        %v4066 = vunpack.c.l.b16 %v3969
        %v4067 = vunpack.c.h.b16 %v3969
        %v4068 = vunpack.c.l.b16 %v3970
        %v4069 = vunpack.c.h.b16 %v3970
        %v4070 = vunpack.c.l.b16 %v3971
        %v4071 = vunpack.c.h.b16 %v3971
        %v4072 = vunpack.c.l.b16 %v3972
        %v4073 = vunpack.c.h.b16 %v3972
        %v4074 = vunpack.c.l.b16 %v3973
        %v4075 = vunpack.c.h.b16 %v3973
        %v4076 = vunpack.c.l.b16 %v3974
        %v4077 = vunpack.c.h.b16 %v3974
        %v4078 = vunpack.c.l.b16 %v3975
        %v4079 = vunpack.c.h.b16 %v3975
        %v4080 = vunpack.c.l.b16 %v3976
        %v4081 = vunpack.c.h.b16 %v3976
        %v4082 = vunpack.c.l.b16 %v3977
        %v4083 = vunpack.c.h.b16 %v3977
        %v4084 = vunpack.c.l.b16 %v3978
        %v4085 = vunpack.c.h.b16 %v3978
        %v4086 = vunpack.c.l.b16 %v3979
        %v4087 = vunpack.c.h.b16 %v3979
        %v4088 = vunpack.c.l.b16 %v3980
        %v4089 = vunpack.c.h.b16 %v3980
        %v4090 = vunpack.c.l.b16 %v3981
        %v4091 = vunpack.c.h.b16 %v3981
        %v4092 = vunpack.c.l.b16 %v3982
        %v4093 = vunpack.c.h.b16 %v3982
        %v4094 = vunpack.c.l.b16 %v3983
        %v4095 = vunpack.c.h.b16 %v3983
        %v4096 = vunpack.c.l.b16 %v3984
        %v4097 = vunpack.c.h.b16 %v3984
        %v4098 = vunpack.c.l.b16 %v3985
        %v4099 = vunpack.c.h.b16 %v3985
        %v4100 = vunpack.c.l.b16 %v3986
        %v4101 = vunpack.c.h.b16 %v3986
        %v4102 = vunpack.c.l.b16 %v3987
        %v4103 = vunpack.c.h.b16 %v3987
        %v4104 = vunpack.c.l.b16 %v3988
        %v4105 = vunpack.c.h.b16 %v3988
        %v4106 = vpack.c.b16 %v4044, %v4042
        %v4107 = vpack.c.b16 %v4045, %v4043
        %v4108 = vpack.c.b16 %v4048, %v4046
        %v4109 = vpack.c.b16 %v4049, %v4047
        %v4110 = vpack.c.b16 %v4052, %v4050
        %v4111 = vpack.c.b16 %v4053, %v4051
        %v4112 = vpack.c.b16 %v4056, %v4054
        %v4113 = vpack.c.b16 %v4057, %v4055
        %v4114 = vpack.c.b16 %v4060, %v4058
        %v4115 = vpack.c.b16 %v4061, %v4059
        %v4116 = vpack.c.b16 %v4064, %v4062
        %v4117 = vpack.c.b16 %v4065, %v4063
        %v4118 = vpack.c.b16 %v4068, %v4066
        %v4119 = vpack.c.b16 %v4069, %v4067
        %v4120 = vpack.c.b16 %v4072, %v4070
        %v4121 = vpack.c.b16 %v4073, %v4071
        %v4122 = vpack.c.b16 %v4076, %v4074
        %v4123 = vpack.c.b16 %v4077, %v4075
        %v4124 = vpack.c.b16 %v4080, %v4078
        %v4125 = vpack.c.b16 %v4081, %v4079
        %v4126 = vpack.c.b16 %v4084, %v4082
        %v4127 = vpack.c.b16 %v4085, %v4083
        %v4128 = vpack.c.b16 %v4088, %v4086
        %v4129 = vpack.c.b16 %v4089, %v4087
        %v4130 = vpack.c.b16 %v4092, %v4090
        %v4131 = vpack.c.b16 %v4093, %v4091
        %v4132 = vpack.c.b16 %v4096, %v4094
        %v4133 = vpack.c.b16 %v4097, %v4095
        %v4134 = vpack.c.b16 %v4100, %v4098
        %v4135 = vpack.c.b16 %v4101, %v4099
        %v4136 = vpack.c.b16 %v4104, %v4102
        %v4137 = vpack.c.b16 %v4105, %v4103
        %4170 = vmatpush.bf16.msra.mxu0 %v4120
        %4171 = vmatpush.bf16.msra.mxu0 %v4118
        %4172 = vmatpush.bf16.msra.mxu0 %v4116
        %4173 = vmatpush.bf16.msra.mxu0 %v4114
        %4174 = vmatpush.bf16.msra.mxu0 %v4112
        %4175 = vmatpush.bf16.msra.mxu0 %v4110
        %4176 = vmatpush.bf16.msra.mxu0 %v4108
        %4177 = vmatpush.bf16.msra.mxu0 %v4106
        %4178 = vmatmul.bf16.gmra.mxu0 %v4000
        %v4179 = vpop.f32.mrf.mxu0
        %v4180 = vadd.f32 0.0, %v4179
        %v4181 = vpop.f32.mrf.mxu0
        %4182 = vdwg.mxu0
        %4183 = vmatpush.bf16.msra.mxu0 %v4136
        %4184 = vmatpush.bf16.msra.mxu0 %v4134
        %4185 = vmatpush.bf16.msra.mxu0 %v4132
        %4186 = vmatpush.bf16.msra.mxu0 %v4130
        %4187 = vmatpush.bf16.msra.mxu0 %v4128
        %4188 = vmatpush.bf16.msra.mxu0 %v4126
        %4189 = vmatpush.bf16.msra.mxu0 %v4124
        %4190 = vmatpush.bf16.msra.mxu0 %v4122
        %4191 = vmatmul.bf16.gmra.mxu0 %v4007
        %v4192 = vpop.f32.mrf.mxu0
        %v4193 = vadd.f32 %v4180, %v4192
        %v4194 = vpop.f32.mrf.mxu0
        %4195 = vdwg.mxu0
        %4196 = vmatpush.bf16.msra.mxu0 %v4121
        %4197 = vmatpush.bf16.msra.mxu0 %v4119
        %4198 = vmatpush.bf16.msra.mxu0 %v4117
        %4199 = vmatpush.bf16.msra.mxu0 %v4115
        %4200 = vmatpush.bf16.msra.mxu0 %v4113
        %4201 = vmatpush.bf16.msra.mxu0 %v4111
        %4202 = vmatpush.bf16.msra.mxu0 %v4109
        %4203 = vmatpush.bf16.msra.mxu0 %v4107
        %4204 = vmatmul.bf16.gmra.mxu0 %v4000
        %v4205 = vpop.f32.mrf.mxu0
        %v4206 = vadd.f32 0.0, %v4205
        %v4207 = vpop.f32.mrf.mxu0
        %4208 = vdwg.mxu0
        %4209 = vmatpush.bf16.msra.mxu0 %v4137
        %4210 = vmatpush.bf16.msra.mxu0 %v4135
        %4211 = vmatpush.bf16.msra.mxu0 %v4133
        %4212 = vmatpush.bf16.msra.mxu0 %v4131
        %4213 = vmatpush.bf16.msra.mxu0 %v4129
        %4214 = vmatpush.bf16.msra.mxu0 %v4127
        %4215 = vmatpush.bf16.msra.mxu0 %v4125
        %4216 = vmatpush.bf16.msra.mxu0 %v4123
        %4217 = vmatmul.bf16.gmra.mxu0 %v4007
        %v4218 = vpop.f32.mrf.mxu0
        %v4219 = vadd.f32 %v4206, %v4218
        %v4220 = vpop.f32.mrf.mxu0
        %4221 = vdwg.mxu0
        %v4223 = vunpack.c.l.b16 %v3922
        %v4224 = vunpack.c.h.b16 %v3922
        %v4225 = vpack.c.b16 %v4223, %v4223
        %v4226 = vpack.c.b16 %v4224, %v4224
        %v4261 = vunpack.c.l.b16 %v3923
        %v4262 = vunpack.c.h.b16 %v3923
        %v4263 = vunpack.c.l.b16 %v3924
        %v4264 = vunpack.c.h.b16 %v3924
        %v4265 = vunpack.c.l.b16 %v3925
        %v4266 = vunpack.c.h.b16 %v3925
        %v4267 = vunpack.c.l.b16 %v3926
        %v4268 = vunpack.c.h.b16 %v3926
        %v4269 = vunpack.c.l.b16 %v3927
        %v4270 = vunpack.c.h.b16 %v3927
        %v4271 = vunpack.c.l.b16 %v3928
        %v4272 = vunpack.c.h.b16 %v3928
        %v4273 = vunpack.c.l.b16 %v3929
        %v4274 = vunpack.c.h.b16 %v3929
        %v4275 = vunpack.c.l.b16 %v3930
        %v4276 = vunpack.c.h.b16 %v3930
        %v4277 = vunpack.c.l.b16 %v3931
        %v4278 = vunpack.c.h.b16 %v3931
        %v4279 = vunpack.c.l.b16 %v3932
        %v4280 = vunpack.c.h.b16 %v3932
        %v4281 = vunpack.c.l.b16 %v3933
        %v4282 = vunpack.c.h.b16 %v3933
        %v4283 = vunpack.c.l.b16 %v3934
        %v4284 = vunpack.c.h.b16 %v3934
        %v4285 = vunpack.c.l.b16 %v3935
        %v4286 = vunpack.c.h.b16 %v3935
        %v4287 = vunpack.c.l.b16 %v3936
        %v4288 = vunpack.c.h.b16 %v3936
        %v4289 = vunpack.c.l.b16 %v3937
        %v4290 = vunpack.c.h.b16 %v3937
        %v4291 = vunpack.c.l.b16 %v3938
        %v4292 = vunpack.c.h.b16 %v3938
        %v4293 = vunpack.c.l.b16 %v3939
        %v4294 = vunpack.c.h.b16 %v3939
        %v4295 = vunpack.c.l.b16 %v3940
        %v4296 = vunpack.c.h.b16 %v3940
        %v4297 = vunpack.c.l.b16 %v3941
        %v4298 = vunpack.c.h.b16 %v3941
        %v4299 = vunpack.c.l.b16 %v3942
        %v4300 = vunpack.c.h.b16 %v3942
        %v4301 = vunpack.c.l.b16 %v3943
        %v4302 = vunpack.c.h.b16 %v3943
        %v4303 = vunpack.c.l.b16 %v3944
        %v4304 = vunpack.c.h.b16 %v3944
        %v4305 = vunpack.c.l.b16 %v3945
        %v4306 = vunpack.c.h.b16 %v3945
        %v4307 = vunpack.c.l.b16 %v3946
        %v4308 = vunpack.c.h.b16 %v3946
        %v4309 = vunpack.c.l.b16 %v3947
        %v4310 = vunpack.c.h.b16 %v3947
        %v4311 = vunpack.c.l.b16 %v3948
        %v4312 = vunpack.c.h.b16 %v3948
        %v4313 = vunpack.c.l.b16 %v3949
        %v4314 = vunpack.c.h.b16 %v3949
        %v4315 = vunpack.c.l.b16 %v3950
        %v4316 = vunpack.c.h.b16 %v3950
        %v4317 = vunpack.c.l.b16 %v3951
        %v4318 = vunpack.c.h.b16 %v3951
        %v4319 = vunpack.c.l.b16 %v3952
        %v4320 = vunpack.c.h.b16 %v3952
        %v4321 = vunpack.c.l.b16 %v3953
        %v4322 = vunpack.c.h.b16 %v3953
        %v4323 = vunpack.c.l.b16 %v3954
        %v4324 = vunpack.c.h.b16 %v3954
        %v4325 = vpack.c.b16 %v4263, %v4261
        %v4326 = vpack.c.b16 %v4264, %v4262
        %v4327 = vpack.c.b16 %v4267, %v4265
        %v4328 = vpack.c.b16 %v4268, %v4266
        %v4329 = vpack.c.b16 %v4271, %v4269
        %v4330 = vpack.c.b16 %v4272, %v4270
        %v4331 = vpack.c.b16 %v4275, %v4273
        %v4332 = vpack.c.b16 %v4276, %v4274
        %v4333 = vpack.c.b16 %v4279, %v4277
        %v4334 = vpack.c.b16 %v4280, %v4278
        %v4335 = vpack.c.b16 %v4283, %v4281
        %v4336 = vpack.c.b16 %v4284, %v4282
        %v4337 = vpack.c.b16 %v4287, %v4285
        %v4338 = vpack.c.b16 %v4288, %v4286
        %v4339 = vpack.c.b16 %v4291, %v4289
        %v4340 = vpack.c.b16 %v4292, %v4290
        %v4341 = vpack.c.b16 %v4295, %v4293
        %v4342 = vpack.c.b16 %v4296, %v4294
        %v4343 = vpack.c.b16 %v4299, %v4297
        %v4344 = vpack.c.b16 %v4300, %v4298
        %v4345 = vpack.c.b16 %v4303, %v4301
        %v4346 = vpack.c.b16 %v4304, %v4302
        %v4347 = vpack.c.b16 %v4307, %v4305
        %v4348 = vpack.c.b16 %v4308, %v4306
        %v4349 = vpack.c.b16 %v4311, %v4309
        %v4350 = vpack.c.b16 %v4312, %v4310
        %v4351 = vpack.c.b16 %v4315, %v4313
        %v4352 = vpack.c.b16 %v4316, %v4314
        %v4353 = vpack.c.b16 %v4319, %v4317
        %v4354 = vpack.c.b16 %v4320, %v4318
        %v4355 = vpack.c.b16 %v4323, %v4321
        %v4356 = vpack.c.b16 %v4324, %v4322
        %4389 = vmatpush.bf16.msra.mxu0 %v4339
        %4390 = vmatpush.bf16.msra.mxu0 %v4337
        %4391 = vmatpush.bf16.msra.mxu0 %v4335
        %4392 = vmatpush.bf16.msra.mxu0 %v4333
        %4393 = vmatpush.bf16.msra.mxu0 %v4331
        %4394 = vmatpush.bf16.msra.mxu0 %v4329
        %4395 = vmatpush.bf16.msra.mxu0 %v4327
        %4396 = vmatpush.bf16.msra.mxu0 %v4325
        %4397 = vmatmul.bf16.gmra.mxu0 %v4225
        %v4398 = vpop.f32.mrf.mxu0
        %v4399 = vadd.f32 %v4193, %v4398
        %v4400 = vpop.f32.mrf.mxu0
        %4401 = vdwg.mxu0
        %4402 = vmatpush.bf16.msra.mxu0 %v4355
        %4403 = vmatpush.bf16.msra.mxu0 %v4353
        %4404 = vmatpush.bf16.msra.mxu0 %v4351
        %4405 = vmatpush.bf16.msra.mxu0 %v4349
        %4406 = vmatpush.bf16.msra.mxu0 %v4347
        %4407 = vmatpush.bf16.msra.mxu0 %v4345
        %4408 = vmatpush.bf16.msra.mxu0 %v4343
        %4409 = vmatpush.bf16.msra.mxu0 %v4341
        %4410 = vmatmul.bf16.gmra.mxu0 %v4226
        %v4411 = vpop.f32.mrf.mxu0
        %v4412 = vadd.f32 %v4399, %v4411
        %v4413 = vpop.f32.mrf.mxu0
        %4414 = vdwg.mxu0
        %4415 = vmatpush.bf16.msra.mxu0 %v4340
        %4416 = vmatpush.bf16.msra.mxu0 %v4338
        %4417 = vmatpush.bf16.msra.mxu0 %v4336
        %4418 = vmatpush.bf16.msra.mxu0 %v4334
        %4419 = vmatpush.bf16.msra.mxu0 %v4332
        %4420 = vmatpush.bf16.msra.mxu0 %v4330
        %4421 = vmatpush.bf16.msra.mxu0 %v4328
        %4422 = vmatpush.bf16.msra.mxu0 %v4326
        %4423 = vmatmul.bf16.gmra.mxu0 %v4225
        %v4424 = vpop.f32.mrf.mxu0
        %v4425 = vadd.f32 %v4219, %v4424
        %v4426 = vpop.f32.mrf.mxu0
        %4427 = vdwg.mxu0
        %4428 = vmatpush.bf16.msra.mxu0 %v4356
        %4429 = vmatpush.bf16.msra.mxu0 %v4354
        %4430 = vmatpush.bf16.msra.mxu0 %v4352
        %4431 = vmatpush.bf16.msra.mxu0 %v4350
        %4432 = vmatpush.bf16.msra.mxu0 %v4348
        %4433 = vmatpush.bf16.msra.mxu0 %v4346
        %4434 = vmatpush.bf16.msra.mxu0 %v4344
        %4435 = vmatpush.bf16.msra.mxu0 %v4342
        %4436 = vmatmul.bf16.gmra.mxu0 %v4226
        %v4437 = vpop.f32.mrf.mxu0
        %v4438 = vadd.f32 %v4425, %v4437
        %v4439 = vpop.f32.mrf.mxu0
        %4440 = vdwg.mxu0
        %v4441 = vld [vmem:[#allocation2] sm:$0x22]
        %s4442 = scalar_lea.vmem [#allocation11], 512
        %v4443 = vld [vmem:[%s4442] sm:$0xff]
        %v4444 = vld [vmem:[%s4442 + $0x8] sm:$0xff]
        %v4445 = vld [vmem:[%s4442 + $0x10] sm:$0xff]
        %v4446 = vld [vmem:[%s4442 + $0x18] sm:$0xff]
        %v4447 = vld [vmem:[%s4442 + $0x20] sm:$0xff]
        %v4448 = vld [vmem:[%s4442 + $0x28] sm:$0xff]
        %v4449 = vld [vmem:[%s4442 + $0x30] sm:$0xff]
        %v4450 = vld [vmem:[%s4442 + $0x38] sm:$0xff]
        %v4451 = vld [vmem:[%s4442 + $0x40] sm:$0xff]
        %v4452 = vld [vmem:[%s4442 + $0x48] sm:$0xff]
        %v4453 = vld [vmem:[%s4442 + $0x50] sm:$0xff]
        %v4454 = vld [vmem:[%s4442 + $0x58] sm:$0xff]
        %v4455 = vld [vmem:[%s4442 + $0x60] sm:$0xff]
        %v4456 = vld [vmem:[%s4442 + $0x68] sm:$0xff]
        %v4457 = vld [vmem:[%s4442 + $0x70] sm:$0xff]
        %v4458 = vld [vmem:[%s4442 + $0x78] sm:$0xff]
        %v4459 = vld [vmem:[%s4442 + $0x80] sm:$0xff]
        %v4460 = vld [vmem:[%s4442 + $0x88] sm:$0xff]
        %v4461 = vld [vmem:[%s4442 + $0x90] sm:$0xff]
        %v4462 = vld [vmem:[%s4442 + $0x98] sm:$0xff]
        %v4463 = vld [vmem:[%s4442 + $0xa0] sm:$0xff]
        %v4464 = vld [vmem:[%s4442 + $0xa8] sm:$0xff]
        %v4465 = vld [vmem:[%s4442 + $0xb0] sm:$0xff]
        %v4466 = vld [vmem:[%s4442 + $0xb8] sm:$0xff]
        %v4467 = vld [vmem:[%s4442 + $0xc0] sm:$0xff]
        %v4468 = vld [vmem:[%s4442 + $0xc8] sm:$0xff]
        %v4469 = vld [vmem:[%s4442 + $0xd0] sm:$0xff]
        %v4470 = vld [vmem:[%s4442 + $0xd8] sm:$0xff]
        %v4471 = vld [vmem:[%s4442 + $0xe0] sm:$0xff]
        %v4472 = vld [vmem:[%s4442 + $0xe8] sm:$0xff]
        %v4473 = vld [vmem:[%s4442 + $0xf0] sm:$0xff]
        %v4474 = vld [vmem:[%s4442 + $0xf8] sm:$0xff]
        %v4476 = vunpack.c.l.b16 %v4441
        %v4477 = vunpack.c.h.b16 %v4441
        %v4478 = vpack.c.b16 %v4476, %v4476
        %v4479 = vpack.c.b16 %v4477, %v4477
        %v4480 = vrot.slane %v4478, 1
        %v4481 = vrot.slane %v4479, 1
        %v4516 = vunpack.c.l.b16 %v4443
        %v4517 = vunpack.c.h.b16 %v4443
        %v4518 = vunpack.c.l.b16 %v4444
        %v4519 = vunpack.c.h.b16 %v4444
        %v4520 = vunpack.c.l.b16 %v4445
        %v4521 = vunpack.c.h.b16 %v4445
        %v4522 = vunpack.c.l.b16 %v4446
        %v4523 = vunpack.c.h.b16 %v4446
        %v4524 = vunpack.c.l.b16 %v4447
        %v4525 = vunpack.c.h.b16 %v4447
        %v4526 = vunpack.c.l.b16 %v4448
        %v4527 = vunpack.c.h.b16 %v4448
        %v4528 = vunpack.c.l.b16 %v4449
        %v4529 = vunpack.c.h.b16 %v4449
        %v4530 = vunpack.c.l.b16 %v4450
        %v4531 = vunpack.c.h.b16 %v4450
        %v4532 = vunpack.c.l.b16 %v4451
        %v4533 = vunpack.c.h.b16 %v4451
        %v4534 = vunpack.c.l.b16 %v4452
        %v4535 = vunpack.c.h.b16 %v4452
        %v4536 = vunpack.c.l.b16 %v4453
        %v4537 = vunpack.c.h.b16 %v4453
        %v4538 = vunpack.c.l.b16 %v4454
        %v4539 = vunpack.c.h.b16 %v4454
        %v4540 = vunpack.c.l.b16 %v4455
        %v4541 = vunpack.c.h.b16 %v4455
        %v4542 = vunpack.c.l.b16 %v4456
        %v4543 = vunpack.c.h.b16 %v4456
        %v4544 = vunpack.c.l.b16 %v4457
        %v4545 = vunpack.c.h.b16 %v4457
        %v4546 = vunpack.c.l.b16 %v4458
        %v4547 = vunpack.c.h.b16 %v4458
        %v4548 = vunpack.c.l.b16 %v4459
        %v4549 = vunpack.c.h.b16 %v4459
        %v4550 = vunpack.c.l.b16 %v4460
        %v4551 = vunpack.c.h.b16 %v4460
        %v4552 = vunpack.c.l.b16 %v4461
        %v4553 = vunpack.c.h.b16 %v4461
        %v4554 = vunpack.c.l.b16 %v4462
        %v4555 = vunpack.c.h.b16 %v4462
        %v4556 = vunpack.c.l.b16 %v4463
        %v4557 = vunpack.c.h.b16 %v4463
        %v4558 = vunpack.c.l.b16 %v4464
        %v4559 = vunpack.c.h.b16 %v4464
        %v4560 = vunpack.c.l.b16 %v4465
        %v4561 = vunpack.c.h.b16 %v4465
        %v4562 = vunpack.c.l.b16 %v4466
        %v4563 = vunpack.c.h.b16 %v4466
        %v4564 = vunpack.c.l.b16 %v4467
        %v4565 = vunpack.c.h.b16 %v4467
        %v4566 = vunpack.c.l.b16 %v4468
        %v4567 = vunpack.c.h.b16 %v4468
        %v4568 = vunpack.c.l.b16 %v4469
        %v4569 = vunpack.c.h.b16 %v4469
        %v4570 = vunpack.c.l.b16 %v4470
        %v4571 = vunpack.c.h.b16 %v4470
        %v4572 = vunpack.c.l.b16 %v4471
        %v4573 = vunpack.c.h.b16 %v4471
        %v4574 = vunpack.c.l.b16 %v4472
        %v4575 = vunpack.c.h.b16 %v4472
        %v4576 = vunpack.c.l.b16 %v4473
        %v4577 = vunpack.c.h.b16 %v4473
        %v4578 = vunpack.c.l.b16 %v4474
        %v4579 = vunpack.c.h.b16 %v4474
        %v4580 = vpack.c.b16 %v4518, %v4516
        %v4581 = vpack.c.b16 %v4519, %v4517
        %v4582 = vpack.c.b16 %v4522, %v4520
        %v4583 = vpack.c.b16 %v4523, %v4521
        %v4584 = vpack.c.b16 %v4526, %v4524
        %v4585 = vpack.c.b16 %v4527, %v4525
        %v4586 = vpack.c.b16 %v4530, %v4528
        %v4587 = vpack.c.b16 %v4531, %v4529
        %v4588 = vpack.c.b16 %v4534, %v4532
        %v4589 = vpack.c.b16 %v4535, %v4533
        %v4590 = vpack.c.b16 %v4538, %v4536
        %v4591 = vpack.c.b16 %v4539, %v4537
        %v4592 = vpack.c.b16 %v4542, %v4540
        %v4593 = vpack.c.b16 %v4543, %v4541
        %v4594 = vpack.c.b16 %v4546, %v4544
        %v4595 = vpack.c.b16 %v4547, %v4545
        %v4596 = vpack.c.b16 %v4550, %v4548
        %v4597 = vpack.c.b16 %v4551, %v4549
        %v4598 = vpack.c.b16 %v4554, %v4552
        %v4599 = vpack.c.b16 %v4555, %v4553
        %v4600 = vpack.c.b16 %v4558, %v4556
        %v4601 = vpack.c.b16 %v4559, %v4557
        %v4602 = vpack.c.b16 %v4562, %v4560
        %v4603 = vpack.c.b16 %v4563, %v4561
        %v4604 = vpack.c.b16 %v4566, %v4564
        %v4605 = vpack.c.b16 %v4567, %v4565
        %v4606 = vpack.c.b16 %v4570, %v4568
        %v4607 = vpack.c.b16 %v4571, %v4569
        %v4608 = vpack.c.b16 %v4574, %v4572
        %v4609 = vpack.c.b16 %v4575, %v4573
        %v4610 = vpack.c.b16 %v4578, %v4576
        %v4611 = vpack.c.b16 %v4579, %v4577
        %4644 = vmatpush.bf16.msra.mxu0 %v4594
        %4645 = vmatpush.bf16.msra.mxu0 %v4592
        %4646 = vmatpush.bf16.msra.mxu0 %v4590
        %4647 = vmatpush.bf16.msra.mxu0 %v4588
        %4648 = vmatpush.bf16.msra.mxu0 %v4586
        %4649 = vmatpush.bf16.msra.mxu0 %v4584
        %4650 = vmatpush.bf16.msra.mxu0 %v4582
        %4651 = vmatpush.bf16.msra.mxu0 %v4580
        %4652 = vmatmul.bf16.gmra.mxu0 %v4480
        %v4653 = vpop.f32.mrf.mxu0
        %v4654 = vadd.f32 0.0, %v4653
        %v4655 = vpop.f32.mrf.mxu0
        %4656 = vdwg.mxu0
        %4657 = vmatpush.bf16.msra.mxu0 %v4610
        %4658 = vmatpush.bf16.msra.mxu0 %v4608
        %4659 = vmatpush.bf16.msra.mxu0 %v4606
        %4660 = vmatpush.bf16.msra.mxu0 %v4604
        %4661 = vmatpush.bf16.msra.mxu0 %v4602
        %4662 = vmatpush.bf16.msra.mxu0 %v4600
        %4663 = vmatpush.bf16.msra.mxu0 %v4598
        %4664 = vmatpush.bf16.msra.mxu0 %v4596
        %4665 = vmatmul.bf16.gmra.mxu0 %v4481
        %v4666 = vpop.f32.mrf.mxu0
        %v4667 = vadd.f32 %v4654, %v4666
        %v4668 = vpop.f32.mrf.mxu0
        %4669 = vdwg.mxu0
        %4670 = vmatpush.bf16.msra.mxu0 %v4595
        %4671 = vmatpush.bf16.msra.mxu0 %v4593
        %4672 = vmatpush.bf16.msra.mxu0 %v4591
        %4673 = vmatpush.bf16.msra.mxu0 %v4589
        %4674 = vmatpush.bf16.msra.mxu0 %v4587
        %4675 = vmatpush.bf16.msra.mxu0 %v4585
        %4676 = vmatpush.bf16.msra.mxu0 %v4583
        %4677 = vmatpush.bf16.msra.mxu0 %v4581
        %4678 = vmatmul.bf16.gmra.mxu0 %v4480
        %v4679 = vpop.f32.mrf.mxu0
        %v4680 = vadd.f32 0.0, %v4679
        %v4681 = vpop.f32.mrf.mxu0
        %4682 = vdwg.mxu0
        %4683 = vmatpush.bf16.msra.mxu0 %v4611
        %4684 = vmatpush.bf16.msra.mxu0 %v4609
        %4685 = vmatpush.bf16.msra.mxu0 %v4607
        %4686 = vmatpush.bf16.msra.mxu0 %v4605
        %4687 = vmatpush.bf16.msra.mxu0 %v4603
        %4688 = vmatpush.bf16.msra.mxu0 %v4601
        %4689 = vmatpush.bf16.msra.mxu0 %v4599
        %4690 = vmatpush.bf16.msra.mxu0 %v4597
        %4691 = vmatmul.bf16.gmra.mxu0 %v4481
        %v4692 = vpop.f32.mrf.mxu0
        %v4693 = vadd.f32 %v4680, %v4692
        %v4694 = vpop.f32.mrf.mxu0
        %4695 = vdwg.mxu0
        %v4696 = vadd.f32 %v4412, %v4667
        %v4697 = vadd.f32 %v4438, %v4693
        %v4698 = vld [vmem:[#allocation12] sm:$0x3]
        %v4700 = vperm.slane %v4698, 0
        %v4701 = vperm.slane %v4698, 1
        %v4704 = vadd.f32 %v4696, %v4700
        %v4705 = vadd.f32 %v4697, %v4701
        %v4706 = vmul.f32 %v4704, 0.5
        %v4707 = vmul.f32 %v4705, 0.5
        %v4708 = vmul.f32 %v4704, %v4704
        %v4709 = vmul.f32 %v4705, %v4705
        %v4710 = vmul.f32 %v4708, %v4704
        %v4711 = vmul.f32 %v4709, %v4705
        %v4712 = vmul.f32 %v4710, 0.044715
        %v4713 = vmul.f32 %v4711, 0.044715
        %v4714 = vadd.f32 %v4704, %v4712
        %v4715 = vadd.f32 %v4705, %v4713
        %v4716 = vmul.f32 %v4714, 0.7978846
        %v4717 = vmul.f32 %v4715, 0.7978846
        %v4718 = vtanh.pop %v4716
        %v4719 = vtanh.pop %v4717
        %v4720 = vadd.f32 %v4718, 1.0
        %v4721 = vadd.f32 %v4719, 1.0
        %v4722 = vmul.f32 %v4706, %v4720
        %v4723 = vmul.f32 %v4707, %v4721
        %v4724 = vpack.c.bf16 %v4722, %v4722
        %v4725 = vpack.c.bf16 %v4723, %v4723
        %v4726 = vld [vmem:[#allocation17] sm:$0xf]
        %v4727 = vld [vmem:[#allocation17 + $0x4] sm:$0xf]
        %v4728 = vld [vmem:[#allocation17 + $0x8] sm:$0xf]
        %v4729 = vld [vmem:[#allocation17 + $0xc] sm:$0xf]
        %v4730 = vld [vmem:[#allocation17 + $0x10] sm:$0xf]
        %v4731 = vld [vmem:[#allocation17 + $0x14] sm:$0xf]
        %v4732 = vld [vmem:[#allocation17 + $0x18] sm:$0xf]
        %v4733 = vld [vmem:[#allocation17 + $0x1c] sm:$0xf]
        %v4734 = vld [vmem:[#allocation17 + $0x20] sm:$0xf]
        %v4735 = vld [vmem:[#allocation17 + $0x24] sm:$0xf]
        %v4736 = vld [vmem:[#allocation17 + $0x28] sm:$0xf]
        %v4737 = vld [vmem:[#allocation17 + $0x2c] sm:$0xf]
        %v4738 = vld [vmem:[#allocation17 + $0x30] sm:$0xf]
        %v4739 = vld [vmem:[#allocation17 + $0x34] sm:$0xf]
        %v4740 = vld [vmem:[#allocation17 + $0x38] sm:$0xf]
        %v4741 = vld [vmem:[#allocation17 + $0x3c] sm:$0xf]
        %v4742 = vld [vmem:[#allocation17 + $0x40] sm:$0xf]
        %v4743 = vld [vmem:[#allocation17 + $0x44] sm:$0xf]
        %v4744 = vld [vmem:[#allocation17 + $0x48] sm:$0xf]
        %v4745 = vld [vmem:[#allocation17 + $0x4c] sm:$0xf]
        %v4746 = vld [vmem:[#allocation17 + $0x50] sm:$0xf]
        %v4747 = vld [vmem:[#allocation17 + $0x54] sm:$0xf]
        %v4748 = vld [vmem:[#allocation17 + $0x58] sm:$0xf]
        %v4749 = vld [vmem:[#allocation17 + $0x5c] sm:$0xf]
        %v4750 = vld [vmem:[#allocation17 + $0x60] sm:$0xf]
        %v4751 = vld [vmem:[#allocation17 + $0x64] sm:$0xf]
        %v4752 = vld [vmem:[#allocation17 + $0x68] sm:$0xf]
        %v4753 = vld [vmem:[#allocation17 + $0x6c] sm:$0xf]
        %v4754 = vld [vmem:[#allocation17 + $0x70] sm:$0xf]
        %v4755 = vld [vmem:[#allocation17 + $0x74] sm:$0xf]
        %v4756 = vld [vmem:[#allocation17 + $0x78] sm:$0xf]
        %v4757 = vld [vmem:[#allocation17 + $0x7c] sm:$0xf]
        %v4758 = vld [vmem:[#allocation18] sm:$0x1]
        %v4760 = vperm.slane %v4758, 0
        %v4794 = vunpack.c.l.b16 %v4726
        %v4795 = vunpack.c.l.b16 %v4727
        %v4796 = vunpack.c.l.b16 %v4728
        %v4797 = vunpack.c.l.b16 %v4729
        %v4798 = vunpack.c.l.b16 %v4730
        %v4799 = vunpack.c.l.b16 %v4731
        %v4800 = vunpack.c.l.b16 %v4732
        %v4801 = vunpack.c.l.b16 %v4733
        %v4802 = vunpack.c.l.b16 %v4734
        %v4803 = vunpack.c.l.b16 %v4735
        %v4804 = vunpack.c.l.b16 %v4736
        %v4805 = vunpack.c.l.b16 %v4737
        %v4806 = vunpack.c.l.b16 %v4738
        %v4807 = vunpack.c.l.b16 %v4739
        %v4808 = vunpack.c.l.b16 %v4740
        %v4809 = vunpack.c.l.b16 %v4741
        %v4810 = vunpack.c.l.b16 %v4742
        %v4811 = vunpack.c.l.b16 %v4743
        %v4812 = vunpack.c.l.b16 %v4744
        %v4813 = vunpack.c.l.b16 %v4745
        %v4814 = vunpack.c.l.b16 %v4746
        %v4815 = vunpack.c.l.b16 %v4747
        %v4816 = vunpack.c.l.b16 %v4748
        %v4817 = vunpack.c.l.b16 %v4749
        %v4818 = vunpack.c.l.b16 %v4750
        %v4819 = vunpack.c.l.b16 %v4751
        %v4820 = vunpack.c.l.b16 %v4752
        %v4821 = vunpack.c.l.b16 %v4753
        %v4822 = vunpack.c.l.b16 %v4754
        %v4823 = vunpack.c.l.b16 %v4755
        %v4824 = vunpack.c.l.b16 %v4756
        %v4825 = vunpack.c.l.b16 %v4757
        %v4826 = vpack.c.b16 %v4795, %v4794
        %v4827 = vpack.c.b16 %v4797, %v4796
        %v4828 = vpack.c.b16 %v4799, %v4798
        %v4829 = vpack.c.b16 %v4801, %v4800
        %v4830 = vpack.c.b16 %v4803, %v4802
        %v4831 = vpack.c.b16 %v4805, %v4804
        %v4832 = vpack.c.b16 %v4807, %v4806
        %v4833 = vpack.c.b16 %v4809, %v4808
        %v4834 = vpack.c.b16 %v4811, %v4810
        %v4835 = vpack.c.b16 %v4813, %v4812
        %v4836 = vpack.c.b16 %v4815, %v4814
        %v4837 = vpack.c.b16 %v4817, %v4816
        %v4838 = vpack.c.b16 %v4819, %v4818
        %v4839 = vpack.c.b16 %v4821, %v4820
        %v4840 = vpack.c.b16 %v4823, %v4822
        %v4841 = vpack.c.b16 %v4825, %v4824
        %4858 = vmatpush.bf16.msra.mxu0 %v4833
        %4859 = vmatpush.bf16.msra.mxu0 %v4832
        %4860 = vmatpush.bf16.msra.mxu0 %v4831
        %4861 = vmatpush.bf16.msra.mxu0 %v4830
        %4862 = vmatpush.bf16.msra.mxu0 %v4829
        %4863 = vmatpush.bf16.msra.mxu0 %v4828
        %4864 = vmatpush.bf16.msra.mxu0 %v4827
        %4865 = vmatpush.bf16.msra.mxu0 %v4826
        %4866 = vmatmul.bf16.gmra.mxu0 %v4724
        %v4867 = vpop.f32.mrf.mxu0
        %v4868 = vadd.f32 %v4760, %v4867
        %v4869 = vpop.f32.mrf.mxu0
        %4870 = vdwg.mxu0
        %4871 = vmatpush.bf16.msra.mxu0 %v4841
        %4872 = vmatpush.bf16.msra.mxu0 %v4840
        %4873 = vmatpush.bf16.msra.mxu0 %v4839
        %4874 = vmatpush.bf16.msra.mxu0 %v4838
        %4875 = vmatpush.bf16.msra.mxu0 %v4837
        %4876 = vmatpush.bf16.msra.mxu0 %v4836
        %4877 = vmatpush.bf16.msra.mxu0 %v4835
        %4878 = vmatpush.bf16.msra.mxu0 %v4834
        %4879 = vmatmul.bf16.gmra.mxu0 %v4725
        %v4880 = vpop.f32.mrf.mxu0
        %v4881 = vadd.f32 %v4868, %v4880
        %v4882 = vpop.f32.mrf.mxu0
        %4883 = vdwg.mxu0
        %4884 = vst [vmem:[%s573] sm:$0x3] %v4881
        %s4885 = sand.u32 %s280, 1
        %s4886 = scalar_lea.sflag [#allocation5], %s4885
        %s4887 = sand.u32 %s280, 1
        %s4888 = smul.addr %s4887, 2
        %s4889 = scalar_lea.vmem [#allocation20], %s4888
        %s4890 = sand.u32 %s306, 1
        %s4891 = scalar_lea.sflag [#allocation22], %s4890
        %s4892 = sand.u32 %s306, 1
        %s4893 = smul.addr %s4892, 2
        %s4894 = scalar_lea.vmem [#allocation21], %s4893
        // Predicated region
        $region105: #{_forward_impl.3} parent=63 // pred_check
          %p4895 = pneg %p290
        $region106: #{_forward_impl.3} parent=63 // pred_check_branch
          %4897 = sbr.rel (%p4895) target = $region108
        $region107: #{_forward_impl.3} parent=63 // pred_region
          %4899 = vsyncadd %s4886, 0
          %s4900 = smul.addr %s36, 2
          %s4901 = scalar_lea.hbm %s11, %s4900
          %s4903 = sshll.u32 %s4889, 4
          %s4904 = int_to_ptr.vmem [resolvable:$true] %s4903
          %s4905 = sshll.u32 %s4901, 4
          %s4906 = int_to_ptr.hbm [resolvable:$true] %s4905
          %4908 = dma.vmem_to_hbm [thread:$0]  %s4904, 32, %s4906, %s4886
        $region108: #{_forward_impl.3} parent=63 // pred_fallthru
          _
        // Predicated region
        $region109: #{_forward_impl.3} parent=63 // pred_check
          %p4909 = pneg %p316
        $region110: #{_forward_impl.3} parent=63 // pred_check_branch
          %4911 = sbr.rel (%p4909) target = $region112
        $region111: #{_forward_impl.3} parent=63 // pred_region
          %4913 = vsyncadd %s4891, 0
          %s4914 = smul.addr %s36, 2
          %s4915 = scalar_lea.hbm %s12, %s4914
          %s4917 = sshll.u32 %s4894, 4
          %s4918 = int_to_ptr.vmem [resolvable:$true] %s4917
          %s4919 = sshll.u32 %s4915, 4
          %s4920 = int_to_ptr.hbm [resolvable:$true] %s4919
          %4922 = dma.vmem_to_hbm [thread:$0]  %s4918, 32, %s4920, %s4891
        $region112: #{_forward_impl.3} parent=63 // pred_fallthru
          _
      $region64: #{_forward_impl.3} parent=5 // pred_fallthru
        _
      %p4923 = scmp.le.s32.totalorder 2, %s31
      // Predicated region
      $region113: #{_forward_impl.3} parent=5 // pred_check
        %p4924 = pneg %p4923
      $region114: #{_forward_impl.3} parent=5 // pred_check_branch
        %4926 = sbr.rel (%p4924) target = $region116
      $region115: #{_forward_impl.3} parent=5 // pred_region
        %s4927 = ssub.s32 %s31, 2
        // Predicated region
        $region117: #{_forward_impl.3} parent=115 // pred_check
          %p4928 = pneg %p296
        $region118: #{_forward_impl.3} parent=115 // pred_check_branch
          %4930 = sbr.rel (%p4928) target = $region120
        $region119: #{_forward_impl.3} parent=115 // pred_region
          %s4931 = sand.u32 %s281, 1
          %s4932 = scalar_lea.sflag [#allocation5], %s4931
          %s4933 = sand.u32 %s281, 1
          %s4934 = smul.addr %s4933, 2
          %s4935 = scalar_lea.vmem [#allocation20], %s4934
          %4937 = dma.done %s4932, 32
        $region120: #{_forward_impl.3} parent=115 // pred_fallthru
          _
        // Predicated region
        $region121: #{_forward_impl.3} parent=115 // pred_check
          %p4938 = pneg %p322
        $region122: #{_forward_impl.3} parent=115 // pred_check_branch
          %4940 = sbr.rel (%p4938) target = $region124
        $region123: #{_forward_impl.3} parent=115 // pred_region
          %s4941 = sand.u32 %s307, 1
          %s4942 = scalar_lea.sflag [#allocation22], %s4941
          %s4943 = sand.u32 %s307, 1
          %s4944 = smul.addr %s4943, 2
          %s4945 = scalar_lea.vmem [#allocation21], %s4944
          %4947 = dma.done %s4942, 32
        $region124: #{_forward_impl.3} parent=115 // pred_fallthru
          _
      $region116: #{_forward_impl.3} parent=5 // pred_fallthru
        _
    $region6: #{_forward_impl.3} parent=1 // loop_footer
      %s35 = sadd.s32 1, %s31
    $region7: #{_forward_impl.3} parent=1 // loop_footer_branch
      %30 = sbr.rel target = $region3
    $region8: #{_forward_impl.3} parent=1 // loop_exit
      _
    %4948 = vsyncpa [#allocation4], 1
    %s4949 = scalar_lea.sflag [#allocation4], 1
    %4950 = vsyncpa %s4949, 1
    %4951 = vsyncpa [#allocation7], 1
    %4952 = vsyncpa [#allocation10], 1
    %4953 = vsyncpa [#allocation13], 1
    %4954 = vsyncpa [#allocation16], 1
    %4955 = vsyncpa [#allocation19], 1
    %4956 = vsyncpa [#allocation5], 1
    %s4957 = scalar_lea.sflag [#allocation5], 1
    %4958 = vsyncpa %s4957, 1
    %4959 = vsyncpa [#allocation22], 1
    %s4960 = scalar_lea.sflag [#allocation22], 1
    %4961 = vsyncpa %s4960, 1

// kernel: _forward_impl.2
$region0: #{_forward_impl.2}
  #allocation0 [shape = 'u32[]', space=smem, size = 0x4, offset = 0x4, fixed_abs, tag = 'smem constant byte address 0x4 - core index']
  #allocation1 [shape = 'u32[72,128]{1,0:T(1,128)}', space=vmem, size = 0x9000, scoped, tag = 'internal scratch']
  %s0 = inlined_call_operand.vmem [shape: bf16[16,172], index: 0, kind: input, shape index: {}]
  %s1 = inlined_call_operand.hbm [shape: bf16[172,2752], index: 1, kind: input, shape index: {}]
  %s2 = inlined_call_operand.hbm [shape: f32[1,2752], index: 2, kind: input, shape index: {}]
  %s3 = inlined_call_operand.hbm [shape: bf16[2752,256], index: 3, kind: input, shape index: {}]
  %s4 = inlined_call_operand.hbm [shape: f32[1,256], index: 4, kind: input, shape index: {}]
  %s5 = inlined_call_operand.hbm [shape: f32[256,256], index: 5, kind: input, shape index: {}]
  %s6 = inlined_call_operand.hbm [shape: f32[1,256], index: 6, kind: input, shape index: {}]
  %s7 = inlined_call_operand.hbm [shape: f32[1,256], index: 7, kind: input, shape index: {}]
  %s8 = inlined_call_operand.vmem [shape: bf16[16,256], index: 8, kind: output, shape index: {}]
  %s9 = sld [smem:[#allocation0]]
  $region70: #{_forward_impl.2} parent=0
    _
  %s11 = ssub.s32 1, %s9
  %s12 = scalar_select 0, %s11, %s9
  $region1: #{_forward_impl.2} parent=0
    #allocation2 [shape = 'u8[991232]{0}', space=vmem, size = 0xf2000, scoped, tag = 'input window, operand 1, single buffered']
    #allocation3 [shape = 's32[1]{0}', space=sflag, size = 0x4, scoped, tag = 'scoped memory for _forward_impl.2']
    #allocation4 [shape = 'u8[11264]{0}', space=vmem, size = 0x2c00, scoped, tag = 'input window, operand 2, single buffered']
    #allocation5 [shape = 's32[1]{0}', space=sflag, size = 0x4, scoped, tag = 'scoped memory for _forward_impl.2']
    #allocation6 [shape = 'u8[1409024]{0}', space=vmem, size = 0x158000, scoped, tag = 'input window, operand 3, single buffered']
    #allocation7 [shape = 'u8[1024]{0}', space=vmem, size = 0x400, scoped, tag = 'input window, operand 4, single buffered']
    #allocation8 [shape = 's32[1]{0}', space=sflag, size = 0x4, scoped, tag = 'scoped memory for _forward_impl.2']
    #allocation9 [shape = 'u8[262144]{0}', space=vmem, size = 0x40000, scoped, tag = 'input window, operand 5, single buffered']
    #allocation10 [shape = 'u8[1024]{0}', space=vmem, size = 0x400, scoped, tag = 'input window, operand 6, single buffered']
    #allocation11 [shape = 's32[1]{0}', space=sflag, size = 0x4, scoped, tag = 'scoped memory for _forward_impl.2']
    #allocation12 [shape = 'u8[1024]{0}', space=vmem, size = 0x400, scoped, tag = 'input window, operand 7, single buffered']
    %13 = vsyncpa [#allocation3], 0
    %14 = vsyncpa [#allocation5], 0
    %15 = vsyncpa [#allocation8], 0
    %16 = vsyncpa [#allocation11], 0
    // Predicated region
    $region2: #{_forward_impl.2} parent=1 // pred_check
      _
    $region3: #{_forward_impl.2} parent=1 // pred_check_branch
      %18 = sbr.rel (0) target = $region5
    $region4: #{_forward_impl.2} parent=1 // pred_region
      _
    $region5: #{_forward_impl.2} parent=1 // pred_fallthru
      _
    // Predicated region
    $region6: #{_forward_impl.2} parent=1 // pred_check
      _
    $region7: #{_forward_impl.2} parent=1 // pred_check_branch
      %20 = sbr.rel (0) target = $region9
    $region8: #{_forward_impl.2} parent=1 // pred_region
      %22 = vsyncadd [#allocation3], 0
      %s23 = sshll.u32 %s1, 4
      %s24 = int_to_ptr.hbm [resolvable:$true] %s23
      %s25 = sshll.u32 [#allocation2], 4
      %s26 = int_to_ptr.vmem [resolvable:$true] %s25
      %31 = dma.hbm_to_vmem [thread:$0]  %s24, 30976, %s26, [#allocation3], 1408, 1408, 88
    $region9: #{_forward_impl.2} parent=1 // pred_fallthru
      _
    // Predicated region
    $region10: #{_forward_impl.2} parent=1 // pred_check
      _
    $region11: #{_forward_impl.2} parent=1 // pred_check_branch
      %33 = sbr.rel (0) target = $region13
    $region12: #{_forward_impl.2} parent=1 // pred_region
      %35 = vsyncadd [#allocation5], 0
      %s37 = sshll.u32 %s2, 4
      %s38 = int_to_ptr.hbm [resolvable:$true] %s37
      %s39 = sshll.u32 [#allocation4], 4
      %s40 = int_to_ptr.vmem [resolvable:$true] %s39
      %42 = dma.hbm_to_vmem [thread:$0]  %s38, 352, %s40, [#allocation5]
    $region13: #{_forward_impl.2} parent=1 // pred_fallthru
      _
    // Predicated region
    $region14: #{_forward_impl.2} parent=1 // pred_check
      _
    $region15: #{_forward_impl.2} parent=1 // pred_check_branch
      %44 = sbr.rel (0) target = $region17
    $region16: #{_forward_impl.2} parent=1 // pred_region
      %46 = vsyncadd [#allocation5], 0
      %s47 = sshll.u32 %s3, 4
      %s48 = int_to_ptr.hbm [resolvable:$true] %s47
      %s49 = sshll.u32 [#allocation6], 4
      %s50 = int_to_ptr.vmem [resolvable:$true] %s49
      %55 = dma.hbm_to_vmem [thread:$0]  %s48, 44032, %s50, [#allocation5], 128, 128, 8
    $region17: #{_forward_impl.2} parent=1 // pred_fallthru
      _
    // Predicated region
    $region18: #{_forward_impl.2} parent=1 // pred_check
      _
    $region19: #{_forward_impl.2} parent=1 // pred_check_branch
      %57 = sbr.rel (0) target = $region21
    $region20: #{_forward_impl.2} parent=1 // pred_region
      %59 = vsyncadd [#allocation8], 0
      %s61 = sshll.u32 %s4, 4
      %s62 = int_to_ptr.hbm [resolvable:$true] %s61
      %s63 = sshll.u32 [#allocation7], 4
      %s64 = int_to_ptr.vmem [resolvable:$true] %s63
      %66 = dma.hbm_to_vmem [thread:$0]  %s62, 32, %s64, [#allocation8]
    $region21: #{_forward_impl.2} parent=1 // pred_fallthru
      _
    // Predicated region
    $region22: #{_forward_impl.2} parent=1 // pred_check
      _
    $region23: #{_forward_impl.2} parent=1 // pred_check_branch
      %68 = sbr.rel (0) target = $region25
    $region24: #{_forward_impl.2} parent=1 // pred_region
      %70 = vsyncadd [#allocation8], 0
      %s71 = sshll.u32 %s5, 4
      %s72 = int_to_ptr.hbm [resolvable:$true] %s71
      %s73 = sshll.u32 [#allocation9], 4
      %s74 = int_to_ptr.vmem [resolvable:$true] %s73
      %79 = dma.hbm_to_vmem [thread:$0]  %s72, 8192, %s74, [#allocation8], 256, 256, 16
    $region25: #{_forward_impl.2} parent=1 // pred_fallthru
      _
    // Predicated region
    $region26: #{_forward_impl.2} parent=1 // pred_check
      _
    $region27: #{_forward_impl.2} parent=1 // pred_check_branch
      %81 = sbr.rel (0) target = $region29
    $region28: #{_forward_impl.2} parent=1 // pred_region
      %83 = vsyncadd [#allocation11], 0
      %s85 = sshll.u32 %s6, 4
      %s86 = int_to_ptr.hbm [resolvable:$true] %s85
      %s87 = sshll.u32 [#allocation10], 4
      %s88 = int_to_ptr.vmem [resolvable:$true] %s87
      %90 = dma.hbm_to_vmem [thread:$0]  %s86, 32, %s88, [#allocation11]
    $region29: #{_forward_impl.2} parent=1 // pred_fallthru
      _
    // Predicated region
    $region30: #{_forward_impl.2} parent=1 // pred_check
      _
    $region31: #{_forward_impl.2} parent=1 // pred_check_branch
      %92 = sbr.rel (0) target = $region33
    $region32: #{_forward_impl.2} parent=1 // pred_region
      %94 = vsyncadd [#allocation11], 0
      %s96 = sshll.u32 %s7, 4
      %s97 = int_to_ptr.hbm [resolvable:$true] %s96
      %s98 = sshll.u32 [#allocation12], 4
      %s99 = int_to_ptr.vmem [resolvable:$true] %s98
      %101 = dma.hbm_to_vmem [thread:$0]  %s97, 32, %s99, [#allocation11]
    $region33: #{_forward_impl.2} parent=1 // pred_fallthru
      _
    // Predicated region
    $region34: #{_forward_impl.2} parent=1 // pred_check
      _
    $region35: #{_forward_impl.2} parent=1 // pred_check_branch
      %103 = sbr.rel (0) target = $region37
    $region36: #{_forward_impl.2} parent=1 // pred_region
      %105 = dma.done [#allocation3], 30976
    $region37: #{_forward_impl.2} parent=1 // pred_fallthru
      _
    // Predicated region
    $region38: #{_forward_impl.2} parent=1 // pred_check
      _
    $region39: #{_forward_impl.2} parent=1 // pred_check_branch
      %107 = sbr.rel (0) target = $region41
    $region40: #{_forward_impl.2} parent=1 // pred_region
      %109 = dma.done [#allocation5], 352
    $region41: #{_forward_impl.2} parent=1 // pred_fallthru
      _
    // Predicated region
    $region42: #{_forward_impl.2} parent=1 // pred_check
      _
    $region43: #{_forward_impl.2} parent=1 // pred_check_branch
      %111 = sbr.rel (0) target = $region45
    $region44: #{_forward_impl.2} parent=1 // pred_region
      %113 = dma.done [#allocation5], 44032
    $region45: #{_forward_impl.2} parent=1 // pred_fallthru
      _
    // Predicated region
    $region46: #{_forward_impl.2} parent=1 // pred_check
      _
    $region47: #{_forward_impl.2} parent=1 // pred_check_branch
      %115 = sbr.rel (0) target = $region49
    $region48: #{_forward_impl.2} parent=1 // pred_region
      %117 = dma.done [#allocation8], 32
    $region49: #{_forward_impl.2} parent=1 // pred_fallthru
      _
    // Predicated region
    $region50: #{_forward_impl.2} parent=1 // pred_check
      _
    $region51: #{_forward_impl.2} parent=1 // pred_check_branch
      %119 = sbr.rel (0) target = $region53
    $region52: #{_forward_impl.2} parent=1 // pred_region
      %121 = dma.done [#allocation8], 8192
    $region53: #{_forward_impl.2} parent=1 // pred_fallthru
      _
    // Predicated region
    $region54: #{_forward_impl.2} parent=1 // pred_check
      _
    $region55: #{_forward_impl.2} parent=1 // pred_check_branch
      %123 = sbr.rel (0) target = $region57
    $region56: #{_forward_impl.2} parent=1 // pred_region
      %125 = dma.done [#allocation11], 32
    $region57: #{_forward_impl.2} parent=1 // pred_fallthru
      _
    // Predicated region
    $region58: #{_forward_impl.2} parent=1 // pred_check
      _
    $region59: #{_forward_impl.2} parent=1 // pred_check_branch
      %127 = sbr.rel (0) target = $region61
    $region60: #{_forward_impl.2} parent=1 // pred_region
      %129 = dma.done [#allocation11], 32
    $region61: #{_forward_impl.2} parent=1 // pred_fallthru
      _
    %v131 = vld [vmem:[%s0] sm:$0xff]
    %v132 = vld [vmem:[%s0 + $0x8] sm:$0xff]
    %v133 = vld [vmem:[#allocation2] sm:$0xff]
    %v134 = vld [vmem:[#allocation2 + $0x8] sm:$0xff]
    %v135 = vld [vmem:[#allocation2 + $0x10] sm:$0xff]
    %v136 = vld [vmem:[#allocation2 + $0x18] sm:$0xff]
    %v137 = vld [vmem:[#allocation2 + $0x20] sm:$0xff]
    %v138 = vld [vmem:[#allocation2 + $0x28] sm:$0xff]
    %v139 = vld [vmem:[#allocation2 + $0x30] sm:$0xff]
    %v140 = vld [vmem:[#allocation2 + $0x38] sm:$0xff]
    %v141 = vld [vmem:[#allocation2 + $0x40] sm:$0xff]
    %v142 = vld [vmem:[#allocation2 + $0x48] sm:$0xff]
    %v143 = vld [vmem:[#allocation2 + $0x50] sm:$0xff]
    %v144 = vld [vmem:[#allocation2 + $0x58] sm:$0xff]
    %v145 = vld [vmem:[#allocation2 + $0x60] sm:$0xff]
    %v146 = vld [vmem:[#allocation2 + $0x68] sm:$0xff]
    %v147 = vld [vmem:[#allocation2 + $0x70] sm:$0xff]
    %v148 = vld [vmem:[#allocation2 + $0x78] sm:$0xff]
    %v149 = vld [vmem:[#allocation2 + $0x80] sm:$0xff]
    %v150 = vld [vmem:[#allocation2 + $0x88] sm:$0xff]
    %v151 = vld [vmem:[#allocation2 + $0x90] sm:$0xff]
    %v152 = vld [vmem:[#allocation2 + $0x98] sm:$0xff]
    %v153 = vld [vmem:[#allocation2 + $0xa0] sm:$0xff]
    %v154 = vld [vmem:[#allocation2 + $0xa8] sm:$0xff]
    %v155 = vld [vmem:[#allocation2 + $0xb0] sm:$0xff]
    %v156 = vld [vmem:[#allocation2 + $0xb8] sm:$0xff]
    %v157 = vld [vmem:[#allocation2 + $0xc0] sm:$0xff]
    %v158 = vld [vmem:[#allocation2 + $0xc8] sm:$0xff]
    %v159 = vld [vmem:[#allocation2 + $0xd0] sm:$0xff]
    %v160 = vld [vmem:[#allocation2 + $0xd8] sm:$0xff]
    %v161 = vld [vmem:[#allocation2 + $0xe0] sm:$0xff]
    %v162 = vld [vmem:[#allocation2 + $0xe8] sm:$0xff]
    %v163 = vld [vmem:[#allocation2 + $0xf0] sm:$0xff]
    %v164 = vld [vmem:[#allocation2 + $0xf8] sm:$0xff]
    %v165 = vld [vmem:[#allocation2 + $0x100] sm:$0xff]
    %v166 = vld [vmem:[#allocation2 + $0x108] sm:$0xff]
    %v167 = vld [vmem:[#allocation2 + $0x110] sm:$0xff]
    %v168 = vld [vmem:[#allocation2 + $0x118] sm:$0xff]
    %v169 = vld [vmem:[#allocation2 + $0x120] sm:$0xff]
    %v170 = vld [vmem:[#allocation2 + $0x128] sm:$0xff]
    %v171 = vld [vmem:[#allocation2 + $0x130] sm:$0xff]
    %v172 = vld [vmem:[#allocation2 + $0x138] sm:$0xff]
    %v173 = vld [vmem:[#allocation2 + $0x140] sm:$0xff]
    %v174 = vld [vmem:[#allocation2 + $0x148] sm:$0xff]
    %v175 = vld [vmem:[#allocation2 + $0x150] sm:$0xff]
    %v176 = vld [vmem:[#allocation2 + $0x158] sm:$0xff]
    %v177 = vld [vmem:[#allocation2 + $0x160] sm:$0xff]
    %v178 = vld [vmem:[#allocation2 + $0x168] sm:$0xff]
    %v179 = vld [vmem:[#allocation2 + $0x170] sm:$0xff]
    %v180 = vld [vmem:[#allocation2 + $0x178] sm:$0xff]
    %v181 = vld [vmem:[#allocation2 + $0x180] sm:$0xff]
    %v182 = vld [vmem:[#allocation2 + $0x188] sm:$0xff]
    %v183 = vld [vmem:[#allocation2 + $0x190] sm:$0xff]
    %v184 = vld [vmem:[#allocation2 + $0x198] sm:$0xff]
    %v185 = vld [vmem:[#allocation2 + $0x1a0] sm:$0xff]
    %v186 = vld [vmem:[#allocation2 + $0x1a8] sm:$0xff]
    %v187 = vld [vmem:[#allocation2 + $0x1b0] sm:$0xff]
    %v188 = vld [vmem:[#allocation2 + $0x1b8] sm:$0xff]
    %v189 = vld [vmem:[#allocation2 + $0x1c0] sm:$0xff]
    %v190 = vld [vmem:[#allocation2 + $0x1c8] sm:$0xff]
    %v191 = vld [vmem:[#allocation2 + $0x1d0] sm:$0xff]
    %v192 = vld [vmem:[#allocation2 + $0x1d8] sm:$0xff]
    %v193 = vld [vmem:[#allocation2 + $0x1e0] sm:$0xff]
    %v194 = vld [vmem:[#allocation2 + $0x1e8] sm:$0xff]
    %v195 = vld [vmem:[#allocation2 + $0x1f0] sm:$0xff]
    %v196 = vld [vmem:[#allocation2 + $0x1f8] sm:$0xff]
    %v197 = vld [vmem:[#allocation2 + $0x200] sm:$0xff]
    %v198 = vld [vmem:[#allocation2 + $0x208] sm:$0xff]
    %v199 = vld [vmem:[#allocation2 + $0x210] sm:$0xff]
    %v200 = vld [vmem:[#allocation2 + $0x218] sm:$0xff]
    %v201 = vld [vmem:[#allocation2 + $0x220] sm:$0xff]
    %v202 = vld [vmem:[#allocation2 + $0x228] sm:$0xff]
    %v203 = vld [vmem:[#allocation2 + $0x230] sm:$0xff]
    %v204 = vld [vmem:[#allocation2 + $0x238] sm:$0xff]
    %v205 = vld [vmem:[#allocation2 + $0x240] sm:$0xff]
    %v206 = vld [vmem:[#allocation2 + $0x248] sm:$0xff]
    %v207 = vld [vmem:[#allocation2 + $0x250] sm:$0xff]
    %v208 = vld [vmem:[#allocation2 + $0x258] sm:$0xff]
    %v209 = vld [vmem:[#allocation2 + $0x260] sm:$0xff]
    %v210 = vld [vmem:[#allocation2 + $0x268] sm:$0xff]
    %v211 = vld [vmem:[#allocation2 + $0x270] sm:$0xff]
    %v212 = vld [vmem:[#allocation2 + $0x278] sm:$0xff]
    %v213 = vld [vmem:[#allocation2 + $0x280] sm:$0xff]
    %v214 = vld [vmem:[#allocation2 + $0x288] sm:$0xff]
    %v215 = vld [vmem:[#allocation2 + $0x290] sm:$0xff]
    %v216 = vld [vmem:[#allocation2 + $0x298] sm:$0xff]
    %v217 = vld [vmem:[#allocation2 + $0x2a0] sm:$0xff]
    %v218 = vld [vmem:[#allocation2 + $0x2a8] sm:$0xff]
    %v219 = vld [vmem:[#allocation2 + $0x2b0] sm:$0xff]
    %v220 = vld [vmem:[#allocation2 + $0x2b8] sm:$0xff]
    %v221 = vld [vmem:[#allocation2 + $0x2c0] sm:$0xff]
    %v222 = vld [vmem:[#allocation2 + $0x2c8] sm:$0xff]
    %v223 = vld [vmem:[#allocation2 + $0x2d0] sm:$0xff]
    %v224 = vld [vmem:[#allocation2 + $0x2d8] sm:$0xff]
    %v225 = vld [vmem:[#allocation2 + $0x2e0] sm:$0xff]
    %v226 = vld [vmem:[#allocation2 + $0x2e8] sm:$0xff]
    %v227 = vld [vmem:[#allocation2 + $0x2f0] sm:$0xff]
    %v228 = vld [vmem:[#allocation2 + $0x2f8] sm:$0xff]
    %v229 = vld [vmem:[#allocation2 + $0x300] sm:$0xff]
    %v230 = vld [vmem:[#allocation2 + $0x308] sm:$0xff]
    %v231 = vld [vmem:[#allocation2 + $0x310] sm:$0xff]
    %v232 = vld [vmem:[#allocation2 + $0x318] sm:$0xff]
    %v233 = vld [vmem:[#allocation2 + $0x320] sm:$0xff]
    %v234 = vld [vmem:[#allocation2 + $0x328] sm:$0xff]
    %v235 = vld [vmem:[#allocation2 + $0x330] sm:$0xff]
    %v236 = vld [vmem:[#allocation2 + $0x338] sm:$0xff]
    %v237 = vld [vmem:[#allocation2 + $0x340] sm:$0xff]
    %v238 = vld [vmem:[#allocation2 + $0x348] sm:$0xff]
    %v239 = vld [vmem:[#allocation2 + $0x350] sm:$0xff]
    %v240 = vld [vmem:[#allocation2 + $0x358] sm:$0xff]
    %v241 = vld [vmem:[#allocation2 + $0x360] sm:$0xff]
    %v242 = vld [vmem:[#allocation2 + $0x368] sm:$0xff]
    %v243 = vld [vmem:[#allocation2 + $0x370] sm:$0xff]
    %v244 = vld [vmem:[#allocation2 + $0x378] sm:$0xff]
    %v245 = vld [vmem:[#allocation2 + $0x380] sm:$0xff]
    %v246 = vld [vmem:[#allocation2 + $0x388] sm:$0xff]
    %v247 = vld [vmem:[#allocation2 + $0x390] sm:$0xff]
    %v248 = vld [vmem:[#allocation2 + $0x398] sm:$0xff]
    %v249 = vld [vmem:[#allocation2 + $0x3a0] sm:$0xff]
    %v250 = vld [vmem:[#allocation2 + $0x3a8] sm:$0xff]
    %v251 = vld [vmem:[#allocation2 + $0x3b0] sm:$0xff]
    %v252 = vld [vmem:[#allocation2 + $0x3b8] sm:$0xff]
    %v253 = vld [vmem:[#allocation2 + $0x3c0] sm:$0xff]
    %v254 = vld [vmem:[#allocation2 + $0x3c8] sm:$0xff]
    %v255 = vld [vmem:[#allocation2 + $0x3d0] sm:$0xff]
    %v256 = vld [vmem:[#allocation2 + $0x3d8] sm:$0xff]
    %v257 = vld [vmem:[#allocation2 + $0x3e0] sm:$0xff]
    %v258 = vld [vmem:[#allocation2 + $0x3e8] sm:$0xff]
    %v259 = vld [vmem:[#allocation2 + $0x3f0] sm:$0xff]
    %v260 = vld [vmem:[#allocation2 + $0x3f8] sm:$0xff]
    %v261 = vld [vmem:[#allocation2 + $0x400] sm:$0xff]
    %v262 = vld [vmem:[#allocation2 + $0x408] sm:$0xff]
    %v263 = vld [vmem:[#allocation2 + $0x410] sm:$0xff]
    %v264 = vld [vmem:[#allocation2 + $0x418] sm:$0xff]
    %v265 = vld [vmem:[#allocation2 + $0x420] sm:$0xff]
    %v266 = vld [vmem:[#allocation2 + $0x428] sm:$0xff]
    %v267 = vld [vmem:[#allocation2 + $0x430] sm:$0xff]
    %v268 = vld [vmem:[#allocation2 + $0x438] sm:$0xff]
    %v269 = vld [vmem:[#allocation2 + $0x440] sm:$0xff]
    %v270 = vld [vmem:[#allocation2 + $0x448] sm:$0xff]
    %v271 = vld [vmem:[#allocation2 + $0x450] sm:$0xff]
    %v272 = vld [vmem:[#allocation2 + $0x458] sm:$0xff]
    %v273 = vld [vmem:[#allocation2 + $0x460] sm:$0xff]
    %v274 = vld [vmem:[#allocation2 + $0x468] sm:$0xff]
    %v275 = vld [vmem:[#allocation2 + $0x470] sm:$0xff]
    %v276 = vld [vmem:[#allocation2 + $0x478] sm:$0xff]
    %v277 = vld [vmem:[#allocation2 + $0x480] sm:$0xff]
    %v278 = vld [vmem:[#allocation2 + $0x488] sm:$0xff]
    %v279 = vld [vmem:[#allocation2 + $0x490] sm:$0xff]
    %v280 = vld [vmem:[#allocation2 + $0x498] sm:$0xff]
    %v281 = vld [vmem:[#allocation2 + $0x4a0] sm:$0xff]
    %v282 = vld [vmem:[#allocation2 + $0x4a8] sm:$0xff]
    %v283 = vld [vmem:[#allocation2 + $0x4b0] sm:$0xff]
    %v284 = vld [vmem:[#allocation2 + $0x4b8] sm:$0xff]
    %v285 = vld [vmem:[#allocation2 + $0x4c0] sm:$0xff]
    %v286 = vld [vmem:[#allocation2 + $0x4c8] sm:$0xff]
    %v287 = vld [vmem:[#allocation2 + $0x4d0] sm:$0xff]
    %v288 = vld [vmem:[#allocation2 + $0x4d8] sm:$0xff]
    %v289 = vld [vmem:[#allocation2 + $0x4e0] sm:$0xff]
    %v290 = vld [vmem:[#allocation2 + $0x4e8] sm:$0xff]
    %v291 = vld [vmem:[#allocation2 + $0x4f0] sm:$0xff]
    %v292 = vld [vmem:[#allocation2 + $0x4f8] sm:$0xff]
    %v293 = vld [vmem:[#allocation2 + $0x500] sm:$0xff]
    %v294 = vld [vmem:[#allocation2 + $0x508] sm:$0xff]
    %v295 = vld [vmem:[#allocation2 + $0x510] sm:$0xff]
    %v296 = vld [vmem:[#allocation2 + $0x518] sm:$0xff]
    %v297 = vld [vmem:[#allocation2 + $0x520] sm:$0xff]
    %v298 = vld [vmem:[#allocation2 + $0x528] sm:$0xff]
    %v299 = vld [vmem:[#allocation2 + $0x530] sm:$0xff]
    %v300 = vld [vmem:[#allocation2 + $0x538] sm:$0xff]
    %v301 = vld [vmem:[#allocation2 + $0x540] sm:$0xff]
    %v302 = vld [vmem:[#allocation2 + $0x548] sm:$0xff]
    %v303 = vld [vmem:[#allocation2 + $0x550] sm:$0xff]
    %v304 = vld [vmem:[#allocation2 + $0x558] sm:$0xff]
    %v305 = vld [vmem:[#allocation2 + $0x560] sm:$0xff]
    %v306 = vld [vmem:[#allocation2 + $0x568] sm:$0xff]
    %v307 = vld [vmem:[#allocation2 + $0x570] sm:$0xff]
    %v308 = vld [vmem:[#allocation2 + $0x578] sm:$0xff]
    %v309 = vld [vmem:[#allocation2 + $0x580] sm:$0xff]
    %v310 = vld [vmem:[#allocation2 + $0x588] sm:$0xff]
    %v311 = vld [vmem:[#allocation2 + $0x590] sm:$0xff]
    %v312 = vld [vmem:[#allocation2 + $0x598] sm:$0xff]
    %v313 = vld [vmem:[#allocation2 + $0x5a0] sm:$0xff]
    %v314 = vld [vmem:[#allocation2 + $0x5a8] sm:$0xff]
    %v315 = vld [vmem:[#allocation2 + $0x5b0] sm:$0xff]
    %v316 = vld [vmem:[#allocation2 + $0x5b8] sm:$0xff]
    %v317 = vld [vmem:[#allocation2 + $0x5c0] sm:$0xff]
    %v318 = vld [vmem:[#allocation2 + $0x5c8] sm:$0xff]
    %v319 = vld [vmem:[#allocation2 + $0x5d0] sm:$0xff]
    %v320 = vld [vmem:[#allocation2 + $0x5d8] sm:$0xff]
    %v321 = vld [vmem:[#allocation2 + $0x5e0] sm:$0xff]
    %v322 = vld [vmem:[#allocation2 + $0x5e8] sm:$0xff]
    %v323 = vld [vmem:[#allocation2 + $0x5f0] sm:$0xff]
    %v324 = vld [vmem:[#allocation2 + $0x5f8] sm:$0xff]
    %v325 = vld [vmem:[#allocation2 + $0x600] sm:$0xff]
    %v326 = vld [vmem:[#allocation2 + $0x608] sm:$0xff]
    %v327 = vld [vmem:[#allocation2 + $0x610] sm:$0xff]
    %v328 = vld [vmem:[#allocation2 + $0x618] sm:$0xff]
    %v329 = vld [vmem:[#allocation2 + $0x620] sm:$0xff]
    %v330 = vld [vmem:[#allocation2 + $0x628] sm:$0xff]
    %v331 = vld [vmem:[#allocation2 + $0x630] sm:$0xff]
    %v332 = vld [vmem:[#allocation2 + $0x638] sm:$0xff]
    %v333 = vld [vmem:[#allocation2 + $0x640] sm:$0xff]
    %v334 = vld [vmem:[#allocation2 + $0x648] sm:$0xff]
    %v335 = vld [vmem:[#allocation2 + $0x650] sm:$0xff]
    %v336 = vld [vmem:[#allocation2 + $0x658] sm:$0xff]
    %v337 = vld [vmem:[#allocation2 + $0x660] sm:$0xff]
    %v338 = vld [vmem:[#allocation2 + $0x668] sm:$0xff]
    %v339 = vld [vmem:[#allocation2 + $0x670] sm:$0xff]
    %v340 = vld [vmem:[#allocation2 + $0x678] sm:$0xff]
    %v341 = vld [vmem:[#allocation2 + $0x680] sm:$0xff]
    %v342 = vld [vmem:[#allocation2 + $0x688] sm:$0xff]
    %v343 = vld [vmem:[#allocation2 + $0x690] sm:$0xff]
    %v344 = vld [vmem:[#allocation2 + $0x698] sm:$0xff]
    %v345 = vld [vmem:[#allocation2 + $0x6a0] sm:$0xff]
    %v346 = vld [vmem:[#allocation2 + $0x6a8] sm:$0xff]
    %v347 = vld [vmem:[#allocation2 + $0x6b0] sm:$0xff]
    %v348 = vld [vmem:[#allocation2 + $0x6b8] sm:$0xff]
    %v349 = vld [vmem:[#allocation2 + $0x6c0] sm:$0xff]
    %v350 = vld [vmem:[#allocation2 + $0x6c8] sm:$0xff]
    %v351 = vld [vmem:[#allocation2 + $0x6d0] sm:$0xff]
    %v352 = vld [vmem:[#allocation2 + $0x6d8] sm:$0xff]
    %v353 = vld [vmem:[#allocation2 + $0x6e0] sm:$0xff]
    %v354 = vld [vmem:[#allocation2 + $0x6e8] sm:$0xff]
    %v355 = vld [vmem:[#allocation2 + $0x6f0] sm:$0xff]
    %v356 = vld [vmem:[#allocation2 + $0x6f8] sm:$0xff]
    %v357 = vld [vmem:[#allocation2 + $0x700] sm:$0xff]
    %v358 = vld [vmem:[#allocation2 + $0x708] sm:$0xff]
    %v359 = vld [vmem:[#allocation2 + $0x710] sm:$0xff]
    %v360 = vld [vmem:[#allocation2 + $0x718] sm:$0xff]
    %v361 = vld [vmem:[#allocation2 + $0x720] sm:$0xff]
    %v362 = vld [vmem:[#allocation2 + $0x728] sm:$0xff]
    %v363 = vld [vmem:[#allocation2 + $0x730] sm:$0xff]
    %v364 = vld [vmem:[#allocation2 + $0x738] sm:$0x33]
    %v365 = vld [vmem:[#allocation2 + $0x740] sm:$0x33]
    %v366 = vld [vmem:[#allocation2 + $0x748] sm:$0x33]
    %v367 = vld [vmem:[#allocation2 + $0x750] sm:$0x33]
    %v368 = vld [vmem:[#allocation2 + $0x758] sm:$0x33]
    %v369 = vld [vmem:[#allocation2 + $0x760] sm:$0x33]
    %v370 = vld [vmem:[#allocation2 + $0x768] sm:$0x33]
    %v371 = vld [vmem:[#allocation2 + $0x770] sm:$0x33]
    %v372 = vld [vmem:[#allocation2 + $0x778] sm:$0x33]
    %v373 = vld [vmem:[#allocation2 + $0x780] sm:$0x33]
    %v374 = vld [vmem:[#allocation2 + $0x788] sm:$0x33]
    %v375 = vld [vmem:[#allocation4] sm:$0xff]
    %v376 = vld [vmem:[#allocation4 + $0x8] sm:$0xff]
    %v377 = vld [vmem:[#allocation4 + $0x10] sm:$0x3f]
    %v381 = vperm.slane %v375, 0
    %v382 = vperm.slane %v375, 1
    %v383 = vperm.slane %v375, 2
    %v384 = vperm.slane %v375, 3
    %v385 = vperm.slane %v375, 4
    %v386 = vperm.slane %v375, 5
    %v387 = vperm.slane %v375, 6
    %v388 = vperm.slane %v375, 7
    %v389 = vperm.slane %v376, 0
    %v390 = vperm.slane %v376, 1
    %v391 = vperm.slane %v376, 2
    %v392 = vperm.slane %v376, 3
    %v393 = vperm.slane %v376, 4
    %v394 = vperm.slane %v376, 5
    %v395 = vperm.slane %v376, 6
    %v396 = vperm.slane %v376, 7
    %v397 = vperm.slane %v377, 0
    %v398 = vperm.slane %v377, 1
    %v399 = vperm.slane %v377, 2
    %v400 = vperm.slane %v377, 3
    %v401 = vperm.slane %v377, 4
    %v402 = vperm.slane %v377, 5
    %v427 = vunpack.c.l.b16 %v131
    %v428 = vunpack.c.h.b16 %v131
    %v429 = vunpack.c.l.b16 %v132
    %v430 = vunpack.c.h.b16 %v132
    %v431 = vpack.c.b16 %v429, %v427
    %v432 = vpack.c.b16 %v430, %v428
    %v676 = vunpack.c.l.b16 %v133
    %v677 = vunpack.c.h.b16 %v133
    %v678 = vunpack.c.l.b16 %v134
    %v679 = vunpack.c.h.b16 %v134
    %v680 = vunpack.c.l.b16 %v135
    %v681 = vunpack.c.h.b16 %v135
    %v682 = vunpack.c.l.b16 %v136
    %v683 = vunpack.c.h.b16 %v136
    %v684 = vunpack.c.l.b16 %v137
    %v685 = vunpack.c.h.b16 %v137
    %v686 = vunpack.c.l.b16 %v138
    %v687 = vunpack.c.h.b16 %v138
    %v688 = vunpack.c.l.b16 %v139
    %v689 = vunpack.c.h.b16 %v139
    %v690 = vunpack.c.l.b16 %v140
    %v691 = vunpack.c.h.b16 %v140
    %v692 = vunpack.c.l.b16 %v141
    %v693 = vunpack.c.h.b16 %v141
    %v694 = vunpack.c.l.b16 %v142
    %v695 = vunpack.c.h.b16 %v142
    %v696 = vunpack.c.l.b16 %v143
    %v697 = vunpack.c.h.b16 %v143
    %v698 = vunpack.c.l.b16 %v144
    %v699 = vunpack.c.h.b16 %v144
    %v700 = vunpack.c.l.b16 %v145
    %v701 = vunpack.c.h.b16 %v145
    %v702 = vunpack.c.l.b16 %v146
    %v703 = vunpack.c.h.b16 %v146
    %v704 = vunpack.c.l.b16 %v147
    %v705 = vunpack.c.h.b16 %v147
    %v706 = vunpack.c.l.b16 %v148
    %v707 = vunpack.c.h.b16 %v148
    %v708 = vunpack.c.l.b16 %v149
    %v709 = vunpack.c.h.b16 %v149
    %v710 = vunpack.c.l.b16 %v150
    %v711 = vunpack.c.h.b16 %v150
    %v712 = vunpack.c.l.b16 %v151
    %v713 = vunpack.c.h.b16 %v151
    %v714 = vunpack.c.l.b16 %v152
    %v715 = vunpack.c.h.b16 %v152
    %v716 = vunpack.c.l.b16 %v153
    %v717 = vunpack.c.h.b16 %v153
    %v718 = vunpack.c.l.b16 %v154
    %v719 = vunpack.c.h.b16 %v154
    %v720 = vunpack.c.l.b16 %v155
    %v721 = vunpack.c.h.b16 %v155
    %v722 = vunpack.c.l.b16 %v156
    %v723 = vunpack.c.h.b16 %v156
    %v724 = vunpack.c.l.b16 %v157
    %v725 = vunpack.c.h.b16 %v157
    %v726 = vunpack.c.l.b16 %v158
    %v727 = vunpack.c.h.b16 %v158
    %v728 = vunpack.c.l.b16 %v159
    %v729 = vunpack.c.h.b16 %v159
    %v730 = vunpack.c.l.b16 %v160
    %v731 = vunpack.c.h.b16 %v160
    %v732 = vunpack.c.l.b16 %v161
    %v733 = vunpack.c.h.b16 %v161
    %v734 = vunpack.c.l.b16 %v162
    %v735 = vunpack.c.h.b16 %v162
    %v736 = vunpack.c.l.b16 %v163
    %v737 = vunpack.c.h.b16 %v163
    %v738 = vunpack.c.l.b16 %v164
    %v739 = vunpack.c.h.b16 %v164
    %v740 = vunpack.c.l.b16 %v165
    %v741 = vunpack.c.h.b16 %v165
    %v742 = vunpack.c.l.b16 %v166
    %v743 = vunpack.c.h.b16 %v166
    %v744 = vunpack.c.l.b16 %v167
    %v745 = vunpack.c.h.b16 %v167
    %v746 = vunpack.c.l.b16 %v168
    %v747 = vunpack.c.h.b16 %v168
    %v748 = vunpack.c.l.b16 %v169
    %v749 = vunpack.c.h.b16 %v169
    %v750 = vunpack.c.l.b16 %v170
    %v751 = vunpack.c.h.b16 %v170
    %v752 = vunpack.c.l.b16 %v171
    %v753 = vunpack.c.h.b16 %v171
    %v754 = vunpack.c.l.b16 %v172
    %v755 = vunpack.c.h.b16 %v172
    %v756 = vunpack.c.l.b16 %v173
    %v757 = vunpack.c.h.b16 %v173
    %v758 = vunpack.c.l.b16 %v174
    %v759 = vunpack.c.h.b16 %v174
    %v760 = vunpack.c.l.b16 %v175
    %v761 = vunpack.c.h.b16 %v175
    %v762 = vunpack.c.l.b16 %v176
    %v763 = vunpack.c.h.b16 %v176
    %v764 = vunpack.c.l.b16 %v177
    %v765 = vunpack.c.h.b16 %v177
    %v766 = vunpack.c.l.b16 %v178
    %v767 = vunpack.c.h.b16 %v178
    %v768 = vunpack.c.l.b16 %v179
    %v769 = vunpack.c.h.b16 %v179
    %v770 = vunpack.c.l.b16 %v180
    %v771 = vunpack.c.h.b16 %v180
    %v772 = vunpack.c.l.b16 %v181
    %v773 = vunpack.c.h.b16 %v181
    %v774 = vunpack.c.l.b16 %v182
    %v775 = vunpack.c.h.b16 %v182
    %v776 = vunpack.c.l.b16 %v183
    %v777 = vunpack.c.h.b16 %v183
    %v778 = vunpack.c.l.b16 %v184
    %v779 = vunpack.c.h.b16 %v184
    %v780 = vunpack.c.l.b16 %v185
    %v781 = vunpack.c.h.b16 %v185
    %v782 = vunpack.c.l.b16 %v186
    %v783 = vunpack.c.h.b16 %v186
    %v784 = vunpack.c.l.b16 %v187
    %v785 = vunpack.c.h.b16 %v187
    %v786 = vunpack.c.l.b16 %v188
    %v787 = vunpack.c.h.b16 %v188
    %v788 = vunpack.c.l.b16 %v189
    %v789 = vunpack.c.h.b16 %v189
    %v790 = vunpack.c.l.b16 %v190
    %v791 = vunpack.c.h.b16 %v190
    %v792 = vunpack.c.l.b16 %v191
    %v793 = vunpack.c.h.b16 %v191
    %v794 = vunpack.c.l.b16 %v192
    %v795 = vunpack.c.h.b16 %v192
    %v796 = vunpack.c.l.b16 %v193
    %v797 = vunpack.c.h.b16 %v193
    %v798 = vunpack.c.l.b16 %v194
    %v799 = vunpack.c.h.b16 %v194
    %v800 = vunpack.c.l.b16 %v195
    %v801 = vunpack.c.h.b16 %v195
    %v802 = vunpack.c.l.b16 %v196
    %v803 = vunpack.c.h.b16 %v196
    %v804 = vunpack.c.l.b16 %v197
    %v805 = vunpack.c.h.b16 %v197
    %v806 = vunpack.c.l.b16 %v198
    %v807 = vunpack.c.h.b16 %v198
    %v808 = vunpack.c.l.b16 %v199
    %v809 = vunpack.c.h.b16 %v199
    %v810 = vunpack.c.l.b16 %v200
    %v811 = vunpack.c.h.b16 %v200
    %v812 = vunpack.c.l.b16 %v201
    %v813 = vunpack.c.h.b16 %v201
    %v814 = vunpack.c.l.b16 %v202
    %v815 = vunpack.c.h.b16 %v202
    %v816 = vunpack.c.l.b16 %v203
    %v817 = vunpack.c.h.b16 %v203
    %v818 = vunpack.c.l.b16 %v204
    %v819 = vunpack.c.h.b16 %v204
    %v820 = vunpack.c.l.b16 %v205
    %v821 = vunpack.c.h.b16 %v205
    %v822 = vunpack.c.l.b16 %v206
    %v823 = vunpack.c.h.b16 %v206
    %v824 = vunpack.c.l.b16 %v207
    %v825 = vunpack.c.h.b16 %v207
    %v826 = vunpack.c.l.b16 %v208
    %v827 = vunpack.c.h.b16 %v208
    %v828 = vunpack.c.l.b16 %v209
    %v829 = vunpack.c.h.b16 %v209
    %v830 = vunpack.c.l.b16 %v210
    %v831 = vunpack.c.h.b16 %v210
    %v832 = vunpack.c.l.b16 %v211
    %v833 = vunpack.c.h.b16 %v211
    %v834 = vunpack.c.l.b16 %v212
    %v835 = vunpack.c.h.b16 %v212
    %v836 = vunpack.c.l.b16 %v213
    %v837 = vunpack.c.h.b16 %v213
    %v838 = vunpack.c.l.b16 %v214
    %v839 = vunpack.c.h.b16 %v214
    %v840 = vunpack.c.l.b16 %v215
    %v841 = vunpack.c.h.b16 %v215
    %v842 = vunpack.c.l.b16 %v216
    %v843 = vunpack.c.h.b16 %v216
    %v844 = vunpack.c.l.b16 %v217
    %v845 = vunpack.c.h.b16 %v217
    %v846 = vunpack.c.l.b16 %v218
    %v847 = vunpack.c.h.b16 %v218
    %v848 = vunpack.c.l.b16 %v219
    %v849 = vunpack.c.h.b16 %v219
    %v850 = vunpack.c.l.b16 %v220
    %v851 = vunpack.c.h.b16 %v220
    %v852 = vunpack.c.l.b16 %v221
    %v853 = vunpack.c.h.b16 %v221
    %v854 = vunpack.c.l.b16 %v222
    %v855 = vunpack.c.h.b16 %v222
    %v856 = vunpack.c.l.b16 %v223
    %v857 = vunpack.c.h.b16 %v223
    %v858 = vunpack.c.l.b16 %v224
    %v859 = vunpack.c.h.b16 %v224
    %v860 = vunpack.c.l.b16 %v225
    %v861 = vunpack.c.h.b16 %v225
    %v862 = vunpack.c.l.b16 %v226
    %v863 = vunpack.c.h.b16 %v226
    %v864 = vunpack.c.l.b16 %v227
    %v865 = vunpack.c.h.b16 %v227
    %v866 = vunpack.c.l.b16 %v228
    %v867 = vunpack.c.h.b16 %v228
    %v868 = vunpack.c.l.b16 %v229
    %v869 = vunpack.c.h.b16 %v229
    %v870 = vunpack.c.l.b16 %v230
    %v871 = vunpack.c.h.b16 %v230
    %v872 = vunpack.c.l.b16 %v231
    %v873 = vunpack.c.h.b16 %v231
    %v874 = vunpack.c.l.b16 %v232
    %v875 = vunpack.c.h.b16 %v232
    %v876 = vunpack.c.l.b16 %v233
    %v877 = vunpack.c.h.b16 %v233
    %v878 = vunpack.c.l.b16 %v234
    %v879 = vunpack.c.h.b16 %v234
    %v880 = vunpack.c.l.b16 %v235
    %v881 = vunpack.c.h.b16 %v235
    %v882 = vunpack.c.l.b16 %v236
    %v883 = vunpack.c.h.b16 %v236
    %v884 = vunpack.c.l.b16 %v237
    %v885 = vunpack.c.h.b16 %v237
    %v886 = vunpack.c.l.b16 %v238
    %v887 = vunpack.c.h.b16 %v238
    %v888 = vunpack.c.l.b16 %v239
    %v889 = vunpack.c.h.b16 %v239
    %v890 = vunpack.c.l.b16 %v240
    %v891 = vunpack.c.h.b16 %v240
    %v892 = vunpack.c.l.b16 %v241
    %v893 = vunpack.c.h.b16 %v241
    %v894 = vunpack.c.l.b16 %v242
    %v895 = vunpack.c.h.b16 %v242
    %v896 = vunpack.c.l.b16 %v243
    %v897 = vunpack.c.h.b16 %v243
    %v898 = vunpack.c.l.b16 %v244
    %v899 = vunpack.c.h.b16 %v244
    %v900 = vunpack.c.l.b16 %v245
    %v901 = vunpack.c.h.b16 %v245
    %v902 = vunpack.c.l.b16 %v246
    %v903 = vunpack.c.h.b16 %v246
    %v904 = vunpack.c.l.b16 %v247
    %v905 = vunpack.c.h.b16 %v247
    %v906 = vunpack.c.l.b16 %v248
    %v907 = vunpack.c.h.b16 %v248
    %v908 = vunpack.c.l.b16 %v249
    %v909 = vunpack.c.h.b16 %v249
    %v910 = vunpack.c.l.b16 %v250
    %v911 = vunpack.c.h.b16 %v250
    %v912 = vunpack.c.l.b16 %v251
    %v913 = vunpack.c.h.b16 %v251
    %v914 = vunpack.c.l.b16 %v252
    %v915 = vunpack.c.h.b16 %v252
    %v916 = vunpack.c.l.b16 %v253
    %v917 = vunpack.c.h.b16 %v253
    %v918 = vunpack.c.l.b16 %v254
    %v919 = vunpack.c.h.b16 %v254
    %v920 = vunpack.c.l.b16 %v255
    %v921 = vunpack.c.h.b16 %v255
    %v922 = vunpack.c.l.b16 %v256
    %v923 = vunpack.c.h.b16 %v256
    %v924 = vunpack.c.l.b16 %v257
    %v925 = vunpack.c.h.b16 %v257
    %v926 = vunpack.c.l.b16 %v258
    %v927 = vunpack.c.h.b16 %v258
    %v928 = vunpack.c.l.b16 %v259
    %v929 = vunpack.c.h.b16 %v259
    %v930 = vunpack.c.l.b16 %v260
    %v931 = vunpack.c.h.b16 %v260
    %v932 = vunpack.c.l.b16 %v261
    %v933 = vunpack.c.h.b16 %v261
    %v934 = vunpack.c.l.b16 %v262
    %v935 = vunpack.c.h.b16 %v262
    %v936 = vunpack.c.l.b16 %v263
    %v937 = vunpack.c.h.b16 %v263
    %v938 = vunpack.c.l.b16 %v264
    %v939 = vunpack.c.h.b16 %v264
    %v940 = vunpack.c.l.b16 %v265
    %v941 = vunpack.c.h.b16 %v265
    %v942 = vunpack.c.l.b16 %v266
    %v943 = vunpack.c.h.b16 %v266
    %v944 = vunpack.c.l.b16 %v267
    %v945 = vunpack.c.h.b16 %v267
    %v946 = vunpack.c.l.b16 %v268
    %v947 = vunpack.c.h.b16 %v268
    %v948 = vunpack.c.l.b16 %v269
    %v949 = vunpack.c.h.b16 %v269
    %v950 = vunpack.c.l.b16 %v270
    %v951 = vunpack.c.h.b16 %v270
    %v952 = vunpack.c.l.b16 %v271
    %v953 = vunpack.c.h.b16 %v271
    %v954 = vunpack.c.l.b16 %v272
    %v955 = vunpack.c.h.b16 %v272
    %v956 = vunpack.c.l.b16 %v273
    %v957 = vunpack.c.h.b16 %v273
    %v958 = vunpack.c.l.b16 %v274
    %v959 = vunpack.c.h.b16 %v274
    %v960 = vunpack.c.l.b16 %v275
    %v961 = vunpack.c.h.b16 %v275
    %v962 = vunpack.c.l.b16 %v276
    %v963 = vunpack.c.h.b16 %v276
    %v964 = vunpack.c.l.b16 %v277
    %v965 = vunpack.c.h.b16 %v277
    %v966 = vunpack.c.l.b16 %v278
    %v967 = vunpack.c.h.b16 %v278
    %v968 = vunpack.c.l.b16 %v279
    %v969 = vunpack.c.h.b16 %v279
    %v970 = vunpack.c.l.b16 %v280
    %v971 = vunpack.c.h.b16 %v280
    %v972 = vunpack.c.l.b16 %v281
    %v973 = vunpack.c.h.b16 %v281
    %v974 = vunpack.c.l.b16 %v282
    %v975 = vunpack.c.h.b16 %v282
    %v976 = vunpack.c.l.b16 %v283
    %v977 = vunpack.c.h.b16 %v283
    %v978 = vunpack.c.l.b16 %v284
    %v979 = vunpack.c.h.b16 %v284
    %v980 = vunpack.c.l.b16 %v285
    %v981 = vunpack.c.h.b16 %v285
    %v982 = vunpack.c.l.b16 %v286
    %v983 = vunpack.c.h.b16 %v286
    %v984 = vunpack.c.l.b16 %v287
    %v985 = vunpack.c.h.b16 %v287
    %v986 = vunpack.c.l.b16 %v288
    %v987 = vunpack.c.h.b16 %v288
    %v988 = vunpack.c.l.b16 %v289
    %v989 = vunpack.c.h.b16 %v289
    %v990 = vunpack.c.l.b16 %v290
    %v991 = vunpack.c.h.b16 %v290
    %v992 = vunpack.c.l.b16 %v291
    %v993 = vunpack.c.h.b16 %v291
    %v994 = vunpack.c.l.b16 %v292
    %v995 = vunpack.c.h.b16 %v292
    %v996 = vunpack.c.l.b16 %v293
    %v997 = vunpack.c.h.b16 %v293
    %v998 = vunpack.c.l.b16 %v294
    %v999 = vunpack.c.h.b16 %v294
    %v1000 = vunpack.c.l.b16 %v295
    %v1001 = vunpack.c.h.b16 %v295
    %v1002 = vunpack.c.l.b16 %v296
    %v1003 = vunpack.c.h.b16 %v296
    %v1004 = vunpack.c.l.b16 %v297
    %v1005 = vunpack.c.h.b16 %v297
    %v1006 = vunpack.c.l.b16 %v298
    %v1007 = vunpack.c.h.b16 %v298
    %v1008 = vunpack.c.l.b16 %v299
    %v1009 = vunpack.c.h.b16 %v299
    %v1010 = vunpack.c.l.b16 %v300
    %v1011 = vunpack.c.h.b16 %v300
    %v1012 = vunpack.c.l.b16 %v301
    %v1013 = vunpack.c.h.b16 %v301
    %v1014 = vunpack.c.l.b16 %v302
    %v1015 = vunpack.c.h.b16 %v302
    %v1016 = vunpack.c.l.b16 %v303
    %v1017 = vunpack.c.h.b16 %v303
    %v1018 = vunpack.c.l.b16 %v304
    %v1019 = vunpack.c.h.b16 %v304
    %v1020 = vunpack.c.l.b16 %v305
    %v1021 = vunpack.c.h.b16 %v305
    %v1022 = vunpack.c.l.b16 %v306
    %v1023 = vunpack.c.h.b16 %v306
    %v1024 = vunpack.c.l.b16 %v307
    %v1025 = vunpack.c.h.b16 %v307
    %v1026 = vunpack.c.l.b16 %v308
    %v1027 = vunpack.c.h.b16 %v308
    %v1028 = vunpack.c.l.b16 %v309
    %v1029 = vunpack.c.h.b16 %v309
    %v1030 = vunpack.c.l.b16 %v310
    %v1031 = vunpack.c.h.b16 %v310
    %v1032 = vunpack.c.l.b16 %v311
    %v1033 = vunpack.c.h.b16 %v311
    %v1034 = vunpack.c.l.b16 %v312
    %v1035 = vunpack.c.h.b16 %v312
    %v1036 = vunpack.c.l.b16 %v313
    %v1037 = vunpack.c.h.b16 %v313
    %v1038 = vunpack.c.l.b16 %v314
    %v1039 = vunpack.c.h.b16 %v314
    %v1040 = vunpack.c.l.b16 %v315
    %v1041 = vunpack.c.h.b16 %v315
    %v1042 = vunpack.c.l.b16 %v316
    %v1043 = vunpack.c.h.b16 %v316
    %v1044 = vunpack.c.l.b16 %v317
    %v1045 = vunpack.c.h.b16 %v317
    %v1046 = vunpack.c.l.b16 %v318
    %v1047 = vunpack.c.h.b16 %v318
    %v1048 = vunpack.c.l.b16 %v319
    %v1049 = vunpack.c.h.b16 %v319
    %v1050 = vunpack.c.l.b16 %v320
    %v1051 = vunpack.c.h.b16 %v320
    %v1052 = vunpack.c.l.b16 %v321
    %v1053 = vunpack.c.h.b16 %v321
    %v1054 = vunpack.c.l.b16 %v322
    %v1055 = vunpack.c.h.b16 %v322
    %v1056 = vunpack.c.l.b16 %v323
    %v1057 = vunpack.c.h.b16 %v323
    %v1058 = vunpack.c.l.b16 %v324
    %v1059 = vunpack.c.h.b16 %v324
    %v1060 = vunpack.c.l.b16 %v325
    %v1061 = vunpack.c.h.b16 %v325
    %v1062 = vunpack.c.l.b16 %v326
    %v1063 = vunpack.c.h.b16 %v326
    %v1064 = vunpack.c.l.b16 %v327
    %v1065 = vunpack.c.h.b16 %v327
    %v1066 = vunpack.c.l.b16 %v328
    %v1067 = vunpack.c.h.b16 %v328
    %v1068 = vunpack.c.l.b16 %v329
    %v1069 = vunpack.c.h.b16 %v329
    %v1070 = vunpack.c.l.b16 %v330
    %v1071 = vunpack.c.h.b16 %v330
    %v1072 = vunpack.c.l.b16 %v331
    %v1073 = vunpack.c.h.b16 %v331
    %v1074 = vunpack.c.l.b16 %v332
    %v1075 = vunpack.c.h.b16 %v332
    %v1076 = vunpack.c.l.b16 %v333
    %v1077 = vunpack.c.h.b16 %v333
    %v1078 = vunpack.c.l.b16 %v334
    %v1079 = vunpack.c.h.b16 %v334
    %v1080 = vunpack.c.l.b16 %v335
    %v1081 = vunpack.c.h.b16 %v335
    %v1082 = vunpack.c.l.b16 %v336
    %v1083 = vunpack.c.h.b16 %v336
    %v1084 = vunpack.c.l.b16 %v337
    %v1085 = vunpack.c.h.b16 %v337
    %v1086 = vunpack.c.l.b16 %v338
    %v1087 = vunpack.c.h.b16 %v338
    %v1088 = vunpack.c.l.b16 %v339
    %v1089 = vunpack.c.h.b16 %v339
    %v1090 = vunpack.c.l.b16 %v340
    %v1091 = vunpack.c.h.b16 %v340
    %v1092 = vunpack.c.l.b16 %v341
    %v1093 = vunpack.c.h.b16 %v341
    %v1094 = vunpack.c.l.b16 %v342
    %v1095 = vunpack.c.h.b16 %v342
    %v1096 = vunpack.c.l.b16 %v343
    %v1097 = vunpack.c.h.b16 %v343
    %v1098 = vunpack.c.l.b16 %v344
    %v1099 = vunpack.c.h.b16 %v344
    %v1100 = vunpack.c.l.b16 %v345
    %v1101 = vunpack.c.h.b16 %v345
    %v1102 = vunpack.c.l.b16 %v346
    %v1103 = vunpack.c.h.b16 %v346
    %v1104 = vunpack.c.l.b16 %v347
    %v1105 = vunpack.c.h.b16 %v347
    %v1106 = vunpack.c.l.b16 %v348
    %v1107 = vunpack.c.h.b16 %v348
    %v1108 = vunpack.c.l.b16 %v349
    %v1109 = vunpack.c.h.b16 %v349
    %v1110 = vunpack.c.l.b16 %v350
    %v1111 = vunpack.c.h.b16 %v350
    %v1112 = vunpack.c.l.b16 %v351
    %v1113 = vunpack.c.h.b16 %v351
    %v1114 = vunpack.c.l.b16 %v352
    %v1115 = vunpack.c.h.b16 %v352
    %v1116 = vunpack.c.l.b16 %v353
    %v1117 = vunpack.c.h.b16 %v353
    %v1118 = vunpack.c.l.b16 %v354
    %v1119 = vunpack.c.h.b16 %v354
    %v1120 = vunpack.c.l.b16 %v355
    %v1121 = vunpack.c.h.b16 %v355
    %v1122 = vunpack.c.l.b16 %v356
    %v1123 = vunpack.c.h.b16 %v356
    %v1124 = vunpack.c.l.b16 %v357
    %v1125 = vunpack.c.h.b16 %v357
    %v1126 = vunpack.c.l.b16 %v358
    %v1127 = vunpack.c.h.b16 %v358
    %v1128 = vunpack.c.l.b16 %v359
    %v1129 = vunpack.c.h.b16 %v359
    %v1130 = vunpack.c.l.b16 %v360
    %v1131 = vunpack.c.h.b16 %v360
    %v1132 = vunpack.c.l.b16 %v361
    %v1133 = vunpack.c.h.b16 %v361
    %v1134 = vunpack.c.l.b16 %v362
    %v1135 = vunpack.c.h.b16 %v362
    %v1136 = vunpack.c.l.b16 %v363
    %v1137 = vunpack.c.h.b16 %v363
    %v1138 = vunpack.c.l.b16 %v364
    %v1139 = vunpack.c.h.b16 %v364
    %v1140 = vunpack.c.l.b16 %v365
    %v1141 = vunpack.c.h.b16 %v365
    %v1142 = vunpack.c.l.b16 %v366
    %v1143 = vunpack.c.h.b16 %v366
    %v1144 = vunpack.c.l.b16 %v367
    %v1145 = vunpack.c.h.b16 %v367
    %v1146 = vunpack.c.l.b16 %v368
    %v1147 = vunpack.c.h.b16 %v368
    %v1148 = vunpack.c.l.b16 %v369
    %v1149 = vunpack.c.h.b16 %v369
    %v1150 = vunpack.c.l.b16 %v370
    %v1151 = vunpack.c.h.b16 %v370
    %v1152 = vunpack.c.l.b16 %v371
    %v1153 = vunpack.c.h.b16 %v371
    %v1154 = vunpack.c.l.b16 %v372
    %v1155 = vunpack.c.h.b16 %v372
    %v1156 = vunpack.c.l.b16 %v373
    %v1157 = vunpack.c.h.b16 %v373
    %v1158 = vunpack.c.l.b16 %v374
    %v1159 = vunpack.c.h.b16 %v374
    %v1160 = vpack.c.b16 %v698, %v676
    %v1161 = vpack.c.b16 %v699, %v677
    %v1162 = vpack.c.b16 %v700, %v678
    %v1163 = vpack.c.b16 %v701, %v679
    %v1164 = vpack.c.b16 %v702, %v680
    %v1165 = vpack.c.b16 %v703, %v681
    %v1166 = vpack.c.b16 %v704, %v682
    %v1167 = vpack.c.b16 %v705, %v683
    %v1168 = vpack.c.b16 %v706, %v684
    %v1169 = vpack.c.b16 %v707, %v685
    %v1170 = vpack.c.b16 %v708, %v686
    %v1171 = vpack.c.b16 %v709, %v687
    %v1172 = vpack.c.b16 %v710, %v688
    %v1173 = vpack.c.b16 %v711, %v689
    %v1174 = vpack.c.b16 %v712, %v690
    %v1175 = vpack.c.b16 %v713, %v691
    %v1176 = vpack.c.b16 %v714, %v692
    %v1177 = vpack.c.b16 %v715, %v693
    %v1178 = vpack.c.b16 %v716, %v694
    %v1179 = vpack.c.b16 %v717, %v695
    %v1180 = vpack.c.b16 %v718, %v696
    %v1181 = vpack.c.b16 %v719, %v697
    %v1182 = vpack.c.b16 %v742, %v720
    %v1183 = vpack.c.b16 %v743, %v721
    %v1184 = vpack.c.b16 %v744, %v722
    %v1185 = vpack.c.b16 %v745, %v723
    %v1186 = vpack.c.b16 %v746, %v724
    %v1187 = vpack.c.b16 %v747, %v725
    %v1188 = vpack.c.b16 %v748, %v726
    %v1189 = vpack.c.b16 %v749, %v727
    %v1190 = vpack.c.b16 %v750, %v728
    %v1191 = vpack.c.b16 %v751, %v729
    %v1192 = vpack.c.b16 %v752, %v730
    %v1193 = vpack.c.b16 %v753, %v731
    %v1194 = vpack.c.b16 %v754, %v732
    %v1195 = vpack.c.b16 %v755, %v733
    %v1196 = vpack.c.b16 %v756, %v734
    %v1197 = vpack.c.b16 %v757, %v735
    %v1198 = vpack.c.b16 %v758, %v736
    %v1199 = vpack.c.b16 %v759, %v737
    %v1200 = vpack.c.b16 %v760, %v738
    %v1201 = vpack.c.b16 %v761, %v739
    %v1202 = vpack.c.b16 %v762, %v740
    %v1203 = vpack.c.b16 %v763, %v741
    %v1204 = vpack.c.b16 %v786, %v764
    %v1205 = vpack.c.b16 %v787, %v765
    %v1206 = vpack.c.b16 %v788, %v766
    %v1207 = vpack.c.b16 %v789, %v767
    %v1208 = vpack.c.b16 %v790, %v768
    %v1209 = vpack.c.b16 %v791, %v769
    %v1210 = vpack.c.b16 %v792, %v770
    %v1211 = vpack.c.b16 %v793, %v771
    %v1212 = vpack.c.b16 %v794, %v772
    %v1213 = vpack.c.b16 %v795, %v773
    %v1214 = vpack.c.b16 %v796, %v774
    %v1215 = vpack.c.b16 %v797, %v775
    %v1216 = vpack.c.b16 %v798, %v776
    %v1217 = vpack.c.b16 %v799, %v777
    %v1218 = vpack.c.b16 %v800, %v778
    %v1219 = vpack.c.b16 %v801, %v779
    %v1220 = vpack.c.b16 %v802, %v780
    %v1221 = vpack.c.b16 %v803, %v781
    %v1222 = vpack.c.b16 %v804, %v782
    %v1223 = vpack.c.b16 %v805, %v783
    %v1224 = vpack.c.b16 %v806, %v784
    %v1225 = vpack.c.b16 %v807, %v785
    %v1226 = vpack.c.b16 %v830, %v808
    %v1227 = vpack.c.b16 %v831, %v809
    %v1228 = vpack.c.b16 %v832, %v810
    %v1229 = vpack.c.b16 %v833, %v811
    %v1230 = vpack.c.b16 %v834, %v812
    %v1231 = vpack.c.b16 %v835, %v813
    %v1232 = vpack.c.b16 %v836, %v814
    %v1233 = vpack.c.b16 %v837, %v815
    %v1234 = vpack.c.b16 %v838, %v816
    %v1235 = vpack.c.b16 %v839, %v817
    %v1236 = vpack.c.b16 %v840, %v818
    %v1237 = vpack.c.b16 %v841, %v819
    %v1238 = vpack.c.b16 %v842, %v820
    %v1239 = vpack.c.b16 %v843, %v821
    %v1240 = vpack.c.b16 %v844, %v822
    %v1241 = vpack.c.b16 %v845, %v823
    %v1242 = vpack.c.b16 %v846, %v824
    %v1243 = vpack.c.b16 %v847, %v825
    %v1244 = vpack.c.b16 %v848, %v826
    %v1245 = vpack.c.b16 %v849, %v827
    %v1246 = vpack.c.b16 %v850, %v828
    %v1247 = vpack.c.b16 %v851, %v829
    %v1248 = vpack.c.b16 %v874, %v852
    %v1249 = vpack.c.b16 %v875, %v853
    %v1250 = vpack.c.b16 %v876, %v854
    %v1251 = vpack.c.b16 %v877, %v855
    %v1252 = vpack.c.b16 %v878, %v856
    %v1253 = vpack.c.b16 %v879, %v857
    %v1254 = vpack.c.b16 %v880, %v858
    %v1255 = vpack.c.b16 %v881, %v859
    %v1256 = vpack.c.b16 %v882, %v860
    %v1257 = vpack.c.b16 %v883, %v861
    %v1258 = vpack.c.b16 %v884, %v862
    %v1259 = vpack.c.b16 %v885, %v863
    %v1260 = vpack.c.b16 %v886, %v864
    %v1261 = vpack.c.b16 %v887, %v865
    %v1262 = vpack.c.b16 %v888, %v866
    %v1263 = vpack.c.b16 %v889, %v867
    %v1264 = vpack.c.b16 %v890, %v868
    %v1265 = vpack.c.b16 %v891, %v869
    %v1266 = vpack.c.b16 %v892, %v870
    %v1267 = vpack.c.b16 %v893, %v871
    %v1268 = vpack.c.b16 %v894, %v872
    %v1269 = vpack.c.b16 %v895, %v873
    %v1270 = vpack.c.b16 %v918, %v896
    %v1271 = vpack.c.b16 %v919, %v897
    %v1272 = vpack.c.b16 %v920, %v898
    %v1273 = vpack.c.b16 %v921, %v899
    %v1274 = vpack.c.b16 %v922, %v900
    %v1275 = vpack.c.b16 %v923, %v901
    %v1276 = vpack.c.b16 %v924, %v902
    %v1277 = vpack.c.b16 %v925, %v903
    %v1278 = vpack.c.b16 %v926, %v904
    %v1279 = vpack.c.b16 %v927, %v905
    %v1280 = vpack.c.b16 %v928, %v906
    %v1281 = vpack.c.b16 %v929, %v907
    %v1282 = vpack.c.b16 %v930, %v908
    %v1283 = vpack.c.b16 %v931, %v909
    %v1284 = vpack.c.b16 %v932, %v910
    %v1285 = vpack.c.b16 %v933, %v911
    %v1286 = vpack.c.b16 %v934, %v912
    %v1287 = vpack.c.b16 %v935, %v913
    %v1288 = vpack.c.b16 %v936, %v914
    %v1289 = vpack.c.b16 %v937, %v915
    %v1290 = vpack.c.b16 %v938, %v916
    %v1291 = vpack.c.b16 %v939, %v917
    %v1292 = vpack.c.b16 %v962, %v940
    %v1293 = vpack.c.b16 %v963, %v941
    %v1294 = vpack.c.b16 %v964, %v942
    %v1295 = vpack.c.b16 %v965, %v943
    %v1296 = vpack.c.b16 %v966, %v944
    %v1297 = vpack.c.b16 %v967, %v945
    %v1298 = vpack.c.b16 %v968, %v946
    %v1299 = vpack.c.b16 %v969, %v947
    %v1300 = vpack.c.b16 %v970, %v948
    %v1301 = vpack.c.b16 %v971, %v949
    %v1302 = vpack.c.b16 %v972, %v950
    %v1303 = vpack.c.b16 %v973, %v951
    %v1304 = vpack.c.b16 %v974, %v952
    %v1305 = vpack.c.b16 %v975, %v953
    %v1306 = vpack.c.b16 %v976, %v954
    %v1307 = vpack.c.b16 %v977, %v955
    %v1308 = vpack.c.b16 %v978, %v956
    %v1309 = vpack.c.b16 %v979, %v957
    %v1310 = vpack.c.b16 %v980, %v958
    %v1311 = vpack.c.b16 %v981, %v959
    %v1312 = vpack.c.b16 %v982, %v960
    %v1313 = vpack.c.b16 %v983, %v961
    %v1314 = vpack.c.b16 %v1006, %v984
    %v1315 = vpack.c.b16 %v1007, %v985
    %v1316 = vpack.c.b16 %v1008, %v986
    %v1317 = vpack.c.b16 %v1009, %v987
    %v1318 = vpack.c.b16 %v1010, %v988
    %v1319 = vpack.c.b16 %v1011, %v989
    %v1320 = vpack.c.b16 %v1012, %v990
    %v1321 = vpack.c.b16 %v1013, %v991
    %v1322 = vpack.c.b16 %v1014, %v992
    %v1323 = vpack.c.b16 %v1015, %v993
    %v1324 = vpack.c.b16 %v1016, %v994
    %v1325 = vpack.c.b16 %v1017, %v995
    %v1326 = vpack.c.b16 %v1018, %v996
    %v1327 = vpack.c.b16 %v1019, %v997
    %v1328 = vpack.c.b16 %v1020, %v998
    %v1329 = vpack.c.b16 %v1021, %v999
    %v1330 = vpack.c.b16 %v1022, %v1000
    %v1331 = vpack.c.b16 %v1023, %v1001
    %v1332 = vpack.c.b16 %v1024, %v1002
    %v1333 = vpack.c.b16 %v1025, %v1003
    %v1334 = vpack.c.b16 %v1026, %v1004
    %v1335 = vpack.c.b16 %v1027, %v1005
    %v1336 = vpack.c.b16 %v1050, %v1028
    %v1337 = vpack.c.b16 %v1051, %v1029
    %v1338 = vpack.c.b16 %v1052, %v1030
    %v1339 = vpack.c.b16 %v1053, %v1031
    %v1340 = vpack.c.b16 %v1054, %v1032
    %v1341 = vpack.c.b16 %v1055, %v1033
    %v1342 = vpack.c.b16 %v1056, %v1034
    %v1343 = vpack.c.b16 %v1057, %v1035
    %v1344 = vpack.c.b16 %v1058, %v1036
    %v1345 = vpack.c.b16 %v1059, %v1037
    %v1346 = vpack.c.b16 %v1060, %v1038
    %v1347 = vpack.c.b16 %v1061, %v1039
    %v1348 = vpack.c.b16 %v1062, %v1040
    %v1349 = vpack.c.b16 %v1063, %v1041
    %v1350 = vpack.c.b16 %v1064, %v1042
    %v1351 = vpack.c.b16 %v1065, %v1043
    %v1352 = vpack.c.b16 %v1066, %v1044
    %v1353 = vpack.c.b16 %v1067, %v1045
    %v1354 = vpack.c.b16 %v1068, %v1046
    %v1355 = vpack.c.b16 %v1069, %v1047
    %v1356 = vpack.c.b16 %v1070, %v1048
    %v1357 = vpack.c.b16 %v1071, %v1049
    %v1358 = vpack.c.b16 %v1094, %v1072
    %v1359 = vpack.c.b16 %v1095, %v1073
    %v1360 = vpack.c.b16 %v1096, %v1074
    %v1361 = vpack.c.b16 %v1097, %v1075
    %v1362 = vpack.c.b16 %v1098, %v1076
    %v1363 = vpack.c.b16 %v1099, %v1077
    %v1364 = vpack.c.b16 %v1100, %v1078
    %v1365 = vpack.c.b16 %v1101, %v1079
    %v1366 = vpack.c.b16 %v1102, %v1080
    %v1367 = vpack.c.b16 %v1103, %v1081
    %v1368 = vpack.c.b16 %v1104, %v1082
    %v1369 = vpack.c.b16 %v1105, %v1083
    %v1370 = vpack.c.b16 %v1106, %v1084
    %v1371 = vpack.c.b16 %v1107, %v1085
    %v1372 = vpack.c.b16 %v1108, %v1086
    %v1373 = vpack.c.b16 %v1109, %v1087
    %v1374 = vpack.c.b16 %v1110, %v1088
    %v1375 = vpack.c.b16 %v1111, %v1089
    %v1376 = vpack.c.b16 %v1112, %v1090
    %v1377 = vpack.c.b16 %v1113, %v1091
    %v1378 = vpack.c.b16 %v1114, %v1092
    %v1379 = vpack.c.b16 %v1115, %v1093
    %v1380 = vpack.c.b16 %v1138, %v1116
    %v1381 = vpack.c.b16 %v1139, %v1117
    %v1382 = vpack.c.b16 %v1140, %v1118
    %v1383 = vpack.c.b16 %v1141, %v1119
    %v1384 = vpack.c.b16 %v1142, %v1120
    %v1385 = vpack.c.b16 %v1143, %v1121
    %v1386 = vpack.c.b16 %v1144, %v1122
    %v1387 = vpack.c.b16 %v1145, %v1123
    %v1388 = vpack.c.b16 %v1146, %v1124
    %v1389 = vpack.c.b16 %v1147, %v1125
    %v1390 = vpack.c.b16 %v1148, %v1126
    %v1391 = vpack.c.b16 %v1149, %v1127
    %v1392 = vpack.c.b16 %v1150, %v1128
    %v1393 = vpack.c.b16 %v1151, %v1129
    %v1394 = vpack.c.b16 %v1152, %v1130
    %v1395 = vpack.c.b16 %v1153, %v1131
    %v1396 = vpack.c.b16 %v1154, %v1132
    %v1397 = vpack.c.b16 %v1155, %v1133
    %v1398 = vpack.c.b16 %v1156, %v1134
    %v1399 = vpack.c.b16 %v1157, %v1135
    %v1400 = vpack.c.b16 %v1158, %v1136
    %v1401 = vpack.c.b16 %v1159, %v1137
    %vm1622 = vcmask 359424
    %v1624 = vsel %vm1622, %v432, 0
    %vm1626 = vcmask 1045504
    %v1628 = vsel %vm1626, %v1380, 0
    %v1631 = vsel %vm1626, %v1381, 0
    %v1634 = vsel %vm1626, %v1382, 0
    %v1637 = vsel %vm1626, %v1383, 0
    %v1640 = vsel %vm1626, %v1384, 0
    %v1643 = vsel %vm1626, %v1385, 0
    %v1646 = vsel %vm1626, %v1386, 0
    %v1649 = vsel %vm1626, %v1387, 0
    %v1652 = vsel %vm1626, %v1388, 0
    %v1655 = vsel %vm1626, %v1389, 0
    %v1658 = vsel %vm1626, %v1390, 0
    %v1661 = vsel %vm1626, %v1391, 0
    %v1664 = vsel %vm1626, %v1392, 0
    %v1667 = vsel %vm1626, %v1393, 0
    %v1670 = vsel %vm1626, %v1394, 0
    %v1673 = vsel %vm1626, %v1395, 0
    %v1676 = vsel %vm1626, %v1396, 0
    %v1679 = vsel %vm1626, %v1397, 0
    %v1682 = vsel %vm1626, %v1398, 0
    %v1685 = vsel %vm1626, %v1399, 0
    %v1688 = vsel %vm1626, %v1400, 0
    %v1691 = vsel %vm1626, %v1401, 0
    %1693 = vmatpush.bf16.msra.mxu0 %v1314
    %1694 = vmatpush.bf16.msra.mxu0 %v1292
    %1695 = vmatpush.bf16.msra.mxu0 %v1270
    %1696 = vmatpush.bf16.msra.mxu0 %v1248
    %1697 = vmatpush.bf16.msra.mxu0 %v1226
    %1698 = vmatpush.bf16.msra.mxu0 %v1204
    %1699 = vmatpush.bf16.msra.mxu0 %v1182
    %1700 = vmatpush.bf16.msra.mxu0 %v1160
    %1701 = vmatmul.bf16.gmra.mxu0 %v431
    %v1702 = vpop.f32.mrf.mxu0
    %v1703 = vadd.f32 %v381, %v1702
    %v1704 = vpop.f32.mrf.mxu0
    %v1705 = vadd.f32 %v381, %v1704
    %1706 = vdwg.mxu0
    %1707 = vmatpush.bf16.msra.mxu0 0
    %1708 = vmatpush.bf16.msra.mxu0 0
    %1709 = vmatpush.bf16.msra.mxu0 0
    %1710 = vmatpush.bf16.msra.mxu0 0
    %1711 = vmatpush.bf16.msra.mxu0 0
    %1712 = vmatpush.bf16.msra.mxu0 %v1628
    %1713 = vmatpush.bf16.msra.mxu0 %v1358
    %1714 = vmatpush.bf16.msra.mxu0 %v1336
    %1715 = vmatmul.bf16.gmra.mxu0 %v1624
    %v1716 = vpop.f32.mrf.mxu0
    %v1717 = vadd.f32 %v1703, %v1716
    %v1718 = vpop.f32.mrf.mxu0
    %v1719 = vadd.f32 %v1705, %v1718
    %1720 = vdwg.mxu0
    %1721 = vmatpush.bf16.msra.mxu0 %v1315
    %1722 = vmatpush.bf16.msra.mxu0 %v1293
    %1723 = vmatpush.bf16.msra.mxu0 %v1271
    %1724 = vmatpush.bf16.msra.mxu0 %v1249
    %1725 = vmatpush.bf16.msra.mxu0 %v1227
    %1726 = vmatpush.bf16.msra.mxu0 %v1205
    %1727 = vmatpush.bf16.msra.mxu0 %v1183
    %1728 = vmatpush.bf16.msra.mxu0 %v1161
    %1729 = vmatmul.bf16.gmra.mxu0 %v431
    %v1730 = vpop.f32.mrf.mxu0
    %v1731 = vadd.f32 %v382, %v1730
    %v1732 = vpop.f32.mrf.mxu0
    %v1733 = vadd.f32 %v382, %v1732
    %1734 = vdwg.mxu0
    %1735 = vmatpush.bf16.msra.mxu0 0
    %1736 = vmatpush.bf16.msra.mxu0 0
    %1737 = vmatpush.bf16.msra.mxu0 0
    %1738 = vmatpush.bf16.msra.mxu0 0
    %1739 = vmatpush.bf16.msra.mxu0 0
    %1740 = vmatpush.bf16.msra.mxu0 %v1631
    %1741 = vmatpush.bf16.msra.mxu0 %v1359
    %1742 = vmatpush.bf16.msra.mxu0 %v1337
    %1743 = vmatmul.bf16.gmra.mxu0 %v1624
    %v1744 = vpop.f32.mrf.mxu0
    %v1745 = vadd.f32 %v1731, %v1744
    %v1746 = vpop.f32.mrf.mxu0
    %v1747 = vadd.f32 %v1733, %v1746
    %1748 = vdwg.mxu0
    %1749 = vmatpush.bf16.msra.mxu0 %v1316
    %1750 = vmatpush.bf16.msra.mxu0 %v1294
    %1751 = vmatpush.bf16.msra.mxu0 %v1272
    %1752 = vmatpush.bf16.msra.mxu0 %v1250
    %1753 = vmatpush.bf16.msra.mxu0 %v1228
    %1754 = vmatpush.bf16.msra.mxu0 %v1206
    %1755 = vmatpush.bf16.msra.mxu0 %v1184
    %1756 = vmatpush.bf16.msra.mxu0 %v1162
    %1757 = vmatmul.bf16.gmra.mxu0 %v431
    %v1758 = vpop.f32.mrf.mxu0
    %v1759 = vadd.f32 %v383, %v1758
    %v1760 = vpop.f32.mrf.mxu0
    %v1761 = vadd.f32 %v383, %v1760
    %1762 = vdwg.mxu0
    %1763 = vmatpush.bf16.msra.mxu0 0
    %1764 = vmatpush.bf16.msra.mxu0 0
    %1765 = vmatpush.bf16.msra.mxu0 0
    %1766 = vmatpush.bf16.msra.mxu0 0
    %1767 = vmatpush.bf16.msra.mxu0 0
    %1768 = vmatpush.bf16.msra.mxu0 %v1634
    %1769 = vmatpush.bf16.msra.mxu0 %v1360
    %1770 = vmatpush.bf16.msra.mxu0 %v1338
    %1771 = vmatmul.bf16.gmra.mxu0 %v1624
    %v1772 = vpop.f32.mrf.mxu0
    %v1773 = vadd.f32 %v1759, %v1772
    %v1774 = vpop.f32.mrf.mxu0
    %v1775 = vadd.f32 %v1761, %v1774
    %1776 = vdwg.mxu0
    %1777 = vmatpush.bf16.msra.mxu0 %v1317
    %1778 = vmatpush.bf16.msra.mxu0 %v1295
    %1779 = vmatpush.bf16.msra.mxu0 %v1273
    %1780 = vmatpush.bf16.msra.mxu0 %v1251
    %1781 = vmatpush.bf16.msra.mxu0 %v1229
    %1782 = vmatpush.bf16.msra.mxu0 %v1207
    %1783 = vmatpush.bf16.msra.mxu0 %v1185
    %1784 = vmatpush.bf16.msra.mxu0 %v1163
    %1785 = vmatmul.bf16.gmra.mxu0 %v431
    %v1786 = vpop.f32.mrf.mxu0
    %v1787 = vadd.f32 %v384, %v1786
    %v1788 = vpop.f32.mrf.mxu0
    %v1789 = vadd.f32 %v384, %v1788
    %1790 = vdwg.mxu0
    %1791 = vmatpush.bf16.msra.mxu0 0
    %1792 = vmatpush.bf16.msra.mxu0 0
    %1793 = vmatpush.bf16.msra.mxu0 0
    %1794 = vmatpush.bf16.msra.mxu0 0
    %1795 = vmatpush.bf16.msra.mxu0 0
    %1796 = vmatpush.bf16.msra.mxu0 %v1637
    %1797 = vmatpush.bf16.msra.mxu0 %v1361
    %1798 = vmatpush.bf16.msra.mxu0 %v1339
    %1799 = vmatmul.bf16.gmra.mxu0 %v1624
    %v1800 = vpop.f32.mrf.mxu0
    %v1801 = vadd.f32 %v1787, %v1800
    %v1802 = vpop.f32.mrf.mxu0
    %v1803 = vadd.f32 %v1789, %v1802
    %1804 = vdwg.mxu0
    %1805 = vmatpush.bf16.msra.mxu0 %v1318
    %1806 = vmatpush.bf16.msra.mxu0 %v1296
    %1807 = vmatpush.bf16.msra.mxu0 %v1274
    %1808 = vmatpush.bf16.msra.mxu0 %v1252
    %1809 = vmatpush.bf16.msra.mxu0 %v1230
    %1810 = vmatpush.bf16.msra.mxu0 %v1208
    %1811 = vmatpush.bf16.msra.mxu0 %v1186
    %1812 = vmatpush.bf16.msra.mxu0 %v1164
    %1813 = vmatmul.bf16.gmra.mxu0 %v431
    %v1814 = vpop.f32.mrf.mxu0
    %v1815 = vadd.f32 %v385, %v1814
    %v1816 = vpop.f32.mrf.mxu0
    %v1817 = vadd.f32 %v385, %v1816
    %1818 = vdwg.mxu0
    %1819 = vmatpush.bf16.msra.mxu0 0
    %1820 = vmatpush.bf16.msra.mxu0 0
    %1821 = vmatpush.bf16.msra.mxu0 0
    %1822 = vmatpush.bf16.msra.mxu0 0
    %1823 = vmatpush.bf16.msra.mxu0 0
    %1824 = vmatpush.bf16.msra.mxu0 %v1640
    %1825 = vmatpush.bf16.msra.mxu0 %v1362
    %1826 = vmatpush.bf16.msra.mxu0 %v1340
    %1827 = vmatmul.bf16.gmra.mxu0 %v1624
    %v1828 = vpop.f32.mrf.mxu0
    %v1829 = vadd.f32 %v1815, %v1828
    %v1830 = vpop.f32.mrf.mxu0
    %v1831 = vadd.f32 %v1817, %v1830
    %1832 = vdwg.mxu0
    %1833 = vmatpush.bf16.msra.mxu0 %v1319
    %1834 = vmatpush.bf16.msra.mxu0 %v1297
    %1835 = vmatpush.bf16.msra.mxu0 %v1275
    %1836 = vmatpush.bf16.msra.mxu0 %v1253
    %1837 = vmatpush.bf16.msra.mxu0 %v1231
    %1838 = vmatpush.bf16.msra.mxu0 %v1209
    %1839 = vmatpush.bf16.msra.mxu0 %v1187
    %1840 = vmatpush.bf16.msra.mxu0 %v1165
    %1841 = vmatmul.bf16.gmra.mxu0 %v431
    %v1842 = vpop.f32.mrf.mxu0
    %v1843 = vadd.f32 %v386, %v1842
    %v1844 = vpop.f32.mrf.mxu0
    %v1845 = vadd.f32 %v386, %v1844
    %1846 = vdwg.mxu0
    %1847 = vmatpush.bf16.msra.mxu0 0
    %1848 = vmatpush.bf16.msra.mxu0 0
    %1849 = vmatpush.bf16.msra.mxu0 0
    %1850 = vmatpush.bf16.msra.mxu0 0
    %1851 = vmatpush.bf16.msra.mxu0 0
    %1852 = vmatpush.bf16.msra.mxu0 %v1643
    %1853 = vmatpush.bf16.msra.mxu0 %v1363
    %1854 = vmatpush.bf16.msra.mxu0 %v1341
    %1855 = vmatmul.bf16.gmra.mxu0 %v1624
    %v1856 = vpop.f32.mrf.mxu0
    %v1857 = vadd.f32 %v1843, %v1856
    %v1858 = vpop.f32.mrf.mxu0
    %v1859 = vadd.f32 %v1845, %v1858
    %1860 = vdwg.mxu0
    %1861 = vmatpush.bf16.msra.mxu0 %v1320
    %1862 = vmatpush.bf16.msra.mxu0 %v1298
    %1863 = vmatpush.bf16.msra.mxu0 %v1276
    %1864 = vmatpush.bf16.msra.mxu0 %v1254
    %1865 = vmatpush.bf16.msra.mxu0 %v1232
    %1866 = vmatpush.bf16.msra.mxu0 %v1210
    %1867 = vmatpush.bf16.msra.mxu0 %v1188
    %1868 = vmatpush.bf16.msra.mxu0 %v1166
    %1869 = vmatmul.bf16.gmra.mxu0 %v431
    %v1870 = vpop.f32.mrf.mxu0
    %v1871 = vadd.f32 %v387, %v1870
    %v1872 = vpop.f32.mrf.mxu0
    %v1873 = vadd.f32 %v387, %v1872
    %1874 = vdwg.mxu0
    %1875 = vmatpush.bf16.msra.mxu0 0
    %1876 = vmatpush.bf16.msra.mxu0 0
    %1877 = vmatpush.bf16.msra.mxu0 0
    %1878 = vmatpush.bf16.msra.mxu0 0
    %1879 = vmatpush.bf16.msra.mxu0 0
    %1880 = vmatpush.bf16.msra.mxu0 %v1646
    %1881 = vmatpush.bf16.msra.mxu0 %v1364
    %1882 = vmatpush.bf16.msra.mxu0 %v1342
    %1883 = vmatmul.bf16.gmra.mxu0 %v1624
    %v1884 = vpop.f32.mrf.mxu0
    %v1885 = vadd.f32 %v1871, %v1884
    %v1886 = vpop.f32.mrf.mxu0
    %v1887 = vadd.f32 %v1873, %v1886
    %1888 = vdwg.mxu0
    %1889 = vmatpush.bf16.msra.mxu0 %v1321
    %1890 = vmatpush.bf16.msra.mxu0 %v1299
    %1891 = vmatpush.bf16.msra.mxu0 %v1277
    %1892 = vmatpush.bf16.msra.mxu0 %v1255
    %1893 = vmatpush.bf16.msra.mxu0 %v1233
    %1894 = vmatpush.bf16.msra.mxu0 %v1211
    %1895 = vmatpush.bf16.msra.mxu0 %v1189
    %1896 = vmatpush.bf16.msra.mxu0 %v1167
    %1897 = vmatmul.bf16.gmra.mxu0 %v431
    %v1898 = vpop.f32.mrf.mxu0
    %v1899 = vadd.f32 %v388, %v1898
    %v1900 = vpop.f32.mrf.mxu0
    %v1901 = vadd.f32 %v388, %v1900
    %1902 = vdwg.mxu0
    %1903 = vmatpush.bf16.msra.mxu0 0
    %1904 = vmatpush.bf16.msra.mxu0 0
    %1905 = vmatpush.bf16.msra.mxu0 0
    %1906 = vmatpush.bf16.msra.mxu0 0
    %1907 = vmatpush.bf16.msra.mxu0 0
    %1908 = vmatpush.bf16.msra.mxu0 %v1649
    %1909 = vmatpush.bf16.msra.mxu0 %v1365
    %1910 = vmatpush.bf16.msra.mxu0 %v1343
    %1911 = vmatmul.bf16.gmra.mxu0 %v1624
    %v1912 = vpop.f32.mrf.mxu0
    %v1913 = vadd.f32 %v1899, %v1912
    %v1914 = vpop.f32.mrf.mxu0
    %v1915 = vadd.f32 %v1901, %v1914
    %1916 = vdwg.mxu0
    %1917 = vmatpush.bf16.msra.mxu0 %v1322
    %1918 = vmatpush.bf16.msra.mxu0 %v1300
    %1919 = vmatpush.bf16.msra.mxu0 %v1278
    %1920 = vmatpush.bf16.msra.mxu0 %v1256
    %1921 = vmatpush.bf16.msra.mxu0 %v1234
    %1922 = vmatpush.bf16.msra.mxu0 %v1212
    %1923 = vmatpush.bf16.msra.mxu0 %v1190
    %1924 = vmatpush.bf16.msra.mxu0 %v1168
    %1925 = vmatmul.bf16.gmra.mxu0 %v431
    %v1926 = vpop.f32.mrf.mxu0
    %v1927 = vadd.f32 %v389, %v1926
    %v1928 = vpop.f32.mrf.mxu0
    %v1929 = vadd.f32 %v389, %v1928
    %1930 = vdwg.mxu0
    %1931 = vmatpush.bf16.msra.mxu0 0
    %1932 = vmatpush.bf16.msra.mxu0 0
    %1933 = vmatpush.bf16.msra.mxu0 0
    %1934 = vmatpush.bf16.msra.mxu0 0
    %1935 = vmatpush.bf16.msra.mxu0 0
    %1936 = vmatpush.bf16.msra.mxu0 %v1652
    %1937 = vmatpush.bf16.msra.mxu0 %v1366
    %1938 = vmatpush.bf16.msra.mxu0 %v1344
    %1939 = vmatmul.bf16.gmra.mxu0 %v1624
    %v1940 = vpop.f32.mrf.mxu0
    %v1941 = vadd.f32 %v1927, %v1940
    %v1942 = vpop.f32.mrf.mxu0
    %v1943 = vadd.f32 %v1929, %v1942
    %1944 = vdwg.mxu0
    %1945 = vmatpush.bf16.msra.mxu0 %v1323
    %1946 = vmatpush.bf16.msra.mxu0 %v1301
    %1947 = vmatpush.bf16.msra.mxu0 %v1279
    %1948 = vmatpush.bf16.msra.mxu0 %v1257
    %1949 = vmatpush.bf16.msra.mxu0 %v1235
    %1950 = vmatpush.bf16.msra.mxu0 %v1213
    %1951 = vmatpush.bf16.msra.mxu0 %v1191
    %1952 = vmatpush.bf16.msra.mxu0 %v1169
    %1953 = vmatmul.bf16.gmra.mxu0 %v431
    %v1954 = vpop.f32.mrf.mxu0
    %v1955 = vadd.f32 %v390, %v1954
    %v1956 = vpop.f32.mrf.mxu0
    %v1957 = vadd.f32 %v390, %v1956
    %1958 = vdwg.mxu0
    %1959 = vmatpush.bf16.msra.mxu0 0
    %1960 = vmatpush.bf16.msra.mxu0 0
    %1961 = vmatpush.bf16.msra.mxu0 0
    %1962 = vmatpush.bf16.msra.mxu0 0
    %1963 = vmatpush.bf16.msra.mxu0 0
    %1964 = vmatpush.bf16.msra.mxu0 %v1655
    %1965 = vmatpush.bf16.msra.mxu0 %v1367
    %1966 = vmatpush.bf16.msra.mxu0 %v1345
    %1967 = vmatmul.bf16.gmra.mxu0 %v1624
    %v1968 = vpop.f32.mrf.mxu0
    %v1969 = vadd.f32 %v1955, %v1968
    %v1970 = vpop.f32.mrf.mxu0
    %v1971 = vadd.f32 %v1957, %v1970
    %1972 = vdwg.mxu0
    %1973 = vmatpush.bf16.msra.mxu0 %v1324
    %1974 = vmatpush.bf16.msra.mxu0 %v1302
    %1975 = vmatpush.bf16.msra.mxu0 %v1280
    %1976 = vmatpush.bf16.msra.mxu0 %v1258
    %1977 = vmatpush.bf16.msra.mxu0 %v1236
    %1978 = vmatpush.bf16.msra.mxu0 %v1214
    %1979 = vmatpush.bf16.msra.mxu0 %v1192
    %1980 = vmatpush.bf16.msra.mxu0 %v1170
    %1981 = vmatmul.bf16.gmra.mxu0 %v431
    %v1982 = vpop.f32.mrf.mxu0
    %v1983 = vadd.f32 %v391, %v1982
    %v1984 = vpop.f32.mrf.mxu0
    %v1985 = vadd.f32 %v391, %v1984
    %1986 = vdwg.mxu0
    %1987 = vmatpush.bf16.msra.mxu0 0
    %1988 = vmatpush.bf16.msra.mxu0 0
    %1989 = vmatpush.bf16.msra.mxu0 0
    %1990 = vmatpush.bf16.msra.mxu0 0
    %1991 = vmatpush.bf16.msra.mxu0 0
    %1992 = vmatpush.bf16.msra.mxu0 %v1658
    %1993 = vmatpush.bf16.msra.mxu0 %v1368
    %1994 = vmatpush.bf16.msra.mxu0 %v1346
    %1995 = vmatmul.bf16.gmra.mxu0 %v1624
    %v1996 = vpop.f32.mrf.mxu0
    %v1997 = vadd.f32 %v1983, %v1996
    %v1998 = vpop.f32.mrf.mxu0
    %v1999 = vadd.f32 %v1985, %v1998
    %2000 = vdwg.mxu0
    %2001 = vmatpush.bf16.msra.mxu0 %v1325
    %2002 = vmatpush.bf16.msra.mxu0 %v1303
    %2003 = vmatpush.bf16.msra.mxu0 %v1281
    %2004 = vmatpush.bf16.msra.mxu0 %v1259
    %2005 = vmatpush.bf16.msra.mxu0 %v1237
    %2006 = vmatpush.bf16.msra.mxu0 %v1215
    %2007 = vmatpush.bf16.msra.mxu0 %v1193
    %2008 = vmatpush.bf16.msra.mxu0 %v1171
    %2009 = vmatmul.bf16.gmra.mxu0 %v431
    %v2010 = vpop.f32.mrf.mxu0
    %v2011 = vadd.f32 %v392, %v2010
    %v2012 = vpop.f32.mrf.mxu0
    %v2013 = vadd.f32 %v392, %v2012
    %2014 = vdwg.mxu0
    %2015 = vmatpush.bf16.msra.mxu0 0
    %2016 = vmatpush.bf16.msra.mxu0 0
    %2017 = vmatpush.bf16.msra.mxu0 0
    %2018 = vmatpush.bf16.msra.mxu0 0
    %2019 = vmatpush.bf16.msra.mxu0 0
    %2020 = vmatpush.bf16.msra.mxu0 %v1661
    %2021 = vmatpush.bf16.msra.mxu0 %v1369
    %2022 = vmatpush.bf16.msra.mxu0 %v1347
    %2023 = vmatmul.bf16.gmra.mxu0 %v1624
    %v2024 = vpop.f32.mrf.mxu0
    %v2025 = vadd.f32 %v2011, %v2024
    %v2026 = vpop.f32.mrf.mxu0
    %v2027 = vadd.f32 %v2013, %v2026
    %2028 = vdwg.mxu0
    %2029 = vmatpush.bf16.msra.mxu0 %v1326
    %2030 = vmatpush.bf16.msra.mxu0 %v1304
    %2031 = vmatpush.bf16.msra.mxu0 %v1282
    %2032 = vmatpush.bf16.msra.mxu0 %v1260
    %2033 = vmatpush.bf16.msra.mxu0 %v1238
    %2034 = vmatpush.bf16.msra.mxu0 %v1216
    %2035 = vmatpush.bf16.msra.mxu0 %v1194
    %2036 = vmatpush.bf16.msra.mxu0 %v1172
    %2037 = vmatmul.bf16.gmra.mxu0 %v431
    %v2038 = vpop.f32.mrf.mxu0
    %v2039 = vadd.f32 %v393, %v2038
    %v2040 = vpop.f32.mrf.mxu0
    %v2041 = vadd.f32 %v393, %v2040
    %2042 = vdwg.mxu0
    %2043 = vmatpush.bf16.msra.mxu0 0
    %2044 = vmatpush.bf16.msra.mxu0 0
    %2045 = vmatpush.bf16.msra.mxu0 0
    %2046 = vmatpush.bf16.msra.mxu0 0
    %2047 = vmatpush.bf16.msra.mxu0 0
    %2048 = vmatpush.bf16.msra.mxu0 %v1664
    %2049 = vmatpush.bf16.msra.mxu0 %v1370
    %2050 = vmatpush.bf16.msra.mxu0 %v1348
    %2051 = vmatmul.bf16.gmra.mxu0 %v1624
    %v2052 = vpop.f32.mrf.mxu0
    %v2053 = vadd.f32 %v2039, %v2052
    %v2054 = vpop.f32.mrf.mxu0
    %v2055 = vadd.f32 %v2041, %v2054
    %2056 = vdwg.mxu0
    %2057 = vmatpush.bf16.msra.mxu0 %v1327
    %2058 = vmatpush.bf16.msra.mxu0 %v1305
    %2059 = vmatpush.bf16.msra.mxu0 %v1283
    %2060 = vmatpush.bf16.msra.mxu0 %v1261
    %2061 = vmatpush.bf16.msra.mxu0 %v1239
    %2062 = vmatpush.bf16.msra.mxu0 %v1217
    %2063 = vmatpush.bf16.msra.mxu0 %v1195
    %2064 = vmatpush.bf16.msra.mxu0 %v1173
    %2065 = vmatmul.bf16.gmra.mxu0 %v431
    %v2066 = vpop.f32.mrf.mxu0
    %v2067 = vadd.f32 %v394, %v2066
    %v2068 = vpop.f32.mrf.mxu0
    %v2069 = vadd.f32 %v394, %v2068
    %2070 = vdwg.mxu0
    %2071 = vmatpush.bf16.msra.mxu0 0
    %2072 = vmatpush.bf16.msra.mxu0 0
    %2073 = vmatpush.bf16.msra.mxu0 0
    %2074 = vmatpush.bf16.msra.mxu0 0
    %2075 = vmatpush.bf16.msra.mxu0 0
    %2076 = vmatpush.bf16.msra.mxu0 %v1667
    %2077 = vmatpush.bf16.msra.mxu0 %v1371
    %2078 = vmatpush.bf16.msra.mxu0 %v1349
    %2079 = vmatmul.bf16.gmra.mxu0 %v1624
    %v2080 = vpop.f32.mrf.mxu0
    %v2081 = vadd.f32 %v2067, %v2080
    %v2082 = vpop.f32.mrf.mxu0
    %v2083 = vadd.f32 %v2069, %v2082
    %2084 = vdwg.mxu0
    %2085 = vmatpush.bf16.msra.mxu0 %v1328
    %2086 = vmatpush.bf16.msra.mxu0 %v1306
    %2087 = vmatpush.bf16.msra.mxu0 %v1284
    %2088 = vmatpush.bf16.msra.mxu0 %v1262
    %2089 = vmatpush.bf16.msra.mxu0 %v1240
    %2090 = vmatpush.bf16.msra.mxu0 %v1218
    %2091 = vmatpush.bf16.msra.mxu0 %v1196
    %2092 = vmatpush.bf16.msra.mxu0 %v1174
    %2093 = vmatmul.bf16.gmra.mxu0 %v431
    %v2094 = vpop.f32.mrf.mxu0
    %v2095 = vadd.f32 %v395, %v2094
    %v2096 = vpop.f32.mrf.mxu0
    %v2097 = vadd.f32 %v395, %v2096
    %2098 = vdwg.mxu0
    %2099 = vmatpush.bf16.msra.mxu0 0
    %2100 = vmatpush.bf16.msra.mxu0 0
    %2101 = vmatpush.bf16.msra.mxu0 0
    %2102 = vmatpush.bf16.msra.mxu0 0
    %2103 = vmatpush.bf16.msra.mxu0 0
    %2104 = vmatpush.bf16.msra.mxu0 %v1670
    %2105 = vmatpush.bf16.msra.mxu0 %v1372
    %2106 = vmatpush.bf16.msra.mxu0 %v1350
    %2107 = vmatmul.bf16.gmra.mxu0 %v1624
    %v2108 = vpop.f32.mrf.mxu0
    %v2109 = vadd.f32 %v2095, %v2108
    %v2110 = vpop.f32.mrf.mxu0
    %v2111 = vadd.f32 %v2097, %v2110
    %2112 = vdwg.mxu0
    %2113 = vmatpush.bf16.msra.mxu0 %v1329
    %2114 = vmatpush.bf16.msra.mxu0 %v1307
    %2115 = vmatpush.bf16.msra.mxu0 %v1285
    %2116 = vmatpush.bf16.msra.mxu0 %v1263
    %2117 = vmatpush.bf16.msra.mxu0 %v1241
    %2118 = vmatpush.bf16.msra.mxu0 %v1219
    %2119 = vmatpush.bf16.msra.mxu0 %v1197
    %2120 = vmatpush.bf16.msra.mxu0 %v1175
    %2121 = vmatmul.bf16.gmra.mxu0 %v431
    %v2122 = vpop.f32.mrf.mxu0
    %v2123 = vadd.f32 %v396, %v2122
    %v2124 = vpop.f32.mrf.mxu0
    %v2125 = vadd.f32 %v396, %v2124
    %2126 = vdwg.mxu0
    %2127 = vmatpush.bf16.msra.mxu0 0
    %2128 = vmatpush.bf16.msra.mxu0 0
    %2129 = vmatpush.bf16.msra.mxu0 0
    %2130 = vmatpush.bf16.msra.mxu0 0
    %2131 = vmatpush.bf16.msra.mxu0 0
    %2132 = vmatpush.bf16.msra.mxu0 %v1673
    %2133 = vmatpush.bf16.msra.mxu0 %v1373
    %2134 = vmatpush.bf16.msra.mxu0 %v1351
    %2135 = vmatmul.bf16.gmra.mxu0 %v1624
    %v2136 = vpop.f32.mrf.mxu0
    %v2137 = vadd.f32 %v2123, %v2136
    %v2138 = vpop.f32.mrf.mxu0
    %v2139 = vadd.f32 %v2125, %v2138
    %2140 = vdwg.mxu0
    %2141 = vmatpush.bf16.msra.mxu0 %v1330
    %2142 = vmatpush.bf16.msra.mxu0 %v1308
    %2143 = vmatpush.bf16.msra.mxu0 %v1286
    %2144 = vmatpush.bf16.msra.mxu0 %v1264
    %2145 = vmatpush.bf16.msra.mxu0 %v1242
    %2146 = vmatpush.bf16.msra.mxu0 %v1220
    %2147 = vmatpush.bf16.msra.mxu0 %v1198
    %2148 = vmatpush.bf16.msra.mxu0 %v1176
    %2149 = vmatmul.bf16.gmra.mxu0 %v431
    %v2150 = vpop.f32.mrf.mxu0
    %v2151 = vadd.f32 %v397, %v2150
    %v2152 = vpop.f32.mrf.mxu0
    %v2153 = vadd.f32 %v397, %v2152
    %2154 = vdwg.mxu0
    %2155 = vmatpush.bf16.msra.mxu0 0
    %2156 = vmatpush.bf16.msra.mxu0 0
    %2157 = vmatpush.bf16.msra.mxu0 0
    %2158 = vmatpush.bf16.msra.mxu0 0
    %2159 = vmatpush.bf16.msra.mxu0 0
    %2160 = vmatpush.bf16.msra.mxu0 %v1676
    %2161 = vmatpush.bf16.msra.mxu0 %v1374
    %2162 = vmatpush.bf16.msra.mxu0 %v1352
    %2163 = vmatmul.bf16.gmra.mxu0 %v1624
    %v2164 = vpop.f32.mrf.mxu0
    %v2165 = vadd.f32 %v2151, %v2164
    %v2166 = vpop.f32.mrf.mxu0
    %v2167 = vadd.f32 %v2153, %v2166
    %2168 = vdwg.mxu0
    %2169 = vmatpush.bf16.msra.mxu0 %v1331
    %2170 = vmatpush.bf16.msra.mxu0 %v1309
    %2171 = vmatpush.bf16.msra.mxu0 %v1287
    %2172 = vmatpush.bf16.msra.mxu0 %v1265
    %2173 = vmatpush.bf16.msra.mxu0 %v1243
    %2174 = vmatpush.bf16.msra.mxu0 %v1221
    %2175 = vmatpush.bf16.msra.mxu0 %v1199
    %2176 = vmatpush.bf16.msra.mxu0 %v1177
    %2177 = vmatmul.bf16.gmra.mxu0 %v431
    %v2178 = vpop.f32.mrf.mxu0
    %v2179 = vadd.f32 %v398, %v2178
    %v2180 = vpop.f32.mrf.mxu0
    %v2181 = vadd.f32 %v398, %v2180
    %2182 = vdwg.mxu0
    %2183 = vmatpush.bf16.msra.mxu0 0
    %2184 = vmatpush.bf16.msra.mxu0 0
    %2185 = vmatpush.bf16.msra.mxu0 0
    %2186 = vmatpush.bf16.msra.mxu0 0
    %2187 = vmatpush.bf16.msra.mxu0 0
    %2188 = vmatpush.bf16.msra.mxu0 %v1679
    %2189 = vmatpush.bf16.msra.mxu0 %v1375
    %2190 = vmatpush.bf16.msra.mxu0 %v1353
    %2191 = vmatmul.bf16.gmra.mxu0 %v1624
    %v2192 = vpop.f32.mrf.mxu0
    %v2193 = vadd.f32 %v2179, %v2192
    %v2194 = vpop.f32.mrf.mxu0
    %v2195 = vadd.f32 %v2181, %v2194
    %2196 = vdwg.mxu0
    %2197 = vmatpush.bf16.msra.mxu0 %v1332
    %2198 = vmatpush.bf16.msra.mxu0 %v1310
    %2199 = vmatpush.bf16.msra.mxu0 %v1288
    %2200 = vmatpush.bf16.msra.mxu0 %v1266
    %2201 = vmatpush.bf16.msra.mxu0 %v1244
    %2202 = vmatpush.bf16.msra.mxu0 %v1222
    %2203 = vmatpush.bf16.msra.mxu0 %v1200
    %2204 = vmatpush.bf16.msra.mxu0 %v1178
    %2205 = vmatmul.bf16.gmra.mxu0 %v431
    %v2206 = vpop.f32.mrf.mxu0
    %v2207 = vadd.f32 %v399, %v2206
    %v2208 = vpop.f32.mrf.mxu0
    %v2209 = vadd.f32 %v399, %v2208
    %2210 = vdwg.mxu0
    %2211 = vmatpush.bf16.msra.mxu0 0
    %2212 = vmatpush.bf16.msra.mxu0 0
    %2213 = vmatpush.bf16.msra.mxu0 0
    %2214 = vmatpush.bf16.msra.mxu0 0
    %2215 = vmatpush.bf16.msra.mxu0 0
    %2216 = vmatpush.bf16.msra.mxu0 %v1682
    %2217 = vmatpush.bf16.msra.mxu0 %v1376
    %2218 = vmatpush.bf16.msra.mxu0 %v1354
    %2219 = vmatmul.bf16.gmra.mxu0 %v1624
    %v2220 = vpop.f32.mrf.mxu0
    %v2221 = vadd.f32 %v2207, %v2220
    %v2222 = vpop.f32.mrf.mxu0
    %v2223 = vadd.f32 %v2209, %v2222
    %2224 = vdwg.mxu0
    %2225 = vmatpush.bf16.msra.mxu0 %v1333
    %2226 = vmatpush.bf16.msra.mxu0 %v1311
    %2227 = vmatpush.bf16.msra.mxu0 %v1289
    %2228 = vmatpush.bf16.msra.mxu0 %v1267
    %2229 = vmatpush.bf16.msra.mxu0 %v1245
    %2230 = vmatpush.bf16.msra.mxu0 %v1223
    %2231 = vmatpush.bf16.msra.mxu0 %v1201
    %2232 = vmatpush.bf16.msra.mxu0 %v1179
    %2233 = vmatmul.bf16.gmra.mxu0 %v431
    %v2234 = vpop.f32.mrf.mxu0
    %v2235 = vadd.f32 %v400, %v2234
    %v2236 = vpop.f32.mrf.mxu0
    %v2237 = vadd.f32 %v400, %v2236
    %2238 = vdwg.mxu0
    %2239 = vmatpush.bf16.msra.mxu0 0
    %2240 = vmatpush.bf16.msra.mxu0 0
    %2241 = vmatpush.bf16.msra.mxu0 0
    %2242 = vmatpush.bf16.msra.mxu0 0
    %2243 = vmatpush.bf16.msra.mxu0 0
    %2244 = vmatpush.bf16.msra.mxu0 %v1685
    %2245 = vmatpush.bf16.msra.mxu0 %v1377
    %2246 = vmatpush.bf16.msra.mxu0 %v1355
    %2247 = vmatmul.bf16.gmra.mxu0 %v1624
    %v2248 = vpop.f32.mrf.mxu0
    %v2249 = vadd.f32 %v2235, %v2248
    %v2250 = vpop.f32.mrf.mxu0
    %v2251 = vadd.f32 %v2237, %v2250
    %2252 = vdwg.mxu0
    %2253 = vmatpush.bf16.msra.mxu0 %v1334
    %2254 = vmatpush.bf16.msra.mxu0 %v1312
    %2255 = vmatpush.bf16.msra.mxu0 %v1290
    %2256 = vmatpush.bf16.msra.mxu0 %v1268
    %2257 = vmatpush.bf16.msra.mxu0 %v1246
    %2258 = vmatpush.bf16.msra.mxu0 %v1224
    %2259 = vmatpush.bf16.msra.mxu0 %v1202
    %2260 = vmatpush.bf16.msra.mxu0 %v1180
    %2261 = vmatmul.bf16.gmra.mxu0 %v431
    %v2262 = vpop.f32.mrf.mxu0
    %v2263 = vadd.f32 %v401, %v2262
    %v2264 = vpop.f32.mrf.mxu0
    %v2265 = vadd.f32 %v401, %v2264
    %2266 = vdwg.mxu0
    %2267 = vmatpush.bf16.msra.mxu0 0
    %2268 = vmatpush.bf16.msra.mxu0 0
    %2269 = vmatpush.bf16.msra.mxu0 0
    %2270 = vmatpush.bf16.msra.mxu0 0
    %2271 = vmatpush.bf16.msra.mxu0 0
    %2272 = vmatpush.bf16.msra.mxu0 %v1688
    %2273 = vmatpush.bf16.msra.mxu0 %v1378
    %2274 = vmatpush.bf16.msra.mxu0 %v1356
    %2275 = vmatmul.bf16.gmra.mxu0 %v1624
    %v2276 = vpop.f32.mrf.mxu0
    %v2277 = vadd.f32 %v2263, %v2276
    %v2278 = vpop.f32.mrf.mxu0
    %v2279 = vadd.f32 %v2265, %v2278
    %2280 = vdwg.mxu0
    %2281 = vmatpush.bf16.msra.mxu0 %v1335
    %2282 = vmatpush.bf16.msra.mxu0 %v1313
    %2283 = vmatpush.bf16.msra.mxu0 %v1291
    %2284 = vmatpush.bf16.msra.mxu0 %v1269
    %2285 = vmatpush.bf16.msra.mxu0 %v1247
    %2286 = vmatpush.bf16.msra.mxu0 %v1225
    %2287 = vmatpush.bf16.msra.mxu0 %v1203
    %2288 = vmatpush.bf16.msra.mxu0 %v1181
    %2289 = vmatmul.bf16.gmra.mxu0 %v431
    %v2290 = vpop.f32.mrf.mxu0
    %v2291 = vadd.f32 %v402, %v2290
    %v2292 = vpop.f32.mrf.mxu0
    %v2293 = vadd.f32 %v402, %v2292
    %2294 = vdwg.mxu0
    %2295 = vmatpush.bf16.msra.mxu0 0
    %2296 = vmatpush.bf16.msra.mxu0 0
    %2297 = vmatpush.bf16.msra.mxu0 0
    %2298 = vmatpush.bf16.msra.mxu0 0
    %2299 = vmatpush.bf16.msra.mxu0 0
    %2300 = vmatpush.bf16.msra.mxu0 %v1691
    %2301 = vmatpush.bf16.msra.mxu0 %v1379
    %2302 = vmatpush.bf16.msra.mxu0 %v1357
    %2303 = vmatmul.bf16.gmra.mxu0 %v1624
    %v2304 = vpop.f32.mrf.mxu0
    %v2305 = vadd.f32 %v2291, %v2304
    %v2306 = vpop.f32.mrf.mxu0
    %v2307 = vadd.f32 %v2293, %v2306
    %2308 = vdwg.mxu0
    %v2309 = vmax.f32 %v1717, 0.0
    %v2310 = vmax.f32 %v1745, 0.0
    %v2311 = vmax.f32 %v1773, 0.0
    %v2312 = vmax.f32 %v1801, 0.0
    %v2313 = vmax.f32 %v1829, 0.0
    %v2314 = vmax.f32 %v1857, 0.0
    %v2315 = vmax.f32 %v1885, 0.0
    %v2316 = vmax.f32 %v1913, 0.0
    %v2317 = vmax.f32 %v1941, 0.0
    %v2318 = vmax.f32 %v1969, 0.0
    %v2319 = vmax.f32 %v1997, 0.0
    %v2320 = vmax.f32 %v2025, 0.0
    %v2321 = vmax.f32 %v2053, 0.0
    %v2322 = vmax.f32 %v2081, 0.0
    %v2323 = vmax.f32 %v2109, 0.0
    %v2324 = vmax.f32 %v2137, 0.0
    %v2325 = vmax.f32 %v2165, 0.0
    %v2326 = vmax.f32 %v2193, 0.0
    %v2327 = vmax.f32 %v2221, 0.0
    %v2328 = vmax.f32 %v2249, 0.0
    %v2329 = vmax.f32 %v2277, 0.0
    %v2330 = vmax.f32 %v2305, 0.0
    %v2331 = vmax.f32 %v1719, 0.0
    %v2332 = vmax.f32 %v1747, 0.0
    %v2333 = vmax.f32 %v1775, 0.0
    %v2334 = vmax.f32 %v1803, 0.0
    %v2335 = vmax.f32 %v1831, 0.0
    %v2336 = vmax.f32 %v1859, 0.0
    %v2337 = vmax.f32 %v1887, 0.0
    %v2338 = vmax.f32 %v1915, 0.0
    %v2339 = vmax.f32 %v1943, 0.0
    %v2340 = vmax.f32 %v1971, 0.0
    %v2341 = vmax.f32 %v1999, 0.0
    %v2342 = vmax.f32 %v2027, 0.0
    %v2343 = vmax.f32 %v2055, 0.0
    %v2344 = vmax.f32 %v2083, 0.0
    %v2345 = vmax.f32 %v2111, 0.0
    %v2346 = vmax.f32 %v2139, 0.0
    %v2347 = vmax.f32 %v2167, 0.0
    %v2348 = vmax.f32 %v2195, 0.0
    %v2349 = vmax.f32 %v2223, 0.0
    %v2350 = vmax.f32 %v2251, 0.0
    %v2351 = vmax.f32 %v2279, 0.0
    %v2352 = vmax.f32 %v2307, 0.0
    %v2353 = vpack.c.bf16 %v2331, %v2309
    %v2354 = vpack.c.bf16 %v2332, %v2310
    %v2355 = vpack.c.bf16 %v2333, %v2311
    %v2356 = vpack.c.bf16 %v2334, %v2312
    %v2357 = vpack.c.bf16 %v2335, %v2313
    %v2358 = vpack.c.bf16 %v2336, %v2314
    %v2359 = vpack.c.bf16 %v2337, %v2315
    %v2360 = vpack.c.bf16 %v2338, %v2316
    %v2361 = vpack.c.bf16 %v2339, %v2317
    %v2362 = vpack.c.bf16 %v2340, %v2318
    %v2363 = vpack.c.bf16 %v2341, %v2319
    %v2364 = vpack.c.bf16 %v2342, %v2320
    %v2365 = vpack.c.bf16 %v2343, %v2321
    %v2366 = vpack.c.bf16 %v2344, %v2322
    %v2367 = vpack.c.bf16 %v2345, %v2323
    %v2368 = vpack.c.bf16 %v2346, %v2324
    %v2369 = vpack.c.bf16 %v2347, %v2325
    %v2370 = vpack.c.bf16 %v2348, %v2326
    %v2371 = vpack.c.bf16 %v2349, %v2327
    %v2372 = vpack.c.bf16 %v2350, %v2328
    %v2373 = vpack.c.bf16 %v2351, %v2329
    %v2374 = vpack.c.bf16 %v2352, %v2330
    %v2375 = vld [vmem:[#allocation6] sm:$0xff]
    %v2376 = vld [vmem:[#allocation6 + $0x8] sm:$0xff]
    %v2377 = vld [vmem:[#allocation6 + $0x10] sm:$0xff]
    %v2378 = vld [vmem:[#allocation6 + $0x18] sm:$0xff]
    %v2379 = vld [vmem:[#allocation6 + $0x20] sm:$0xff]
    %v2380 = vld [vmem:[#allocation6 + $0x28] sm:$0xff]
    %v2381 = vld [vmem:[#allocation6 + $0x30] sm:$0xff]
    %v2382 = vld [vmem:[#allocation6 + $0x38] sm:$0xff]
    %v2383 = vld [vmem:[#allocation6 + $0x40] sm:$0xff]
    %v2384 = vld [vmem:[#allocation6 + $0x48] sm:$0xff]
    %v2385 = vld [vmem:[#allocation6 + $0x50] sm:$0xff]
    %v2386 = vld [vmem:[#allocation6 + $0x58] sm:$0xff]
    %v2387 = vld [vmem:[#allocation6 + $0x60] sm:$0xff]
    %v2388 = vld [vmem:[#allocation6 + $0x68] sm:$0xff]
    %v2389 = vld [vmem:[#allocation6 + $0x70] sm:$0xff]
    %v2390 = vld [vmem:[#allocation6 + $0x78] sm:$0xff]
    %v2391 = vld [vmem:[#allocation6 + $0x80] sm:$0xff]
    %v2392 = vld [vmem:[#allocation6 + $0x88] sm:$0xff]
    %v2393 = vld [vmem:[#allocation6 + $0x90] sm:$0xff]
    %v2394 = vld [vmem:[#allocation6 + $0x98] sm:$0xff]
    %v2395 = vld [vmem:[#allocation6 + $0xa0] sm:$0xff]
    %v2396 = vld [vmem:[#allocation6 + $0xa8] sm:$0xff]
    %v2397 = vld [vmem:[#allocation6 + $0xb0] sm:$0xff]
    %v2398 = vld [vmem:[#allocation6 + $0xb8] sm:$0xff]
    %v2399 = vld [vmem:[#allocation6 + $0xc0] sm:$0xff]
    %v2400 = vld [vmem:[#allocation6 + $0xc8] sm:$0xff]
    %v2401 = vld [vmem:[#allocation6 + $0xd0] sm:$0xff]
    %v2402 = vld [vmem:[#allocation6 + $0xd8] sm:$0xff]
    %v2403 = vld [vmem:[#allocation6 + $0xe0] sm:$0xff]
    %v2404 = vld [vmem:[#allocation6 + $0xe8] sm:$0xff]
    %v2405 = vld [vmem:[#allocation6 + $0xf0] sm:$0xff]
    %v2406 = vld [vmem:[#allocation6 + $0xf8] sm:$0xff]
    %v2407 = vld [vmem:[#allocation6 + $0x100] sm:$0xff]
    %v2408 = vld [vmem:[#allocation6 + $0x108] sm:$0xff]
    %v2409 = vld [vmem:[#allocation6 + $0x110] sm:$0xff]
    %v2410 = vld [vmem:[#allocation6 + $0x118] sm:$0xff]
    %v2411 = vld [vmem:[#allocation6 + $0x120] sm:$0xff]
    %v2412 = vld [vmem:[#allocation6 + $0x128] sm:$0xff]
    %v2413 = vld [vmem:[#allocation6 + $0x130] sm:$0xff]
    %v2414 = vld [vmem:[#allocation6 + $0x138] sm:$0xff]
    %v2415 = vld [vmem:[#allocation6 + $0x140] sm:$0xff]
    %v2416 = vld [vmem:[#allocation6 + $0x148] sm:$0xff]
    %v2417 = vld [vmem:[#allocation6 + $0x150] sm:$0xff]
    %v2418 = vld [vmem:[#allocation6 + $0x158] sm:$0xff]
    %v2419 = vld [vmem:[#allocation6 + $0x160] sm:$0xff]
    %v2420 = vld [vmem:[#allocation6 + $0x168] sm:$0xff]
    %v2421 = vld [vmem:[#allocation6 + $0x170] sm:$0xff]
    %v2422 = vld [vmem:[#allocation6 + $0x178] sm:$0xff]
    %v2423 = vld [vmem:[#allocation6 + $0x180] sm:$0xff]
    %v2424 = vld [vmem:[#allocation6 + $0x188] sm:$0xff]
    %v2425 = vld [vmem:[#allocation6 + $0x190] sm:$0xff]
    %v2426 = vld [vmem:[#allocation6 + $0x198] sm:$0xff]
    %v2427 = vld [vmem:[#allocation6 + $0x1a0] sm:$0xff]
    %v2428 = vld [vmem:[#allocation6 + $0x1a8] sm:$0xff]
    %v2429 = vld [vmem:[#allocation6 + $0x1b0] sm:$0xff]
    %v2430 = vld [vmem:[#allocation6 + $0x1b8] sm:$0xff]
    %v2431 = vld [vmem:[#allocation6 + $0x1c0] sm:$0xff]
    %v2432 = vld [vmem:[#allocation6 + $0x1c8] sm:$0xff]
    %v2433 = vld [vmem:[#allocation6 + $0x1d0] sm:$0xff]
    %v2434 = vld [vmem:[#allocation6 + $0x1d8] sm:$0xff]
    %v2435 = vld [vmem:[#allocation6 + $0x1e0] sm:$0xff]
    %v2436 = vld [vmem:[#allocation6 + $0x1e8] sm:$0xff]
    %v2437 = vld [vmem:[#allocation6 + $0x1f0] sm:$0xff]
    %v2438 = vld [vmem:[#allocation6 + $0x1f8] sm:$0xff]
    %v2439 = vld [vmem:[#allocation6 + $0x200] sm:$0xff]
    %v2440 = vld [vmem:[#allocation6 + $0x208] sm:$0xff]
    %v2441 = vld [vmem:[#allocation6 + $0x210] sm:$0xff]
    %v2442 = vld [vmem:[#allocation6 + $0x218] sm:$0xff]
    %v2443 = vld [vmem:[#allocation6 + $0x220] sm:$0xff]
    %v2444 = vld [vmem:[#allocation6 + $0x228] sm:$0xff]
    %v2445 = vld [vmem:[#allocation6 + $0x230] sm:$0xff]
    %v2446 = vld [vmem:[#allocation6 + $0x238] sm:$0xff]
    %v2447 = vld [vmem:[#allocation6 + $0x240] sm:$0xff]
    %v2448 = vld [vmem:[#allocation6 + $0x248] sm:$0xff]
    %v2449 = vld [vmem:[#allocation6 + $0x250] sm:$0xff]
    %v2450 = vld [vmem:[#allocation6 + $0x258] sm:$0xff]
    %v2451 = vld [vmem:[#allocation6 + $0x260] sm:$0xff]
    %v2452 = vld [vmem:[#allocation6 + $0x268] sm:$0xff]
    %v2453 = vld [vmem:[#allocation6 + $0x270] sm:$0xff]
    %v2454 = vld [vmem:[#allocation6 + $0x278] sm:$0xff]
    %v2455 = vld [vmem:[#allocation6 + $0x280] sm:$0xff]
    %v2456 = vld [vmem:[#allocation6 + $0x288] sm:$0xff]
    %v2457 = vld [vmem:[#allocation6 + $0x290] sm:$0xff]
    %v2458 = vld [vmem:[#allocation6 + $0x298] sm:$0xff]
    %v2459 = vld [vmem:[#allocation6 + $0x2a0] sm:$0xff]
    %v2460 = vld [vmem:[#allocation6 + $0x2a8] sm:$0xff]
    %v2461 = vld [vmem:[#allocation6 + $0x2b0] sm:$0xff]
    %v2462 = vld [vmem:[#allocation6 + $0x2b8] sm:$0xff]
    %v2463 = vld [vmem:[#allocation6 + $0x2c0] sm:$0xff]
    %v2464 = vld [vmem:[#allocation6 + $0x2c8] sm:$0xff]
    %v2465 = vld [vmem:[#allocation6 + $0x2d0] sm:$0xff]
    %v2466 = vld [vmem:[#allocation6 + $0x2d8] sm:$0xff]
    %v2467 = vld [vmem:[#allocation6 + $0x2e0] sm:$0xff]
    %v2468 = vld [vmem:[#allocation6 + $0x2e8] sm:$0xff]
    %v2469 = vld [vmem:[#allocation6 + $0x2f0] sm:$0xff]
    %v2470 = vld [vmem:[#allocation6 + $0x2f8] sm:$0xff]
    %v2471 = vld [vmem:[#allocation6 + $0x300] sm:$0xff]
    %v2472 = vld [vmem:[#allocation6 + $0x308] sm:$0xff]
    %v2473 = vld [vmem:[#allocation6 + $0x310] sm:$0xff]
    %v2474 = vld [vmem:[#allocation6 + $0x318] sm:$0xff]
    %v2475 = vld [vmem:[#allocation6 + $0x320] sm:$0xff]
    %v2476 = vld [vmem:[#allocation6 + $0x328] sm:$0xff]
    %v2477 = vld [vmem:[#allocation6 + $0x330] sm:$0xff]
    %v2478 = vld [vmem:[#allocation6 + $0x338] sm:$0xff]
    %v2479 = vld [vmem:[#allocation6 + $0x340] sm:$0xff]
    %v2480 = vld [vmem:[#allocation6 + $0x348] sm:$0xff]
    %v2481 = vld [vmem:[#allocation6 + $0x350] sm:$0xff]
    %v2482 = vld [vmem:[#allocation6 + $0x358] sm:$0xff]
    %v2483 = vld [vmem:[#allocation6 + $0x360] sm:$0xff]
    %v2484 = vld [vmem:[#allocation6 + $0x368] sm:$0xff]
    %v2485 = vld [vmem:[#allocation6 + $0x370] sm:$0xff]
    %v2486 = vld [vmem:[#allocation6 + $0x378] sm:$0xff]
    %v2487 = vld [vmem:[#allocation6 + $0x380] sm:$0xff]
    %v2488 = vld [vmem:[#allocation6 + $0x388] sm:$0xff]
    %v2489 = vld [vmem:[#allocation6 + $0x390] sm:$0xff]
    %v2490 = vld [vmem:[#allocation6 + $0x398] sm:$0xff]
    %v2491 = vld [vmem:[#allocation6 + $0x3a0] sm:$0xff]
    %v2492 = vld [vmem:[#allocation6 + $0x3a8] sm:$0xff]
    %v2493 = vld [vmem:[#allocation6 + $0x3b0] sm:$0xff]
    %v2494 = vld [vmem:[#allocation6 + $0x3b8] sm:$0xff]
    %v2495 = vld [vmem:[#allocation6 + $0x3c0] sm:$0xff]
    %v2496 = vld [vmem:[#allocation6 + $0x3c8] sm:$0xff]
    %v2497 = vld [vmem:[#allocation6 + $0x3d0] sm:$0xff]
    %v2498 = vld [vmem:[#allocation6 + $0x3d8] sm:$0xff]
    %v2499 = vld [vmem:[#allocation6 + $0x3e0] sm:$0xff]
    %v2500 = vld [vmem:[#allocation6 + $0x3e8] sm:$0xff]
    %v2501 = vld [vmem:[#allocation6 + $0x3f0] sm:$0xff]
    %v2502 = vld [vmem:[#allocation6 + $0x3f8] sm:$0xff]
    %v2503 = vld [vmem:[#allocation6 + $0x400] sm:$0xff]
    %v2504 = vld [vmem:[#allocation6 + $0x408] sm:$0xff]
    %v2505 = vld [vmem:[#allocation6 + $0x410] sm:$0xff]
    %v2506 = vld [vmem:[#allocation6 + $0x418] sm:$0xff]
    %v2507 = vld [vmem:[#allocation6 + $0x420] sm:$0xff]
    %v2508 = vld [vmem:[#allocation6 + $0x428] sm:$0xff]
    %v2509 = vld [vmem:[#allocation6 + $0x430] sm:$0xff]
    %v2510 = vld [vmem:[#allocation6 + $0x438] sm:$0xff]
    %v2511 = vld [vmem:[#allocation6 + $0x440] sm:$0xff]
    %v2512 = vld [vmem:[#allocation6 + $0x448] sm:$0xff]
    %v2513 = vld [vmem:[#allocation6 + $0x450] sm:$0xff]
    %v2514 = vld [vmem:[#allocation6 + $0x458] sm:$0xff]
    %v2515 = vld [vmem:[#allocation6 + $0x460] sm:$0xff]
    %v2516 = vld [vmem:[#allocation6 + $0x468] sm:$0xff]
    %v2517 = vld [vmem:[#allocation6 + $0x470] sm:$0xff]
    %v2518 = vld [vmem:[#allocation6 + $0x478] sm:$0xff]
    %v2519 = vld [vmem:[#allocation6 + $0x480] sm:$0xff]
    %v2520 = vld [vmem:[#allocation6 + $0x488] sm:$0xff]
    %v2521 = vld [vmem:[#allocation6 + $0x490] sm:$0xff]
    %v2522 = vld [vmem:[#allocation6 + $0x498] sm:$0xff]
    %v2523 = vld [vmem:[#allocation6 + $0x4a0] sm:$0xff]
    %v2524 = vld [vmem:[#allocation6 + $0x4a8] sm:$0xff]
    %v2525 = vld [vmem:[#allocation6 + $0x4b0] sm:$0xff]
    %v2526 = vld [vmem:[#allocation6 + $0x4b8] sm:$0xff]
    %v2527 = vld [vmem:[#allocation6 + $0x4c0] sm:$0xff]
    %v2528 = vld [vmem:[#allocation6 + $0x4c8] sm:$0xff]
    %v2529 = vld [vmem:[#allocation6 + $0x4d0] sm:$0xff]
    %v2530 = vld [vmem:[#allocation6 + $0x4d8] sm:$0xff]
    %v2531 = vld [vmem:[#allocation6 + $0x4e0] sm:$0xff]
    %v2532 = vld [vmem:[#allocation6 + $0x4e8] sm:$0xff]
    %v2533 = vld [vmem:[#allocation6 + $0x4f0] sm:$0xff]
    %v2534 = vld [vmem:[#allocation6 + $0x4f8] sm:$0xff]
    %v2535 = vld [vmem:[#allocation6 + $0x500] sm:$0xff]
    %v2536 = vld [vmem:[#allocation6 + $0x508] sm:$0xff]
    %v2537 = vld [vmem:[#allocation6 + $0x510] sm:$0xff]
    %v2538 = vld [vmem:[#allocation6 + $0x518] sm:$0xff]
    %v2539 = vld [vmem:[#allocation6 + $0x520] sm:$0xff]
    %v2540 = vld [vmem:[#allocation6 + $0x528] sm:$0xff]
    %v2541 = vld [vmem:[#allocation6 + $0x530] sm:$0xff]
    %v2542 = vld [vmem:[#allocation6 + $0x538] sm:$0xff]
    %v2543 = vld [vmem:[#allocation6 + $0x540] sm:$0xff]
    %v2544 = vld [vmem:[#allocation6 + $0x548] sm:$0xff]
    %v2545 = vld [vmem:[#allocation6 + $0x550] sm:$0xff]
    %v2546 = vld [vmem:[#allocation6 + $0x558] sm:$0xff]
    %v2547 = vld [vmem:[#allocation6 + $0x560] sm:$0xff]
    %v2548 = vld [vmem:[#allocation6 + $0x568] sm:$0xff]
    %v2549 = vld [vmem:[#allocation6 + $0x570] sm:$0xff]
    %v2550 = vld [vmem:[#allocation6 + $0x578] sm:$0xff]
    %v2551 = vld [vmem:[#allocation6 + $0x580] sm:$0xff]
    %v2552 = vld [vmem:[#allocation6 + $0x588] sm:$0xff]
    %v2553 = vld [vmem:[#allocation6 + $0x590] sm:$0xff]
    %v2554 = vld [vmem:[#allocation6 + $0x598] sm:$0xff]
    %v2555 = vld [vmem:[#allocation6 + $0x5a0] sm:$0xff]
    %v2556 = vld [vmem:[#allocation6 + $0x5a8] sm:$0xff]
    %v2557 = vld [vmem:[#allocation6 + $0x5b0] sm:$0xff]
    %v2558 = vld [vmem:[#allocation6 + $0x5b8] sm:$0xff]
    %v2559 = vld [vmem:[#allocation6 + $0x5c0] sm:$0xff]
    %v2560 = vld [vmem:[#allocation6 + $0x5c8] sm:$0xff]
    %v2561 = vld [vmem:[#allocation6 + $0x5d0] sm:$0xff]
    %v2562 = vld [vmem:[#allocation6 + $0x5d8] sm:$0xff]
    %v2563 = vld [vmem:[#allocation6 + $0x5e0] sm:$0xff]
    %v2564 = vld [vmem:[#allocation6 + $0x5e8] sm:$0xff]
    %v2565 = vld [vmem:[#allocation6 + $0x5f0] sm:$0xff]
    %v2566 = vld [vmem:[#allocation6 + $0x5f8] sm:$0xff]
    %v2567 = vld [vmem:[#allocation6 + $0x600] sm:$0xff]
    %v2568 = vld [vmem:[#allocation6 + $0x608] sm:$0xff]
    %v2569 = vld [vmem:[#allocation6 + $0x610] sm:$0xff]
    %v2570 = vld [vmem:[#allocation6 + $0x618] sm:$0xff]
    %v2571 = vld [vmem:[#allocation6 + $0x620] sm:$0xff]
    %v2572 = vld [vmem:[#allocation6 + $0x628] sm:$0xff]
    %v2573 = vld [vmem:[#allocation6 + $0x630] sm:$0xff]
    %v2574 = vld [vmem:[#allocation6 + $0x638] sm:$0xff]
    %v2575 = vld [vmem:[#allocation6 + $0x640] sm:$0xff]
    %v2576 = vld [vmem:[#allocation6 + $0x648] sm:$0xff]
    %v2577 = vld [vmem:[#allocation6 + $0x650] sm:$0xff]
    %v2578 = vld [vmem:[#allocation6 + $0x658] sm:$0xff]
    %v2579 = vld [vmem:[#allocation6 + $0x660] sm:$0xff]
    %v2580 = vld [vmem:[#allocation6 + $0x668] sm:$0xff]
    %v2581 = vld [vmem:[#allocation6 + $0x670] sm:$0xff]
    %v2582 = vld [vmem:[#allocation6 + $0x678] sm:$0xff]
    %v2583 = vld [vmem:[#allocation6 + $0x680] sm:$0xff]
    %v2584 = vld [vmem:[#allocation6 + $0x688] sm:$0xff]
    %v2585 = vld [vmem:[#allocation6 + $0x690] sm:$0xff]
    %v2586 = vld [vmem:[#allocation6 + $0x698] sm:$0xff]
    %v2587 = vld [vmem:[#allocation6 + $0x6a0] sm:$0xff]
    %v2588 = vld [vmem:[#allocation6 + $0x6a8] sm:$0xff]
    %v2589 = vld [vmem:[#allocation6 + $0x6b0] sm:$0xff]
    %v2590 = vld [vmem:[#allocation6 + $0x6b8] sm:$0xff]
    %v2591 = vld [vmem:[#allocation6 + $0x6c0] sm:$0xff]
    %v2592 = vld [vmem:[#allocation6 + $0x6c8] sm:$0xff]
    %v2593 = vld [vmem:[#allocation6 + $0x6d0] sm:$0xff]
    %v2594 = vld [vmem:[#allocation6 + $0x6d8] sm:$0xff]
    %v2595 = vld [vmem:[#allocation6 + $0x6e0] sm:$0xff]
    %v2596 = vld [vmem:[#allocation6 + $0x6e8] sm:$0xff]
    %v2597 = vld [vmem:[#allocation6 + $0x6f0] sm:$0xff]
    %v2598 = vld [vmem:[#allocation6 + $0x6f8] sm:$0xff]
    %v2599 = vld [vmem:[#allocation6 + $0x700] sm:$0xff]
    %v2600 = vld [vmem:[#allocation6 + $0x708] sm:$0xff]
    %v2601 = vld [vmem:[#allocation6 + $0x710] sm:$0xff]
    %v2602 = vld [vmem:[#allocation6 + $0x718] sm:$0xff]
    %v2603 = vld [vmem:[#allocation6 + $0x720] sm:$0xff]
    %v2604 = vld [vmem:[#allocation6 + $0x728] sm:$0xff]
    %v2605 = vld [vmem:[#allocation6 + $0x730] sm:$0xff]
    %v2606 = vld [vmem:[#allocation6 + $0x738] sm:$0xff]
    %v2607 = vld [vmem:[#allocation6 + $0x740] sm:$0xff]
    %v2608 = vld [vmem:[#allocation6 + $0x748] sm:$0xff]
    %v2609 = vld [vmem:[#allocation6 + $0x750] sm:$0xff]
    %v2610 = vld [vmem:[#allocation6 + $0x758] sm:$0xff]
    %v2611 = vld [vmem:[#allocation6 + $0x760] sm:$0xff]
    %v2612 = vld [vmem:[#allocation6 + $0x768] sm:$0xff]
    %v2613 = vld [vmem:[#allocation6 + $0x770] sm:$0xff]
    %v2614 = vld [vmem:[#allocation6 + $0x778] sm:$0xff]
    %v2615 = vld [vmem:[#allocation6 + $0x780] sm:$0xff]
    %v2616 = vld [vmem:[#allocation6 + $0x788] sm:$0xff]
    %v2617 = vld [vmem:[#allocation6 + $0x790] sm:$0xff]
    %v2618 = vld [vmem:[#allocation6 + $0x798] sm:$0xff]
    %v2619 = vld [vmem:[#allocation6 + $0x7a0] sm:$0xff]
    %v2620 = vld [vmem:[#allocation6 + $0x7a8] sm:$0xff]
    %v2621 = vld [vmem:[#allocation6 + $0x7b0] sm:$0xff]
    %v2622 = vld [vmem:[#allocation6 + $0x7b8] sm:$0xff]
    %v2623 = vld [vmem:[#allocation6 + $0x7c0] sm:$0xff]
    %v2624 = vld [vmem:[#allocation6 + $0x7c8] sm:$0xff]
    %v2625 = vld [vmem:[#allocation6 + $0x7d0] sm:$0xff]
    %v2626 = vld [vmem:[#allocation6 + $0x7d8] sm:$0xff]
    %v2627 = vld [vmem:[#allocation6 + $0x7e0] sm:$0xff]
    %v2628 = vld [vmem:[#allocation6 + $0x7e8] sm:$0xff]
    %v2629 = vld [vmem:[#allocation6 + $0x7f0] sm:$0xff]
    %v2630 = vld [vmem:[#allocation6 + $0x7f8] sm:$0xff]
    %v2631 = vld [vmem:[#allocation6 + $0x800] sm:$0xff]
    %v2632 = vld [vmem:[#allocation6 + $0x808] sm:$0xff]
    %v2633 = vld [vmem:[#allocation6 + $0x810] sm:$0xff]
    %v2634 = vld [vmem:[#allocation6 + $0x818] sm:$0xff]
    %v2635 = vld [vmem:[#allocation6 + $0x820] sm:$0xff]
    %v2636 = vld [vmem:[#allocation6 + $0x828] sm:$0xff]
    %v2637 = vld [vmem:[#allocation6 + $0x830] sm:$0xff]
    %v2638 = vld [vmem:[#allocation6 + $0x838] sm:$0xff]
    %v2639 = vld [vmem:[#allocation6 + $0x840] sm:$0xff]
    %v2640 = vld [vmem:[#allocation6 + $0x848] sm:$0xff]
    %v2641 = vld [vmem:[#allocation6 + $0x850] sm:$0xff]
    %v2642 = vld [vmem:[#allocation6 + $0x858] sm:$0xff]
    %v2643 = vld [vmem:[#allocation6 + $0x860] sm:$0xff]
    %v2644 = vld [vmem:[#allocation6 + $0x868] sm:$0xff]
    %v2645 = vld [vmem:[#allocation6 + $0x870] sm:$0xff]
    %v2646 = vld [vmem:[#allocation6 + $0x878] sm:$0xff]
    %v2647 = vld [vmem:[#allocation6 + $0x880] sm:$0xff]
    %v2648 = vld [vmem:[#allocation6 + $0x888] sm:$0xff]
    %v2649 = vld [vmem:[#allocation6 + $0x890] sm:$0xff]
    %v2650 = vld [vmem:[#allocation6 + $0x898] sm:$0xff]
    %v2651 = vld [vmem:[#allocation6 + $0x8a0] sm:$0xff]
    %v2652 = vld [vmem:[#allocation6 + $0x8a8] sm:$0xff]
    %v2653 = vld [vmem:[#allocation6 + $0x8b0] sm:$0xff]
    %v2654 = vld [vmem:[#allocation6 + $0x8b8] sm:$0xff]
    %v2655 = vld [vmem:[#allocation6 + $0x8c0] sm:$0xff]
    %v2656 = vld [vmem:[#allocation6 + $0x8c8] sm:$0xff]
    %v2657 = vld [vmem:[#allocation6 + $0x8d0] sm:$0xff]
    %v2658 = vld [vmem:[#allocation6 + $0x8d8] sm:$0xff]
    %v2659 = vld [vmem:[#allocation6 + $0x8e0] sm:$0xff]
    %v2660 = vld [vmem:[#allocation6 + $0x8e8] sm:$0xff]
    %v2661 = vld [vmem:[#allocation6 + $0x8f0] sm:$0xff]
    %v2662 = vld [vmem:[#allocation6 + $0x8f8] sm:$0xff]
    %v2663 = vld [vmem:[#allocation6 + $0x900] sm:$0xff]
    %v2664 = vld [vmem:[#allocation6 + $0x908] sm:$0xff]
    %v2665 = vld [vmem:[#allocation6 + $0x910] sm:$0xff]
    %v2666 = vld [vmem:[#allocation6 + $0x918] sm:$0xff]
    %v2667 = vld [vmem:[#allocation6 + $0x920] sm:$0xff]
    %v2668 = vld [vmem:[#allocation6 + $0x928] sm:$0xff]
    %v2669 = vld [vmem:[#allocation6 + $0x930] sm:$0xff]
    %v2670 = vld [vmem:[#allocation6 + $0x938] sm:$0xff]
    %v2671 = vld [vmem:[#allocation6 + $0x940] sm:$0xff]
    %v2672 = vld [vmem:[#allocation6 + $0x948] sm:$0xff]
    %v2673 = vld [vmem:[#allocation6 + $0x950] sm:$0xff]
    %v2674 = vld [vmem:[#allocation6 + $0x958] sm:$0xff]
    %v2675 = vld [vmem:[#allocation6 + $0x960] sm:$0xff]
    %v2676 = vld [vmem:[#allocation6 + $0x968] sm:$0xff]
    %v2677 = vld [vmem:[#allocation6 + $0x970] sm:$0xff]
    %v2678 = vld [vmem:[#allocation6 + $0x978] sm:$0xff]
    %v2679 = vld [vmem:[#allocation6 + $0x980] sm:$0xff]
    %v2680 = vld [vmem:[#allocation6 + $0x988] sm:$0xff]
    %v2681 = vld [vmem:[#allocation6 + $0x990] sm:$0xff]
    %v2682 = vld [vmem:[#allocation6 + $0x998] sm:$0xff]
    %v2683 = vld [vmem:[#allocation6 + $0x9a0] sm:$0xff]
    %v2684 = vld [vmem:[#allocation6 + $0x9a8] sm:$0xff]
    %v2685 = vld [vmem:[#allocation6 + $0x9b0] sm:$0xff]
    %v2686 = vld [vmem:[#allocation6 + $0x9b8] sm:$0xff]
    %v2687 = vld [vmem:[#allocation6 + $0x9c0] sm:$0xff]
    %v2688 = vld [vmem:[#allocation6 + $0x9c8] sm:$0xff]
    %v2689 = vld [vmem:[#allocation6 + $0x9d0] sm:$0xff]
    %v2690 = vld [vmem:[#allocation6 + $0x9d8] sm:$0xff]
    %v2691 = vld [vmem:[#allocation6 + $0x9e0] sm:$0xff]
    %v2692 = vld [vmem:[#allocation6 + $0x9e8] sm:$0xff]
    %v2693 = vld [vmem:[#allocation6 + $0x9f0] sm:$0xff]
    %v2694 = vld [vmem:[#allocation6 + $0x9f8] sm:$0xff]
    %v2695 = vld [vmem:[#allocation6 + $0xa00] sm:$0xff]
    %v2696 = vld [vmem:[#allocation6 + $0xa08] sm:$0xff]
    %v2697 = vld [vmem:[#allocation6 + $0xa10] sm:$0xff]
    %v2698 = vld [vmem:[#allocation6 + $0xa18] sm:$0xff]
    %v2699 = vld [vmem:[#allocation6 + $0xa20] sm:$0xff]
    %v2700 = vld [vmem:[#allocation6 + $0xa28] sm:$0xff]
    %v2701 = vld [vmem:[#allocation6 + $0xa30] sm:$0xff]
    %v2702 = vld [vmem:[#allocation6 + $0xa38] sm:$0xff]
    %v2703 = vld [vmem:[#allocation6 + $0xa40] sm:$0xff]
    %v2704 = vld [vmem:[#allocation6 + $0xa48] sm:$0xff]
    %v2705 = vld [vmem:[#allocation6 + $0xa50] sm:$0xff]
    %v2706 = vld [vmem:[#allocation6 + $0xa58] sm:$0xff]
    %v2707 = vld [vmem:[#allocation6 + $0xa60] sm:$0xff]
    %v2708 = vld [vmem:[#allocation6 + $0xa68] sm:$0xff]
    %v2709 = vld [vmem:[#allocation6 + $0xa70] sm:$0xff]
    %v2710 = vld [vmem:[#allocation6 + $0xa78] sm:$0xff]
    %v2711 = vld [vmem:[#allocation6 + $0xa80] sm:$0xff]
    %v2712 = vld [vmem:[#allocation6 + $0xa88] sm:$0xff]
    %v2713 = vld [vmem:[#allocation6 + $0xa90] sm:$0xff]
    %v2714 = vld [vmem:[#allocation6 + $0xa98] sm:$0xff]
    %v2715 = vld [vmem:[#allocation6 + $0xaa0] sm:$0xff]
    %v2716 = vld [vmem:[#allocation6 + $0xaa8] sm:$0xff]
    %v2717 = vld [vmem:[#allocation6 + $0xab0] sm:$0xff]
    %v2718 = vld [vmem:[#allocation6 + $0xab8] sm:$0xff]
    %v2719 = vld [vmem:[#allocation7] sm:$0x3]
    %v2721 = vperm.slane %v2719, 0
    %v2722 = vperm.slane %v2719, 1
    %v3069 = vunpack.c.l.b16 %v2375
    %v3070 = vunpack.c.h.b16 %v2375
    %v3071 = vunpack.c.l.b16 %v2376
    %v3072 = vunpack.c.h.b16 %v2376
    %v3073 = vunpack.c.l.b16 %v2377
    %v3074 = vunpack.c.h.b16 %v2377
    %v3075 = vunpack.c.l.b16 %v2378
    %v3076 = vunpack.c.h.b16 %v2378
    %v3077 = vunpack.c.l.b16 %v2379
    %v3078 = vunpack.c.h.b16 %v2379
    %v3079 = vunpack.c.l.b16 %v2380
    %v3080 = vunpack.c.h.b16 %v2380
    %v3081 = vunpack.c.l.b16 %v2381
    %v3082 = vunpack.c.h.b16 %v2381
    %v3083 = vunpack.c.l.b16 %v2382
    %v3084 = vunpack.c.h.b16 %v2382
    %v3085 = vunpack.c.l.b16 %v2383
    %v3086 = vunpack.c.h.b16 %v2383
    %v3087 = vunpack.c.l.b16 %v2384
    %v3088 = vunpack.c.h.b16 %v2384
    %v3089 = vunpack.c.l.b16 %v2385
    %v3090 = vunpack.c.h.b16 %v2385
    %v3091 = vunpack.c.l.b16 %v2386
    %v3092 = vunpack.c.h.b16 %v2386
    %v3093 = vunpack.c.l.b16 %v2387
    %v3094 = vunpack.c.h.b16 %v2387
    %v3095 = vunpack.c.l.b16 %v2388
    %v3096 = vunpack.c.h.b16 %v2388
    %v3097 = vunpack.c.l.b16 %v2389
    %v3098 = vunpack.c.h.b16 %v2389
    %v3099 = vunpack.c.l.b16 %v2390
    %v3100 = vunpack.c.h.b16 %v2390
    %v3101 = vunpack.c.l.b16 %v2391
    %v3102 = vunpack.c.h.b16 %v2391
    %v3103 = vunpack.c.l.b16 %v2392
    %v3104 = vunpack.c.h.b16 %v2392
    %v3105 = vunpack.c.l.b16 %v2393
    %v3106 = vunpack.c.h.b16 %v2393
    %v3107 = vunpack.c.l.b16 %v2394
    %v3108 = vunpack.c.h.b16 %v2394
    %v3109 = vunpack.c.l.b16 %v2395
    %v3110 = vunpack.c.h.b16 %v2395
    %v3111 = vunpack.c.l.b16 %v2396
    %v3112 = vunpack.c.h.b16 %v2396
    %v3113 = vunpack.c.l.b16 %v2397
    %v3114 = vunpack.c.h.b16 %v2397
    %v3115 = vunpack.c.l.b16 %v2398
    %v3116 = vunpack.c.h.b16 %v2398
    %v3117 = vunpack.c.l.b16 %v2399
    %v3118 = vunpack.c.h.b16 %v2399
    %v3119 = vunpack.c.l.b16 %v2400
    %v3120 = vunpack.c.h.b16 %v2400
    %v3121 = vunpack.c.l.b16 %v2401
    %v3122 = vunpack.c.h.b16 %v2401
    %v3123 = vunpack.c.l.b16 %v2402
    %v3124 = vunpack.c.h.b16 %v2402
    %v3125 = vunpack.c.l.b16 %v2403
    %v3126 = vunpack.c.h.b16 %v2403
    %v3127 = vunpack.c.l.b16 %v2404
    %v3128 = vunpack.c.h.b16 %v2404
    %v3129 = vunpack.c.l.b16 %v2405
    %v3130 = vunpack.c.h.b16 %v2405
    %v3131 = vunpack.c.l.b16 %v2406
    %v3132 = vunpack.c.h.b16 %v2406
    %v3133 = vunpack.c.l.b16 %v2407
    %v3134 = vunpack.c.h.b16 %v2407
    %v3135 = vunpack.c.l.b16 %v2408
    %v3136 = vunpack.c.h.b16 %v2408
    %v3137 = vunpack.c.l.b16 %v2409
    %v3138 = vunpack.c.h.b16 %v2409
    %v3139 = vunpack.c.l.b16 %v2410
    %v3140 = vunpack.c.h.b16 %v2410
    %v3141 = vunpack.c.l.b16 %v2411
    %v3142 = vunpack.c.h.b16 %v2411
    %v3143 = vunpack.c.l.b16 %v2412
    %v3144 = vunpack.c.h.b16 %v2412
    %v3145 = vunpack.c.l.b16 %v2413
    %v3146 = vunpack.c.h.b16 %v2413
    %v3147 = vunpack.c.l.b16 %v2414
    %v3148 = vunpack.c.h.b16 %v2414
    %v3149 = vunpack.c.l.b16 %v2415
    %v3150 = vunpack.c.h.b16 %v2415
    %v3151 = vunpack.c.l.b16 %v2416
    %v3152 = vunpack.c.h.b16 %v2416
    %v3153 = vunpack.c.l.b16 %v2417
    %v3154 = vunpack.c.h.b16 %v2417
    %v3155 = vunpack.c.l.b16 %v2418
    %v3156 = vunpack.c.h.b16 %v2418
    %v3157 = vunpack.c.l.b16 %v2419
    %v3158 = vunpack.c.h.b16 %v2419
    %v3159 = vunpack.c.l.b16 %v2420
    %v3160 = vunpack.c.h.b16 %v2420
    %v3161 = vunpack.c.l.b16 %v2421
    %v3162 = vunpack.c.h.b16 %v2421
    %v3163 = vunpack.c.l.b16 %v2422
    %v3164 = vunpack.c.h.b16 %v2422
    %v3165 = vunpack.c.l.b16 %v2423
    %v3166 = vunpack.c.h.b16 %v2423
    %v3167 = vunpack.c.l.b16 %v2424
    %v3168 = vunpack.c.h.b16 %v2424
    %v3169 = vunpack.c.l.b16 %v2425
    %v3170 = vunpack.c.h.b16 %v2425
    %v3171 = vunpack.c.l.b16 %v2426
    %v3172 = vunpack.c.h.b16 %v2426
    %v3173 = vunpack.c.l.b16 %v2427
    %v3174 = vunpack.c.h.b16 %v2427
    %v3175 = vunpack.c.l.b16 %v2428
    %v3176 = vunpack.c.h.b16 %v2428
    %v3177 = vunpack.c.l.b16 %v2429
    %v3178 = vunpack.c.h.b16 %v2429
    %v3179 = vunpack.c.l.b16 %v2430
    %v3180 = vunpack.c.h.b16 %v2430
    %v3181 = vunpack.c.l.b16 %v2431
    %v3182 = vunpack.c.h.b16 %v2431
    %v3183 = vunpack.c.l.b16 %v2432
    %v3184 = vunpack.c.h.b16 %v2432
    %v3185 = vunpack.c.l.b16 %v2433
    %v3186 = vunpack.c.h.b16 %v2433
    %v3187 = vunpack.c.l.b16 %v2434
    %v3188 = vunpack.c.h.b16 %v2434
    %v3189 = vunpack.c.l.b16 %v2435
    %v3190 = vunpack.c.h.b16 %v2435
    %v3191 = vunpack.c.l.b16 %v2436
    %v3192 = vunpack.c.h.b16 %v2436
    %v3193 = vunpack.c.l.b16 %v2437
    %v3194 = vunpack.c.h.b16 %v2437
    %v3195 = vunpack.c.l.b16 %v2438
    %v3196 = vunpack.c.h.b16 %v2438
    %v3197 = vunpack.c.l.b16 %v2439
    %v3198 = vunpack.c.h.b16 %v2439
    %v3199 = vunpack.c.l.b16 %v2440
    %v3200 = vunpack.c.h.b16 %v2440
    %v3201 = vunpack.c.l.b16 %v2441
    %v3202 = vunpack.c.h.b16 %v2441
    %v3203 = vunpack.c.l.b16 %v2442
    %v3204 = vunpack.c.h.b16 %v2442
    %v3205 = vunpack.c.l.b16 %v2443
    %v3206 = vunpack.c.h.b16 %v2443
    %v3207 = vunpack.c.l.b16 %v2444
    %v3208 = vunpack.c.h.b16 %v2444
    %v3209 = vunpack.c.l.b16 %v2445
    %v3210 = vunpack.c.h.b16 %v2445
    %v3211 = vunpack.c.l.b16 %v2446
    %v3212 = vunpack.c.h.b16 %v2446
    %v3213 = vunpack.c.l.b16 %v2447
    %v3214 = vunpack.c.h.b16 %v2447
    %v3215 = vunpack.c.l.b16 %v2448
    %v3216 = vunpack.c.h.b16 %v2448
    %v3217 = vunpack.c.l.b16 %v2449
    %v3218 = vunpack.c.h.b16 %v2449
    %v3219 = vunpack.c.l.b16 %v2450
    %v3220 = vunpack.c.h.b16 %v2450
    %v3221 = vunpack.c.l.b16 %v2451
    %v3222 = vunpack.c.h.b16 %v2451
    %v3223 = vunpack.c.l.b16 %v2452
    %v3224 = vunpack.c.h.b16 %v2452
    %v3225 = vunpack.c.l.b16 %v2453
    %v3226 = vunpack.c.h.b16 %v2453
    %v3227 = vunpack.c.l.b16 %v2454
    %v3228 = vunpack.c.h.b16 %v2454
    %v3229 = vunpack.c.l.b16 %v2455
    %v3230 = vunpack.c.h.b16 %v2455
    %v3231 = vunpack.c.l.b16 %v2456
    %v3232 = vunpack.c.h.b16 %v2456
    %v3233 = vunpack.c.l.b16 %v2457
    %v3234 = vunpack.c.h.b16 %v2457
    %v3235 = vunpack.c.l.b16 %v2458
    %v3236 = vunpack.c.h.b16 %v2458
    %v3237 = vunpack.c.l.b16 %v2459
    %v3238 = vunpack.c.h.b16 %v2459
    %v3239 = vunpack.c.l.b16 %v2460
    %v3240 = vunpack.c.h.b16 %v2460
    %v3241 = vunpack.c.l.b16 %v2461
    %v3242 = vunpack.c.h.b16 %v2461
    %v3243 = vunpack.c.l.b16 %v2462
    %v3244 = vunpack.c.h.b16 %v2462
    %v3245 = vunpack.c.l.b16 %v2463
    %v3246 = vunpack.c.h.b16 %v2463
    %v3247 = vunpack.c.l.b16 %v2464
    %v3248 = vunpack.c.h.b16 %v2464
    %v3249 = vunpack.c.l.b16 %v2465
    %v3250 = vunpack.c.h.b16 %v2465
    %v3251 = vunpack.c.l.b16 %v2466
    %v3252 = vunpack.c.h.b16 %v2466
    %v3253 = vunpack.c.l.b16 %v2467
    %v3254 = vunpack.c.h.b16 %v2467
    %v3255 = vunpack.c.l.b16 %v2468
    %v3256 = vunpack.c.h.b16 %v2468
    %v3257 = vunpack.c.l.b16 %v2469
    %v3258 = vunpack.c.h.b16 %v2469
    %v3259 = vunpack.c.l.b16 %v2470
    %v3260 = vunpack.c.h.b16 %v2470
    %v3261 = vunpack.c.l.b16 %v2471
    %v3262 = vunpack.c.h.b16 %v2471
    %v3263 = vunpack.c.l.b16 %v2472
    %v3264 = vunpack.c.h.b16 %v2472
    %v3265 = vunpack.c.l.b16 %v2473
    %v3266 = vunpack.c.h.b16 %v2473
    %v3267 = vunpack.c.l.b16 %v2474
    %v3268 = vunpack.c.h.b16 %v2474
    %v3269 = vunpack.c.l.b16 %v2475
    %v3270 = vunpack.c.h.b16 %v2475
    %v3271 = vunpack.c.l.b16 %v2476
    %v3272 = vunpack.c.h.b16 %v2476
    %v3273 = vunpack.c.l.b16 %v2477
    %v3274 = vunpack.c.h.b16 %v2477
    %v3275 = vunpack.c.l.b16 %v2478
    %v3276 = vunpack.c.h.b16 %v2478
    %v3277 = vunpack.c.l.b16 %v2479
    %v3278 = vunpack.c.h.b16 %v2479
    %v3279 = vunpack.c.l.b16 %v2480
    %v3280 = vunpack.c.h.b16 %v2480
    %v3281 = vunpack.c.l.b16 %v2481
    %v3282 = vunpack.c.h.b16 %v2481
    %v3283 = vunpack.c.l.b16 %v2482
    %v3284 = vunpack.c.h.b16 %v2482
    %v3285 = vunpack.c.l.b16 %v2483
    %v3286 = vunpack.c.h.b16 %v2483
    %v3287 = vunpack.c.l.b16 %v2484
    %v3288 = vunpack.c.h.b16 %v2484
    %v3289 = vunpack.c.l.b16 %v2485
    %v3290 = vunpack.c.h.b16 %v2485
    %v3291 = vunpack.c.l.b16 %v2486
    %v3292 = vunpack.c.h.b16 %v2486
    %v3293 = vunpack.c.l.b16 %v2487
    %v3294 = vunpack.c.h.b16 %v2487
    %v3295 = vunpack.c.l.b16 %v2488
    %v3296 = vunpack.c.h.b16 %v2488
    %v3297 = vunpack.c.l.b16 %v2489
    %v3298 = vunpack.c.h.b16 %v2489
    %v3299 = vunpack.c.l.b16 %v2490
    %v3300 = vunpack.c.h.b16 %v2490
    %v3301 = vunpack.c.l.b16 %v2491
    %v3302 = vunpack.c.h.b16 %v2491
    %v3303 = vunpack.c.l.b16 %v2492
    %v3304 = vunpack.c.h.b16 %v2492
    %v3305 = vunpack.c.l.b16 %v2493
    %v3306 = vunpack.c.h.b16 %v2493
    %v3307 = vunpack.c.l.b16 %v2494
    %v3308 = vunpack.c.h.b16 %v2494
    %v3309 = vunpack.c.l.b16 %v2495
    %v3310 = vunpack.c.h.b16 %v2495
    %v3311 = vunpack.c.l.b16 %v2496
    %v3312 = vunpack.c.h.b16 %v2496
    %v3313 = vunpack.c.l.b16 %v2497
    %v3314 = vunpack.c.h.b16 %v2497
    %v3315 = vunpack.c.l.b16 %v2498
    %v3316 = vunpack.c.h.b16 %v2498
    %v3317 = vunpack.c.l.b16 %v2499
    %v3318 = vunpack.c.h.b16 %v2499
    %v3319 = vunpack.c.l.b16 %v2500
    %v3320 = vunpack.c.h.b16 %v2500
    %v3321 = vunpack.c.l.b16 %v2501
    %v3322 = vunpack.c.h.b16 %v2501
    %v3323 = vunpack.c.l.b16 %v2502
    %v3324 = vunpack.c.h.b16 %v2502
    %v3325 = vunpack.c.l.b16 %v2503
    %v3326 = vunpack.c.h.b16 %v2503
    %v3327 = vunpack.c.l.b16 %v2504
    %v3328 = vunpack.c.h.b16 %v2504
    %v3329 = vunpack.c.l.b16 %v2505
    %v3330 = vunpack.c.h.b16 %v2505
    %v3331 = vunpack.c.l.b16 %v2506
    %v3332 = vunpack.c.h.b16 %v2506
    %v3333 = vunpack.c.l.b16 %v2507
    %v3334 = vunpack.c.h.b16 %v2507
    %v3335 = vunpack.c.l.b16 %v2508
    %v3336 = vunpack.c.h.b16 %v2508
    %v3337 = vunpack.c.l.b16 %v2509
    %v3338 = vunpack.c.h.b16 %v2509
    %v3339 = vunpack.c.l.b16 %v2510
    %v3340 = vunpack.c.h.b16 %v2510
    %v3341 = vunpack.c.l.b16 %v2511
    %v3342 = vunpack.c.h.b16 %v2511
    %v3343 = vunpack.c.l.b16 %v2512
    %v3344 = vunpack.c.h.b16 %v2512
    %v3345 = vunpack.c.l.b16 %v2513
    %v3346 = vunpack.c.h.b16 %v2513
    %v3347 = vunpack.c.l.b16 %v2514
    %v3348 = vunpack.c.h.b16 %v2514
    %v3349 = vunpack.c.l.b16 %v2515
    %v3350 = vunpack.c.h.b16 %v2515
    %v3351 = vunpack.c.l.b16 %v2516
    %v3352 = vunpack.c.h.b16 %v2516
    %v3353 = vunpack.c.l.b16 %v2517
    %v3354 = vunpack.c.h.b16 %v2517
    %v3355 = vunpack.c.l.b16 %v2518
    %v3356 = vunpack.c.h.b16 %v2518
    %v3357 = vunpack.c.l.b16 %v2519
    %v3358 = vunpack.c.h.b16 %v2519
    %v3359 = vunpack.c.l.b16 %v2520
    %v3360 = vunpack.c.h.b16 %v2520
    %v3361 = vunpack.c.l.b16 %v2521
    %v3362 = vunpack.c.h.b16 %v2521
    %v3363 = vunpack.c.l.b16 %v2522
    %v3364 = vunpack.c.h.b16 %v2522
    %v3365 = vunpack.c.l.b16 %v2523
    %v3366 = vunpack.c.h.b16 %v2523
    %v3367 = vunpack.c.l.b16 %v2524
    %v3368 = vunpack.c.h.b16 %v2524
    %v3369 = vunpack.c.l.b16 %v2525
    %v3370 = vunpack.c.h.b16 %v2525
    %v3371 = vunpack.c.l.b16 %v2526
    %v3372 = vunpack.c.h.b16 %v2526
    %v3373 = vunpack.c.l.b16 %v2527
    %v3374 = vunpack.c.h.b16 %v2527
    %v3375 = vunpack.c.l.b16 %v2528
    %v3376 = vunpack.c.h.b16 %v2528
    %v3377 = vunpack.c.l.b16 %v2529
    %v3378 = vunpack.c.h.b16 %v2529
    %v3379 = vunpack.c.l.b16 %v2530
    %v3380 = vunpack.c.h.b16 %v2530
    %v3381 = vunpack.c.l.b16 %v2531
    %v3382 = vunpack.c.h.b16 %v2531
    %v3383 = vunpack.c.l.b16 %v2532
    %v3384 = vunpack.c.h.b16 %v2532
    %v3385 = vunpack.c.l.b16 %v2533
    %v3386 = vunpack.c.h.b16 %v2533
    %v3387 = vunpack.c.l.b16 %v2534
    %v3388 = vunpack.c.h.b16 %v2534
    %v3389 = vunpack.c.l.b16 %v2535
    %v3390 = vunpack.c.h.b16 %v2535
    %v3391 = vunpack.c.l.b16 %v2536
    %v3392 = vunpack.c.h.b16 %v2536
    %v3393 = vunpack.c.l.b16 %v2537
    %v3394 = vunpack.c.h.b16 %v2537
    %v3395 = vunpack.c.l.b16 %v2538
    %v3396 = vunpack.c.h.b16 %v2538
    %v3397 = vunpack.c.l.b16 %v2539
    %v3398 = vunpack.c.h.b16 %v2539
    %v3399 = vunpack.c.l.b16 %v2540
    %v3400 = vunpack.c.h.b16 %v2540
    %v3401 = vunpack.c.l.b16 %v2541
    %v3402 = vunpack.c.h.b16 %v2541
    %v3403 = vunpack.c.l.b16 %v2542
    %v3404 = vunpack.c.h.b16 %v2542
    %v3405 = vunpack.c.l.b16 %v2543
    %v3406 = vunpack.c.h.b16 %v2543
    %v3407 = vunpack.c.l.b16 %v2544
    %v3408 = vunpack.c.h.b16 %v2544
    %v3409 = vunpack.c.l.b16 %v2545
    %v3410 = vunpack.c.h.b16 %v2545
    %v3411 = vunpack.c.l.b16 %v2546
    %v3412 = vunpack.c.h.b16 %v2546
    %v3413 = vunpack.c.l.b16 %v2547
    %v3414 = vunpack.c.h.b16 %v2547
    %v3415 = vunpack.c.l.b16 %v2548
    %v3416 = vunpack.c.h.b16 %v2548
    %v3417 = vunpack.c.l.b16 %v2549
    %v3418 = vunpack.c.h.b16 %v2549
    %v3419 = vunpack.c.l.b16 %v2550
    %v3420 = vunpack.c.h.b16 %v2550
    %v3421 = vunpack.c.l.b16 %v2551
    %v3422 = vunpack.c.h.b16 %v2551
    %v3423 = vunpack.c.l.b16 %v2552
    %v3424 = vunpack.c.h.b16 %v2552
    %v3425 = vunpack.c.l.b16 %v2553
    %v3426 = vunpack.c.h.b16 %v2553
    %v3427 = vunpack.c.l.b16 %v2554
    %v3428 = vunpack.c.h.b16 %v2554
    %v3429 = vunpack.c.l.b16 %v2555
    %v3430 = vunpack.c.h.b16 %v2555
    %v3431 = vunpack.c.l.b16 %v2556
    %v3432 = vunpack.c.h.b16 %v2556
    %v3433 = vunpack.c.l.b16 %v2557
    %v3434 = vunpack.c.h.b16 %v2557
    %v3435 = vunpack.c.l.b16 %v2558
    %v3436 = vunpack.c.h.b16 %v2558
    %v3437 = vunpack.c.l.b16 %v2559
    %v3438 = vunpack.c.h.b16 %v2559
    %v3439 = vunpack.c.l.b16 %v2560
    %v3440 = vunpack.c.h.b16 %v2560
    %v3441 = vunpack.c.l.b16 %v2561
    %v3442 = vunpack.c.h.b16 %v2561
    %v3443 = vunpack.c.l.b16 %v2562
    %v3444 = vunpack.c.h.b16 %v2562
    %v3445 = vunpack.c.l.b16 %v2563
    %v3446 = vunpack.c.h.b16 %v2563
    %v3447 = vunpack.c.l.b16 %v2564
    %v3448 = vunpack.c.h.b16 %v2564
    %v3449 = vunpack.c.l.b16 %v2565
    %v3450 = vunpack.c.h.b16 %v2565
    %v3451 = vunpack.c.l.b16 %v2566
    %v3452 = vunpack.c.h.b16 %v2566
    %v3453 = vunpack.c.l.b16 %v2567
    %v3454 = vunpack.c.h.b16 %v2567
    %v3455 = vunpack.c.l.b16 %v2568
    %v3456 = vunpack.c.h.b16 %v2568
    %v3457 = vunpack.c.l.b16 %v2569
    %v3458 = vunpack.c.h.b16 %v2569
    %v3459 = vunpack.c.l.b16 %v2570
    %v3460 = vunpack.c.h.b16 %v2570
    %v3461 = vunpack.c.l.b16 %v2571
    %v3462 = vunpack.c.h.b16 %v2571
    %v3463 = vunpack.c.l.b16 %v2572
    %v3464 = vunpack.c.h.b16 %v2572
    %v3465 = vunpack.c.l.b16 %v2573
    %v3466 = vunpack.c.h.b16 %v2573
    %v3467 = vunpack.c.l.b16 %v2574
    %v3468 = vunpack.c.h.b16 %v2574
    %v3469 = vunpack.c.l.b16 %v2575
    %v3470 = vunpack.c.h.b16 %v2575
    %v3471 = vunpack.c.l.b16 %v2576
    %v3472 = vunpack.c.h.b16 %v2576
    %v3473 = vunpack.c.l.b16 %v2577
    %v3474 = vunpack.c.h.b16 %v2577
    %v3475 = vunpack.c.l.b16 %v2578
    %v3476 = vunpack.c.h.b16 %v2578
    %v3477 = vunpack.c.l.b16 %v2579
    %v3478 = vunpack.c.h.b16 %v2579
    %v3479 = vunpack.c.l.b16 %v2580
    %v3480 = vunpack.c.h.b16 %v2580
    %v3481 = vunpack.c.l.b16 %v2581
    %v3482 = vunpack.c.h.b16 %v2581
    %v3483 = vunpack.c.l.b16 %v2582
    %v3484 = vunpack.c.h.b16 %v2582
    %v3485 = vunpack.c.l.b16 %v2583
    %v3486 = vunpack.c.h.b16 %v2583
    %v3487 = vunpack.c.l.b16 %v2584
    %v3488 = vunpack.c.h.b16 %v2584
    %v3489 = vunpack.c.l.b16 %v2585
    %v3490 = vunpack.c.h.b16 %v2585
    %v3491 = vunpack.c.l.b16 %v2586
    %v3492 = vunpack.c.h.b16 %v2586
    %v3493 = vunpack.c.l.b16 %v2587
    %v3494 = vunpack.c.h.b16 %v2587
    %v3495 = vunpack.c.l.b16 %v2588
    %v3496 = vunpack.c.h.b16 %v2588
    %v3497 = vunpack.c.l.b16 %v2589
    %v3498 = vunpack.c.h.b16 %v2589
    %v3499 = vunpack.c.l.b16 %v2590
    %v3500 = vunpack.c.h.b16 %v2590
    %v3501 = vunpack.c.l.b16 %v2591
    %v3502 = vunpack.c.h.b16 %v2591
    %v3503 = vunpack.c.l.b16 %v2592
    %v3504 = vunpack.c.h.b16 %v2592
    %v3505 = vunpack.c.l.b16 %v2593
    %v3506 = vunpack.c.h.b16 %v2593
    %v3507 = vunpack.c.l.b16 %v2594
    %v3508 = vunpack.c.h.b16 %v2594
    %v3509 = vunpack.c.l.b16 %v2595
    %v3510 = vunpack.c.h.b16 %v2595
    %v3511 = vunpack.c.l.b16 %v2596
    %v3512 = vunpack.c.h.b16 %v2596
    %v3513 = vunpack.c.l.b16 %v2597
    %v3514 = vunpack.c.h.b16 %v2597
    %v3515 = vunpack.c.l.b16 %v2598
    %v3516 = vunpack.c.h.b16 %v2598
    %v3517 = vunpack.c.l.b16 %v2599
    %v3518 = vunpack.c.h.b16 %v2599
    %v3519 = vunpack.c.l.b16 %v2600
    %v3520 = vunpack.c.h.b16 %v2600
    %v3521 = vunpack.c.l.b16 %v2601
    %v3522 = vunpack.c.h.b16 %v2601
    %v3523 = vunpack.c.l.b16 %v2602
    %v3524 = vunpack.c.h.b16 %v2602
    %v3525 = vunpack.c.l.b16 %v2603
    %v3526 = vunpack.c.h.b16 %v2603
    %v3527 = vunpack.c.l.b16 %v2604
    %v3528 = vunpack.c.h.b16 %v2604
    %v3529 = vunpack.c.l.b16 %v2605
    %v3530 = vunpack.c.h.b16 %v2605
    %v3531 = vunpack.c.l.b16 %v2606
    %v3532 = vunpack.c.h.b16 %v2606
    %v3533 = vunpack.c.l.b16 %v2607
    %v3534 = vunpack.c.h.b16 %v2607
    %v3535 = vunpack.c.l.b16 %v2608
    %v3536 = vunpack.c.h.b16 %v2608
    %v3537 = vunpack.c.l.b16 %v2609
    %v3538 = vunpack.c.h.b16 %v2609
    %v3539 = vunpack.c.l.b16 %v2610
    %v3540 = vunpack.c.h.b16 %v2610
    %v3541 = vunpack.c.l.b16 %v2611
    %v3542 = vunpack.c.h.b16 %v2611
    %v3543 = vunpack.c.l.b16 %v2612
    %v3544 = vunpack.c.h.b16 %v2612
    %v3545 = vunpack.c.l.b16 %v2613
    %v3546 = vunpack.c.h.b16 %v2613
    %v3547 = vunpack.c.l.b16 %v2614
    %v3548 = vunpack.c.h.b16 %v2614
    %v3549 = vunpack.c.l.b16 %v2615
    %v3550 = vunpack.c.h.b16 %v2615
    %v3551 = vunpack.c.l.b16 %v2616
    %v3552 = vunpack.c.h.b16 %v2616
    %v3553 = vunpack.c.l.b16 %v2617
    %v3554 = vunpack.c.h.b16 %v2617
    %v3555 = vunpack.c.l.b16 %v2618
    %v3556 = vunpack.c.h.b16 %v2618
    %v3557 = vunpack.c.l.b16 %v2619
    %v3558 = vunpack.c.h.b16 %v2619
    %v3559 = vunpack.c.l.b16 %v2620
    %v3560 = vunpack.c.h.b16 %v2620
    %v3561 = vunpack.c.l.b16 %v2621
    %v3562 = vunpack.c.h.b16 %v2621
    %v3563 = vunpack.c.l.b16 %v2622
    %v3564 = vunpack.c.h.b16 %v2622
    %v3565 = vunpack.c.l.b16 %v2623
    %v3566 = vunpack.c.h.b16 %v2623
    %v3567 = vunpack.c.l.b16 %v2624
    %v3568 = vunpack.c.h.b16 %v2624
    %v3569 = vunpack.c.l.b16 %v2625
    %v3570 = vunpack.c.h.b16 %v2625
    %v3571 = vunpack.c.l.b16 %v2626
    %v3572 = vunpack.c.h.b16 %v2626
    %v3573 = vunpack.c.l.b16 %v2627
    %v3574 = vunpack.c.h.b16 %v2627
    %v3575 = vunpack.c.l.b16 %v2628
    %v3576 = vunpack.c.h.b16 %v2628
    %v3577 = vunpack.c.l.b16 %v2629
    %v3578 = vunpack.c.h.b16 %v2629
    %v3579 = vunpack.c.l.b16 %v2630
    %v3580 = vunpack.c.h.b16 %v2630
    %v3581 = vunpack.c.l.b16 %v2631
    %v3582 = vunpack.c.h.b16 %v2631
    %v3583 = vunpack.c.l.b16 %v2632
    %v3584 = vunpack.c.h.b16 %v2632
    %v3585 = vunpack.c.l.b16 %v2633
    %v3586 = vunpack.c.h.b16 %v2633
    %v3587 = vunpack.c.l.b16 %v2634
    %v3588 = vunpack.c.h.b16 %v2634
    %v3589 = vunpack.c.l.b16 %v2635
    %v3590 = vunpack.c.h.b16 %v2635
    %v3591 = vunpack.c.l.b16 %v2636
    %v3592 = vunpack.c.h.b16 %v2636
    %v3593 = vunpack.c.l.b16 %v2637
    %v3594 = vunpack.c.h.b16 %v2637
    %v3595 = vunpack.c.l.b16 %v2638
    %v3596 = vunpack.c.h.b16 %v2638
    %v3597 = vunpack.c.l.b16 %v2639
    %v3598 = vunpack.c.h.b16 %v2639
    %v3599 = vunpack.c.l.b16 %v2640
    %v3600 = vunpack.c.h.b16 %v2640
    %v3601 = vunpack.c.l.b16 %v2641
    %v3602 = vunpack.c.h.b16 %v2641
    %v3603 = vunpack.c.l.b16 %v2642
    %v3604 = vunpack.c.h.b16 %v2642
    %v3605 = vunpack.c.l.b16 %v2643
    %v3606 = vunpack.c.h.b16 %v2643
    %v3607 = vunpack.c.l.b16 %v2644
    %v3608 = vunpack.c.h.b16 %v2644
    %v3609 = vunpack.c.l.b16 %v2645
    %v3610 = vunpack.c.h.b16 %v2645
    %v3611 = vunpack.c.l.b16 %v2646
    %v3612 = vunpack.c.h.b16 %v2646
    %v3613 = vunpack.c.l.b16 %v2647
    %v3614 = vunpack.c.h.b16 %v2647
    %v3615 = vunpack.c.l.b16 %v2648
    %v3616 = vunpack.c.h.b16 %v2648
    %v3617 = vunpack.c.l.b16 %v2649
    %v3618 = vunpack.c.h.b16 %v2649
    %v3619 = vunpack.c.l.b16 %v2650
    %v3620 = vunpack.c.h.b16 %v2650
    %v3621 = vunpack.c.l.b16 %v2651
    %v3622 = vunpack.c.h.b16 %v2651
    %v3623 = vunpack.c.l.b16 %v2652
    %v3624 = vunpack.c.h.b16 %v2652
    %v3625 = vunpack.c.l.b16 %v2653
    %v3626 = vunpack.c.h.b16 %v2653
    %v3627 = vunpack.c.l.b16 %v2654
    %v3628 = vunpack.c.h.b16 %v2654
    %v3629 = vunpack.c.l.b16 %v2655
    %v3630 = vunpack.c.h.b16 %v2655
    %v3631 = vunpack.c.l.b16 %v2656
    %v3632 = vunpack.c.h.b16 %v2656
    %v3633 = vunpack.c.l.b16 %v2657
    %v3634 = vunpack.c.h.b16 %v2657
    %v3635 = vunpack.c.l.b16 %v2658
    %v3636 = vunpack.c.h.b16 %v2658
    %v3637 = vunpack.c.l.b16 %v2659
    %v3638 = vunpack.c.h.b16 %v2659
    %v3639 = vunpack.c.l.b16 %v2660
    %v3640 = vunpack.c.h.b16 %v2660
    %v3641 = vunpack.c.l.b16 %v2661
    %v3642 = vunpack.c.h.b16 %v2661
    %v3643 = vunpack.c.l.b16 %v2662
    %v3644 = vunpack.c.h.b16 %v2662
    %v3645 = vunpack.c.l.b16 %v2663
    %v3646 = vunpack.c.h.b16 %v2663
    %v3647 = vunpack.c.l.b16 %v2664
    %v3648 = vunpack.c.h.b16 %v2664
    %v3649 = vunpack.c.l.b16 %v2665
    %v3650 = vunpack.c.h.b16 %v2665
    %v3651 = vunpack.c.l.b16 %v2666
    %v3652 = vunpack.c.h.b16 %v2666
    %v3653 = vunpack.c.l.b16 %v2667
    %v3654 = vunpack.c.h.b16 %v2667
    %v3655 = vunpack.c.l.b16 %v2668
    %v3656 = vunpack.c.h.b16 %v2668
    %v3657 = vunpack.c.l.b16 %v2669
    %v3658 = vunpack.c.h.b16 %v2669
    %v3659 = vunpack.c.l.b16 %v2670
    %v3660 = vunpack.c.h.b16 %v2670
    %v3661 = vunpack.c.l.b16 %v2671
    %v3662 = vunpack.c.h.b16 %v2671
    %v3663 = vunpack.c.l.b16 %v2672
    %v3664 = vunpack.c.h.b16 %v2672
    %v3665 = vunpack.c.l.b16 %v2673
    %v3666 = vunpack.c.h.b16 %v2673
    %v3667 = vunpack.c.l.b16 %v2674
    %v3668 = vunpack.c.h.b16 %v2674
    %v3669 = vunpack.c.l.b16 %v2675
    %v3670 = vunpack.c.h.b16 %v2675
    %v3671 = vunpack.c.l.b16 %v2676
    %v3672 = vunpack.c.h.b16 %v2676
    %v3673 = vunpack.c.l.b16 %v2677
    %v3674 = vunpack.c.h.b16 %v2677
    %v3675 = vunpack.c.l.b16 %v2678
    %v3676 = vunpack.c.h.b16 %v2678
    %v3677 = vunpack.c.l.b16 %v2679
    %v3678 = vunpack.c.h.b16 %v2679
    %v3679 = vunpack.c.l.b16 %v2680
    %v3680 = vunpack.c.h.b16 %v2680
    %v3681 = vunpack.c.l.b16 %v2681
    %v3682 = vunpack.c.h.b16 %v2681
    %v3683 = vunpack.c.l.b16 %v2682
    %v3684 = vunpack.c.h.b16 %v2682
    %v3685 = vunpack.c.l.b16 %v2683
    %v3686 = vunpack.c.h.b16 %v2683
    %v3687 = vunpack.c.l.b16 %v2684
    %v3688 = vunpack.c.h.b16 %v2684
    %v3689 = vunpack.c.l.b16 %v2685
    %v3690 = vunpack.c.h.b16 %v2685
    %v3691 = vunpack.c.l.b16 %v2686
    %v3692 = vunpack.c.h.b16 %v2686
    %v3693 = vunpack.c.l.b16 %v2687
    %v3694 = vunpack.c.h.b16 %v2687
    %v3695 = vunpack.c.l.b16 %v2688
    %v3696 = vunpack.c.h.b16 %v2688
    %v3697 = vunpack.c.l.b16 %v2689
    %v3698 = vunpack.c.h.b16 %v2689
    %v3699 = vunpack.c.l.b16 %v2690
    %v3700 = vunpack.c.h.b16 %v2690
    %v3701 = vunpack.c.l.b16 %v2691
    %v3702 = vunpack.c.h.b16 %v2691
    %v3703 = vunpack.c.l.b16 %v2692
    %v3704 = vunpack.c.h.b16 %v2692
    %v3705 = vunpack.c.l.b16 %v2693
    %v3706 = vunpack.c.h.b16 %v2693
    %v3707 = vunpack.c.l.b16 %v2694
    %v3708 = vunpack.c.h.b16 %v2694
    %v3709 = vunpack.c.l.b16 %v2695
    %v3710 = vunpack.c.h.b16 %v2695
    %v3711 = vunpack.c.l.b16 %v2696
    %v3712 = vunpack.c.h.b16 %v2696
    %v3713 = vunpack.c.l.b16 %v2697
    %v3714 = vunpack.c.h.b16 %v2697
    %v3715 = vunpack.c.l.b16 %v2698
    %v3716 = vunpack.c.h.b16 %v2698
    %v3717 = vunpack.c.l.b16 %v2699
    %v3718 = vunpack.c.h.b16 %v2699
    %v3719 = vunpack.c.l.b16 %v2700
    %v3720 = vunpack.c.h.b16 %v2700
    %v3721 = vunpack.c.l.b16 %v2701
    %v3722 = vunpack.c.h.b16 %v2701
    %v3723 = vunpack.c.l.b16 %v2702
    %v3724 = vunpack.c.h.b16 %v2702
    %v3725 = vunpack.c.l.b16 %v2703
    %v3726 = vunpack.c.h.b16 %v2703
    %v3727 = vunpack.c.l.b16 %v2704
    %v3728 = vunpack.c.h.b16 %v2704
    %v3729 = vunpack.c.l.b16 %v2705
    %v3730 = vunpack.c.h.b16 %v2705
    %v3731 = vunpack.c.l.b16 %v2706
    %v3732 = vunpack.c.h.b16 %v2706
    %v3733 = vunpack.c.l.b16 %v2707
    %v3734 = vunpack.c.h.b16 %v2707
    %v3735 = vunpack.c.l.b16 %v2708
    %v3736 = vunpack.c.h.b16 %v2708
    %v3737 = vunpack.c.l.b16 %v2709
    %v3738 = vunpack.c.h.b16 %v2709
    %v3739 = vunpack.c.l.b16 %v2710
    %v3740 = vunpack.c.h.b16 %v2710
    %v3741 = vunpack.c.l.b16 %v2711
    %v3742 = vunpack.c.h.b16 %v2711
    %v3743 = vunpack.c.l.b16 %v2712
    %v3744 = vunpack.c.h.b16 %v2712
    %v3745 = vunpack.c.l.b16 %v2713
    %v3746 = vunpack.c.h.b16 %v2713
    %v3747 = vunpack.c.l.b16 %v2714
    %v3748 = vunpack.c.h.b16 %v2714
    %v3749 = vunpack.c.l.b16 %v2715
    %v3750 = vunpack.c.h.b16 %v2715
    %v3751 = vunpack.c.l.b16 %v2716
    %v3752 = vunpack.c.h.b16 %v2716
    %v3753 = vunpack.c.l.b16 %v2717
    %v3754 = vunpack.c.h.b16 %v2717
    %v3755 = vunpack.c.l.b16 %v2718
    %v3756 = vunpack.c.h.b16 %v2718
    %v3757 = vpack.c.b16 %v3071, %v3069
    %v3758 = vpack.c.b16 %v3072, %v3070
    %v3759 = vpack.c.b16 %v3075, %v3073
    %v3760 = vpack.c.b16 %v3076, %v3074
    %v3761 = vpack.c.b16 %v3079, %v3077
    %v3762 = vpack.c.b16 %v3080, %v3078
    %v3763 = vpack.c.b16 %v3083, %v3081
    %v3764 = vpack.c.b16 %v3084, %v3082
    %v3765 = vpack.c.b16 %v3087, %v3085
    %v3766 = vpack.c.b16 %v3088, %v3086
    %v3767 = vpack.c.b16 %v3091, %v3089
    %v3768 = vpack.c.b16 %v3092, %v3090
    %v3769 = vpack.c.b16 %v3095, %v3093
    %v3770 = vpack.c.b16 %v3096, %v3094
    %v3771 = vpack.c.b16 %v3099, %v3097
    %v3772 = vpack.c.b16 %v3100, %v3098
    %v3773 = vpack.c.b16 %v3103, %v3101
    %v3774 = vpack.c.b16 %v3104, %v3102
    %v3775 = vpack.c.b16 %v3107, %v3105
    %v3776 = vpack.c.b16 %v3108, %v3106
    %v3777 = vpack.c.b16 %v3111, %v3109
    %v3778 = vpack.c.b16 %v3112, %v3110
    %v3779 = vpack.c.b16 %v3115, %v3113
    %v3780 = vpack.c.b16 %v3116, %v3114
    %v3781 = vpack.c.b16 %v3119, %v3117
    %v3782 = vpack.c.b16 %v3120, %v3118
    %v3783 = vpack.c.b16 %v3123, %v3121
    %v3784 = vpack.c.b16 %v3124, %v3122
    %v3785 = vpack.c.b16 %v3127, %v3125
    %v3786 = vpack.c.b16 %v3128, %v3126
    %v3787 = vpack.c.b16 %v3131, %v3129
    %v3788 = vpack.c.b16 %v3132, %v3130
    %v3789 = vpack.c.b16 %v3135, %v3133
    %v3790 = vpack.c.b16 %v3136, %v3134
    %v3791 = vpack.c.b16 %v3139, %v3137
    %v3792 = vpack.c.b16 %v3140, %v3138
    %v3793 = vpack.c.b16 %v3143, %v3141
    %v3794 = vpack.c.b16 %v3144, %v3142
    %v3795 = vpack.c.b16 %v3147, %v3145
    %v3796 = vpack.c.b16 %v3148, %v3146
    %v3797 = vpack.c.b16 %v3151, %v3149
    %v3798 = vpack.c.b16 %v3152, %v3150
    %v3799 = vpack.c.b16 %v3155, %v3153
    %v3800 = vpack.c.b16 %v3156, %v3154
    %v3801 = vpack.c.b16 %v3159, %v3157
    %v3802 = vpack.c.b16 %v3160, %v3158
    %v3803 = vpack.c.b16 %v3163, %v3161
    %v3804 = vpack.c.b16 %v3164, %v3162
    %v3805 = vpack.c.b16 %v3167, %v3165
    %v3806 = vpack.c.b16 %v3168, %v3166
    %v3807 = vpack.c.b16 %v3171, %v3169
    %v3808 = vpack.c.b16 %v3172, %v3170
    %v3809 = vpack.c.b16 %v3175, %v3173
    %v3810 = vpack.c.b16 %v3176, %v3174
    %v3811 = vpack.c.b16 %v3179, %v3177
    %v3812 = vpack.c.b16 %v3180, %v3178
    %v3813 = vpack.c.b16 %v3183, %v3181
    %v3814 = vpack.c.b16 %v3184, %v3182
    %v3815 = vpack.c.b16 %v3187, %v3185
    %v3816 = vpack.c.b16 %v3188, %v3186
    %v3817 = vpack.c.b16 %v3191, %v3189
    %v3818 = vpack.c.b16 %v3192, %v3190
    %v3819 = vpack.c.b16 %v3195, %v3193
    %v3820 = vpack.c.b16 %v3196, %v3194
    %v3821 = vpack.c.b16 %v3199, %v3197
    %v3822 = vpack.c.b16 %v3200, %v3198
    %v3823 = vpack.c.b16 %v3203, %v3201
    %v3824 = vpack.c.b16 %v3204, %v3202
    %v3825 = vpack.c.b16 %v3207, %v3205
    %v3826 = vpack.c.b16 %v3208, %v3206
    %v3827 = vpack.c.b16 %v3211, %v3209
    %v3828 = vpack.c.b16 %v3212, %v3210
    %v3829 = vpack.c.b16 %v3215, %v3213
    %v3830 = vpack.c.b16 %v3216, %v3214
    %v3831 = vpack.c.b16 %v3219, %v3217
    %v3832 = vpack.c.b16 %v3220, %v3218
    %v3833 = vpack.c.b16 %v3223, %v3221
    %v3834 = vpack.c.b16 %v3224, %v3222
    %v3835 = vpack.c.b16 %v3227, %v3225
    %v3836 = vpack.c.b16 %v3228, %v3226
    %v3837 = vpack.c.b16 %v3231, %v3229
    %v3838 = vpack.c.b16 %v3232, %v3230
    %v3839 = vpack.c.b16 %v3235, %v3233
    %v3840 = vpack.c.b16 %v3236, %v3234
    %v3841 = vpack.c.b16 %v3239, %v3237
    %v3842 = vpack.c.b16 %v3240, %v3238
    %v3843 = vpack.c.b16 %v3243, %v3241
    %v3844 = vpack.c.b16 %v3244, %v3242
    %v3845 = vpack.c.b16 %v3247, %v3245
    %v3846 = vpack.c.b16 %v3248, %v3246
    %v3847 = vpack.c.b16 %v3251, %v3249
    %v3848 = vpack.c.b16 %v3252, %v3250
    %v3849 = vpack.c.b16 %v3255, %v3253
    %v3850 = vpack.c.b16 %v3256, %v3254
    %v3851 = vpack.c.b16 %v3259, %v3257
    %v3852 = vpack.c.b16 %v3260, %v3258
    %v3853 = vpack.c.b16 %v3263, %v3261
    %v3854 = vpack.c.b16 %v3264, %v3262
    %v3855 = vpack.c.b16 %v3267, %v3265
    %v3856 = vpack.c.b16 %v3268, %v3266
    %v3857 = vpack.c.b16 %v3271, %v3269
    %v3858 = vpack.c.b16 %v3272, %v3270
    %v3859 = vpack.c.b16 %v3275, %v3273
    %v3860 = vpack.c.b16 %v3276, %v3274
    %v3861 = vpack.c.b16 %v3279, %v3277
    %v3862 = vpack.c.b16 %v3280, %v3278
    %v3863 = vpack.c.b16 %v3283, %v3281
    %v3864 = vpack.c.b16 %v3284, %v3282
    %v3865 = vpack.c.b16 %v3287, %v3285
    %v3866 = vpack.c.b16 %v3288, %v3286
    %v3867 = vpack.c.b16 %v3291, %v3289
    %v3868 = vpack.c.b16 %v3292, %v3290
    %v3869 = vpack.c.b16 %v3295, %v3293
    %v3870 = vpack.c.b16 %v3296, %v3294
    %v3871 = vpack.c.b16 %v3299, %v3297
    %v3872 = vpack.c.b16 %v3300, %v3298
    %v3873 = vpack.c.b16 %v3303, %v3301
    %v3874 = vpack.c.b16 %v3304, %v3302
    %v3875 = vpack.c.b16 %v3307, %v3305
    %v3876 = vpack.c.b16 %v3308, %v3306
    %v3877 = vpack.c.b16 %v3311, %v3309
    %v3878 = vpack.c.b16 %v3312, %v3310
    %v3879 = vpack.c.b16 %v3315, %v3313
    %v3880 = vpack.c.b16 %v3316, %v3314
    %v3881 = vpack.c.b16 %v3319, %v3317
    %v3882 = vpack.c.b16 %v3320, %v3318
    %v3883 = vpack.c.b16 %v3323, %v3321
    %v3884 = vpack.c.b16 %v3324, %v3322
    %v3885 = vpack.c.b16 %v3327, %v3325
    %v3886 = vpack.c.b16 %v3328, %v3326
    %v3887 = vpack.c.b16 %v3331, %v3329
    %v3888 = vpack.c.b16 %v3332, %v3330
    %v3889 = vpack.c.b16 %v3335, %v3333
    %v3890 = vpack.c.b16 %v3336, %v3334
    %v3891 = vpack.c.b16 %v3339, %v3337
    %v3892 = vpack.c.b16 %v3340, %v3338
    %v3893 = vpack.c.b16 %v3343, %v3341
    %v3894 = vpack.c.b16 %v3344, %v3342
    %v3895 = vpack.c.b16 %v3347, %v3345
    %v3896 = vpack.c.b16 %v3348, %v3346
    %v3897 = vpack.c.b16 %v3351, %v3349
    %v3898 = vpack.c.b16 %v3352, %v3350
    %v3899 = vpack.c.b16 %v3355, %v3353
    %v3900 = vpack.c.b16 %v3356, %v3354
    %v3901 = vpack.c.b16 %v3359, %v3357
    %v3902 = vpack.c.b16 %v3360, %v3358
    %v3903 = vpack.c.b16 %v3363, %v3361
    %v3904 = vpack.c.b16 %v3364, %v3362
    %v3905 = vpack.c.b16 %v3367, %v3365
    %v3906 = vpack.c.b16 %v3368, %v3366
    %v3907 = vpack.c.b16 %v3371, %v3369
    %v3908 = vpack.c.b16 %v3372, %v3370
    %v3909 = vpack.c.b16 %v3375, %v3373
    %v3910 = vpack.c.b16 %v3376, %v3374
    %v3911 = vpack.c.b16 %v3379, %v3377
    %v3912 = vpack.c.b16 %v3380, %v3378
    %v3913 = vpack.c.b16 %v3383, %v3381
    %v3914 = vpack.c.b16 %v3384, %v3382
    %v3915 = vpack.c.b16 %v3387, %v3385
    %v3916 = vpack.c.b16 %v3388, %v3386
    %v3917 = vpack.c.b16 %v3391, %v3389
    %v3918 = vpack.c.b16 %v3392, %v3390
    %v3919 = vpack.c.b16 %v3395, %v3393
    %v3920 = vpack.c.b16 %v3396, %v3394
    %v3921 = vpack.c.b16 %v3399, %v3397
    %v3922 = vpack.c.b16 %v3400, %v3398
    %v3923 = vpack.c.b16 %v3403, %v3401
    %v3924 = vpack.c.b16 %v3404, %v3402
    %v3925 = vpack.c.b16 %v3407, %v3405
    %v3926 = vpack.c.b16 %v3408, %v3406
    %v3927 = vpack.c.b16 %v3411, %v3409
    %v3928 = vpack.c.b16 %v3412, %v3410
    %v3929 = vpack.c.b16 %v3415, %v3413
    %v3930 = vpack.c.b16 %v3416, %v3414
    %v3931 = vpack.c.b16 %v3419, %v3417
    %v3932 = vpack.c.b16 %v3420, %v3418
    %v3933 = vpack.c.b16 %v3423, %v3421
    %v3934 = vpack.c.b16 %v3424, %v3422
    %v3935 = vpack.c.b16 %v3427, %v3425
    %v3936 = vpack.c.b16 %v3428, %v3426
    %v3937 = vpack.c.b16 %v3431, %v3429
    %v3938 = vpack.c.b16 %v3432, %v3430
    %v3939 = vpack.c.b16 %v3435, %v3433
    %v3940 = vpack.c.b16 %v3436, %v3434
    %v3941 = vpack.c.b16 %v3439, %v3437
    %v3942 = vpack.c.b16 %v3440, %v3438
    %v3943 = vpack.c.b16 %v3443, %v3441
    %v3944 = vpack.c.b16 %v3444, %v3442
    %v3945 = vpack.c.b16 %v3447, %v3445
    %v3946 = vpack.c.b16 %v3448, %v3446
    %v3947 = vpack.c.b16 %v3451, %v3449
    %v3948 = vpack.c.b16 %v3452, %v3450
    %v3949 = vpack.c.b16 %v3455, %v3453
    %v3950 = vpack.c.b16 %v3456, %v3454
    %v3951 = vpack.c.b16 %v3459, %v3457
    %v3952 = vpack.c.b16 %v3460, %v3458
    %v3953 = vpack.c.b16 %v3463, %v3461
    %v3954 = vpack.c.b16 %v3464, %v3462
    %v3955 = vpack.c.b16 %v3467, %v3465
    %v3956 = vpack.c.b16 %v3468, %v3466
    %v3957 = vpack.c.b16 %v3471, %v3469
    %v3958 = vpack.c.b16 %v3472, %v3470
    %v3959 = vpack.c.b16 %v3475, %v3473
    %v3960 = vpack.c.b16 %v3476, %v3474
    %v3961 = vpack.c.b16 %v3479, %v3477
    %v3962 = vpack.c.b16 %v3480, %v3478
    %v3963 = vpack.c.b16 %v3483, %v3481
    %v3964 = vpack.c.b16 %v3484, %v3482
    %v3965 = vpack.c.b16 %v3487, %v3485
    %v3966 = vpack.c.b16 %v3488, %v3486
    %v3967 = vpack.c.b16 %v3491, %v3489
    %v3968 = vpack.c.b16 %v3492, %v3490
    %v3969 = vpack.c.b16 %v3495, %v3493
    %v3970 = vpack.c.b16 %v3496, %v3494
    %v3971 = vpack.c.b16 %v3499, %v3497
    %v3972 = vpack.c.b16 %v3500, %v3498
    %v3973 = vpack.c.b16 %v3503, %v3501
    %v3974 = vpack.c.b16 %v3504, %v3502
    %v3975 = vpack.c.b16 %v3507, %v3505
    %v3976 = vpack.c.b16 %v3508, %v3506
    %v3977 = vpack.c.b16 %v3511, %v3509
    %v3978 = vpack.c.b16 %v3512, %v3510
    %v3979 = vpack.c.b16 %v3515, %v3513
    %v3980 = vpack.c.b16 %v3516, %v3514
    %v3981 = vpack.c.b16 %v3519, %v3517
    %v3982 = vpack.c.b16 %v3520, %v3518
    %v3983 = vpack.c.b16 %v3523, %v3521
    %v3984 = vpack.c.b16 %v3524, %v3522
    %v3985 = vpack.c.b16 %v3527, %v3525
    %v3986 = vpack.c.b16 %v3528, %v3526
    %v3987 = vpack.c.b16 %v3531, %v3529
    %v3988 = vpack.c.b16 %v3532, %v3530
    %v3989 = vpack.c.b16 %v3535, %v3533
    %v3990 = vpack.c.b16 %v3536, %v3534
    %v3991 = vpack.c.b16 %v3539, %v3537
    %v3992 = vpack.c.b16 %v3540, %v3538
    %v3993 = vpack.c.b16 %v3543, %v3541
    %v3994 = vpack.c.b16 %v3544, %v3542
    %v3995 = vpack.c.b16 %v3547, %v3545
    %v3996 = vpack.c.b16 %v3548, %v3546
    %v3997 = vpack.c.b16 %v3551, %v3549
    %v3998 = vpack.c.b16 %v3552, %v3550
    %v3999 = vpack.c.b16 %v3555, %v3553
    %v4000 = vpack.c.b16 %v3556, %v3554
    %v4001 = vpack.c.b16 %v3559, %v3557
    %v4002 = vpack.c.b16 %v3560, %v3558
    %v4003 = vpack.c.b16 %v3563, %v3561
    %v4004 = vpack.c.b16 %v3564, %v3562
    %v4005 = vpack.c.b16 %v3567, %v3565
    %v4006 = vpack.c.b16 %v3568, %v3566
    %v4007 = vpack.c.b16 %v3571, %v3569
    %v4008 = vpack.c.b16 %v3572, %v3570
    %v4009 = vpack.c.b16 %v3575, %v3573
    %v4010 = vpack.c.b16 %v3576, %v3574
    %v4011 = vpack.c.b16 %v3579, %v3577
    %v4012 = vpack.c.b16 %v3580, %v3578
    %v4013 = vpack.c.b16 %v3583, %v3581
    %v4014 = vpack.c.b16 %v3584, %v3582
    %v4015 = vpack.c.b16 %v3587, %v3585
    %v4016 = vpack.c.b16 %v3588, %v3586
    %v4017 = vpack.c.b16 %v3591, %v3589
    %v4018 = vpack.c.b16 %v3592, %v3590
    %v4019 = vpack.c.b16 %v3595, %v3593
    %v4020 = vpack.c.b16 %v3596, %v3594
    %v4021 = vpack.c.b16 %v3599, %v3597
    %v4022 = vpack.c.b16 %v3600, %v3598
    %v4023 = vpack.c.b16 %v3603, %v3601
    %v4024 = vpack.c.b16 %v3604, %v3602
    %v4025 = vpack.c.b16 %v3607, %v3605
    %v4026 = vpack.c.b16 %v3608, %v3606
    %v4027 = vpack.c.b16 %v3611, %v3609
    %v4028 = vpack.c.b16 %v3612, %v3610
    %v4029 = vpack.c.b16 %v3615, %v3613
    %v4030 = vpack.c.b16 %v3616, %v3614
    %v4031 = vpack.c.b16 %v3619, %v3617
    %v4032 = vpack.c.b16 %v3620, %v3618
    %v4033 = vpack.c.b16 %v3623, %v3621
    %v4034 = vpack.c.b16 %v3624, %v3622
    %v4035 = vpack.c.b16 %v3627, %v3625
    %v4036 = vpack.c.b16 %v3628, %v3626
    %v4037 = vpack.c.b16 %v3631, %v3629
    %v4038 = vpack.c.b16 %v3632, %v3630
    %v4039 = vpack.c.b16 %v3635, %v3633
    %v4040 = vpack.c.b16 %v3636, %v3634
    %v4041 = vpack.c.b16 %v3639, %v3637
    %v4042 = vpack.c.b16 %v3640, %v3638
    %v4043 = vpack.c.b16 %v3643, %v3641
    %v4044 = vpack.c.b16 %v3644, %v3642
    %v4045 = vpack.c.b16 %v3647, %v3645
    %v4046 = vpack.c.b16 %v3648, %v3646
    %v4047 = vpack.c.b16 %v3651, %v3649
    %v4048 = vpack.c.b16 %v3652, %v3650
    %v4049 = vpack.c.b16 %v3655, %v3653
    %v4050 = vpack.c.b16 %v3656, %v3654
    %v4051 = vpack.c.b16 %v3659, %v3657
    %v4052 = vpack.c.b16 %v3660, %v3658
    %v4053 = vpack.c.b16 %v3663, %v3661
    %v4054 = vpack.c.b16 %v3664, %v3662
    %v4055 = vpack.c.b16 %v3667, %v3665
    %v4056 = vpack.c.b16 %v3668, %v3666
    %v4057 = vpack.c.b16 %v3671, %v3669
    %v4058 = vpack.c.b16 %v3672, %v3670
    %v4059 = vpack.c.b16 %v3675, %v3673
    %v4060 = vpack.c.b16 %v3676, %v3674
    %v4061 = vpack.c.b16 %v3679, %v3677
    %v4062 = vpack.c.b16 %v3680, %v3678
    %v4063 = vpack.c.b16 %v3683, %v3681
    %v4064 = vpack.c.b16 %v3684, %v3682
    %v4065 = vpack.c.b16 %v3687, %v3685
    %v4066 = vpack.c.b16 %v3688, %v3686
    %v4067 = vpack.c.b16 %v3691, %v3689
    %v4068 = vpack.c.b16 %v3692, %v3690
    %v4069 = vpack.c.b16 %v3695, %v3693
    %v4070 = vpack.c.b16 %v3696, %v3694
    %v4071 = vpack.c.b16 %v3699, %v3697
    %v4072 = vpack.c.b16 %v3700, %v3698
    %v4073 = vpack.c.b16 %v3703, %v3701
    %v4074 = vpack.c.b16 %v3704, %v3702
    %v4075 = vpack.c.b16 %v3707, %v3705
    %v4076 = vpack.c.b16 %v3708, %v3706
    %v4077 = vpack.c.b16 %v3711, %v3709
    %v4078 = vpack.c.b16 %v3712, %v3710
    %v4079 = vpack.c.b16 %v3715, %v3713
    %v4080 = vpack.c.b16 %v3716, %v3714
    %v4081 = vpack.c.b16 %v3719, %v3717
    %v4082 = vpack.c.b16 %v3720, %v3718
    %v4083 = vpack.c.b16 %v3723, %v3721
    %v4084 = vpack.c.b16 %v3724, %v3722
    %v4085 = vpack.c.b16 %v3727, %v3725
    %v4086 = vpack.c.b16 %v3728, %v3726
    %v4087 = vpack.c.b16 %v3731, %v3729
    %v4088 = vpack.c.b16 %v3732, %v3730
    %v4089 = vpack.c.b16 %v3735, %v3733
    %v4090 = vpack.c.b16 %v3736, %v3734
    %v4091 = vpack.c.b16 %v3739, %v3737
    %v4092 = vpack.c.b16 %v3740, %v3738
    %v4093 = vpack.c.b16 %v3743, %v3741
    %v4094 = vpack.c.b16 %v3744, %v3742
    %v4095 = vpack.c.b16 %v3747, %v3745
    %v4096 = vpack.c.b16 %v3748, %v3746
    %v4097 = vpack.c.b16 %v3751, %v3749
    %v4098 = vpack.c.b16 %v3752, %v3750
    %v4099 = vpack.c.b16 %v3755, %v3753
    %v4100 = vpack.c.b16 %v3756, %v3754
    %vm4445 = vcmask 523264
    %v4447 = vsel %vm4445, %v2374, 0
    %4449 = vmatpush.bf16.msra.mxu0 %v3771
    %4450 = vmatpush.bf16.msra.mxu0 %v3769
    %4451 = vmatpush.bf16.msra.mxu0 %v3767
    %4452 = vmatpush.bf16.msra.mxu0 %v3765
    %4453 = vmatpush.bf16.msra.mxu0 %v3763
    %4454 = vmatpush.bf16.msra.mxu0 %v3761
    %4455 = vmatpush.bf16.msra.mxu0 %v3759
    %4456 = vmatpush.bf16.msra.mxu0 %v3757
    %4457 = vmatmul.bf16.gmra.mxu0 %v2353
    %v4458 = vpop.f32.mrf.mxu0
    %v4459 = vadd.f32 %v2721, %v4458
    %v4460 = vpop.f32.mrf.mxu0
    %v4461 = vadd.f32 %v2721, %v4460
    %4462 = vdwg.mxu0
    %4463 = vmatpush.bf16.msra.mxu0 %v3787
    %4464 = vmatpush.bf16.msra.mxu0 %v3785
    %4465 = vmatpush.bf16.msra.mxu0 %v3783
    %4466 = vmatpush.bf16.msra.mxu0 %v3781
    %4467 = vmatpush.bf16.msra.mxu0 %v3779
    %4468 = vmatpush.bf16.msra.mxu0 %v3777
    %4469 = vmatpush.bf16.msra.mxu0 %v3775
    %4470 = vmatpush.bf16.msra.mxu0 %v3773
    %4471 = vmatmul.bf16.gmra.mxu0 %v2354
    %v4472 = vpop.f32.mrf.mxu0
    %v4473 = vadd.f32 %v4459, %v4472
    %v4474 = vpop.f32.mrf.mxu0
    %v4475 = vadd.f32 %v4461, %v4474
    %4476 = vdwg.mxu0
    %4477 = vmatpush.bf16.msra.mxu0 %v3803
    %4478 = vmatpush.bf16.msra.mxu0 %v3801
    %4479 = vmatpush.bf16.msra.mxu0 %v3799
    %4480 = vmatpush.bf16.msra.mxu0 %v3797
    %4481 = vmatpush.bf16.msra.mxu0 %v3795
    %4482 = vmatpush.bf16.msra.mxu0 %v3793
    %4483 = vmatpush.bf16.msra.mxu0 %v3791
    %4484 = vmatpush.bf16.msra.mxu0 %v3789
    %4485 = vmatmul.bf16.gmra.mxu0 %v2355
    %v4486 = vpop.f32.mrf.mxu0
    %v4487 = vadd.f32 %v4473, %v4486
    %v4488 = vpop.f32.mrf.mxu0
    %v4489 = vadd.f32 %v4475, %v4488
    %4490 = vdwg.mxu0
    %4491 = vmatpush.bf16.msra.mxu0 %v3819
    %4492 = vmatpush.bf16.msra.mxu0 %v3817
    %4493 = vmatpush.bf16.msra.mxu0 %v3815
    %4494 = vmatpush.bf16.msra.mxu0 %v3813
    %4495 = vmatpush.bf16.msra.mxu0 %v3811
    %4496 = vmatpush.bf16.msra.mxu0 %v3809
    %4497 = vmatpush.bf16.msra.mxu0 %v3807
    %4498 = vmatpush.bf16.msra.mxu0 %v3805
    %4499 = vmatmul.bf16.gmra.mxu0 %v2356
    %v4500 = vpop.f32.mrf.mxu0
    %v4501 = vadd.f32 %v4487, %v4500
    %v4502 = vpop.f32.mrf.mxu0
    %v4503 = vadd.f32 %v4489, %v4502
    %4504 = vdwg.mxu0
    %4505 = vmatpush.bf16.msra.mxu0 %v3835
    %4506 = vmatpush.bf16.msra.mxu0 %v3833
    %4507 = vmatpush.bf16.msra.mxu0 %v3831
    %4508 = vmatpush.bf16.msra.mxu0 %v3829
    %4509 = vmatpush.bf16.msra.mxu0 %v3827
    %4510 = vmatpush.bf16.msra.mxu0 %v3825
    %4511 = vmatpush.bf16.msra.mxu0 %v3823
    %4512 = vmatpush.bf16.msra.mxu0 %v3821
    %4513 = vmatmul.bf16.gmra.mxu0 %v2357
    %v4514 = vpop.f32.mrf.mxu0
    %v4515 = vadd.f32 %v4501, %v4514
    %v4516 = vpop.f32.mrf.mxu0
    %v4517 = vadd.f32 %v4503, %v4516
    %4518 = vdwg.mxu0
    %4519 = vmatpush.bf16.msra.mxu0 %v3851
    %4520 = vmatpush.bf16.msra.mxu0 %v3849
    %4521 = vmatpush.bf16.msra.mxu0 %v3847
    %4522 = vmatpush.bf16.msra.mxu0 %v3845
    %4523 = vmatpush.bf16.msra.mxu0 %v3843
    %4524 = vmatpush.bf16.msra.mxu0 %v3841
    %4525 = vmatpush.bf16.msra.mxu0 %v3839
    %4526 = vmatpush.bf16.msra.mxu0 %v3837
    %4527 = vmatmul.bf16.gmra.mxu0 %v2358
    %v4528 = vpop.f32.mrf.mxu0
    %v4529 = vadd.f32 %v4515, %v4528
    %v4530 = vpop.f32.mrf.mxu0
    %v4531 = vadd.f32 %v4517, %v4530
    %4532 = vdwg.mxu0
    %4533 = vmatpush.bf16.msra.mxu0 %v3867
    %4534 = vmatpush.bf16.msra.mxu0 %v3865
    %4535 = vmatpush.bf16.msra.mxu0 %v3863
    %4536 = vmatpush.bf16.msra.mxu0 %v3861
    %4537 = vmatpush.bf16.msra.mxu0 %v3859
    %4538 = vmatpush.bf16.msra.mxu0 %v3857
    %4539 = vmatpush.bf16.msra.mxu0 %v3855
    %4540 = vmatpush.bf16.msra.mxu0 %v3853
    %4541 = vmatmul.bf16.gmra.mxu0 %v2359
    %v4542 = vpop.f32.mrf.mxu0
    %v4543 = vadd.f32 %v4529, %v4542
    %v4544 = vpop.f32.mrf.mxu0
    %v4545 = vadd.f32 %v4531, %v4544
    %4546 = vdwg.mxu0
    %4547 = vmatpush.bf16.msra.mxu0 %v3883
    %4548 = vmatpush.bf16.msra.mxu0 %v3881
    %4549 = vmatpush.bf16.msra.mxu0 %v3879
    %4550 = vmatpush.bf16.msra.mxu0 %v3877
    %4551 = vmatpush.bf16.msra.mxu0 %v3875
    %4552 = vmatpush.bf16.msra.mxu0 %v3873
    %4553 = vmatpush.bf16.msra.mxu0 %v3871
    %4554 = vmatpush.bf16.msra.mxu0 %v3869
    %4555 = vmatmul.bf16.gmra.mxu0 %v2360
    %v4556 = vpop.f32.mrf.mxu0
    %v4557 = vadd.f32 %v4543, %v4556
    %v4558 = vpop.f32.mrf.mxu0
    %v4559 = vadd.f32 %v4545, %v4558
    %4560 = vdwg.mxu0
    %4561 = vmatpush.bf16.msra.mxu0 %v3899
    %4562 = vmatpush.bf16.msra.mxu0 %v3897
    %4563 = vmatpush.bf16.msra.mxu0 %v3895
    %4564 = vmatpush.bf16.msra.mxu0 %v3893
    %4565 = vmatpush.bf16.msra.mxu0 %v3891
    %4566 = vmatpush.bf16.msra.mxu0 %v3889
    %4567 = vmatpush.bf16.msra.mxu0 %v3887
    %4568 = vmatpush.bf16.msra.mxu0 %v3885
    %4569 = vmatmul.bf16.gmra.mxu0 %v2361
    %v4570 = vpop.f32.mrf.mxu0
    %v4571 = vadd.f32 %v4557, %v4570
    %v4572 = vpop.f32.mrf.mxu0
    %v4573 = vadd.f32 %v4559, %v4572
    %4574 = vdwg.mxu0
    %4575 = vmatpush.bf16.msra.mxu0 %v3915
    %4576 = vmatpush.bf16.msra.mxu0 %v3913
    %4577 = vmatpush.bf16.msra.mxu0 %v3911
    %4578 = vmatpush.bf16.msra.mxu0 %v3909
    %4579 = vmatpush.bf16.msra.mxu0 %v3907
    %4580 = vmatpush.bf16.msra.mxu0 %v3905
    %4581 = vmatpush.bf16.msra.mxu0 %v3903
    %4582 = vmatpush.bf16.msra.mxu0 %v3901
    %4583 = vmatmul.bf16.gmra.mxu0 %v2362
    %v4584 = vpop.f32.mrf.mxu0
    %v4585 = vadd.f32 %v4571, %v4584
    %v4586 = vpop.f32.mrf.mxu0
    %v4587 = vadd.f32 %v4573, %v4586
    %4588 = vdwg.mxu0
    %4589 = vmatpush.bf16.msra.mxu0 %v3931
    %4590 = vmatpush.bf16.msra.mxu0 %v3929
    %4591 = vmatpush.bf16.msra.mxu0 %v3927
    %4592 = vmatpush.bf16.msra.mxu0 %v3925
    %4593 = vmatpush.bf16.msra.mxu0 %v3923
    %4594 = vmatpush.bf16.msra.mxu0 %v3921
    %4595 = vmatpush.bf16.msra.mxu0 %v3919
    %4596 = vmatpush.bf16.msra.mxu0 %v3917
    %4597 = vmatmul.bf16.gmra.mxu0 %v2363
    %v4598 = vpop.f32.mrf.mxu0
    %v4599 = vadd.f32 %v4585, %v4598
    %v4600 = vpop.f32.mrf.mxu0
    %v4601 = vadd.f32 %v4587, %v4600
    %4602 = vdwg.mxu0
    %4603 = vmatpush.bf16.msra.mxu0 %v3947
    %4604 = vmatpush.bf16.msra.mxu0 %v3945
    %4605 = vmatpush.bf16.msra.mxu0 %v3943
    %4606 = vmatpush.bf16.msra.mxu0 %v3941
    %4607 = vmatpush.bf16.msra.mxu0 %v3939
    %4608 = vmatpush.bf16.msra.mxu0 %v3937
    %4609 = vmatpush.bf16.msra.mxu0 %v3935
    %4610 = vmatpush.bf16.msra.mxu0 %v3933
    %4611 = vmatmul.bf16.gmra.mxu0 %v2364
    %v4612 = vpop.f32.mrf.mxu0
    %v4613 = vadd.f32 %v4599, %v4612
    %v4614 = vpop.f32.mrf.mxu0
    %v4615 = vadd.f32 %v4601, %v4614
    %4616 = vdwg.mxu0
    %4617 = vmatpush.bf16.msra.mxu0 %v3963
    %4618 = vmatpush.bf16.msra.mxu0 %v3961
    %4619 = vmatpush.bf16.msra.mxu0 %v3959
    %4620 = vmatpush.bf16.msra.mxu0 %v3957
    %4621 = vmatpush.bf16.msra.mxu0 %v3955
    %4622 = vmatpush.bf16.msra.mxu0 %v3953
    %4623 = vmatpush.bf16.msra.mxu0 %v3951
    %4624 = vmatpush.bf16.msra.mxu0 %v3949
    %4625 = vmatmul.bf16.gmra.mxu0 %v2365
    %v4626 = vpop.f32.mrf.mxu0
    %v4627 = vadd.f32 %v4613, %v4626
    %v4628 = vpop.f32.mrf.mxu0
    %v4629 = vadd.f32 %v4615, %v4628
    %4630 = vdwg.mxu0
    %4631 = vmatpush.bf16.msra.mxu0 %v3979
    %4632 = vmatpush.bf16.msra.mxu0 %v3977
    %4633 = vmatpush.bf16.msra.mxu0 %v3975
    %4634 = vmatpush.bf16.msra.mxu0 %v3973
    %4635 = vmatpush.bf16.msra.mxu0 %v3971
    %4636 = vmatpush.bf16.msra.mxu0 %v3969
    %4637 = vmatpush.bf16.msra.mxu0 %v3967
    %4638 = vmatpush.bf16.msra.mxu0 %v3965
    %4639 = vmatmul.bf16.gmra.mxu0 %v2366
    %v4640 = vpop.f32.mrf.mxu0
    %v4641 = vadd.f32 %v4627, %v4640
    %v4642 = vpop.f32.mrf.mxu0
    %v4643 = vadd.f32 %v4629, %v4642
    %4644 = vdwg.mxu0
    %4645 = vmatpush.bf16.msra.mxu0 %v3995
    %4646 = vmatpush.bf16.msra.mxu0 %v3993
    %4647 = vmatpush.bf16.msra.mxu0 %v3991
    %4648 = vmatpush.bf16.msra.mxu0 %v3989
    %4649 = vmatpush.bf16.msra.mxu0 %v3987
    %4650 = vmatpush.bf16.msra.mxu0 %v3985
    %4651 = vmatpush.bf16.msra.mxu0 %v3983
    %4652 = vmatpush.bf16.msra.mxu0 %v3981
    %4653 = vmatmul.bf16.gmra.mxu0 %v2367
    %v4654 = vpop.f32.mrf.mxu0
    %v4655 = vadd.f32 %v4641, %v4654
    %v4656 = vpop.f32.mrf.mxu0
    %v4657 = vadd.f32 %v4643, %v4656
    %4658 = vdwg.mxu0
    %4659 = vmatpush.bf16.msra.mxu0 %v4011
    %4660 = vmatpush.bf16.msra.mxu0 %v4009
    %4661 = vmatpush.bf16.msra.mxu0 %v4007
    %4662 = vmatpush.bf16.msra.mxu0 %v4005
    %4663 = vmatpush.bf16.msra.mxu0 %v4003
    %4664 = vmatpush.bf16.msra.mxu0 %v4001
    %4665 = vmatpush.bf16.msra.mxu0 %v3999
    %4666 = vmatpush.bf16.msra.mxu0 %v3997
    %4667 = vmatmul.bf16.gmra.mxu0 %v2368
    %v4668 = vpop.f32.mrf.mxu0
    %v4669 = vadd.f32 %v4655, %v4668
    %v4670 = vpop.f32.mrf.mxu0
    %v4671 = vadd.f32 %v4657, %v4670
    %4672 = vdwg.mxu0
    %4673 = vmatpush.bf16.msra.mxu0 %v4027
    %4674 = vmatpush.bf16.msra.mxu0 %v4025
    %4675 = vmatpush.bf16.msra.mxu0 %v4023
    %4676 = vmatpush.bf16.msra.mxu0 %v4021
    %4677 = vmatpush.bf16.msra.mxu0 %v4019
    %4678 = vmatpush.bf16.msra.mxu0 %v4017
    %4679 = vmatpush.bf16.msra.mxu0 %v4015
    %4680 = vmatpush.bf16.msra.mxu0 %v4013
    %4681 = vmatmul.bf16.gmra.mxu0 %v2369
    %v4682 = vpop.f32.mrf.mxu0
    %v4683 = vadd.f32 %v4669, %v4682
    %v4684 = vpop.f32.mrf.mxu0
    %v4685 = vadd.f32 %v4671, %v4684
    %4686 = vdwg.mxu0
    %4687 = vmatpush.bf16.msra.mxu0 %v4043
    %4688 = vmatpush.bf16.msra.mxu0 %v4041
    %4689 = vmatpush.bf16.msra.mxu0 %v4039
    %4690 = vmatpush.bf16.msra.mxu0 %v4037
    %4691 = vmatpush.bf16.msra.mxu0 %v4035
    %4692 = vmatpush.bf16.msra.mxu0 %v4033
    %4693 = vmatpush.bf16.msra.mxu0 %v4031
    %4694 = vmatpush.bf16.msra.mxu0 %v4029
    %4695 = vmatmul.bf16.gmra.mxu0 %v2370
    %v4696 = vpop.f32.mrf.mxu0
    %v4697 = vadd.f32 %v4683, %v4696
    %v4698 = vpop.f32.mrf.mxu0
    %v4699 = vadd.f32 %v4685, %v4698
    %4700 = vdwg.mxu0
    %4701 = vmatpush.bf16.msra.mxu0 %v4059
    %4702 = vmatpush.bf16.msra.mxu0 %v4057
    %4703 = vmatpush.bf16.msra.mxu0 %v4055
    %4704 = vmatpush.bf16.msra.mxu0 %v4053
    %4705 = vmatpush.bf16.msra.mxu0 %v4051
    %4706 = vmatpush.bf16.msra.mxu0 %v4049
    %4707 = vmatpush.bf16.msra.mxu0 %v4047
    %4708 = vmatpush.bf16.msra.mxu0 %v4045
    %4709 = vmatmul.bf16.gmra.mxu0 %v2371
    %v4710 = vpop.f32.mrf.mxu0
    %v4711 = vadd.f32 %v4697, %v4710
    %v4712 = vpop.f32.mrf.mxu0
    %v4713 = vadd.f32 %v4699, %v4712
    %4714 = vdwg.mxu0
    %4715 = vmatpush.bf16.msra.mxu0 %v4075
    %4716 = vmatpush.bf16.msra.mxu0 %v4073
    %4717 = vmatpush.bf16.msra.mxu0 %v4071
    %4718 = vmatpush.bf16.msra.mxu0 %v4069
    %4719 = vmatpush.bf16.msra.mxu0 %v4067
    %4720 = vmatpush.bf16.msra.mxu0 %v4065
    %4721 = vmatpush.bf16.msra.mxu0 %v4063
    %4722 = vmatpush.bf16.msra.mxu0 %v4061
    %4723 = vmatmul.bf16.gmra.mxu0 %v2372
    %v4724 = vpop.f32.mrf.mxu0
    %v4725 = vadd.f32 %v4711, %v4724
    %v4726 = vpop.f32.mrf.mxu0
    %v4727 = vadd.f32 %v4713, %v4726
    %4728 = vdwg.mxu0
    %4729 = vmatpush.bf16.msra.mxu0 %v4091
    %4730 = vmatpush.bf16.msra.mxu0 %v4089
    %4731 = vmatpush.bf16.msra.mxu0 %v4087
    %4732 = vmatpush.bf16.msra.mxu0 %v4085
    %4733 = vmatpush.bf16.msra.mxu0 %v4083
    %4734 = vmatpush.bf16.msra.mxu0 %v4081
    %4735 = vmatpush.bf16.msra.mxu0 %v4079
    %4736 = vmatpush.bf16.msra.mxu0 %v4077
    %4737 = vmatmul.bf16.gmra.mxu0 %v2373
    %v4738 = vpop.f32.mrf.mxu0
    %v4739 = vadd.f32 %v4725, %v4738
    %v4740 = vpop.f32.mrf.mxu0
    %v4741 = vadd.f32 %v4727, %v4740
    %4742 = vdwg.mxu0
    %4743 = vmatpush.bf16.msra.mxu0 0
    %4744 = vmatpush.bf16.msra.mxu0 0
    %4745 = vmatpush.bf16.msra.mxu0 0
    %4746 = vmatpush.bf16.msra.mxu0 0
    %4747 = vmatpush.bf16.msra.mxu0 %v4099
    %4748 = vmatpush.bf16.msra.mxu0 %v4097
    %4749 = vmatpush.bf16.msra.mxu0 %v4095
    %4750 = vmatpush.bf16.msra.mxu0 %v4093
    %4751 = vmatmul.bf16.gmra.mxu0 %v4447
    %v4752 = vpop.f32.mrf.mxu0
    %v4753 = vadd.f32 %v4739, %v4752
    %v4754 = vpop.f32.mrf.mxu0
    %v4755 = vadd.f32 %v4741, %v4754
    %4756 = vdwg.mxu0
    %4757 = vmatpush.bf16.msra.mxu0 %v3772
    %4758 = vmatpush.bf16.msra.mxu0 %v3770
    %4759 = vmatpush.bf16.msra.mxu0 %v3768
    %4760 = vmatpush.bf16.msra.mxu0 %v3766
    %4761 = vmatpush.bf16.msra.mxu0 %v3764
    %4762 = vmatpush.bf16.msra.mxu0 %v3762
    %4763 = vmatpush.bf16.msra.mxu0 %v3760
    %4764 = vmatpush.bf16.msra.mxu0 %v3758
    %4765 = vmatmul.bf16.gmra.mxu0 %v2353
    %v4766 = vpop.f32.mrf.mxu0
    %v4767 = vadd.f32 %v2722, %v4766
    %v4768 = vpop.f32.mrf.mxu0
    %v4769 = vadd.f32 %v2722, %v4768
    %4770 = vdwg.mxu0
    %4771 = vmatpush.bf16.msra.mxu0 %v3788
    %4772 = vmatpush.bf16.msra.mxu0 %v3786
    %4773 = vmatpush.bf16.msra.mxu0 %v3784
    %4774 = vmatpush.bf16.msra.mxu0 %v3782
    %4775 = vmatpush.bf16.msra.mxu0 %v3780
    %4776 = vmatpush.bf16.msra.mxu0 %v3778
    %4777 = vmatpush.bf16.msra.mxu0 %v3776
    %4778 = vmatpush.bf16.msra.mxu0 %v3774
    %4779 = vmatmul.bf16.gmra.mxu0 %v2354
    %v4780 = vpop.f32.mrf.mxu0
    %v4781 = vadd.f32 %v4767, %v4780
    %v4782 = vpop.f32.mrf.mxu0
    %v4783 = vadd.f32 %v4769, %v4782
    %4784 = vdwg.mxu0
    %4785 = vmatpush.bf16.msra.mxu0 %v3804
    %4786 = vmatpush.bf16.msra.mxu0 %v3802
    %4787 = vmatpush.bf16.msra.mxu0 %v3800
    %4788 = vmatpush.bf16.msra.mxu0 %v3798
    %4789 = vmatpush.bf16.msra.mxu0 %v3796
    %4790 = vmatpush.bf16.msra.mxu0 %v3794
    %4791 = vmatpush.bf16.msra.mxu0 %v3792
    %4792 = vmatpush.bf16.msra.mxu0 %v3790
    %4793 = vmatmul.bf16.gmra.mxu0 %v2355
    %v4794 = vpop.f32.mrf.mxu0
    %v4795 = vadd.f32 %v4781, %v4794
    %v4796 = vpop.f32.mrf.mxu0
    %v4797 = vadd.f32 %v4783, %v4796
    %4798 = vdwg.mxu0
    %4799 = vmatpush.bf16.msra.mxu0 %v3820
    %4800 = vmatpush.bf16.msra.mxu0 %v3818
    %4801 = vmatpush.bf16.msra.mxu0 %v3816
    %4802 = vmatpush.bf16.msra.mxu0 %v3814
    %4803 = vmatpush.bf16.msra.mxu0 %v3812
    %4804 = vmatpush.bf16.msra.mxu0 %v3810
    %4805 = vmatpush.bf16.msra.mxu0 %v3808
    %4806 = vmatpush.bf16.msra.mxu0 %v3806
    %4807 = vmatmul.bf16.gmra.mxu0 %v2356
    %v4808 = vpop.f32.mrf.mxu0
    %v4809 = vadd.f32 %v4795, %v4808
    %v4810 = vpop.f32.mrf.mxu0
    %v4811 = vadd.f32 %v4797, %v4810
    %4812 = vdwg.mxu0
    %4813 = vmatpush.bf16.msra.mxu0 %v3836
    %4814 = vmatpush.bf16.msra.mxu0 %v3834
    %4815 = vmatpush.bf16.msra.mxu0 %v3832
    %4816 = vmatpush.bf16.msra.mxu0 %v3830
    %4817 = vmatpush.bf16.msra.mxu0 %v3828
    %4818 = vmatpush.bf16.msra.mxu0 %v3826
    %4819 = vmatpush.bf16.msra.mxu0 %v3824
    %4820 = vmatpush.bf16.msra.mxu0 %v3822
    %4821 = vmatmul.bf16.gmra.mxu0 %v2357
    %v4822 = vpop.f32.mrf.mxu0
    %v4823 = vadd.f32 %v4809, %v4822
    %v4824 = vpop.f32.mrf.mxu0
    %v4825 = vadd.f32 %v4811, %v4824
    %4826 = vdwg.mxu0
    %4827 = vmatpush.bf16.msra.mxu0 %v3852
    %4828 = vmatpush.bf16.msra.mxu0 %v3850
    %4829 = vmatpush.bf16.msra.mxu0 %v3848
    %4830 = vmatpush.bf16.msra.mxu0 %v3846
    %4831 = vmatpush.bf16.msra.mxu0 %v3844
    %4832 = vmatpush.bf16.msra.mxu0 %v3842
    %4833 = vmatpush.bf16.msra.mxu0 %v3840
    %4834 = vmatpush.bf16.msra.mxu0 %v3838
    %4835 = vmatmul.bf16.gmra.mxu0 %v2358
    %v4836 = vpop.f32.mrf.mxu0
    %v4837 = vadd.f32 %v4823, %v4836
    %v4838 = vpop.f32.mrf.mxu0
    %v4839 = vadd.f32 %v4825, %v4838
    %4840 = vdwg.mxu0
    %4841 = vmatpush.bf16.msra.mxu0 %v3868
    %4842 = vmatpush.bf16.msra.mxu0 %v3866
    %4843 = vmatpush.bf16.msra.mxu0 %v3864
    %4844 = vmatpush.bf16.msra.mxu0 %v3862
    %4845 = vmatpush.bf16.msra.mxu0 %v3860
    %4846 = vmatpush.bf16.msra.mxu0 %v3858
    %4847 = vmatpush.bf16.msra.mxu0 %v3856
    %4848 = vmatpush.bf16.msra.mxu0 %v3854
    %4849 = vmatmul.bf16.gmra.mxu0 %v2359
    %v4850 = vpop.f32.mrf.mxu0
    %v4851 = vadd.f32 %v4837, %v4850
    %v4852 = vpop.f32.mrf.mxu0
    %v4853 = vadd.f32 %v4839, %v4852
    %4854 = vdwg.mxu0
    %4855 = vmatpush.bf16.msra.mxu0 %v3884
    %4856 = vmatpush.bf16.msra.mxu0 %v3882
    %4857 = vmatpush.bf16.msra.mxu0 %v3880
    %4858 = vmatpush.bf16.msra.mxu0 %v3878
    %4859 = vmatpush.bf16.msra.mxu0 %v3876
    %4860 = vmatpush.bf16.msra.mxu0 %v3874
    %4861 = vmatpush.bf16.msra.mxu0 %v3872
    %4862 = vmatpush.bf16.msra.mxu0 %v3870
    %4863 = vmatmul.bf16.gmra.mxu0 %v2360
    %v4864 = vpop.f32.mrf.mxu0
    %v4865 = vadd.f32 %v4851, %v4864
    %v4866 = vpop.f32.mrf.mxu0
    %v4867 = vadd.f32 %v4853, %v4866
    %4868 = vdwg.mxu0
    %4869 = vmatpush.bf16.msra.mxu0 %v3900
    %4870 = vmatpush.bf16.msra.mxu0 %v3898
    %4871 = vmatpush.bf16.msra.mxu0 %v3896
    %4872 = vmatpush.bf16.msra.mxu0 %v3894
    %4873 = vmatpush.bf16.msra.mxu0 %v3892
    %4874 = vmatpush.bf16.msra.mxu0 %v3890
    %4875 = vmatpush.bf16.msra.mxu0 %v3888
    %4876 = vmatpush.bf16.msra.mxu0 %v3886
    %4877 = vmatmul.bf16.gmra.mxu0 %v2361
    %v4878 = vpop.f32.mrf.mxu0
    %v4879 = vadd.f32 %v4865, %v4878
    %v4880 = vpop.f32.mrf.mxu0
    %v4881 = vadd.f32 %v4867, %v4880
    %4882 = vdwg.mxu0
    %4883 = vmatpush.bf16.msra.mxu0 %v3916
    %4884 = vmatpush.bf16.msra.mxu0 %v3914
    %4885 = vmatpush.bf16.msra.mxu0 %v3912
    %4886 = vmatpush.bf16.msra.mxu0 %v3910
    %4887 = vmatpush.bf16.msra.mxu0 %v3908
    %4888 = vmatpush.bf16.msra.mxu0 %v3906
    %4889 = vmatpush.bf16.msra.mxu0 %v3904
    %4890 = vmatpush.bf16.msra.mxu0 %v3902
    %4891 = vmatmul.bf16.gmra.mxu0 %v2362
    %v4892 = vpop.f32.mrf.mxu0
    %v4893 = vadd.f32 %v4879, %v4892
    %v4894 = vpop.f32.mrf.mxu0
    %v4895 = vadd.f32 %v4881, %v4894
    %4896 = vdwg.mxu0
    %4897 = vmatpush.bf16.msra.mxu0 %v3932
    %4898 = vmatpush.bf16.msra.mxu0 %v3930
    %4899 = vmatpush.bf16.msra.mxu0 %v3928
    %4900 = vmatpush.bf16.msra.mxu0 %v3926
    %4901 = vmatpush.bf16.msra.mxu0 %v3924
    %4902 = vmatpush.bf16.msra.mxu0 %v3922
    %4903 = vmatpush.bf16.msra.mxu0 %v3920
    %4904 = vmatpush.bf16.msra.mxu0 %v3918
    %4905 = vmatmul.bf16.gmra.mxu0 %v2363
    %v4906 = vpop.f32.mrf.mxu0
    %v4907 = vadd.f32 %v4893, %v4906
    %v4908 = vpop.f32.mrf.mxu0
    %v4909 = vadd.f32 %v4895, %v4908
    %4910 = vdwg.mxu0
    %4911 = vmatpush.bf16.msra.mxu0 %v3948
    %4912 = vmatpush.bf16.msra.mxu0 %v3946
    %4913 = vmatpush.bf16.msra.mxu0 %v3944
    %4914 = vmatpush.bf16.msra.mxu0 %v3942
    %4915 = vmatpush.bf16.msra.mxu0 %v3940
    %4916 = vmatpush.bf16.msra.mxu0 %v3938
    %4917 = vmatpush.bf16.msra.mxu0 %v3936
    %4918 = vmatpush.bf16.msra.mxu0 %v3934
    %4919 = vmatmul.bf16.gmra.mxu0 %v2364
    %v4920 = vpop.f32.mrf.mxu0
    %v4921 = vadd.f32 %v4907, %v4920
    %v4922 = vpop.f32.mrf.mxu0
    %v4923 = vadd.f32 %v4909, %v4922
    %4924 = vdwg.mxu0
    %4925 = vmatpush.bf16.msra.mxu0 %v3964
    %4926 = vmatpush.bf16.msra.mxu0 %v3962
    %4927 = vmatpush.bf16.msra.mxu0 %v3960
    %4928 = vmatpush.bf16.msra.mxu0 %v3958
    %4929 = vmatpush.bf16.msra.mxu0 %v3956
    %4930 = vmatpush.bf16.msra.mxu0 %v3954
    %4931 = vmatpush.bf16.msra.mxu0 %v3952
    %4932 = vmatpush.bf16.msra.mxu0 %v3950
    %4933 = vmatmul.bf16.gmra.mxu0 %v2365
    %v4934 = vpop.f32.mrf.mxu0
    %v4935 = vadd.f32 %v4921, %v4934
    %v4936 = vpop.f32.mrf.mxu0
    %v4937 = vadd.f32 %v4923, %v4936
    %4938 = vdwg.mxu0
    %4939 = vmatpush.bf16.msra.mxu0 %v3980
    %4940 = vmatpush.bf16.msra.mxu0 %v3978
    %4941 = vmatpush.bf16.msra.mxu0 %v3976
    %4942 = vmatpush.bf16.msra.mxu0 %v3974
    %4943 = vmatpush.bf16.msra.mxu0 %v3972
    %4944 = vmatpush.bf16.msra.mxu0 %v3970
    %4945 = vmatpush.bf16.msra.mxu0 %v3968
    %4946 = vmatpush.bf16.msra.mxu0 %v3966
    %4947 = vmatmul.bf16.gmra.mxu0 %v2366
    %v4948 = vpop.f32.mrf.mxu0
    %v4949 = vadd.f32 %v4935, %v4948
    %v4950 = vpop.f32.mrf.mxu0
    %v4951 = vadd.f32 %v4937, %v4950
    %4952 = vdwg.mxu0
    %4953 = vmatpush.bf16.msra.mxu0 %v3996
    %4954 = vmatpush.bf16.msra.mxu0 %v3994
    %4955 = vmatpush.bf16.msra.mxu0 %v3992
    %4956 = vmatpush.bf16.msra.mxu0 %v3990
    %4957 = vmatpush.bf16.msra.mxu0 %v3988
    %4958 = vmatpush.bf16.msra.mxu0 %v3986
    %4959 = vmatpush.bf16.msra.mxu0 %v3984
    %4960 = vmatpush.bf16.msra.mxu0 %v3982
    %4961 = vmatmul.bf16.gmra.mxu0 %v2367
    %v4962 = vpop.f32.mrf.mxu0
    %v4963 = vadd.f32 %v4949, %v4962
    %v4964 = vpop.f32.mrf.mxu0
    %v4965 = vadd.f32 %v4951, %v4964
    %4966 = vdwg.mxu0
    %4967 = vmatpush.bf16.msra.mxu0 %v4012
    %4968 = vmatpush.bf16.msra.mxu0 %v4010
    %4969 = vmatpush.bf16.msra.mxu0 %v4008
    %4970 = vmatpush.bf16.msra.mxu0 %v4006
    %4971 = vmatpush.bf16.msra.mxu0 %v4004
    %4972 = vmatpush.bf16.msra.mxu0 %v4002
    %4973 = vmatpush.bf16.msra.mxu0 %v4000
    %4974 = vmatpush.bf16.msra.mxu0 %v3998
    %4975 = vmatmul.bf16.gmra.mxu0 %v2368
    %v4976 = vpop.f32.mrf.mxu0
    %v4977 = vadd.f32 %v4963, %v4976
    %v4978 = vpop.f32.mrf.mxu0
    %v4979 = vadd.f32 %v4965, %v4978
    %4980 = vdwg.mxu0
    %4981 = vmatpush.bf16.msra.mxu0 %v4028
    %4982 = vmatpush.bf16.msra.mxu0 %v4026
    %4983 = vmatpush.bf16.msra.mxu0 %v4024
    %4984 = vmatpush.bf16.msra.mxu0 %v4022
    %4985 = vmatpush.bf16.msra.mxu0 %v4020
    %4986 = vmatpush.bf16.msra.mxu0 %v4018
    %4987 = vmatpush.bf16.msra.mxu0 %v4016
    %4988 = vmatpush.bf16.msra.mxu0 %v4014
    %4989 = vmatmul.bf16.gmra.mxu0 %v2369
    %v4990 = vpop.f32.mrf.mxu0
    %v4991 = vadd.f32 %v4977, %v4990
    %v4992 = vpop.f32.mrf.mxu0
    %v4993 = vadd.f32 %v4979, %v4992
    %4994 = vdwg.mxu0
    %4995 = vmatpush.bf16.msra.mxu0 %v4044
    %4996 = vmatpush.bf16.msra.mxu0 %v4042
    %4997 = vmatpush.bf16.msra.mxu0 %v4040
    %4998 = vmatpush.bf16.msra.mxu0 %v4038
    %4999 = vmatpush.bf16.msra.mxu0 %v4036
    %5000 = vmatpush.bf16.msra.mxu0 %v4034
    %5001 = vmatpush.bf16.msra.mxu0 %v4032
    %5002 = vmatpush.bf16.msra.mxu0 %v4030
    %5003 = vmatmul.bf16.gmra.mxu0 %v2370
    %v5004 = vpop.f32.mrf.mxu0
    %v5005 = vadd.f32 %v4991, %v5004
    %v5006 = vpop.f32.mrf.mxu0
    %v5007 = vadd.f32 %v4993, %v5006
    %5008 = vdwg.mxu0
    %5009 = vmatpush.bf16.msra.mxu0 %v4060
    %5010 = vmatpush.bf16.msra.mxu0 %v4058
    %5011 = vmatpush.bf16.msra.mxu0 %v4056
    %5012 = vmatpush.bf16.msra.mxu0 %v4054
    %5013 = vmatpush.bf16.msra.mxu0 %v4052
    %5014 = vmatpush.bf16.msra.mxu0 %v4050
    %5015 = vmatpush.bf16.msra.mxu0 %v4048
    %5016 = vmatpush.bf16.msra.mxu0 %v4046
    %5017 = vmatmul.bf16.gmra.mxu0 %v2371
    %v5018 = vpop.f32.mrf.mxu0
    %v5019 = vadd.f32 %v5005, %v5018
    %v5020 = vpop.f32.mrf.mxu0
    %v5021 = vadd.f32 %v5007, %v5020
    %5022 = vdwg.mxu0
    %5023 = vmatpush.bf16.msra.mxu0 %v4076
    %5024 = vmatpush.bf16.msra.mxu0 %v4074
    %5025 = vmatpush.bf16.msra.mxu0 %v4072
    %5026 = vmatpush.bf16.msra.mxu0 %v4070
    %5027 = vmatpush.bf16.msra.mxu0 %v4068
    %5028 = vmatpush.bf16.msra.mxu0 %v4066
    %5029 = vmatpush.bf16.msra.mxu0 %v4064
    %5030 = vmatpush.bf16.msra.mxu0 %v4062
    %5031 = vmatmul.bf16.gmra.mxu0 %v2372
    %v5032 = vpop.f32.mrf.mxu0
    %v5033 = vadd.f32 %v5019, %v5032
    %v5034 = vpop.f32.mrf.mxu0
    %v5035 = vadd.f32 %v5021, %v5034
    %5036 = vdwg.mxu0
    %5037 = vmatpush.bf16.msra.mxu0 %v4092
    %5038 = vmatpush.bf16.msra.mxu0 %v4090
    %5039 = vmatpush.bf16.msra.mxu0 %v4088
    %5040 = vmatpush.bf16.msra.mxu0 %v4086
    %5041 = vmatpush.bf16.msra.mxu0 %v4084
    %5042 = vmatpush.bf16.msra.mxu0 %v4082
    %5043 = vmatpush.bf16.msra.mxu0 %v4080
    %5044 = vmatpush.bf16.msra.mxu0 %v4078
    %5045 = vmatmul.bf16.gmra.mxu0 %v2373
    %v5046 = vpop.f32.mrf.mxu0
    %v5047 = vadd.f32 %v5033, %v5046
    %v5048 = vpop.f32.mrf.mxu0
    %v5049 = vadd.f32 %v5035, %v5048
    %5050 = vdwg.mxu0
    %5051 = vmatpush.bf16.msra.mxu0 0
    %5052 = vmatpush.bf16.msra.mxu0 0
    %5053 = vmatpush.bf16.msra.mxu0 0
    %5054 = vmatpush.bf16.msra.mxu0 0
    %5055 = vmatpush.bf16.msra.mxu0 %v4100
    %5056 = vmatpush.bf16.msra.mxu0 %v4098
    %5057 = vmatpush.bf16.msra.mxu0 %v4096
    %5058 = vmatpush.bf16.msra.mxu0 %v4094
    %5059 = vmatmul.bf16.gmra.mxu0 %v4447
    %v5060 = vpop.f32.mrf.mxu0
    %v5061 = vadd.f32 %v5047, %v5060
    %v5062 = vpop.f32.mrf.mxu0
    %v5063 = vadd.f32 %v5049, %v5062
    %5064 = vdwg.mxu0
    %v5065 = vld [vmem:[#allocation9] sm:$0xff]
    %v5066 = vld [vmem:[#allocation9 + $0x8] sm:$0xff]
    %v5067 = vld [vmem:[#allocation9 + $0x10] sm:$0xff]
    %v5068 = vld [vmem:[#allocation9 + $0x18] sm:$0xff]
    %v5069 = vld [vmem:[#allocation9 + $0x20] sm:$0xff]
    %v5070 = vld [vmem:[#allocation9 + $0x28] sm:$0xff]
    %v5071 = vld [vmem:[#allocation9 + $0x30] sm:$0xff]
    %v5072 = vld [vmem:[#allocation9 + $0x38] sm:$0xff]
    %v5073 = vld [vmem:[#allocation9 + $0x40] sm:$0xff]
    %v5074 = vld [vmem:[#allocation9 + $0x48] sm:$0xff]
    %v5075 = vld [vmem:[#allocation9 + $0x50] sm:$0xff]
    %v5076 = vld [vmem:[#allocation9 + $0x58] sm:$0xff]
    %v5077 = vld [vmem:[#allocation9 + $0x60] sm:$0xff]
    %v5078 = vld [vmem:[#allocation9 + $0x68] sm:$0xff]
    %v5079 = vld [vmem:[#allocation9 + $0x70] sm:$0xff]
    %v5080 = vld [vmem:[#allocation9 + $0x78] sm:$0xff]
    %v5081 = vld [vmem:[#allocation9 + $0x80] sm:$0xff]
    %v5082 = vld [vmem:[#allocation9 + $0x88] sm:$0xff]
    %v5083 = vld [vmem:[#allocation9 + $0x90] sm:$0xff]
    %v5084 = vld [vmem:[#allocation9 + $0x98] sm:$0xff]
    %v5085 = vld [vmem:[#allocation9 + $0xa0] sm:$0xff]
    %v5086 = vld [vmem:[#allocation9 + $0xa8] sm:$0xff]
    %v5087 = vld [vmem:[#allocation9 + $0xb0] sm:$0xff]
    %v5088 = vld [vmem:[#allocation9 + $0xb8] sm:$0xff]
    %v5089 = vld [vmem:[#allocation9 + $0xc0] sm:$0xff]
    %v5090 = vld [vmem:[#allocation9 + $0xc8] sm:$0xff]
    %v5091 = vld [vmem:[#allocation9 + $0xd0] sm:$0xff]
    %v5092 = vld [vmem:[#allocation9 + $0xd8] sm:$0xff]
    %v5093 = vld [vmem:[#allocation9 + $0xe0] sm:$0xff]
    %v5094 = vld [vmem:[#allocation9 + $0xe8] sm:$0xff]
    %v5095 = vld [vmem:[#allocation9 + $0xf0] sm:$0xff]
    %v5096 = vld [vmem:[#allocation9 + $0xf8] sm:$0xff]
    %v5097 = vld [vmem:[#allocation9 + $0x100] sm:$0xff]
    %v5098 = vld [vmem:[#allocation9 + $0x108] sm:$0xff]
    %v5099 = vld [vmem:[#allocation9 + $0x110] sm:$0xff]
    %v5100 = vld [vmem:[#allocation9 + $0x118] sm:$0xff]
    %v5101 = vld [vmem:[#allocation9 + $0x120] sm:$0xff]
    %v5102 = vld [vmem:[#allocation9 + $0x128] sm:$0xff]
    %v5103 = vld [vmem:[#allocation9 + $0x130] sm:$0xff]
    %v5104 = vld [vmem:[#allocation9 + $0x138] sm:$0xff]
    %v5105 = vld [vmem:[#allocation9 + $0x140] sm:$0xff]
    %v5106 = vld [vmem:[#allocation9 + $0x148] sm:$0xff]
    %v5107 = vld [vmem:[#allocation9 + $0x150] sm:$0xff]
    %v5108 = vld [vmem:[#allocation9 + $0x158] sm:$0xff]
    %v5109 = vld [vmem:[#allocation9 + $0x160] sm:$0xff]
    %v5110 = vld [vmem:[#allocation9 + $0x168] sm:$0xff]
    %v5111 = vld [vmem:[#allocation9 + $0x170] sm:$0xff]
    %v5112 = vld [vmem:[#allocation9 + $0x178] sm:$0xff]
    %v5113 = vld [vmem:[#allocation9 + $0x180] sm:$0xff]
    %v5114 = vld [vmem:[#allocation9 + $0x188] sm:$0xff]
    %v5115 = vld [vmem:[#allocation9 + $0x190] sm:$0xff]
    %v5116 = vld [vmem:[#allocation9 + $0x198] sm:$0xff]
    %v5117 = vld [vmem:[#allocation9 + $0x1a0] sm:$0xff]
    %v5118 = vld [vmem:[#allocation9 + $0x1a8] sm:$0xff]
    %v5119 = vld [vmem:[#allocation9 + $0x1b0] sm:$0xff]
    %v5120 = vld [vmem:[#allocation9 + $0x1b8] sm:$0xff]
    %v5121 = vld [vmem:[#allocation9 + $0x1c0] sm:$0xff]
    %v5122 = vld [vmem:[#allocation9 + $0x1c8] sm:$0xff]
    %v5123 = vld [vmem:[#allocation9 + $0x1d0] sm:$0xff]
    %v5124 = vld [vmem:[#allocation9 + $0x1d8] sm:$0xff]
    %v5125 = vld [vmem:[#allocation9 + $0x1e0] sm:$0xff]
    %v5126 = vld [vmem:[#allocation9 + $0x1e8] sm:$0xff]
    %v5127 = vld [vmem:[#allocation9 + $0x1f0] sm:$0xff]
    %v5128 = vld [vmem:[#allocation9 + $0x1f8] sm:$0xff]
    %5129 = vmatpush.msra.mxu0 %v5095
    %5130 = vmatpush.msra.mxu0 %v5093
    %5131 = vmatpush.msra.mxu0 %v5091
    %5132 = vmatpush.msra.mxu0 %v5089
    %5133 = vmatpush.msra.mxu0 %v5087
    %5134 = vmatpush.msra.mxu0 %v5085
    %5135 = vmatpush.msra.mxu0 %v5083
    %5136 = vmatpush.msra.mxu0 %v5081
    %5137 = vmatpush.msra.mxu0 %v5079
    %5138 = vmatpush.msra.mxu0 %v5077
    %5139 = vmatpush.msra.mxu0 %v5075
    %5140 = vmatpush.msra.mxu0 %v5073
    %5141 = vmatpush.msra.mxu0 %v5071
    %5142 = vmatpush.msra.mxu0 %v5069
    %5143 = vmatpush.msra.mxu0 %v5067
    %5144 = vmatpush.msra.mxu0 %v5065
    %5145 = vmatmul.f32.gmra.mxu0 %v4753
    %v5146 = vpop.f32.mrf.mxu0
    %v5147 = vadd.f32 0.0, %v5146
    %5148 = vmatmul.f32.gmra.mxu0 %v4755
    %v5149 = vpop.f32.mrf.mxu0
    %v5150 = vadd.f32 0.0, %v5149
    %5151 = vdwg.mxu0
    %5152 = vmatpush.msra.mxu0 %v5127
    %5153 = vmatpush.msra.mxu0 %v5125
    %5154 = vmatpush.msra.mxu0 %v5123
    %5155 = vmatpush.msra.mxu0 %v5121
    %5156 = vmatpush.msra.mxu0 %v5119
    %5157 = vmatpush.msra.mxu0 %v5117
    %5158 = vmatpush.msra.mxu0 %v5115
    %5159 = vmatpush.msra.mxu0 %v5113
    %5160 = vmatpush.msra.mxu0 %v5111
    %5161 = vmatpush.msra.mxu0 %v5109
    %5162 = vmatpush.msra.mxu0 %v5107
    %5163 = vmatpush.msra.mxu0 %v5105
    %5164 = vmatpush.msra.mxu0 %v5103
    %5165 = vmatpush.msra.mxu0 %v5101
    %5166 = vmatpush.msra.mxu0 %v5099
    %5167 = vmatpush.msra.mxu0 %v5097
    %5168 = vmatmul.f32.gmra.mxu0 %v5061
    %v5169 = vpop.f32.mrf.mxu0
    %v5170 = vadd.f32 %v5147, %v5169
    %5171 = vmatmul.f32.gmra.mxu0 %v5063
    %v5172 = vpop.f32.mrf.mxu0
    %v5173 = vadd.f32 %v5150, %v5172
    %5174 = vdwg.mxu0
    %5175 = vmatpush.msra.mxu0 %v5096
    %5176 = vmatpush.msra.mxu0 %v5094
    %5177 = vmatpush.msra.mxu0 %v5092
    %5178 = vmatpush.msra.mxu0 %v5090
    %5179 = vmatpush.msra.mxu0 %v5088
    %5180 = vmatpush.msra.mxu0 %v5086
    %5181 = vmatpush.msra.mxu0 %v5084
    %5182 = vmatpush.msra.mxu0 %v5082
    %5183 = vmatpush.msra.mxu0 %v5080
    %5184 = vmatpush.msra.mxu0 %v5078
    %5185 = vmatpush.msra.mxu0 %v5076
    %5186 = vmatpush.msra.mxu0 %v5074
    %5187 = vmatpush.msra.mxu0 %v5072
    %5188 = vmatpush.msra.mxu0 %v5070
    %5189 = vmatpush.msra.mxu0 %v5068
    %5190 = vmatpush.msra.mxu0 %v5066
    %5191 = vmatmul.f32.gmra.mxu0 %v4753
    %v5192 = vpop.f32.mrf.mxu0
    %v5193 = vadd.f32 0.0, %v5192
    %5194 = vmatmul.f32.gmra.mxu0 %v4755
    %v5195 = vpop.f32.mrf.mxu0
    %v5196 = vadd.f32 0.0, %v5195
    %5197 = vdwg.mxu0
    %5198 = vmatpush.msra.mxu0 %v5128
    %5199 = vmatpush.msra.mxu0 %v5126
    %5200 = vmatpush.msra.mxu0 %v5124
    %5201 = vmatpush.msra.mxu0 %v5122
    %5202 = vmatpush.msra.mxu0 %v5120
    %5203 = vmatpush.msra.mxu0 %v5118
    %5204 = vmatpush.msra.mxu0 %v5116
    %5205 = vmatpush.msra.mxu0 %v5114
    %5206 = vmatpush.msra.mxu0 %v5112
    %5207 = vmatpush.msra.mxu0 %v5110
    %5208 = vmatpush.msra.mxu0 %v5108
    %5209 = vmatpush.msra.mxu0 %v5106
    %5210 = vmatpush.msra.mxu0 %v5104
    %5211 = vmatpush.msra.mxu0 %v5102
    %5212 = vmatpush.msra.mxu0 %v5100
    %5213 = vmatpush.msra.mxu0 %v5098
    %5214 = vmatmul.f32.gmra.mxu0 %v5061
    %v5215 = vpop.f32.mrf.mxu0
    %v5216 = vadd.f32 %v5193, %v5215
    %5217 = vmatmul.f32.gmra.mxu0 %v5063
    %v5218 = vpop.f32.mrf.mxu0
    %v5219 = vadd.f32 %v5196, %v5218
    %5220 = vdwg.mxu0
    %v5221 = vmul.f32 %v4753, %v4753
    %v5222 = vmul.f32 %v5061, %v5061
    %v5223 = vmul.f32 %v4755, %v4755
    %v5224 = vmul.f32 %v5063, %v5063
    %5225 = vmatpush.msra.mxu0 %v5095
    %5226 = vmatpush.msra.mxu0 %v5093
    %5227 = vmatpush.msra.mxu0 %v5091
    %5228 = vmatpush.msra.mxu0 %v5089
    %5229 = vmatpush.msra.mxu0 %v5087
    %5230 = vmatpush.msra.mxu0 %v5085
    %5231 = vmatpush.msra.mxu0 %v5083
    %5232 = vmatpush.msra.mxu0 %v5081
    %5233 = vmatpush.msra.mxu0 %v5079
    %5234 = vmatpush.msra.mxu0 %v5077
    %5235 = vmatpush.msra.mxu0 %v5075
    %5236 = vmatpush.msra.mxu0 %v5073
    %5237 = vmatpush.msra.mxu0 %v5071
    %5238 = vmatpush.msra.mxu0 %v5069
    %5239 = vmatpush.msra.mxu0 %v5067
    %5240 = vmatpush.msra.mxu0 %v5065
    %5241 = vmatmul.f32.gmra.mxu0 %v5221
    %v5242 = vpop.f32.mrf.mxu0
    %v5243 = vadd.f32 0.0, %v5242
    %5244 = vmatmul.f32.gmra.mxu0 %v5223
    %v5245 = vpop.f32.mrf.mxu0
    %v5246 = vadd.f32 0.0, %v5245
    %5247 = vdwg.mxu0
    %5248 = vmatpush.msra.mxu0 %v5127
    %5249 = vmatpush.msra.mxu0 %v5125
    %5250 = vmatpush.msra.mxu0 %v5123
    %5251 = vmatpush.msra.mxu0 %v5121
    %5252 = vmatpush.msra.mxu0 %v5119
    %5253 = vmatpush.msra.mxu0 %v5117
    %5254 = vmatpush.msra.mxu0 %v5115
    %5255 = vmatpush.msra.mxu0 %v5113
    %5256 = vmatpush.msra.mxu0 %v5111
    %5257 = vmatpush.msra.mxu0 %v5109
    %5258 = vmatpush.msra.mxu0 %v5107
    %5259 = vmatpush.msra.mxu0 %v5105
    %5260 = vmatpush.msra.mxu0 %v5103
    %5261 = vmatpush.msra.mxu0 %v5101
    %5262 = vmatpush.msra.mxu0 %v5099
    %5263 = vmatpush.msra.mxu0 %v5097
    %5264 = vmatmul.f32.gmra.mxu0 %v5222
    %v5265 = vpop.f32.mrf.mxu0
    %v5266 = vadd.f32 %v5243, %v5265
    %5267 = vmatmul.f32.gmra.mxu0 %v5224
    %v5268 = vpop.f32.mrf.mxu0
    %v5269 = vadd.f32 %v5246, %v5268
    %5270 = vdwg.mxu0
    %5271 = vmatpush.msra.mxu0 %v5096
    %5272 = vmatpush.msra.mxu0 %v5094
    %5273 = vmatpush.msra.mxu0 %v5092
    %5274 = vmatpush.msra.mxu0 %v5090
    %5275 = vmatpush.msra.mxu0 %v5088
    %5276 = vmatpush.msra.mxu0 %v5086
    %5277 = vmatpush.msra.mxu0 %v5084
    %5278 = vmatpush.msra.mxu0 %v5082
    %5279 = vmatpush.msra.mxu0 %v5080
    %5280 = vmatpush.msra.mxu0 %v5078
    %5281 = vmatpush.msra.mxu0 %v5076
    %5282 = vmatpush.msra.mxu0 %v5074
    %5283 = vmatpush.msra.mxu0 %v5072
    %5284 = vmatpush.msra.mxu0 %v5070
    %5285 = vmatpush.msra.mxu0 %v5068
    %5286 = vmatpush.msra.mxu0 %v5066
    %5287 = vmatmul.f32.gmra.mxu0 %v5221
    %v5288 = vpop.f32.mrf.mxu0
    %v5289 = vadd.f32 0.0, %v5288
    %5290 = vmatmul.f32.gmra.mxu0 %v5223
    %v5291 = vpop.f32.mrf.mxu0
    %v5292 = vadd.f32 0.0, %v5291
    %5293 = vdwg.mxu0
    %5294 = vmatpush.msra.mxu0 %v5128
    %5295 = vmatpush.msra.mxu0 %v5126
    %5296 = vmatpush.msra.mxu0 %v5124
    %5297 = vmatpush.msra.mxu0 %v5122
    %5298 = vmatpush.msra.mxu0 %v5120
    %5299 = vmatpush.msra.mxu0 %v5118
    %5300 = vmatpush.msra.mxu0 %v5116
    %5301 = vmatpush.msra.mxu0 %v5114
    %5302 = vmatpush.msra.mxu0 %v5112
    %5303 = vmatpush.msra.mxu0 %v5110
    %5304 = vmatpush.msra.mxu0 %v5108
    %5305 = vmatpush.msra.mxu0 %v5106
    %5306 = vmatpush.msra.mxu0 %v5104
    %5307 = vmatpush.msra.mxu0 %v5102
    %5308 = vmatpush.msra.mxu0 %v5100
    %5309 = vmatpush.msra.mxu0 %v5098
    %5310 = vmatmul.f32.gmra.mxu0 %v5222
    %v5311 = vpop.f32.mrf.mxu0
    %v5312 = vadd.f32 %v5289, %v5311
    %5313 = vmatmul.f32.gmra.mxu0 %v5224
    %v5314 = vpop.f32.mrf.mxu0
    %v5315 = vadd.f32 %v5292, %v5314
    %5316 = vdwg.mxu0
    %v5317 = vmul.f32 %v5170, %v5170
    %v5318 = vmul.f32 %v5216, %v5216
    %v5319 = vmul.f32 %v5173, %v5173
    %v5320 = vmul.f32 %v5219, %v5219
    %v5321 = vsub.f32 %v5266, %v5317
    %v5322 = vsub.f32 %v5312, %v5318
    %v5323 = vsub.f32 %v5269, %v5319
    %v5324 = vsub.f32 %v5315, %v5320
    %v5325 = vsub.f32 %v4753, %v5170
    %v5326 = vsub.f32 %v5061, %v5216
    %v5327 = vsub.f32 %v4755, %v5173
    %v5328 = vsub.f32 %v5063, %v5219
    %v5329 = vadd.f32 %v5321, 1e-05
    %v5330 = vadd.f32 %v5322, 1e-05
    %v5331 = vadd.f32 %v5323, 1e-05
    %v5332 = vadd.f32 %v5324, 1e-05
    %v5333 = vrsqrt.pop %v5329
    %v5334 = vmul.f32 %v5333, %v5329
    %v5335 = vmul.f32 %v5334, %v5333
    %v5336 = vmul.f32 0.5, %v5335
    %v5337 = vsub.f32 1.5, %v5336
    %v5338 = vmul.f32 %v5333, %v5337
    %vm5339 = vweird.f32 %v5329
    %vm5340 = vweird.f32 %v5333
    %vm5341 = vmor %vm5339, %vm5340
    %v5342 = vsel %vm5341, %v5333, %v5338
    %v5343 = vrsqrt.pop %v5330
    %v5344 = vmul.f32 %v5343, %v5330
    %v5345 = vmul.f32 %v5344, %v5343
    %v5346 = vmul.f32 0.5, %v5345
    %v5347 = vsub.f32 1.5, %v5346
    %v5348 = vmul.f32 %v5343, %v5347
    %vm5349 = vweird.f32 %v5330
    %vm5350 = vweird.f32 %v5343
    %vm5351 = vmor %vm5349, %vm5350
    %v5352 = vsel %vm5351, %v5343, %v5348
    %v5353 = vrsqrt.pop %v5331
    %v5354 = vmul.f32 %v5353, %v5331
    %v5355 = vmul.f32 %v5354, %v5353
    %v5356 = vmul.f32 0.5, %v5355
    %v5357 = vsub.f32 1.5, %v5356
    %v5358 = vmul.f32 %v5353, %v5357
    %vm5359 = vweird.f32 %v5331
    %vm5360 = vweird.f32 %v5353
    %vm5361 = vmor %vm5359, %vm5360
    %v5362 = vsel %vm5361, %v5353, %v5358
    %v5363 = vrsqrt.pop %v5332
    %v5364 = vmul.f32 %v5363, %v5332
    %v5365 = vmul.f32 %v5364, %v5363
    %v5366 = vmul.f32 0.5, %v5365
    %v5367 = vsub.f32 1.5, %v5366
    %v5368 = vmul.f32 %v5363, %v5367
    %vm5369 = vweird.f32 %v5332
    %vm5370 = vweird.f32 %v5363
    %vm5371 = vmor %vm5369, %vm5370
    %v5372 = vsel %vm5371, %v5363, %v5368
    %v5373 = vmul.f32 %v5325, %v5342
    %v5374 = vmul.f32 %v5326, %v5352
    %v5375 = vmul.f32 %v5327, %v5362
    %v5376 = vmul.f32 %v5328, %v5372
    %v5377 = vld [vmem:[#allocation10] sm:$0x3]
    %v5379 = vperm.slane %v5377, 0
    %v5380 = vperm.slane %v5377, 1
    %v5383 = vmul.f32 %v5373, %v5379
    %v5384 = vmul.f32 %v5374, %v5380
    %v5385 = vmul.f32 %v5375, %v5379
    %v5386 = vmul.f32 %v5376, %v5380
    %v5387 = vld [vmem:[#allocation12] sm:$0x3]
    %v5389 = vperm.slane %v5387, 0
    %v5390 = vperm.slane %v5387, 1
    %v5393 = vadd.f32 %v5383, %v5389
    %v5394 = vadd.f32 %v5384, %v5390
    %v5395 = vadd.f32 %v5385, %v5389
    %v5396 = vadd.f32 %v5386, %v5390
    %v5397 = vmul.f32 %v5393, 0.5
    %v5398 = vmul.f32 %v5394, 0.5
    %v5399 = vmul.f32 %v5395, 0.5
    %v5400 = vmul.f32 %v5396, 0.5
    %v5401 = vmul.f32 %v5393, %v5393
    %v5402 = vmul.f32 %v5394, %v5394
    %v5403 = vmul.f32 %v5395, %v5395
    %v5404 = vmul.f32 %v5396, %v5396
    %v5405 = vmul.f32 %v5401, %v5393
    %v5406 = vmul.f32 %v5402, %v5394
    %v5407 = vmul.f32 %v5403, %v5395
    %v5408 = vmul.f32 %v5404, %v5396
    %v5409 = vmul.f32 %v5405, 0.044715
    %v5410 = vmul.f32 %v5406, 0.044715
    %v5411 = vmul.f32 %v5407, 0.044715
    %v5412 = vmul.f32 %v5408, 0.044715
    %v5413 = vadd.f32 %v5393, %v5409
    %v5414 = vadd.f32 %v5394, %v5410
    %v5415 = vadd.f32 %v5395, %v5411
    %v5416 = vadd.f32 %v5396, %v5412
    %v5417 = vmul.f32 %v5413, 0.7978846
    %v5418 = vmul.f32 %v5414, 0.7978846
    %v5419 = vmul.f32 %v5415, 0.7978846
    %v5420 = vmul.f32 %v5416, 0.7978846
    %v5421 = vtanh.pop %v5417
    %v5422 = vtanh.pop %v5418
    %v5423 = vtanh.pop %v5419
    %v5424 = vtanh.pop %v5420
    %v5425 = vadd.f32 %v5421, 1.0
    %v5426 = vadd.f32 %v5422, 1.0
    %v5427 = vadd.f32 %v5423, 1.0
    %v5428 = vadd.f32 %v5424, 1.0
    %v5429 = vmul.f32 %v5397, %v5425
    %v5430 = vmul.f32 %v5398, %v5426
    %v5431 = vmul.f32 %v5399, %v5427
    %v5432 = vmul.f32 %v5400, %v5428
    %v5433 = vpack.c.bf16 %v5430, %v5429
    %v5434 = vpack.c.bf16 %v5432, %v5431
    %5435 = vst [vmem:[%s8] sm:$0xff] %v5433
    %5436 = vst [vmem:[%s8 + $0x8] sm:$0xff] %v5434
    // Predicated region
    $region62: #{_forward_impl.2} parent=1 // pred_check
      _
    $region63: #{_forward_impl.2} parent=1 // pred_check_branch
      %5438 = sbr.rel (0) target = $region65
    $region64: #{_forward_impl.2} parent=1 // pred_region
      _
    $region65: #{_forward_impl.2} parent=1 // pred_fallthru
      _
    // Predicated region
    $region66: #{_forward_impl.2} parent=1 // pred_check
      _
    $region67: #{_forward_impl.2} parent=1 // pred_check_branch
      %5440 = sbr.rel (0) target = $region69
    $region68: #{_forward_impl.2} parent=1 // pred_region
      _
    $region69: #{_forward_impl.2} parent=1 // pred_fallthru
      _
    %5441 = vsyncpa [#allocation3], 1
    %5442 = vsyncpa [#allocation5], 1
    %5443 = vsyncpa [#allocation8], 1
    %5444 = vsyncpa [#allocation11], 1

</llo_original>
